<compile_context>
chip_gen: v7x
topology: tpu7x:2x2x1
jax: 0.10.0
libtpu: 0.0.40
codegen_flags: <defaults>
</compile_context>

<pallas_src>
import functools
import math

import numpy as np
import jax
import jax.numpy as jnp
from jax import lax
from jax.experimental import pallas as pl
from jax.experimental.pallas import tpu as pltpu

_LN_EPS = 1e-5   # torch.nn.LayerNorm default


# ------------------------- in-kernel math helpers ---------------------------

def _mm(a, b):
    """bf16 x bf16 MXU matmul with f32 accumulation."""
    return jnp.dot(a.astype(jnp.bfloat16), b.astype(jnp.bfloat16),
                   preferred_element_type=jnp.float32)


def _mm_t(a, b):
    """a @ b.T without materialising a transpose (contract last dims)."""
    return lax.dot_general(a.astype(jnp.bfloat16), b.astype(jnp.bfloat16),
                           dimension_numbers=(((1,), (1,)), ((), ())),
                           preferred_element_type=jnp.float32)


def _layernorm(x, g, b, eps=_LN_EPS):
    mu = jnp.mean(x, axis=-1, keepdims=True)
    var = jnp.mean(jnp.square(x - mu), axis=-1, keepdims=True)
    return (x - mu) * lax.rsqrt(var + eps) * g + b


def _softmax(s):
    m = jnp.max(s, axis=-1, keepdims=True)
    e = jnp.exp(s - m)
    return e * pl.reciprocal(jnp.sum(e, axis=-1, keepdims=True), approx=True)


def _sigmoid(z):
    return 1.0 / (1.0 + jnp.exp(-z))


def _enhanced_layer(src, wqkv, bqkv, wo, bo, l1g, l1b, w1, b1, w2, b2,
                    l2g, l2b, gw, gb, nhead):
    """Post-norm nn.TransformerEncoderLayer + sigmoid gate (EnhancedTransformerLayer)."""
    L, D = src.shape
    dh = D // nhead
    qkv = _mm(src, wqkv) + bqkv                        # (L, 3D); Q pre-scaled by 1/sqrt(dh)
    heads = []
    for h in range(nhead):                             # head split done in-kernel
        q = qkv[:, h * dh:(h + 1) * dh]
        k = qkv[:, D + h * dh:D + (h + 1) * dh]
        v = qkv[:, 2 * D + h * dh:2 * D + (h + 1) * dh]
        p = _softmax(_mm_t(q, k))                      # (L, L)
        heads.append(_mm(p, v))                        # (L, dh)
    sa = _mm(jnp.concatenate(heads, axis=-1), wo) + bo
    x1 = _layernorm(src + sa, l1g, l1b)
    ff = _mm(jnp.maximum(_mm(x1, w1) + b1, 0.0), w2) + b2
    x2 = _layernorm(x1 + ff, l2g, l2b)
    return x2 * _sigmoid(_mm(src, gw) + gb)


def _single_head_attn(q_in, kv, wq, bq, wk, bk, wv, bv, wo, bo):
    """torch.nn.MultiheadAttention(num_heads=1); 1/sqrt(D) already folded into wq/bq."""
    q = _mm(q_in, wq) + bq
    k = _mm(kv, wk) + bk
    v = _mm(kv, wv) + bv
    p = _softmax(_mm_t(q, k))
    return _mm(_mm(p, v), wo) + bo


# --------------------------------- kernels ----------------------------------

def _encoder_kernel(*refs, nhead):
    """Per batch element: feature proj + LN + emb add + all layers + final LN."""
    (x_ref, emb_ref,
     pw, pb, pg, pbeta,
     wqkv, bqkv, wo, bo, l1g, l1b, w1, b1, w2, b2, l2g, l2b, gw, gb,
     eg, ebeta,
     out_ref) = refs

    # feature projection + LayerNorm (Dropout = identity in eval)
    h = _mm(x_ref[0], pw[...]) + pb[...]
    h = _layernorm(h, pg[...], pbeta[...])
    # buoy + temporal embedding (pre-combined outside; gathers are XLA glue)
    h = h + emb_ref[0]

    # transformer encoder stack (weights stacked over layers on dim 0)
    for layer in range(wqkv.shape[0]):
        h = _enhanced_layer(h,
                            wqkv[layer], bqkv[layer], wo[layer], bo[layer],
                            l1g[layer], l1b[layer], w1[layer], b1[layer],
                            w2[layer], b2[layer], l2g[layer], l2b[layer],
                            gw[layer], gb[layer], nhead)

    out_ref[0] = _layernorm(h, eg[...], ebeta[...])    # final encoder LayerNorm


def _heads_kernel(*refs):
    """Per batch element: final attention + buoy head + network head + surf head."""
    (enc_ref,
     fa_wq, fa_bq, fa_wk, fa_bk, fa_wv, fa_bv, fa_wo, fa_bo,
     bh_w1, bh_b1, bh_w2, bh_b2, bh_g, bh_beta,
     nh_gt, nh_wq, nh_bq, nh_wk, nh_bk, nh_wv, nh_bv, nh_wo, nh_bo, nh_g, nh_beta,
     sh_tok, sh_wq, sh_bq, sh_wk, sh_bk, sh_wv, sh_bv, sh_wo, sh_bo, sh_g, sh_beta,
     sh_w1, sh_b1, sh_w2, sh_b2,
     buoy_out, net_out, surf_out) = refs

    n_buoys, seq = enc_ref.shape[1], enc_ref.shape[2]

    # --- final attention: one group per buoy, query = last timestep ---
    wq, bq = fa_wq[...], fa_bq[...]
    wk, bk = fa_wk[...], fa_bk[...]
    wv, bv = fa_wv[...], fa_bv[...]
    rows = []
    for n in range(n_buoys):
        kv = enc_ref[0, n]                             # (S, D)
        q = _mm(kv[seq - 1:seq, :], wq) + bq           # (1, D)
        k = _mm(kv, wk) + bk
        v = _mm(kv, wv) + bv
        p = _softmax(_mm_t(q, k))                      # (1, S)
        rows.append(_mm(p, v))                         # (1, D)
    fa = _mm(jnp.concatenate(rows, axis=0), fa_wo[...]) + fa_bo[...]   # (N, D)

    # --- buoy head: Linear -> ReLU -> Linear -> LayerNorm(feature_dim) ---
    y = jnp.maximum(_mm(fa, bh_w1[...]) + bh_b1[...], 0.0)
    y = _mm(y, bh_w2[...]) + bh_b2[...]
    buoy_out[0] = _layernorm(y, bh_g[...], bh_beta[...])

    # --- network head: global token attends over buoys, then LayerNorm ---
    o = _single_head_attn(nh_gt[...], fa,
                          nh_wq[...], nh_bq[...], nh_wk[...], nh_bk[...],
                          nh_wv[...], nh_bv[...], nh_wo[...], nh_bo[...])
    net_out[0] = _layernorm(o, nh_g[...], nh_beta[...])

    # --- surf head: spot tokens attend over buoys -> LN -> predictor ---
    att = _single_head_attn(sh_tok[...], fa,
                            sh_wq[...], sh_bq[...], sh_wk[...], sh_bk[...],
                            sh_wv[...], sh_bv[...], sh_wo[...], sh_bo[...])
    att = _layernorm(att, sh_g[...], sh_beta[...])
    y = jnp.maximum(_mm(att, sh_w1[...]) + sh_b1[...], 0.0)
    surf_out[0] = _mm(y, sh_w2[...]) + sh_b2[...]


# ---------------------------- BlockSpec helpers ------------------------------

def _bspec(shape):
    """Per-batch block: leading (batch) axis indexed by the grid, rest full."""
    nd = len(shape)
    return pl.BlockSpec((1,) + tuple(shape[1:]),
                        lambda b, _nd=nd: (b,) + (0,) * (_nd - 1))


def _wspec(arr):
    """Whole-array block with a constant index map (weights stay VMEM-resident)."""
    nd = arr.ndim
    return pl.BlockSpec(arr.shape, lambda b, _nd=nd: (0,) * _nd)


# ------------------------------- forward pass --------------------------------

def wave_transformer_forward(prep, x, hours, days, cfg):
    B, S, N, F = x.shape
    D = cfg["d_model"]
    L = S * N
    n_spots = cfg["num_surf_spots"]

    # temporal + buoy embeddings (gathers = XLA glue; the add happens in-kernel)
    temporal = (prep["pe"][:S][None, :, :]
                + prep["hour_emb"][hours]
                + prep["day_emb"][days])                                # (B, S, D)
    emb = (prep["buoy_emb"][None, None, :, :]
           + temporal[:, :, None, :]).reshape(B, L, D)                  # (B, L, D)
    x3 = x.reshape(B, L, F)

    # --- kernel 1: fused feature projection + embeddings + transformer stack ---
    enc_w = prep["enc_weights"]
    encoded = pl.pallas_call(
        functools.partial(_encoder_kernel, nhead=cfg["nhead"]),
        grid=(B,),
        in_specs=[_bspec(x3.shape), _bspec(emb.shape)] + [_wspec(a) for a in enc_w],
        out_specs=_bspec((B, L, D)),
        out_shape=jax.ShapeDtypeStruct((B, L, D), jnp.float32),
        compiler_params=pltpu.CompilerParams(dimension_semantics=("parallel",)),
    )(x3, emb, *enc_w)

    # tiny layout permute so the heads kernel sees contiguous (buoy, time) groups
    enc_perm = encoded.reshape(B, S, N, D).transpose(0, 2, 1, 3)        # (B, N, S, D)

    # --- kernel 2: fused final attention + buoy / network / surf heads ---
    head_w = prep["head_weights"]
    buoy_states, network_state, surf_conditions = pl.pallas_call(
        _heads_kernel,
        grid=(B,),
        in_specs=[_bspec(enc_perm.shape)] + [_wspec(a) for a in head_w],
        out_specs=(_bspec((B, N, F)), _bspec((B, 1, D)), _bspec((B, n_spots, 4))),
        out_shape=(jax.ShapeDtypeStruct((B, N, F), jnp.float32),
                   jax.ShapeDtypeStruct((B, 1, D), jnp.float32),
                   jax.ShapeDtypeStruct((B, n_spots, 4), jnp.float32)),
        compiler_params=pltpu.CompilerParams(dimension_semantics=("parallel",)),
    )(enc_perm, *head_w)

    return {"buoy_states": buoy_states,
            "network_state": network_state,
            "surf_conditions": surf_conditions}


# ----------------------------- parameter init --------------------------------

def _dense(key, fan_in, fan_out, scale=0.05):
    kw, kb = jax.random.split(key)
    w = jax.random.normal(kw, (fan_in, fan_out), jnp.float32) * scale
    b = jax.random.normal(kb, (fan_out,), jnp.float32) * scale
    return w, b


def _ln_params(d):
    return jnp.ones((d,), jnp.float32), jnp.zeros((d,), jnp.float32)


def _mha_params(key, d):
    ks = jax.random.split(key, 4)
    wq, bq = _dense(ks[0], d, d)
    wk, bk = _dense(ks[1], d, d)
    wv, bv = _dense(ks[2], d, d)
    wo, bo = _dense(ks[3], d, d)
    return dict(wq=wq, bq=bq, wk=wk, bk=bk, wv=wv, bv=bv, wo=wo, bo=bo)


def init_params(key, cfg):
    D, F, N = cfg["d_model"], cfg["feature_dim"], cfg["num_buoys"]
    keys = jax.random.split(key, 10)
    p = {}
    p["proj_w"], p["proj_b"] = _dense(keys[0], F, D)
    p["proj_ln_g"], p["proj_ln_b"] = _ln_params(D)
    p["buoy_emb"] = jax.random.normal(keys[1], (N, D), jnp.float32) * 0.05

    # sinusoidal positional encoding (deterministic, matches TemporalEmbedding)
    max_len = cfg["max_sequence_length"]
    pos = np.arange(max_len, dtype=np.float32)[:, None]
    div = np.exp(np.arange(0, D, 2, dtype=np.float32) * (-np.log(10000.0) / D))
    pe = np.zeros((max_len, D), dtype=np.float32)
    pe[:, 0::2] = np.sin(pos * div)
    pe[:, 1::2] = np.cos(pos * div)
    p["pe"] = jnp.asarray(pe)
    p["hour_emb"] = jax.random.normal(keys[2], (24, D), jnp.float32) * 0.05
    p["day_emb"] = jax.random.normal(keys[3], (7, D), jnp.float32) * 0.05

    layers = []
    for lk in jax.random.split(keys[4], cfg["num_encoder_layers"]):
        sk = jax.random.split(lk, 4)
        lp = {"attn": _mha_params(sk[0], D)}
        lp["ff_w1"], lp["ff_b1"] = _dense(sk[1], D, 4 * D)
        lp["ff_w2"], lp["ff_b2"] = _dense(sk[2], 4 * D, D)
        lp["ln1_g"], lp["ln1_b"] = _ln_params(D)
        lp["ln2_g"], lp["ln2_b"] = _ln_params(D)
        lp["gate_w"], lp["gate_b"] = _dense(sk[3], D, D)
        layers.append(lp)
    p["layers"] = layers
    p["enc_ln_g"], p["enc_ln_b"] = _ln_params(D)

    p["final_attn"] = _mha_params(keys[5], D)

    bk = jax.random.split(keys[6], 2)
    bh = {}
    bh["w1"], bh["b1"] = _dense(bk[0], D, D)
    bh["w2"], bh["b2"] = _dense(bk[1], D, F)
    bh["ln_g"], bh["ln_b"] = _ln_params(F)
    p["buoy_head"] = bh

    nk = jax.random.split(keys[7], 2)
    nh = {"attn": _mha_params(nk[0], D),
          "global_token": jax.random.normal(nk[1], (1, 1, D), jnp.float32) * 0.05}
    nh["ln_g"], nh["ln_b"] = _ln_params(D)
    p["network_head"] = nh

    sk = jax.random.split(keys[8], 4)
    sh = {"spot_tokens": jax.random.normal(sk[0], (cfg["num_surf_spots"], 1, D),
                                           jnp.float32) * 0.05,
          "attn": _mha_params(sk[1], D)}
    sh["w1"], sh["b1"] = _dense(sk[2], D, D)
    sh["w2"], sh["b2"] = _dense(sk[3], D, 4)
    sh["ln_g"], sh["ln_b"] = _ln_params(D)
    p["surf_head"] = sh
    return p


def prepare_params(p, cfg):
    """Fuse / restack / pre-scale the torch-layout parameters for the kernels."""
    D, H = cfg["d_model"], cfg["nhead"]
    dh_scale = 1.0 / math.sqrt(D // H)      # encoder MHA softmax scale, folded into Q
    d_scale = 1.0 / math.sqrt(D)            # single-head attentions (Dh = D)

    bf16 = lambda w: w.astype(jnp.bfloat16)
    row = lambda v: v.reshape(1, -1).astype(jnp.float32)

    # --- encoder layers: fuse QKV, fold scale into Q, stack across layers ---
    Wqkv, Bqkv, Wo, Bo = [], [], [], []
    L1g, L1b, W1, B1, W2, B2, L2g, L2b, Gw, Gb = ([] for _ in range(10))
    for lp in p["layers"]:
        a = lp["attn"]
        Wqkv.append(jnp.concatenate([a["wq"] * dh_scale, a["wk"], a["wv"]], axis=1))
        Bqkv.append(jnp.concatenate([a["bq"] * dh_scale, a["bk"], a["bv"]]).reshape(1, -1))
        Wo.append(a["wo"]); Bo.append(row(a["bo"]))
        L1g.append(row(lp["ln1_g"])); L1b.append(row(lp["ln1_b"]))
        W1.append(lp["ff_w1"]); B1.append(row(lp["ff_b1"]))
        W2.append(lp["ff_w2"]); B2.append(row(lp["ff_b2"]))
        L2g.append(row(lp["ln2_g"])); L2b.append(row(lp["ln2_b"]))
        Gw.append(lp["gate_w"]); Gb.append(row(lp["gate_b"]))

    enc_weights = [
        bf16(p["proj_w"]), row(p["proj_b"]), row(p["proj_ln_g"]), row(p["proj_ln_b"]),
        bf16(jnp.stack(Wqkv)), jnp.stack(Bqkv), bf16(jnp.stack(Wo)), jnp.stack(Bo),
        jnp.stack(L1g), jnp.stack(L1b),
        bf16(jnp.stack(W1)), jnp.stack(B1), bf16(jnp.stack(W2)), jnp.stack(B2),
        jnp.stack(L2g), jnp.stack(L2b),
        bf16(jnp.stack(Gw)), jnp.stack(Gb),
        row(p["enc_ln_g"]), row(p["enc_ln_b"]),
    ]

    def attn(a, scale):
        return [bf16(a["wq"] * scale), row(a["bq"] * scale),
                bf16(a["wk"]), row(a["bk"]),
                bf16(a["wv"]), row(a["bv"]),
                bf16(a["wo"]), row(a["bo"])]

    bh, nh, sh = p["buoy_head"], p["network_head"], p["surf_head"]
    head_weights = (
        attn(p["final_attn"], d_scale)
        + [bf16(bh["w1"]), row(bh["b1"]), bf16(bh["w2"]), row(bh["b2"]),
           row(bh["ln_g"]), row(bh["ln_b"])]
        + [nh["global_token"].reshape(1, D)]
        + attn(nh["attn"], d_scale)
        + [row(nh["ln_g"]), row(nh["ln_b"])]
        + [sh["spot_tokens"].reshape(-1, D)]
        + attn(sh["attn"], d_scale)
        + [row(sh["ln_g"]), row(sh["ln_b"])]
        + [bf16(sh["w1"]), row(sh["b1"]), bf16(sh["w2"]), row(sh["b2"])]
    )

    return {"pe": p["pe"], "hour_emb": p["hour_emb"], "day_emb": p["day_emb"],
            "buoy_emb": p["buoy_emb"],
            "enc_weights": enc_weights, "head_weights": head_weights}


# ---------------------------------- main -------------------------------------

if __name__ == "__main__":
    cfg = dict(num_buoys=4, feature_dim=8, d_model=32, nhead=4,
               num_encoder_layers=2, num_surf_spots=3, max_sequence_length=16)
    B, S = 2, 8

    key = jax.random.PRNGKey(0)
    kp, kx, kh, kd = jax.random.split(key, 4)
    params = init_params(kp, cfg)
    prep = prepare_params(params, cfg)

    x = jax.random.normal(kx, (B, S, cfg["num_buoys"], cfg["feature_dim"]), jnp.float32)
    hours = jax.random.randint(kh, (B, S), 0, 24)   # ts.hour
    days = jax.random.randint(kd, (B, S), 0, 7)     # ts.weekday()

    fwd = jax.jit(functools.partial(wave_transformer_forward, cfg=cfg))
    out = fwd(prep, x, hours, days)
    out = jax.tree_util.tree_map(jax.block_until_ready, out)

    assert out["buoy_states"].shape == (B, cfg["num_buoys"], cfg["feature_dim"])
    assert out["network_state"].shape == (B, 1, cfg["d_model"])
    assert out["surf_conditions"].shape == (B, cfg["num_surf_spots"], 4)
    print("KERNEL_OK")
</pallas_src>

<mosaic_0001>
module attributes {stable_mosaic.version = 11 : i64} {
  func.func @_encoder_kernel(%arg0: i32, %arg1: memref<1x32x8xf32, #tpu.memory_space<vmem>>, %arg2: memref<1x32x32xf32, #tpu.memory_space<vmem>>, %arg3: memref<8x32xbf16, #tpu.memory_space<vmem>>, %arg4: memref<1x32xf32, #tpu.memory_space<vmem>>, %arg5: memref<1x32xf32, #tpu.memory_space<vmem>>, %arg6: memref<1x32xf32, #tpu.memory_space<vmem>>, %arg7: memref<2x32x96xbf16, #tpu.memory_space<vmem>>, %arg8: memref<2x1x96xf32, #tpu.memory_space<vmem>>, %arg9: memref<2x32x32xbf16, #tpu.memory_space<vmem>>, %arg10: memref<2x1x32xf32, #tpu.memory_space<vmem>>, %arg11: memref<2x1x32xf32, #tpu.memory_space<vmem>>, %arg12: memref<2x1x32xf32, #tpu.memory_space<vmem>>, %arg13: memref<2x32x128xbf16, #tpu.memory_space<vmem>>, %arg14: memref<2x1x128xf32, #tpu.memory_space<vmem>>, %arg15: memref<2x128x32xbf16, #tpu.memory_space<vmem>>, %arg16: memref<2x1x32xf32, #tpu.memory_space<vmem>>, %arg17: memref<2x1x32xf32, #tpu.memory_space<vmem>>, %arg18: memref<2x1x32xf32, #tpu.memory_space<vmem>>, %arg19: memref<2x32x32xbf16, #tpu.memory_space<vmem>>, %arg20: memref<2x1x32xf32, #tpu.memory_space<vmem>>, %arg21: memref<1x32xf32, #tpu.memory_space<vmem>>, %arg22: memref<1x32xf32, #tpu.memory_space<vmem>>, %arg23: memref<1x32x32xf32, #tpu.memory_space<vmem>>) attributes {dimension_semantics = [#tpu.dimension_semantics<parallel>], iteration_bounds = array<i64: 2>, scalar_prefetch = 0 : i64, scratch_operands = 0 : i64, tpu.core_type = #tpu.core_type<tc>, window_params = [{transform_indices = @transform_0, window_bounds = array<i64: 1, 32, 8>}, {transform_indices = @transform_1, window_bounds = array<i64: 1, 32, 32>}, {pipeline_mode = #tpu.pipeline_mode<synchronous>, transform_indices = @transform_2, window_bounds = array<i64: 8, 32>}, {pipeline_mode = #tpu.pipeline_mode<synchronous>, transform_indices = @transform_3, window_bounds = array<i64: 1, 32>}, {pipeline_mode = #tpu.pipeline_mode<synchronous>, transform_indices = @transform_4, window_bounds = array<i64: 1, 32>}, {pipeline_mode = #tpu.pipeline_mode<synchronous>, transform_indices = @transform_5, window_bounds = array<i64: 1, 32>}, {pipeline_mode = #tpu.pipeline_mode<synchronous>, transform_indices = @transform_6, window_bounds = array<i64: 2, 32, 96>}, {pipeline_mode = #tpu.pipeline_mode<synchronous>, transform_indices = @transform_7, window_bounds = array<i64: 2, 1, 96>}, {pipeline_mode = #tpu.pipeline_mode<synchronous>, transform_indices = @transform_8, window_bounds = array<i64: 2, 32, 32>}, {pipeline_mode = #tpu.pipeline_mode<synchronous>, transform_indices = @transform_9, window_bounds = array<i64: 2, 1, 32>}, {pipeline_mode = #tpu.pipeline_mode<synchronous>, transform_indices = @transform_10, window_bounds = array<i64: 2, 1, 32>}, {pipeline_mode = #tpu.pipeline_mode<synchronous>, transform_indices = @transform_11, window_bounds = array<i64: 2, 1, 32>}, {pipeline_mode = #tpu.pipeline_mode<synchronous>, transform_indices = @transform_12, window_bounds = array<i64: 2, 32, 128>}, {pipeline_mode = #tpu.pipeline_mode<synchronous>, transform_indices = @transform_13, window_bounds = array<i64: 2, 1, 128>}, {pipeline_mode = #tpu.pipeline_mode<synchronous>, transform_indices = @transform_14, window_bounds = array<i64: 2, 128, 32>}, {pipeline_mode = #tpu.pipeline_mode<synchronous>, transform_indices = @transform_15, window_bounds = array<i64: 2, 1, 32>}, {pipeline_mode = #tpu.pipeline_mode<synchronous>, transform_indices = @transform_16, window_bounds = array<i64: 2, 1, 32>}, {pipeline_mode = #tpu.pipeline_mode<synchronous>, transform_indices = @transform_17, window_bounds = array<i64: 2, 1, 32>}, {pipeline_mode = #tpu.pipeline_mode<synchronous>, transform_indices = @transform_18, window_bounds = array<i64: 2, 32, 32>}, {pipeline_mode = #tpu.pipeline_mode<synchronous>, transform_indices = @transform_19, window_bounds = array<i64: 2, 1, 32>}, {pipeline_mode = #tpu.pipeline_mode<synchronous>, transform_indices = @transform_20, window_bounds = array<i64: 1, 32>}, {pipeline_mode = #tpu.pipeline_mode<synchronous>, transform_indices = @transform_21, window_bounds = array<i64: 1, 32>}, {transform_indices = @transform_22, window_bounds = array<i64: 1, 32, 32>}]} {
    %c0 = arith.constant 0 : index
    %c0_0 = arith.constant 0 : index
    %c0_1 = arith.constant 0 : index
    %0 = vector.load %arg1[%c0, %c0_0, %c0_1] : memref<1x32x8xf32, #tpu.memory_space<vmem>>, vector<1x32x8xf32>
    %1 = vector.shape_cast %0 : vector<1x32x8xf32> to vector<32x8xf32>
    %c0_2 = arith.constant 0 : index
    %c0_3 = arith.constant 0 : index
    %2 = vector.load %arg3[%c0_2, %c0_3] : memref<8x32xbf16, #tpu.memory_space<vmem>>, vector<8x32xbf16>
    %3 = arith.truncf %1 : vector<32x8xf32> to vector<32x8xbf16>
    %cst = arith.constant dense<0.000000e+00> : vector<32x32xf32>
    %4 = tpu.matmul %3, %2, %cst {dimension_numbers = #tpu.dot_dimension_numbers<[1], [0], [0], [1], [0, 0, 1, 1], [], []>} : vector<32x8xbf16>, vector<8x32xbf16>, vector<32x32xf32> -> vector<32x32xf32>
    %c0_4 = arith.constant 0 : index
    %c0_5 = arith.constant 0 : index
    %5 = vector.load %arg4[%c0_4, %c0_5] : memref<1x32xf32, #tpu.memory_space<vmem>>, vector<1x32xf32>
    %6 = vector.broadcast %5 : vector<1x32xf32> to vector<32x32xf32>
    %7 = arith.addf %4, %6 : vector<32x32xf32>
    %c0_6 = arith.constant 0 : index
    %c0_7 = arith.constant 0 : index
    %8 = vector.load %arg5[%c0_6, %c0_7] : memref<1x32xf32, #tpu.memory_space<vmem>>, vector<1x32xf32>
    %c0_8 = arith.constant 0 : index
    %c0_9 = arith.constant 0 : index
    %9 = vector.load %arg6[%c0_8, %c0_9] : memref<1x32xf32, #tpu.memory_space<vmem>>, vector<1x32xf32>
    %cst_10 = arith.constant dense<0.000000e+00> : vector<32xf32>
    %10 = vector.multi_reduction <add>, %7, %cst_10 [1] : vector<32x32xf32> to vector<32xf32>
    %11 = vector.shape_cast %10 : vector<32xf32> to vector<32x1xf32>
    %cst_11 = arith.constant 3.200000e+01 : f32
    %12 = vector.broadcast %cst_11 : f32 to vector<32x1xf32>
    %13 = arith.divf %11, %12 : vector<32x1xf32>
    %14 = vector.broadcast %13 : vector<32x1xf32> to vector<32x32xf32>
    %15 = arith.subf %7, %14 : vector<32x32xf32>
    %16 = arith.mulf %15, %15 : vector<32x32xf32>
    %cst_12 = arith.constant dense<0.000000e+00> : vector<32xf32>
    %17 = vector.multi_reduction <add>, %16, %cst_12 [1] : vector<32x32xf32> to vector<32xf32>
    %18 = vector.shape_cast %17 : vector<32xf32> to vector<32x1xf32>
    %cst_13 = arith.constant 3.200000e+01 : f32
    %19 = vector.broadcast %cst_13 : f32 to vector<32x1xf32>
    %20 = arith.divf %18, %19 : vector<32x1xf32>
    %21 = vector.broadcast %13 : vector<32x1xf32> to vector<32x32xf32>
    %22 = arith.subf %7, %21 : vector<32x32xf32>
    %cst_14 = arith.constant 9.99999974E-6 : f32
    %23 = vector.broadcast %cst_14 : f32 to vector<32x1xf32>
    %24 = arith.addf %20, %23 : vector<32x1xf32>
    %25 = math.rsqrt %24 : vector<32x1xf32>
    %26 = vector.broadcast %25 : vector<32x1xf32> to vector<32x32xf32>
    %27 = arith.mulf %22, %26 : vector<32x32xf32>
    %28 = vector.broadcast %8 : vector<1x32xf32> to vector<32x32xf32>
    %29 = arith.mulf %27, %28 : vector<32x32xf32>
    %30 = vector.broadcast %9 : vector<1x32xf32> to vector<32x32xf32>
    %31 = arith.addf %29, %30 : vector<32x32xf32>
    %c0_15 = arith.constant 0 : index
    %c0_16 = arith.constant 0 : index
    %c0_17 = arith.constant 0 : index
    %32 = vector.load %arg2[%c0_15, %c0_16, %c0_17] : memref<1x32x32xf32, #tpu.memory_space<vmem>>, vector<1x32x32xf32>
    %33 = vector.shape_cast %32 : vector<1x32x32xf32> to vector<32x32xf32>
    %34 = arith.addf %31, %33 : vector<32x32xf32>
    %c0_18 = arith.constant 0 : index
    %c0_19 = arith.constant 0 : index
    %c0_20 = arith.constant 0 : index
    %35 = vector.load %arg7[%c0_18, %c0_19, %c0_20] : memref<2x32x96xbf16, #tpu.memory_space<vmem>>, vector<1x32x96xbf16>
    %36 = vector.shape_cast %35 : vector<1x32x96xbf16> to vector<32x96xbf16>
    %c0_21 = arith.constant 0 : index
    %c0_22 = arith.constant 0 : index
    %c0_23 = arith.constant 0 : index
    %37 = vector.load %arg8[%c0_21, %c0_22, %c0_23] : memref<2x1x96xf32, #tpu.memory_space<vmem>>, vector<1x1x96xf32>
    %38 = vector.shape_cast %37 : vector<1x1x96xf32> to vector<1x96xf32>
    %c0_24 = arith.constant 0 : index
    %c0_25 = arith.constant 0 : index
    %c0_26 = arith.constant 0 : index
    %39 = vector.load %arg9[%c0_24, %c0_25, %c0_26] : memref<2x32x32xbf16, #tpu.memory_space<vmem>>, vector<1x32x32xbf16>
    %40 = vector.shape_cast %39 : vector<1x32x32xbf16> to vector<32x32xbf16>
    %c0_27 = arith.constant 0 : index
    %c0_28 = arith.constant 0 : index
    %c0_29 = arith.constant 0 : index
    %41 = vector.load %arg10[%c0_27, %c0_28, %c0_29] : memref<2x1x32xf32, #tpu.memory_space<vmem>>, vector<1x1x32xf32>
    %42 = vector.shape_cast %41 : vector<1x1x32xf32> to vector<1x32xf32>
    %c0_30 = arith.constant 0 : index
    %c0_31 = arith.constant 0 : index
    %c0_32 = arith.constant 0 : index
    %43 = vector.load %arg11[%c0_30, %c0_31, %c0_32] : memref<2x1x32xf32, #tpu.memory_space<vmem>>, vector<1x1x32xf32>
    %44 = vector.shape_cast %43 : vector<1x1x32xf32> to vector<1x32xf32>
    %c0_33 = arith.constant 0 : index
    %c0_34 = arith.constant 0 : index
    %c0_35 = arith.constant 0 : index
    %45 = vector.load %arg12[%c0_33, %c0_34, %c0_35] : memref<2x1x32xf32, #tpu.memory_space<vmem>>, vector<1x1x32xf32>
    %46 = vector.shape_cast %45 : vector<1x1x32xf32> to vector<1x32xf32>
    %c0_36 = arith.constant 0 : index
    %c0_37 = arith.constant 0 : index
    %c0_38 = arith.constant 0 : index
    %47 = vector.load %arg13[%c0_36, %c0_37, %c0_38] : memref<2x32x128xbf16, #tpu.memory_space<vmem>>, vector<1x32x128xbf16>
    %48 = vector.shape_cast %47 : vector<1x32x128xbf16> to vector<32x128xbf16>
    %c0_39 = arith.constant 0 : index
    %c0_40 = arith.constant 0 : index
    %c0_41 = arith.constant 0 : index
    %49 = vector.load %arg14[%c0_39, %c0_40, %c0_41] : memref<2x1x128xf32, #tpu.memory_space<vmem>>, vector<1x1x128xf32>
    %50 = vector.shape_cast %49 : vector<1x1x128xf32> to vector<1x128xf32>
    %c0_42 = arith.constant 0 : index
    %c0_43 = arith.constant 0 : index
    %c0_44 = arith.constant 0 : index
    %51 = vector.load %arg15[%c0_42, %c0_43, %c0_44] : memref<2x128x32xbf16, #tpu.memory_space<vmem>>, vector<1x128x32xbf16>
    %52 = vector.shape_cast %51 : vector<1x128x32xbf16> to vector<128x32xbf16>
    %c0_45 = arith.constant 0 : index
    %c0_46 = arith.constant 0 : index
    %c0_47 = arith.constant 0 : index
    %53 = vector.load %arg16[%c0_45, %c0_46, %c0_47] : memref<2x1x32xf32, #tpu.memory_space<vmem>>, vector<1x1x32xf32>
    %54 = vector.shape_cast %53 : vector<1x1x32xf32> to vector<1x32xf32>
    %c0_48 = arith.constant 0 : index
    %c0_49 = arith.constant 0 : index
    %c0_50 = arith.constant 0 : index
    %55 = vector.load %arg17[%c0_48, %c0_49, %c0_50] : memref<2x1x32xf32, #tpu.memory_space<vmem>>, vector<1x1x32xf32>
    %56 = vector.shape_cast %55 : vector<1x1x32xf32> to vector<1x32xf32>
    %c0_51 = arith.constant 0 : index
    %c0_52 = arith.constant 0 : index
    %c0_53 = arith.constant 0 : index
    %57 = vector.load %arg18[%c0_51, %c0_52, %c0_53] : memref<2x1x32xf32, #tpu.memory_space<vmem>>, vector<1x1x32xf32>
    %58 = vector.shape_cast %57 : vector<1x1x32xf32> to vector<1x32xf32>
    %c0_54 = arith.constant 0 : index
    %c0_55 = arith.constant 0 : index
    %c0_56 = arith.constant 0 : index
    %59 = vector.load %arg19[%c0_54, %c0_55, %c0_56] : memref<2x32x32xbf16, #tpu.memory_space<vmem>>, vector<1x32x32xbf16>
    %60 = vector.shape_cast %59 : vector<1x32x32xbf16> to vector<32x32xbf16>
    %c0_57 = arith.constant 0 : index
    %c0_58 = arith.constant 0 : index
    %c0_59 = arith.constant 0 : index
    %61 = vector.load %arg20[%c0_57, %c0_58, %c0_59] : memref<2x1x32xf32, #tpu.memory_space<vmem>>, vector<1x1x32xf32>
    %62 = vector.shape_cast %61 : vector<1x1x32xf32> to vector<1x32xf32>
    %63 = arith.truncf %34 : vector<32x32xf32> to vector<32x32xbf16>
    %cst_60 = arith.constant dense<0.000000e+00> : vector<32x96xf32>
    %64 = tpu.matmul %63, %36, %cst_60 {dimension_numbers = #tpu.dot_dimension_numbers<[1], [0], [0], [1], [0, 0, 1, 1], [], []>} : vector<32x32xbf16>, vector<32x96xbf16>, vector<32x96xf32> -> vector<32x96xf32>
    %65 = vector.broadcast %38 : vector<1x96xf32> to vector<32x96xf32>
    %66 = arith.addf %64, %65 : vector<32x96xf32>
    %67 = vector.extract_strided_slice %66 {offsets = [0, 0], sizes = [32, 8], strides = [1, 1]} : vector<32x96xf32> to vector<32x8xf32>
    %68 = vector.extract_strided_slice %66 {offsets = [0, 32], sizes = [32, 8], strides = [1, 1]} : vector<32x96xf32> to vector<32x8xf32>
    %69 = vector.extract_strided_slice %66 {offsets = [0, 64], sizes = [32, 8], strides = [1, 1]} : vector<32x96xf32> to vector<32x8xf32>
    %70 = arith.truncf %67 : vector<32x8xf32> to vector<32x8xbf16>
    %71 = arith.truncf %68 : vector<32x8xf32> to vector<32x8xbf16>
    %cst_61 = arith.constant dense<0.000000e+00> : vector<32x32xf32>
    %72 = tpu.matmul %70, %71, %cst_61 {dimension_numbers = #tpu.dot_dimension_numbers<[1], [1], [0], [0], [0, 0, 1, 0], [], []>} : vector<32x8xbf16>, vector<32x8xbf16>, vector<32x32xf32> -> vector<32x32xf32>
    %cst_62 = arith.constant dense<0xFF800000> : vector<32xf32>
    %73 = vector.multi_reduction <maximumf>, %72, %cst_62 [1] : vector<32x32xf32> to vector<32xf32>
    %74 = vector.shape_cast %73 : vector<32xf32> to vector<32x1xf32>
    %75 = vector.broadcast %74 : vector<32x1xf32> to vector<32x32xf32>
    %76 = arith.subf %72, %75 : vector<32x32xf32>
    %77 = math.exp %76 : vector<32x32xf32>
    %cst_63 = arith.constant dense<0.000000e+00> : vector<32xf32>
    %78 = vector.multi_reduction <add>, %77, %cst_63 [1] : vector<32x32xf32> to vector<32xf32>
    %79 = vector.shape_cast %78 : vector<32xf32> to vector<32x1xf32>
    %80 = tpu.reciprocal %79 {approx = true} : vector<32x1xf32> -> vector<32x1xf32>
    %81 = vector.broadcast %80 : vector<32x1xf32> to vector<32x32xf32>
    %82 = arith.mulf %77, %81 : vector<32x32xf32>
    %83 = arith.truncf %82 : vector<32x32xf32> to vector<32x32xbf16>
    %84 = arith.truncf %69 : vector<32x8xf32> to vector<32x8xbf16>
    %cst_64 = arith.constant dense<0.000000e+00> : vector<32x8xf32>
    %85 = tpu.matmul %83, %84, %cst_64 {dimension_numbers = #tpu.dot_dimension_numbers<[1], [0], [0], [1], [0, 0, 1, 1], [], []>} : vector<32x32xbf16>, vector<32x8xbf16>, vector<32x8xf32> -> vector<32x8xf32>
    %86 = vector.extract_strided_slice %66 {offsets = [0, 8], sizes = [32, 8], strides = [1, 1]} : vector<32x96xf32> to vector<32x8xf32>
    %87 = vector.extract_strided_slice %66 {offsets = [0, 40], sizes = [32, 8], strides = [1, 1]} : vector<32x96xf32> to vector<32x8xf32>
    %88 = vector.extract_strided_slice %66 {offsets = [0, 72], sizes = [32, 8], strides = [1, 1]} : vector<32x96xf32> to vector<32x8xf32>
    %89 = arith.truncf %86 : vector<32x8xf32> to vector<32x8xbf16>
    %90 = arith.truncf %87 : vector<32x8xf32> to vector<32x8xbf16>
    %cst_65 = arith.constant dense<0.000000e+00> : vector<32x32xf32>
    %91 = tpu.matmul %89, %90, %cst_65 {dimension_numbers = #tpu.dot_dimension_numbers<[1], [1], [0], [0], [0, 0, 1, 0], [], []>} : vector<32x8xbf16>, vector<32x8xbf16>, vector<32x32xf32> -> vector<32x32xf32>
    %cst_66 = arith.constant dense<0xFF800000> : vector<32xf32>
    %92 = vector.multi_reduction <maximumf>, %91, %cst_66 [1] : vector<32x32xf32> to vector<32xf32>
    %93 = vector.shape_cast %92 : vector<32xf32> to vector<32x1xf32>
    %94 = vector.broadcast %93 : vector<32x1xf32> to vector<32x32xf32>
    %95 = arith.subf %91, %94 : vector<32x32xf32>
    %96 = math.exp %95 : vector<32x32xf32>
    %cst_67 = arith.constant dense<0.000000e+00> : vector<32xf32>
    %97 = vector.multi_reduction <add>, %96, %cst_67 [1] : vector<32x32xf32> to vector<32xf32>
    %98 = vector.shape_cast %97 : vector<32xf32> to vector<32x1xf32>
    %99 = tpu.reciprocal %98 {approx = true} : vector<32x1xf32> -> vector<32x1xf32>
    %100 = vector.broadcast %99 : vector<32x1xf32> to vector<32x32xf32>
    %101 = arith.mulf %96, %100 : vector<32x32xf32>
    %102 = arith.truncf %101 : vector<32x32xf32> to vector<32x32xbf16>
    %103 = arith.truncf %88 : vector<32x8xf32> to vector<32x8xbf16>
    %cst_68 = arith.constant dense<0.000000e+00> : vector<32x8xf32>
    %104 = tpu.matmul %102, %103, %cst_68 {dimension_numbers = #tpu.dot_dimension_numbers<[1], [0], [0], [1], [0, 0, 1, 1], [], []>} : vector<32x32xbf16>, vector<32x8xbf16>, vector<32x8xf32> -> vector<32x8xf32>
    %105 = vector.extract_strided_slice %66 {offsets = [0, 16], sizes = [32, 8], strides = [1, 1]} : vector<32x96xf32> to vector<32x8xf32>
    %106 = vector.extract_strided_slice %66 {offsets = [0, 48], sizes = [32, 8], strides = [1, 1]} : vector<32x96xf32> to vector<32x8xf32>
    %107 = vector.extract_strided_slice %66 {offsets = [0, 80], sizes = [32, 8], strides = [1, 1]} : vector<32x96xf32> to vector<32x8xf32>
    %108 = arith.truncf %105 : vector<32x8xf32> to vector<32x8xbf16>
    %109 = arith.truncf %106 : vector<32x8xf32> to vector<32x8xbf16>
    %cst_69 = arith.constant dense<0.000000e+00> : vector<32x32xf32>
    %110 = tpu.matmul %108, %109, %cst_69 {dimension_numbers = #tpu.dot_dimension_numbers<[1], [1], [0], [0], [0, 0, 1, 0], [], []>} : vector<32x8xbf16>, vector<32x8xbf16>, vector<32x32xf32> -> vector<32x32xf32>
    %cst_70 = arith.constant dense<0xFF800000> : vector<32xf32>
    %111 = vector.multi_reduction <maximumf>, %110, %cst_70 [1] : vector<32x32xf32> to vector<32xf32>
    %112 = vector.shape_cast %111 : vector<32xf32> to vector<32x1xf32>
    %113 = vector.broadcast %112 : vector<32x1xf32> to vector<32x32xf32>
    %114 = arith.subf %110, %113 : vector<32x32xf32>
    %115 = math.exp %114 : vector<32x32xf32>
    %cst_71 = arith.constant dense<0.000000e+00> : vector<32xf32>
    %116 = vector.multi_reduction <add>, %115, %cst_71 [1] : vector<32x32xf32> to vector<32xf32>
    %117 = vector.shape_cast %116 : vector<32xf32> to vector<32x1xf32>
    %118 = tpu.reciprocal %117 {approx = true} : vector<32x1xf32> -> vector<32x1xf32>
    %119 = vector.broadcast %118 : vector<32x1xf32> to vector<32x32xf32>
    %120 = arith.mulf %115, %119 : vector<32x32xf32>
    %121 = arith.truncf %120 : vector<32x32xf32> to vector<32x32xbf16>
    %122 = arith.truncf %107 : vector<32x8xf32> to vector<32x8xbf16>
    %cst_72 = arith.constant dense<0.000000e+00> : vector<32x8xf32>
    %123 = tpu.matmul %121, %122, %cst_72 {dimension_numbers = #tpu.dot_dimension_numbers<[1], [0], [0], [1], [0, 0, 1, 1], [], []>} : vector<32x32xbf16>, vector<32x8xbf16>, vector<32x8xf32> -> vector<32x8xf32>
    %124 = vector.extract_strided_slice %66 {offsets = [0, 24], sizes = [32, 8], strides = [1, 1]} : vector<32x96xf32> to vector<32x8xf32>
    %125 = vector.extract_strided_slice %66 {offsets = [0, 56], sizes = [32, 8], strides = [1, 1]} : vector<32x96xf32> to vector<32x8xf32>
    %126 = vector.extract_strided_slice %66 {offsets = [0, 88], sizes = [32, 8], strides = [1, 1]} : vector<32x96xf32> to vector<32x8xf32>
    %127 = arith.truncf %124 : vector<32x8xf32> to vector<32x8xbf16>
    %128 = arith.truncf %125 : vector<32x8xf32> to vector<32x8xbf16>
    %cst_73 = arith.constant dense<0.000000e+00> : vector<32x32xf32>
    %129 = tpu.matmul %127, %128, %cst_73 {dimension_numbers = #tpu.dot_dimension_numbers<[1], [1], [0], [0], [0, 0, 1, 0], [], []>} : vector<32x8xbf16>, vector<32x8xbf16>, vector<32x32xf32> -> vector<32x32xf32>
    %cst_74 = arith.constant dense<0xFF800000> : vector<32xf32>
    %130 = vector.multi_reduction <maximumf>, %129, %cst_74 [1] : vector<32x32xf32> to vector<32xf32>
    %131 = vector.shape_cast %130 : vector<32xf32> to vector<32x1xf32>
    %132 = vector.broadcast %131 : vector<32x1xf32> to vector<32x32xf32>
    %133 = arith.subf %129, %132 : vector<32x32xf32>
    %134 = math.exp %133 : vector<32x32xf32>
    %cst_75 = arith.constant dense<0.000000e+00> : vector<32xf32>
    %135 = vector.multi_reduction <add>, %134, %cst_75 [1] : vector<32x32xf32> to vector<32xf32>
    %136 = vector.shape_cast %135 : vector<32xf32> to vector<32x1xf32>
    %137 = tpu.reciprocal %136 {approx = true} : vector<32x1xf32> -> vector<32x1xf32>
    %138 = vector.broadcast %137 : vector<32x1xf32> to vector<32x32xf32>
    %139 = arith.mulf %134, %138 : vector<32x32xf32>
    %140 = arith.truncf %139 : vector<32x32xf32> to vector<32x32xbf16>
    %141 = arith.truncf %126 : vector<32x8xf32> to vector<32x8xbf16>
    %cst_76 = arith.constant dense<0.000000e+00> : vector<32x8xf32>
    %142 = tpu.matmul %140, %141, %cst_76 {dimension_numbers = #tpu.dot_dimension_numbers<[1], [0], [0], [1], [0, 0, 1, 1], [], []>} : vector<32x32xbf16>, vector<32x8xbf16>, vector<32x8xf32> -> vector<32x8xf32>
    %143 = tpu.concatenate %85, %104, %123, %142 in 1 : vector<32x8xf32>, vector<32x8xf32>, vector<32x8xf32>, vector<32x8xf32> -> vector<32x32xf32>
    %144 = arith.truncf %143 : vector<32x32xf32> to vector<32x32xbf16>
    %cst_77 = arith.constant dense<0.000000e+00> : vector<32x32xf32>
    %145 = tpu.matmul %144, %40, %cst_77 {dimension_numbers = #tpu.dot_dimension_numbers<[1], [0], [0], [1], [0, 0, 1, 1], [], []>} : vector<32x32xbf16>, vector<32x32xbf16>, vector<32x32xf32> -> vector<32x32xf32>
    %146 = vector.broadcast %42 : vector<1x32xf32> to vector<32x32xf32>
    %147 = arith.addf %145, %146 : vector<32x32xf32>
    %148 = arith.addf %34, %147 : vector<32x32xf32>
    %cst_78 = arith.constant dense<0.000000e+00> : vector<32xf32>
    %149 = vector.multi_reduction <add>, %148, %cst_78 [1] : vector<32x32xf32> to vector<32xf32>
    %150 = vector.shape_cast %149 : vector<32xf32> to vector<32x1xf32>
    %cst_79 = arith.constant 3.200000e+01 : f32
    %151 = vector.broadcast %cst_79 : f32 to vector<32x1xf32>
    %152 = arith.divf %150, %151 : vector<32x1xf32>
    %153 = vector.broadcast %152 : vector<32x1xf32> to vector<32x32xf32>
    %154 = arith.subf %148, %153 : vector<32x32xf32>
    %155 = arith.mulf %154, %154 : vector<32x32xf32>
    %cst_80 = arith.constant dense<0.000000e+00> : vector<32xf32>
    %156 = vector.multi_reduction <add>, %155, %cst_80 [1] : vector<32x32xf32> to vector<32xf32>
    %157 = vector.shape_cast %156 : vector<32xf32> to vector<32x1xf32>
    %cst_81 = arith.constant 3.200000e+01 : f32
    %158 = vector.broadcast %cst_81 : f32 to vector<32x1xf32>
    %159 = arith.divf %157, %158 : vector<32x1xf32>
    %160 = vector.broadcast %152 : vector<32x1xf32> to vector<32x32xf32>
    %161 = arith.subf %148, %160 : vector<32x32xf32>
    %cst_82 = arith.constant 9.99999974E-6 : f32
    %162 = vector.broadcast %cst_82 : f32 to vector<32x1xf32>
    %163 = arith.addf %159, %162 : vector<32x1xf32>
    %164 = math.rsqrt %163 : vector<32x1xf32>
    %165 = vector.broadcast %164 : vector<32x1xf32> to vector<32x32xf32>
    %166 = arith.mulf %161, %165 : vector<32x32xf32>
    %167 = vector.broadcast %44 : vector<1x32xf32> to vector<32x32xf32>
    %168 = arith.mulf %166, %167 : vector<32x32xf32>
    %169 = vector.broadcast %46 : vector<1x32xf32> to vector<32x32xf32>
    %170 = arith.addf %168, %169 : vector<32x32xf32>
    %171 = arith.truncf %170 : vector<32x32xf32> to vector<32x32xbf16>
    %cst_83 = arith.constant dense<0.000000e+00> : vector<32x128xf32>
    %172 = tpu.matmul %171, %48, %cst_83 {dimension_numbers = #tpu.dot_dimension_numbers<[1], [0], [0], [1], [0, 0, 1, 1], [], []>} : vector<32x32xbf16>, vector<32x128xbf16>, vector<32x128xf32> -> vector<32x128xf32>
    %173 = vector.broadcast %50 : vector<1x128xf32> to vector<32x128xf32>
    %174 = arith.addf %172, %173 : vector<32x128xf32>
    %cst_84 = arith.constant 0.000000e+00 : f32
    %175 = vector.broadcast %cst_84 : f32 to vector<32x128xf32>
    %176 = arith.maximumf %174, %175 : vector<32x128xf32>
    %177 = arith.truncf %176 : vector<32x128xf32> to vector<32x128xbf16>
    %cst_85 = arith.constant dense<0.000000e+00> : vector<32x32xf32>
    %178 = tpu.matmul %177, %52, %cst_85 {dimension_numbers = #tpu.dot_dimension_numbers<[1], [0], [0], [1], [0, 0, 1, 1], [], []>} : vector<32x128xbf16>, vector<128x32xbf16>, vector<32x32xf32> -> vector<32x32xf32>
    %179 = vector.broadcast %54 : vector<1x32xf32> to vector<32x32xf32>
    %180 = arith.addf %178, %179 : vector<32x32xf32>
    %181 = arith.addf %170, %180 : vector<32x32xf32>
    %cst_86 = arith.constant dense<0.000000e+00> : vector<32xf32>
    %182 = vector.multi_reduction <add>, %181, %cst_86 [1] : vector<32x32xf32> to vector<32xf32>
    %183 = vector.shape_cast %182 : vector<32xf32> to vector<32x1xf32>
    %cst_87 = arith.constant 3.200000e+01 : f32
    %184 = vector.broadcast %cst_87 : f32 to vector<32x1xf32>
    %185 = arith.divf %183, %184 : vector<32x1xf32>
    %186 = vector.broadcast %185 : vector<32x1xf32> to vector<32x32xf32>
    %187 = arith.subf %181, %186 : vector<32x32xf32>
    %188 = arith.mulf %187, %187 : vector<32x32xf32>
    %cst_88 = arith.constant dense<0.000000e+00> : vector<32xf32>
    %189 = vector.multi_reduction <add>, %188, %cst_88 [1] : vector<32x32xf32> to vector<32xf32>
    %190 = vector.shape_cast %189 : vector<32xf32> to vector<32x1xf32>
    %cst_89 = arith.constant 3.200000e+01 : f32
    %191 = vector.broadcast %cst_89 : f32 to vector<32x1xf32>
    %192 = arith.divf %190, %191 : vector<32x1xf32>
    %193 = vector.broadcast %185 : vector<32x1xf32> to vector<32x32xf32>
    %194 = arith.subf %181, %193 : vector<32x32xf32>
    %cst_90 = arith.constant 9.99999974E-6 : f32
    %195 = vector.broadcast %cst_90 : f32 to vector<32x1xf32>
    %196 = arith.addf %192, %195 : vector<32x1xf32>
    %197 = math.rsqrt %196 : vector<32x1xf32>
    %198 = vector.broadcast %197 : vector<32x1xf32> to vector<32x32xf32>
    %199 = arith.mulf %194, %198 : vector<32x32xf32>
    %200 = vector.broadcast %56 : vector<1x32xf32> to vector<32x32xf32>
    %201 = arith.mulf %199, %200 : vector<32x32xf32>
    %202 = vector.broadcast %58 : vector<1x32xf32> to vector<32x32xf32>
    %203 = arith.addf %201, %202 : vector<32x32xf32>
    %204 = arith.truncf %34 : vector<32x32xf32> to vector<32x32xbf16>
    %cst_91 = arith.constant dense<0.000000e+00> : vector<32x32xf32>
    %205 = tpu.matmul %204, %60, %cst_91 {dimension_numbers = #tpu.dot_dimension_numbers<[1], [0], [0], [1], [0, 0, 1, 1], [], []>} : vector<32x32xbf16>, vector<32x32xbf16>, vector<32x32xf32> -> vector<32x32xf32>
    %206 = vector.broadcast %62 : vector<1x32xf32> to vector<32x32xf32>
    %207 = arith.addf %205, %206 : vector<32x32xf32>
    %cst_92 = arith.constant 0.000000e+00 : f32
    %208 = vector.broadcast %cst_92 : f32 to vector<32x32xf32>
    %209 = arith.subf %208, %207 : vector<32x32xf32>
    %210 = math.exp %209 : vector<32x32xf32>
    %cst_93 = arith.constant 1.000000e+00 : f32
    %211 = vector.broadcast %cst_93 : f32 to vector<32x32xf32>
    %212 = arith.addf %211, %210 : vector<32x32xf32>
    %cst_94 = arith.constant 1.000000e+00 : f32
    %213 = vector.broadcast %cst_94 : f32 to vector<32x32xf32>
    %214 = arith.divf %213, %212 : vector<32x32xf32>
    %215 = arith.mulf %203, %214 : vector<32x32xf32>
    %c1 = arith.constant 1 : index
    %c0_95 = arith.constant 0 : index
    %c0_96 = arith.constant 0 : index
    %216 = vector.load %arg7[%c1, %c0_95, %c0_96] : memref<2x32x96xbf16, #tpu.memory_space<vmem>>, vector<1x32x96xbf16>
    %217 = vector.shape_cast %216 : vector<1x32x96xbf16> to vector<32x96xbf16>
    %c1_97 = arith.constant 1 : index
    %c0_98 = arith.constant 0 : index
    %c0_99 = arith.constant 0 : index
    %218 = vector.load %arg8[%c1_97, %c0_98, %c0_99] : memref<2x1x96xf32, #tpu.memory_space<vmem>>, vector<1x1x96xf32>
    %219 = vector.shape_cast %218 : vector<1x1x96xf32> to vector<1x96xf32>
    %c1_100 = arith.constant 1 : index
    %c0_101 = arith.constant 0 : index
    %c0_102 = arith.constant 0 : index
    %220 = vector.load %arg9[%c1_100, %c0_101, %c0_102] : memref<2x32x32xbf16, #tpu.memory_space<vmem>>, vector<1x32x32xbf16>
    %221 = vector.shape_cast %220 : vector<1x32x32xbf16> to vector<32x32xbf16>
    %c1_103 = arith.constant 1 : index
    %c0_104 = arith.constant 0 : index
    %c0_105 = arith.constant 0 : index
    %222 = vector.load %arg10[%c1_103, %c0_104, %c0_105] : memref<2x1x32xf32, #tpu.memory_space<vmem>>, vector<1x1x32xf32>
    %223 = vector.shape_cast %222 : vector<1x1x32xf32> to vector<1x32xf32>
    %c1_106 = arith.constant 1 : index
    %c0_107 = arith.constant 0 : index
    %c0_108 = arith.constant 0 : index
    %224 = vector.load %arg11[%c1_106, %c0_107, %c0_108] : memref<2x1x32xf32, #tpu.memory_space<vmem>>, vector<1x1x32xf32>
    %225 = vector.shape_cast %224 : vector<1x1x32xf32> to vector<1x32xf32>
    %c1_109 = arith.constant 1 : index
    %c0_110 = arith.constant 0 : index
    %c0_111 = arith.constant 0 : index
    %226 = vector.load %arg12[%c1_109, %c0_110, %c0_111] : memref<2x1x32xf32, #tpu.memory_space<vmem>>, vector<1x1x32xf32>
    %227 = vector.shape_cast %226 : vector<1x1x32xf32> to vector<1x32xf32>
    %c1_112 = arith.constant 1 : index
    %c0_113 = arith.constant 0 : index
    %c0_114 = arith.constant 0 : index
    %228 = vector.load %arg13[%c1_112, %c0_113, %c0_114] : memref<2x32x128xbf16, #tpu.memory_space<vmem>>, vector<1x32x128xbf16>
    %229 = vector.shape_cast %228 : vector<1x32x128xbf16> to vector<32x128xbf16>
    %c1_115 = arith.constant 1 : index
    %c0_116 = arith.constant 0 : index
    %c0_117 = arith.constant 0 : index
    %230 = vector.load %arg14[%c1_115, %c0_116, %c0_117] : memref<2x1x128xf32, #tpu.memory_space<vmem>>, vector<1x1x128xf32>
    %231 = vector.shape_cast %230 : vector<1x1x128xf32> to vector<1x128xf32>
    %c1_118 = arith.constant 1 : index
    %c0_119 = arith.constant 0 : index
    %c0_120 = arith.constant 0 : index
    %232 = vector.load %arg15[%c1_118, %c0_119, %c0_120] : memref<2x128x32xbf16, #tpu.memory_space<vmem>>, vector<1x128x32xbf16>
    %233 = vector.shape_cast %232 : vector<1x128x32xbf16> to vector<128x32xbf16>
    %c1_121 = arith.constant 1 : index
    %c0_122 = arith.constant 0 : index
    %c0_123 = arith.constant 0 : index
    %234 = vector.load %arg16[%c1_121, %c0_122, %c0_123] : memref<2x1x32xf32, #tpu.memory_space<vmem>>, vector<1x1x32xf32>
    %235 = vector.shape_cast %234 : vector<1x1x32xf32> to vector<1x32xf32>
    %c1_124 = arith.constant 1 : index
    %c0_125 = arith.constant 0 : index
    %c0_126 = arith.constant 0 : index
    %236 = vector.load %arg17[%c1_124, %c0_125, %c0_126] : memref<2x1x32xf32, #tpu.memory_space<vmem>>, vector<1x1x32xf32>
    %237 = vector.shape_cast %236 : vector<1x1x32xf32> to vector<1x32xf32>
    %c1_127 = arith.constant 1 : index
    %c0_128 = arith.constant 0 : index
    %c0_129 = arith.constant 0 : index
    %238 = vector.load %arg18[%c1_127, %c0_128, %c0_129] : memref<2x1x32xf32, #tpu.memory_space<vmem>>, vector<1x1x32xf32>
    %239 = vector.shape_cast %238 : vector<1x1x32xf32> to vector<1x32xf32>
    %c1_130 = arith.constant 1 : index
    %c0_131 = arith.constant 0 : index
    %c0_132 = arith.constant 0 : index
    %240 = vector.load %arg19[%c1_130, %c0_131, %c0_132] : memref<2x32x32xbf16, #tpu.memory_space<vmem>>, vector<1x32x32xbf16>
    %241 = vector.shape_cast %240 : vector<1x32x32xbf16> to vector<32x32xbf16>
    %c1_133 = arith.constant 1 : index
    %c0_134 = arith.constant 0 : index
    %c0_135 = arith.constant 0 : index
    %242 = vector.load %arg20[%c1_133, %c0_134, %c0_135] : memref<2x1x32xf32, #tpu.memory_space<vmem>>, vector<1x1x32xf32>
    %243 = vector.shape_cast %242 : vector<1x1x32xf32> to vector<1x32xf32>
    %244 = arith.truncf %215 : vector<32x32xf32> to vector<32x32xbf16>
    %cst_136 = arith.constant dense<0.000000e+00> : vector<32x96xf32>
    %245 = tpu.matmul %244, %217, %cst_136 {dimension_numbers = #tpu.dot_dimension_numbers<[1], [0], [0], [1], [0, 0, 1, 1], [], []>} : vector<32x32xbf16>, vector<32x96xbf16>, vector<32x96xf32> -> vector<32x96xf32>
    %246 = vector.broadcast %219 : vector<1x96xf32> to vector<32x96xf32>
    %247 = arith.addf %245, %246 : vector<32x96xf32>
    %248 = vector.extract_strided_slice %247 {offsets = [0, 0], sizes = [32, 8], strides = [1, 1]} : vector<32x96xf32> to vector<32x8xf32>
    %249 = vector.extract_strided_slice %247 {offsets = [0, 32], sizes = [32, 8], strides = [1, 1]} : vector<32x96xf32> to vector<32x8xf32>
    %250 = vector.extract_strided_slice %247 {offsets = [0, 64], sizes = [32, 8], strides = [1, 1]} : vector<32x96xf32> to vector<32x8xf32>
    %251 = arith.truncf %248 : vector<32x8xf32> to vector<32x8xbf16>
    %252 = arith.truncf %249 : vector<32x8xf32> to vector<32x8xbf16>
    %cst_137 = arith.constant dense<0.000000e+00> : vector<32x32xf32>
    %253 = tpu.matmul %251, %252, %cst_137 {dimension_numbers = #tpu.dot_dimension_numbers<[1], [1], [0], [0], [0, 0, 1, 0], [], []>} : vector<32x8xbf16>, vector<32x8xbf16>, vector<32x32xf32> -> vector<32x32xf32>
    %cst_138 = arith.constant dense<0xFF800000> : vector<32xf32>
    %254 = vector.multi_reduction <maximumf>, %253, %cst_138 [1] : vector<32x32xf32> to vector<32xf32>
    %255 = vector.shape_cast %254 : vector<32xf32> to vector<32x1xf32>
    %256 = vector.broadcast %255 : vector<32x1xf32> to vector<32x32xf32>
    %257 = arith.subf %253, %256 : vector<32x32xf32>
    %258 = math.exp %257 : vector<32x32xf32>
    %cst_139 = arith.constant dense<0.000000e+00> : vector<32xf32>
    %259 = vector.multi_reduction <add>, %258, %cst_139 [1] : vector<32x32xf32> to vector<32xf32>
    %260 = vector.shape_cast %259 : vector<32xf32> to vector<32x1xf32>
    %261 = tpu.reciprocal %260 {approx = true} : vector<32x1xf32> -> vector<32x1xf32>
    %262 = vector.broadcast %261 : vector<32x1xf32> to vector<32x32xf32>
    %263 = arith.mulf %258, %262 : vector<32x32xf32>
    %264 = arith.truncf %263 : vector<32x32xf32> to vector<32x32xbf16>
    %265 = arith.truncf %250 : vector<32x8xf32> to vector<32x8xbf16>
    %cst_140 = arith.constant dense<0.000000e+00> : vector<32x8xf32>
    %266 = tpu.matmul %264, %265, %cst_140 {dimension_numbers = #tpu.dot_dimension_numbers<[1], [0], [0], [1], [0, 0, 1, 1], [], []>} : vector<32x32xbf16>, vector<32x8xbf16>, vector<32x8xf32> -> vector<32x8xf32>
    %267 = vector.extract_strided_slice %247 {offsets = [0, 8], sizes = [32, 8], strides = [1, 1]} : vector<32x96xf32> to vector<32x8xf32>
    %268 = vector.extract_strided_slice %247 {offsets = [0, 40], sizes = [32, 8], strides = [1, 1]} : vector<32x96xf32> to vector<32x8xf32>
    %269 = vector.extract_strided_slice %247 {offsets = [0, 72], sizes = [32, 8], strides = [1, 1]} : vector<32x96xf32> to vector<32x8xf32>
    %270 = arith.truncf %267 : vector<32x8xf32> to vector<32x8xbf16>
    %271 = arith.truncf %268 : vector<32x8xf32> to vector<32x8xbf16>
    %cst_141 = arith.constant dense<0.000000e+00> : vector<32x32xf32>
    %272 = tpu.matmul %270, %271, %cst_141 {dimension_numbers = #tpu.dot_dimension_numbers<[1], [1], [0], [0], [0, 0, 1, 0], [], []>} : vector<32x8xbf16>, vector<32x8xbf16>, vector<32x32xf32> -> vector<32x32xf32>
    %cst_142 = arith.constant dense<0xFF800000> : vector<32xf32>
    %273 = vector.multi_reduction <maximumf>, %272, %cst_142 [1] : vector<32x32xf32> to vector<32xf32>
    %274 = vector.shape_cast %273 : vector<32xf32> to vector<32x1xf32>
    %275 = vector.broadcast %274 : vector<32x1xf32> to vector<32x32xf32>
    %276 = arith.subf %272, %275 : vector<32x32xf32>
    %277 = math.exp %276 : vector<32x32xf32>
    %cst_143 = arith.constant dense<0.000000e+00> : vector<32xf32>
    %278 = vector.multi_reduction <add>, %277, %cst_143 [1] : vector<32x32xf32> to vector<32xf32>
    %279 = vector.shape_cast %278 : vector<32xf32> to vector<32x1xf32>
    %280 = tpu.reciprocal %279 {approx = true} : vector<32x1xf32> -> vector<32x1xf32>
    %281 = vector.broadcast %280 : vector<32x1xf32> to vector<32x32xf32>
    %282 = arith.mulf %277, %281 : vector<32x32xf32>
    %283 = arith.truncf %282 : vector<32x32xf32> to vector<32x32xbf16>
    %284 = arith.truncf %269 : vector<32x8xf32> to vector<32x8xbf16>
    %cst_144 = arith.constant dense<0.000000e+00> : vector<32x8xf32>
    %285 = tpu.matmul %283, %284, %cst_144 {dimension_numbers = #tpu.dot_dimension_numbers<[1], [0], [0], [1], [0, 0, 1, 1], [], []>} : vector<32x32xbf16>, vector<32x8xbf16>, vector<32x8xf32> -> vector<32x8xf32>
    %286 = vector.extract_strided_slice %247 {offsets = [0, 16], sizes = [32, 8], strides = [1, 1]} : vector<32x96xf32> to vector<32x8xf32>
    %287 = vector.extract_strided_slice %247 {offsets = [0, 48], sizes = [32, 8], strides = [1, 1]} : vector<32x96xf32> to vector<32x8xf32>
    %288 = vector.extract_strided_slice %247 {offsets = [0, 80], sizes = [32, 8], strides = [1, 1]} : vector<32x96xf32> to vector<32x8xf32>
    %289 = arith.truncf %286 : vector<32x8xf32> to vector<32x8xbf16>
    %290 = arith.truncf %287 : vector<32x8xf32> to vector<32x8xbf16>
    %cst_145 = arith.constant dense<0.000000e+00> : vector<32x32xf32>
    %291 = tpu.matmul %289, %290, %cst_145 {dimension_numbers = #tpu.dot_dimension_numbers<[1], [1], [0], [0], [0, 0, 1, 0], [], []>} : vector<32x8xbf16>, vector<32x8xbf16>, vector<32x32xf32> -> vector<32x32xf32>
    %cst_146 = arith.constant dense<0xFF800000> : vector<32xf32>
    %292 = vector.multi_reduction <maximumf>, %291, %cst_146 [1] : vector<32x32xf32> to vector<32xf32>
    %293 = vector.shape_cast %292 : vector<32xf32> to vector<32x1xf32>
    %294 = vector.broadcast %293 : vector<32x1xf32> to vector<32x32xf32>
    %295 = arith.subf %291, %294 : vector<32x32xf32>
    %296 = math.exp %295 : vector<32x32xf32>
    %cst_147 = arith.constant dense<0.000000e+00> : vector<32xf32>
    %297 = vector.multi_reduction <add>, %296, %cst_147 [1] : vector<32x32xf32> to vector<32xf32>
    %298 = vector.shape_cast %297 : vector<32xf32> to vector<32x1xf32>
    %299 = tpu.reciprocal %298 {approx = true} : vector<32x1xf32> -> vector<32x1xf32>
    %300 = vector.broadcast %299 : vector<32x1xf32> to vector<32x32xf32>
    %301 = arith.mulf %296, %300 : vector<32x32xf32>
    %302 = arith.truncf %301 : vector<32x32xf32> to vector<32x32xbf16>
    %303 = arith.truncf %288 : vector<32x8xf32> to vector<32x8xbf16>
    %cst_148 = arith.constant dense<0.000000e+00> : vector<32x8xf32>
    %304 = tpu.matmul %302, %303, %cst_148 {dimension_numbers = #tpu.dot_dimension_numbers<[1], [0], [0], [1], [0, 0, 1, 1], [], []>} : vector<32x32xbf16>, vector<32x8xbf16>, vector<32x8xf32> -> vector<32x8xf32>
    %305 = vector.extract_strided_slice %247 {offsets = [0, 24], sizes = [32, 8], strides = [1, 1]} : vector<32x96xf32> to vector<32x8xf32>
    %306 = vector.extract_strided_slice %247 {offsets = [0, 56], sizes = [32, 8], strides = [1, 1]} : vector<32x96xf32> to vector<32x8xf32>
    %307 = vector.extract_strided_slice %247 {offsets = [0, 88], sizes = [32, 8], strides = [1, 1]} : vector<32x96xf32> to vector<32x8xf32>
    %308 = arith.truncf %305 : vector<32x8xf32> to vector<32x8xbf16>
    %309 = arith.truncf %306 : vector<32x8xf32> to vector<32x8xbf16>
    %cst_149 = arith.constant dense<0.000000e+00> : vector<32x32xf32>
    %310 = tpu.matmul %308, %309, %cst_149 {dimension_numbers = #tpu.dot_dimension_numbers<[1], [1], [0], [0], [0, 0, 1, 0], [], []>} : vector<32x8xbf16>, vector<32x8xbf16>, vector<32x32xf32> -> vector<32x32xf32>
    %cst_150 = arith.constant dense<0xFF800000> : vector<32xf32>
    %311 = vector.multi_reduction <maximumf>, %310, %cst_150 [1] : vector<32x32xf32> to vector<32xf32>
    %312 = vector.shape_cast %311 : vector<32xf32> to vector<32x1xf32>
    %313 = vector.broadcast %312 : vector<32x1xf32> to vector<32x32xf32>
    %314 = arith.subf %310, %313 : vector<32x32xf32>
    %315 = math.exp %314 : vector<32x32xf32>
    %cst_151 = arith.constant dense<0.000000e+00> : vector<32xf32>
    %316 = vector.multi_reduction <add>, %315, %cst_151 [1] : vector<32x32xf32> to vector<32xf32>
    %317 = vector.shape_cast %316 : vector<32xf32> to vector<32x1xf32>
    %318 = tpu.reciprocal %317 {approx = true} : vector<32x1xf32> -> vector<32x1xf32>
    %319 = vector.broadcast %318 : vector<32x1xf32> to vector<32x32xf32>
    %320 = arith.mulf %315, %319 : vector<32x32xf32>
    %321 = arith.truncf %320 : vector<32x32xf32> to vector<32x32xbf16>
    %322 = arith.truncf %307 : vector<32x8xf32> to vector<32x8xbf16>
    %cst_152 = arith.constant dense<0.000000e+00> : vector<32x8xf32>
    %323 = tpu.matmul %321, %322, %cst_152 {dimension_numbers = #tpu.dot_dimension_numbers<[1], [0], [0], [1], [0, 0, 1, 1], [], []>} : vector<32x32xbf16>, vector<32x8xbf16>, vector<32x8xf32> -> vector<32x8xf32>
    %324 = tpu.concatenate %266, %285, %304, %323 in 1 : vector<32x8xf32>, vector<32x8xf32>, vector<32x8xf32>, vector<32x8xf32> -> vector<32x32xf32>
    %325 = arith.truncf %324 : vector<32x32xf32> to vector<32x32xbf16>
    %cst_153 = arith.constant dense<0.000000e+00> : vector<32x32xf32>
    %326 = tpu.matmul %325, %221, %cst_153 {dimension_numbers = #tpu.dot_dimension_numbers<[1], [0], [0], [1], [0, 0, 1, 1], [], []>} : vector<32x32xbf16>, vector<32x32xbf16>, vector<32x32xf32> -> vector<32x32xf32>
    %327 = vector.broadcast %223 : vector<1x32xf32> to vector<32x32xf32>
    %328 = arith.addf %326, %327 : vector<32x32xf32>
    %329 = arith.addf %215, %328 : vector<32x32xf32>
    %cst_154 = arith.constant dense<0.000000e+00> : vector<32xf32>
    %330 = vector.multi_reduction <add>, %329, %cst_154 [1] : vector<32x32xf32> to vector<32xf32>
    %331 = vector.shape_cast %330 : vector<32xf32> to vector<32x1xf32>
    %cst_155 = arith.constant 3.200000e+01 : f32
    %332 = vector.broadcast %cst_155 : f32 to vector<32x1xf32>
    %333 = arith.divf %331, %332 : vector<32x1xf32>
    %334 = vector.broadcast %333 : vector<32x1xf32> to vector<32x32xf32>
    %335 = arith.subf %329, %334 : vector<32x32xf32>
    %336 = arith.mulf %335, %335 : vector<32x32xf32>
    %cst_156 = arith.constant dense<0.000000e+00> : vector<32xf32>
    %337 = vector.multi_reduction <add>, %336, %cst_156 [1] : vector<32x32xf32> to vector<32xf32>
    %338 = vector.shape_cast %337 : vector<32xf32> to vector<32x1xf32>
    %cst_157 = arith.constant 3.200000e+01 : f32
    %339 = vector.broadcast %cst_157 : f32 to vector<32x1xf32>
    %340 = arith.divf %338, %339 : vector<32x1xf32>
    %341 = vector.broadcast %333 : vector<32x1xf32> to vector<32x32xf32>
    %342 = arith.subf %329, %341 : vector<32x32xf32>
    %cst_158 = arith.constant 9.99999974E-6 : f32
    %343 = vector.broadcast %cst_158 : f32 to vector<32x1xf32>
    %344 = arith.addf %340, %343 : vector<32x1xf32>
    %345 = math.rsqrt %344 : vector<32x1xf32>
    %346 = vector.broadcast %345 : vector<32x1xf32> to vector<32x32xf32>
    %347 = arith.mulf %342, %346 : vector<32x32xf32>
    %348 = vector.broadcast %225 : vector<1x32xf32> to vector<32x32xf32>
    %349 = arith.mulf %347, %348 : vector<32x32xf32>
    %350 = vector.broadcast %227 : vector<1x32xf32> to vector<32x32xf32>
    %351 = arith.addf %349, %350 : vector<32x32xf32>
    %352 = arith.truncf %351 : vector<32x32xf32> to vector<32x32xbf16>
    %cst_159 = arith.constant dense<0.000000e+00> : vector<32x128xf32>
    %353 = tpu.matmul %352, %229, %cst_159 {dimension_numbers = #tpu.dot_dimension_numbers<[1], [0], [0], [1], [0, 0, 1, 1], [], []>} : vector<32x32xbf16>, vector<32x128xbf16>, vector<32x128xf32> -> vector<32x128xf32>
    %354 = vector.broadcast %231 : vector<1x128xf32> to vector<32x128xf32>
    %355 = arith.addf %353, %354 : vector<32x128xf32>
    %cst_160 = arith.constant 0.000000e+00 : f32
    %356 = vector.broadcast %cst_160 : f32 to vector<32x128xf32>
    %357 = arith.maximumf %355, %356 : vector<32x128xf32>
    %358 = arith.truncf %357 : vector<32x128xf32> to vector<32x128xbf16>
    %cst_161 = arith.constant dense<0.000000e+00> : vector<32x32xf32>
    %359 = tpu.matmul %358, %233, %cst_161 {dimension_numbers = #tpu.dot_dimension_numbers<[1], [0], [0], [1], [0, 0, 1, 1], [], []>} : vector<32x128xbf16>, vector<128x32xbf16>, vector<32x32xf32> -> vector<32x32xf32>
    %360 = vector.broadcast %235 : vector<1x32xf32> to vector<32x32xf32>
    %361 = arith.addf %359, %360 : vector<32x32xf32>
    %362 = arith.addf %351, %361 : vector<32x32xf32>
    %cst_162 = arith.constant dense<0.000000e+00> : vector<32xf32>
    %363 = vector.multi_reduction <add>, %362, %cst_162 [1] : vector<32x32xf32> to vector<32xf32>
    %364 = vector.shape_cast %363 : vector<32xf32> to vector<32x1xf32>
    %cst_163 = arith.constant 3.200000e+01 : f32
    %365 = vector.broadcast %cst_163 : f32 to vector<32x1xf32>
    %366 = arith.divf %364, %365 : vector<32x1xf32>
    %367 = vector.broadcast %366 : vector<32x1xf32> to vector<32x32xf32>
    %368 = arith.subf %362, %367 : vector<32x32xf32>
    %369 = arith.mulf %368, %368 : vector<32x32xf32>
    %cst_164 = arith.constant dense<0.000000e+00> : vector<32xf32>
    %370 = vector.multi_reduction <add>, %369, %cst_164 [1] : vector<32x32xf32> to vector<32xf32>
    %371 = vector.shape_cast %370 : vector<32xf32> to vector<32x1xf32>
    %cst_165 = arith.constant 3.200000e+01 : f32
    %372 = vector.broadcast %cst_165 : f32 to vector<32x1xf32>
    %373 = arith.divf %371, %372 : vector<32x1xf32>
    %374 = vector.broadcast %366 : vector<32x1xf32> to vector<32x32xf32>
    %375 = arith.subf %362, %374 : vector<32x32xf32>
    %cst_166 = arith.constant 9.99999974E-6 : f32
    %376 = vector.broadcast %cst_166 : f32 to vector<32x1xf32>
    %377 = arith.addf %373, %376 : vector<32x1xf32>
    %378 = math.rsqrt %377 : vector<32x1xf32>
    %379 = vector.broadcast %378 : vector<32x1xf32> to vector<32x32xf32>
    %380 = arith.mulf %375, %379 : vector<32x32xf32>
    %381 = vector.broadcast %237 : vector<1x32xf32> to vector<32x32xf32>
    %382 = arith.mulf %380, %381 : vector<32x32xf32>
    %383 = vector.broadcast %239 : vector<1x32xf32> to vector<32x32xf32>
    %384 = arith.addf %382, %383 : vector<32x32xf32>
    %385 = arith.truncf %215 : vector<32x32xf32> to vector<32x32xbf16>
    %cst_167 = arith.constant dense<0.000000e+00> : vector<32x32xf32>
    %386 = tpu.matmul %385, %241, %cst_167 {dimension_numbers = #tpu.dot_dimension_numbers<[1], [0], [0], [1], [0, 0, 1, 1], [], []>} : vector<32x32xbf16>, vector<32x32xbf16>, vector<32x32xf32> -> vector<32x32xf32>
    %387 = vector.broadcast %243 : vector<1x32xf32> to vector<32x32xf32>
    %388 = arith.addf %386, %387 : vector<32x32xf32>
    %cst_168 = arith.constant 0.000000e+00 : f32
    %389 = vector.broadcast %cst_168 : f32 to vector<32x32xf32>
    %390 = arith.subf %389, %388 : vector<32x32xf32>
    %391 = math.exp %390 : vector<32x32xf32>
    %cst_169 = arith.constant 1.000000e+00 : f32
    %392 = vector.broadcast %cst_169 : f32 to vector<32x32xf32>
    %393 = arith.addf %392, %391 : vector<32x32xf32>
    %cst_170 = arith.constant 1.000000e+00 : f32
    %394 = vector.broadcast %cst_170 : f32 to vector<32x32xf32>
    %395 = arith.divf %394, %393 : vector<32x32xf32>
    %396 = arith.mulf %384, %395 : vector<32x32xf32>
    %c0_171 = arith.constant 0 : index
    %c0_172 = arith.constant 0 : index
    %397 = vector.load %arg21[%c0_171, %c0_172] : memref<1x32xf32, #tpu.memory_space<vmem>>, vector<1x32xf32>
    %c0_173 = arith.constant 0 : index
    %c0_174 = arith.constant 0 : index
    %398 = vector.load %arg22[%c0_173, %c0_174] : memref<1x32xf32, #tpu.memory_space<vmem>>, vector<1x32xf32>
    %cst_175 = arith.constant dense<0.000000e+00> : vector<32xf32>
    %399 = vector.multi_reduction <add>, %396, %cst_175 [1] : vector<32x32xf32> to vector<32xf32>
    %400 = vector.shape_cast %399 : vector<32xf32> to vector<32x1xf32>
    %cst_176 = arith.constant 3.200000e+01 : f32
    %401 = vector.broadcast %cst_176 : f32 to vector<32x1xf32>
    %402 = arith.divf %400, %401 : vector<32x1xf32>
    %403 = vector.broadcast %402 : vector<32x1xf32> to vector<32x32xf32>
    %404 = arith.subf %396, %403 : vector<32x32xf32>
    %405 = arith.mulf %404, %404 : vector<32x32xf32>
    %cst_177 = arith.constant dense<0.000000e+00> : vector<32xf32>
    %406 = vector.multi_reduction <add>, %405, %cst_177 [1] : vector<32x32xf32> to vector<32xf32>
    %407 = vector.shape_cast %406 : vector<32xf32> to vector<32x1xf32>
    %cst_178 = arith.constant 3.200000e+01 : f32
    %408 = vector.broadcast %cst_178 : f32 to vector<32x1xf32>
    %409 = arith.divf %407, %408 : vector<32x1xf32>
    %410 = vector.broadcast %402 : vector<32x1xf32> to vector<32x32xf32>
    %411 = arith.subf %396, %410 : vector<32x32xf32>
    %cst_179 = arith.constant 9.99999974E-6 : f32
    %412 = vector.broadcast %cst_179 : f32 to vector<32x1xf32>
    %413 = arith.addf %409, %412 : vector<32x1xf32>
    %414 = math.rsqrt %413 : vector<32x1xf32>
    %415 = vector.broadcast %414 : vector<32x1xf32> to vector<32x32xf32>
    %416 = arith.mulf %411, %415 : vector<32x32xf32>
    %417 = vector.broadcast %397 : vector<1x32xf32> to vector<32x32xf32>
    %418 = arith.mulf %416, %417 : vector<32x32xf32>
    %419 = vector.broadcast %398 : vector<1x32xf32> to vector<32x32xf32>
    %420 = arith.addf %418, %419 : vector<32x32xf32>
    %c0_180 = arith.constant 0 : index
    %c0_181 = arith.constant 0 : index
    %c0_182 = arith.constant 0 : index
    %421 = vector.load %arg23[%c0_180, %c0_181, %c0_182] : memref<1x32x32xf32, #tpu.memory_space<vmem>>, vector<1x32x32xf32>
    %422 = vector.shape_cast %421 : vector<1x32x32xf32> to vector<32x32xf32>
    %423 = vector.shape_cast %420 : vector<32x32xf32> to vector<1x32x32xf32>
    tpu.vector_store %arg23[%c0_180, %c0_181, %c0_182], %423 {strides = array<i32>} : memref<1x32x32xf32, #tpu.memory_space<vmem>>, vector<1x32x32xf32>,
    return
  }
  func.func @transform_0(%arg0: i32) -> (i32, i32, i32) {
    %c0_i32 = arith.constant 0 : i32
    %c0_i32_0 = arith.constant 0 : i32
    %c0_i32_1 = arith.constant 0 : i32
    return %arg0, %c0_i32, %c0_i32_0 : i32, i32, i32
  }
  func.func @transform_1(%arg0: i32) -> (i32, i32, i32) {
    %c0_i32 = arith.constant 0 : i32
    %c0_i32_0 = arith.constant 0 : i32
    %c0_i32_1 = arith.constant 0 : i32
    return %arg0, %c0_i32, %c0_i32_0 : i32, i32, i32
  }
  func.func @transform_2(%arg0: i32) -> (i32, i32) {
    %c0_i32 = arith.constant 0 : i32
    %c0_i32_0 = arith.constant 0 : i32
    %c0_i32_1 = arith.constant 0 : i32
    return %c0_i32, %c0_i32_0 : i32, i32
  }
  func.func @transform_3(%arg0: i32) -> (i32, i32) {
    %c0_i32 = arith.constant 0 : i32
    %c0_i32_0 = arith.constant 0 : i32
    %c0_i32_1 = arith.constant 0 : i32
    return %c0_i32, %c0_i32_0 : i32, i32
  }
  func.func @transform_4(%arg0: i32) -> (i32, i32) {
    %c0_i32 = arith.constant 0 : i32
    %c0_i32_0 = arith.constant 0 : i32
    %c0_i32_1 = arith.constant 0 : i32
    return %c0_i32, %c0_i32_0 : i32, i32
  }
  func.func @transform_5(%arg0: i32) -> (i32, i32) {
    %c0_i32 = arith.constant 0 : i32
    %c0_i32_0 = arith.constant 0 : i32
    %c0_i32_1 = arith.constant 0 : i32
    return %c0_i32, %c0_i32_0 : i32, i32
  }
  func.func @transform_6(%arg0: i32) -> (i32, i32, i32) {
    %c0_i32 = arith.constant 0 : i32
    %c0_i32_0 = arith.constant 0 : i32
    %c0_i32_1 = arith.constant 0 : i32
    %c0_i32_2 = arith.constant 0 : i32
    return %c0_i32, %c0_i32_0, %c0_i32_1 : i32, i32, i32
  }
  func.func @transform_7(%arg0: i32) -> (i32, i32, i32) {
    %c0_i32 = arith.constant 0 : i32
    %c0_i32_0 = arith.constant 0 : i32
    %c0_i32_1 = arith.constant 0 : i32
    %c0_i32_2 = arith.constant 0 : i32
    return %c0_i32, %c0_i32_0, %c0_i32_1 : i32, i32, i32
  }
  func.func @transform_8(%arg0: i32) -> (i32, i32, i32) {
    %c0_i32 = arith.constant 0 : i32
    %c0_i32_0 = arith.constant 0 : i32
    %c0_i32_1 = arith.constant 0 : i32
    %c0_i32_2 = arith.constant 0 : i32
    return %c0_i32, %c0_i32_0, %c0_i32_1 : i32, i32, i32
  }
  func.func @transform_9(%arg0: i32) -> (i32, i32, i32) {
    %c0_i32 = arith.constant 0 : i32
    %c0_i32_0 = arith.constant 0 : i32
    %c0_i32_1 = arith.constant 0 : i32
    %c0_i32_2 = arith.constant 0 : i32
    return %c0_i32, %c0_i32_0, %c0_i32_1 : i32, i32, i32
  }
  func.func @transform_10(%arg0: i32) -> (i32, i32, i32) {
    %c0_i32 = arith.constant 0 : i32
    %c0_i32_0 = arith.constant 0 : i32
    %c0_i32_1 = arith.constant 0 : i32
    %c0_i32_2 = arith.constant 0 : i32
    return %c0_i32, %c0_i32_0, %c0_i32_1 : i32, i32, i32
  }
  func.func @transform_11(%arg0: i32) -> (i32, i32, i32) {
    %c0_i32 = arith.constant 0 : i32
    %c0_i32_0 = arith.constant 0 : i32
    %c0_i32_1 = arith.constant 0 : i32
    %c0_i32_2 = arith.constant 0 : i32
    return %c0_i32, %c0_i32_0, %c0_i32_1 : i32, i32, i32
  }
  func.func @transform_12(%arg0: i32) -> (i32, i32, i32) {
    %c0_i32 = arith.constant 0 : i32
    %c0_i32_0 = arith.constant 0 : i32
    %c0_i32_1 = arith.constant 0 : i32
    %c0_i32_2 = arith.constant 0 : i32
    return %c0_i32, %c0_i32_0, %c0_i32_1 : i32, i32, i32
  }
  func.func @transform_13(%arg0: i32) -> (i32, i32, i32) {
    %c0_i32 = arith.constant 0 : i32
    %c0_i32_0 = arith.constant 0 : i32
    %c0_i32_1 = arith.constant 0 : i32
    %c0_i32_2 = arith.constant 0 : i32
    return %c0_i32, %c0_i32_0, %c0_i32_1 : i32, i32, i32
  }
  func.func @transform_14(%arg0: i32) -> (i32, i32, i32) {
    %c0_i32 = arith.constant 0 : i32
    %c0_i32_0 = arith.constant 0 : i32
    %c0_i32_1 = arith.constant 0 : i32
    %c0_i32_2 = arith.constant 0 : i32
    return %c0_i32, %c0_i32_0, %c0_i32_1 : i32, i32, i32
  }
  func.func @transform_15(%arg0: i32) -> (i32, i32, i32) {
    %c0_i32 = arith.constant 0 : i32
    %c0_i32_0 = arith.constant 0 : i32
    %c0_i32_1 = arith.constant 0 : i32
    %c0_i32_2 = arith.constant 0 : i32
    return %c0_i32, %c0_i32_0, %c0_i32_1 : i32, i32, i32
  }
  func.func @transform_16(%arg0: i32) -> (i32, i32, i32) {
    %c0_i32 = arith.constant 0 : i32
    %c0_i32_0 = arith.constant 0 : i32
    %c0_i32_1 = arith.constant 0 : i32
    %c0_i32_2 = arith.constant 0 : i32
    return %c0_i32, %c0_i32_0, %c0_i32_1 : i32, i32, i32
  }
  func.func @transform_17(%arg0: i32) -> (i32, i32, i32) {
    %c0_i32 = arith.constant 0 : i32
    %c0_i32_0 = arith.constant 0 : i32
    %c0_i32_1 = arith.constant 0 : i32
    %c0_i32_2 = arith.constant 0 : i32
    return %c0_i32, %c0_i32_0, %c0_i32_1 : i32, i32, i32
  }
  func.func @transform_18(%arg0: i32) -> (i32, i32, i32) {
    %c0_i32 = arith.constant 0 : i32
    %c0_i32_0 = arith.constant 0 : i32
    %c0_i32_1 = arith.constant 0 : i32
    %c0_i32_2 = arith.constant 0 : i32
    return %c0_i32, %c0_i32_0, %c0_i32_1 : i32, i32, i32
  }
  func.func @transform_19(%arg0: i32) -> (i32, i32, i32) {
    %c0_i32 = arith.constant 0 : i32
    %c0_i32_0 = arith.constant 0 : i32
    %c0_i32_1 = arith.constant 0 : i32
    %c0_i32_2 = arith.constant 0 : i32
    return %c0_i32, %c0_i32_0, %c0_i32_1 : i32, i32, i32
  }
  func.func @transform_20(%arg0: i32) -> (i32, i32) {
    %c0_i32 = arith.constant 0 : i32
    %c0_i32_0 = arith.constant 0 : i32
    %c0_i32_1 = arith.constant 0 : i32
    return %c0_i32, %c0_i32_0 : i32, i32
  }
  func.func @transform_21(%arg0: i32) -> (i32, i32) {
    %c0_i32 = arith.constant 0 : i32
    %c0_i32_0 = arith.constant 0 : i32
    %c0_i32_1 = arith.constant 0 : i32
    return %c0_i32, %c0_i32_0 : i32, i32
  }
  func.func @transform_22(%arg0: i32) -> (i32, i32, i32) {
    %c0_i32 = arith.constant 0 : i32
    %c0_i32_0 = arith.constant 0 : i32
    %c0_i32_1 = arith.constant 0 : i32
    return %arg0, %c0_i32, %c0_i32_0 : i32, i32, i32
  }
}

module attributes {stable_mosaic.version = 11 : i64} {
  func.func @_heads_kernel(%arg0: i32, %arg1: memref<1x4x8x32xf32, #tpu.memory_space<vmem>>, %arg2: memref<32x32xbf16, #tpu.memory_space<vmem>>, %arg3: memref<1x32xf32, #tpu.memory_space<vmem>>, %arg4: memref<32x32xbf16, #tpu.memory_space<vmem>>, %arg5: memref<1x32xf32, #tpu.memory_space<vmem>>, %arg6: memref<32x32xbf16, #tpu.memory_space<vmem>>, %arg7: memref<1x32xf32, #tpu.memory_space<vmem>>, %arg8: memref<32x32xbf16, #tpu.memory_space<vmem>>, %arg9: memref<1x32xf32, #tpu.memory_space<vmem>>, %arg10: memref<32x32xbf16, #tpu.memory_space<vmem>>, %arg11: memref<1x32xf32, #tpu.memory_space<vmem>>, %arg12: memref<32x8xbf16, #tpu.memory_space<vmem>>, %arg13: memref<1x8xf32, #tpu.memory_space<vmem>>, %arg14: memref<1x8xf32, #tpu.memory_space<vmem>>, %arg15: memref<1x8xf32, #tpu.memory_space<vmem>>, %arg16: memref<1x32xf32, #tpu.memory_space<vmem>>, %arg17: memref<32x32xbf16, #tpu.memory_space<vmem>>, %arg18: memref<1x32xf32, #tpu.memory_space<vmem>>, %arg19: memref<32x32xbf16, #tpu.memory_space<vmem>>, %arg20: memref<1x32xf32, #tpu.memory_space<vmem>>, %arg21: memref<32x32xbf16, #tpu.memory_space<vmem>>, %arg22: memref<1x32xf32, #tpu.memory_space<vmem>>, %arg23: memref<32x32xbf16, #tpu.memory_space<vmem>>, %arg24: memref<1x32xf32, #tpu.memory_space<vmem>>, %arg25: memref<1x32xf32, #tpu.memory_space<vmem>>, %arg26: memref<1x32xf32, #tpu.memory_space<vmem>>, %arg27: memref<3x32xf32, #tpu.memory_space<vmem>>, %arg28: memref<32x32xbf16, #tpu.memory_space<vmem>>, %arg29: memref<1x32xf32, #tpu.memory_space<vmem>>, %arg30: memref<32x32xbf16, #tpu.memory_space<vmem>>, %arg31: memref<1x32xf32, #tpu.memory_space<vmem>>, %arg32: memref<32x32xbf16, #tpu.memory_space<vmem>>, %arg33: memref<1x32xf32, #tpu.memory_space<vmem>>, %arg34: memref<32x32xbf16, #tpu.memory_space<vmem>>, %arg35: memref<1x32xf32, #tpu.memory_space<vmem>>, %arg36: memref<1x32xf32, #tpu.memory_space<vmem>>, %arg37: memref<1x32xf32, #tpu.memory_space<vmem>>, %arg38: memref<32x32xbf16, #tpu.memory_space<vmem>>, %arg39: memref<1x32xf32, #tpu.memory_space<vmem>>, %arg40: memref<32x4xbf16, #tpu.memory_space<vmem>>, %arg41: memref<1x4xf32, #tpu.memory_space<vmem>>, %arg42: memref<1x4x8xf32, #tpu.memory_space<vmem>>, %arg43: memref<1x1x32xf32, #tpu.memory_space<vmem>>, %arg44: memref<1x3x4xf32, #tpu.memory_space<vmem>>) attributes {dimension_semantics = [#tpu.dimension_semantics<parallel>], iteration_bounds = array<i64: 2>, scalar_prefetch = 0 : i64, scratch_operands = 0 : i64, tpu.core_type = #tpu.core_type<tc>, window_params = [{transform_indices = @transform_0, window_bounds = array<i64: 1, 4, 8, 32>}, {pipeline_mode = #tpu.pipeline_mode<synchronous>, transform_indices = @transform_1, window_bounds = array<i64: 32, 32>}, {pipeline_mode = #tpu.pipeline_mode<synchronous>, transform_indices = @transform_2, window_bounds = array<i64: 1, 32>}, {pipeline_mode = #tpu.pipeline_mode<synchronous>, transform_indices = @transform_3, window_bounds = array<i64: 32, 32>}, {pipeline_mode = #tpu.pipeline_mode<synchronous>, transform_indices = @transform_4, window_bounds = array<i64: 1, 32>}, {pipeline_mode = #tpu.pipeline_mode<synchronous>, transform_indices = @transform_5, window_bounds = array<i64: 32, 32>}, {pipeline_mode = #tpu.pipeline_mode<synchronous>, transform_indices = @transform_6, window_bounds = array<i64: 1, 32>}, {pipeline_mode = #tpu.pipeline_mode<synchronous>, transform_indices = @transform_7, window_bounds = array<i64: 32, 32>}, {pipeline_mode = #tpu.pipeline_mode<synchronous>, transform_indices = @transform_8, window_bounds = array<i64: 1, 32>}, {pipeline_mode = #tpu.pipeline_mode<synchronous>, transform_indices = @transform_9, window_bounds = array<i64: 32, 32>}, {pipeline_mode = #tpu.pipeline_mode<synchronous>, transform_indices = @transform_10, window_bounds = array<i64: 1, 32>}, {pipeline_mode = #tpu.pipeline_mode<synchronous>, transform_indices = @transform_11, window_bounds = array<i64: 32, 8>}, {pipeline_mode = #tpu.pipeline_mode<synchronous>, transform_indices = @transform_12, window_bounds = array<i64: 1, 8>}, {pipeline_mode = #tpu.pipeline_mode<synchronous>, transform_indices = @transform_13, window_bounds = array<i64: 1, 8>}, {pipeline_mode = #tpu.pipeline_mode<synchronous>, transform_indices = @transform_14, window_bounds = array<i64: 1, 8>}, {pipeline_mode = #tpu.pipeline_mode<synchronous>, transform_indices = @transform_15, window_bounds = array<i64: 1, 32>}, {pipeline_mode = #tpu.pipeline_mode<synchronous>, transform_indices = @transform_16, window_bounds = array<i64: 32, 32>}, {pipeline_mode = #tpu.pipeline_mode<synchronous>, transform_indices = @transform_17, window_bounds = array<i64: 1, 32>}, {pipeline_mode = #tpu.pipeline_mode<synchronous>, transform_indices = @transform_18, window_bounds = array<i64: 32, 32>}, {pipeline_mode = #tpu.pipeline_mode<synchronous>, transform_indices = @transform_19, window_bounds = array<i64: 1, 32>}, {pipeline_mode = #tpu.pipeline_mode<synchronous>, transform_indices = @transform_20, window_bounds = array<i64: 32, 32>}, {pipeline_mode = #tpu.pipeline_mode<synchronous>, transform_indices = @transform_21, window_bounds = array<i64: 1, 32>}, {pipeline_mode = #tpu.pipeline_mode<synchronous>, transform_indices = @transform_22, window_bounds = array<i64: 32, 32>}, {pipeline_mode = #tpu.pipeline_mode<synchronous>, transform_indices = @transform_23, window_bounds = array<i64: 1, 32>}, {pipeline_mode = #tpu.pipeline_mode<synchronous>, transform_indices = @transform_24, window_bounds = array<i64: 1, 32>}, {pipeline_mode = #tpu.pipeline_mode<synchronous>, transform_indices = @transform_25, window_bounds = array<i64: 1, 32>}, {pipeline_mode = #tpu.pipeline_mode<synchronous>, transform_indices = @transform_26, window_bounds = array<i64: 3, 32>}, {pipeline_mode = #tpu.pipeline_mode<synchronous>, transform_indices = @transform_27, window_bounds = array<i64: 32, 32>}, {pipeline_mode = #tpu.pipeline_mode<synchronous>, transform_indices = @transform_28, window_bounds = array<i64: 1, 32>}, {pipeline_mode = #tpu.pipeline_mode<synchronous>, transform_indices = @transform_29, window_bounds = array<i64: 32, 32>}, {pipeline_mode = #tpu.pipeline_mode<synchronous>, transform_indices = @transform_30, window_bounds = array<i64: 1, 32>}, {pipeline_mode = #tpu.pipeline_mode<synchronous>, transform_indices = @transform_31, window_bounds = array<i64: 32, 32>}, {pipeline_mode = #tpu.pipeline_mode<synchronous>, transform_indices = @transform_32, window_bounds = array<i64: 1, 32>}, {pipeline_mode = #tpu.pipeline_mode<synchronous>, transform_indices = @transform_33, window_bounds = array<i64: 32, 32>}, {pipeline_mode = #tpu.pipeline_mode<synchronous>, transform_indices = @transform_34, window_bounds = array<i64: 1, 32>}, {pipeline_mode = #tpu.pipeline_mode<synchronous>, transform_indices = @transform_35, window_bounds = array<i64: 1, 32>}, {pipeline_mode = #tpu.pipeline_mode<synchronous>, transform_indices = @transform_36, window_bounds = array<i64: 1, 32>}, {pipeline_mode = #tpu.pipeline_mode<synchronous>, transform_indices = @transform_37, window_bounds = array<i64: 32, 32>}, {pipeline_mode = #tpu.pipeline_mode<synchronous>, transform_indices = @transform_38, window_bounds = array<i64: 1, 32>}, {pipeline_mode = #tpu.pipeline_mode<synchronous>, transform_indices = @transform_39, window_bounds = array<i64: 32, 4>}, {pipeline_mode = #tpu.pipeline_mode<synchronous>, transform_indices = @transform_40, window_bounds = array<i64: 1, 4>}, {transform_indices = @transform_41, window_bounds = array<i64: 1, 4, 8>}, {transform_indices = @transform_42, window_bounds = array<i64: 1, 1, 32>}, {transform_indices = @transform_43, window_bounds = array<i64: 1, 3, 4>}]} {
    %c0 = arith.constant 0 : index
    %c0_0 = arith.constant 0 : index
    %0 = vector.load %arg2[%c0, %c0_0] : memref<32x32xbf16, #tpu.memory_space<vmem>>, vector<32x32xbf16>
    %c0_1 = arith.constant 0 : index
    %c0_2 = arith.constant 0 : index
    %1 = vector.load %arg3[%c0_1, %c0_2] : memref<1x32xf32, #tpu.memory_space<vmem>>, vector<1x32xf32>
    %c0_3 = arith.constant 0 : index
    %c0_4 = arith.constant 0 : index
    %2 = vector.load %arg4[%c0_3, %c0_4] : memref<32x32xbf16, #tpu.memory_space<vmem>>, vector<32x32xbf16>
    %c0_5 = arith.constant 0 : index
    %c0_6 = arith.constant 0 : index
    %3 = vector.load %arg5[%c0_5, %c0_6] : memref<1x32xf32, #tpu.memory_space<vmem>>, vector<1x32xf32>
    %c0_7 = arith.constant 0 : index
    %c0_8 = arith.constant 0 : index
    %4 = vector.load %arg6[%c0_7, %c0_8] : memref<32x32xbf16, #tpu.memory_space<vmem>>, vector<32x32xbf16>
    %c0_9 = arith.constant 0 : index
    %c0_10 = arith.constant 0 : index
    %5 = vector.load %arg7[%c0_9, %c0_10] : memref<1x32xf32, #tpu.memory_space<vmem>>, vector<1x32xf32>
    %c0_11 = arith.constant 0 : index
    %c0_12 = arith.constant 0 : index
    %c0_13 = arith.constant 0 : index
    %c0_14 = arith.constant 0 : index
    %6 = vector.load %arg1[%c0_11, %c0_12, %c0_13, %c0_14] : memref<1x4x8x32xf32, #tpu.memory_space<vmem>>, vector<1x1x8x32xf32>
    %7 = vector.shape_cast %6 : vector<1x1x8x32xf32> to vector<8x32xf32>
    %8 = vector.extract_strided_slice %7 {offsets = [7, 0], sizes = [1, 32], strides = [1, 1]} : vector<8x32xf32> to vector<1x32xf32>
    %9 = arith.truncf %8 : vector<1x32xf32> to vector<1x32xbf16>
    %cst = arith.constant dense<0.000000e+00> : vector<1x32xf32>
    %10 = tpu.matmul %9, %0, %cst {dimension_numbers = #tpu.dot_dimension_numbers<[1], [0], [0], [1], [0, 0, 1, 1], [], []>} : vector<1x32xbf16>, vector<32x32xbf16>, vector<1x32xf32> -> vector<1x32xf32>
    %11 = arith.addf %10, %1 : vector<1x32xf32>
    %12 = arith.truncf %7 : vector<8x32xf32> to vector<8x32xbf16>
    %cst_15 = arith.constant dense<0.000000e+00> : vector<8x32xf32>
    %13 = tpu.matmul %12, %2, %cst_15 {dimension_numbers = #tpu.dot_dimension_numbers<[1], [0], [0], [1], [0, 0, 1, 1], [], []>} : vector<8x32xbf16>, vector<32x32xbf16>, vector<8x32xf32> -> vector<8x32xf32>
    %14 = vector.broadcast %3 : vector<1x32xf32> to vector<8x32xf32>
    %15 = arith.addf %13, %14 : vector<8x32xf32>
    %16 = arith.truncf %7 : vector<8x32xf32> to vector<8x32xbf16>
    %cst_16 = arith.constant dense<0.000000e+00> : vector<8x32xf32>
    %17 = tpu.matmul %16, %4, %cst_16 {dimension_numbers = #tpu.dot_dimension_numbers<[1], [0], [0], [1], [0, 0, 1, 1], [], []>} : vector<8x32xbf16>, vector<32x32xbf16>, vector<8x32xf32> -> vector<8x32xf32>
    %18 = vector.broadcast %5 : vector<1x32xf32> to vector<8x32xf32>
    %19 = arith.addf %17, %18 : vector<8x32xf32>
    %20 = arith.truncf %11 : vector<1x32xf32> to vector<1x32xbf16>
    %21 = arith.truncf %15 : vector<8x32xf32> to vector<8x32xbf16>
    %cst_17 = arith.constant dense<0.000000e+00> : vector<1x8xf32>
    %22 = tpu.matmul %20, %21, %cst_17 {dimension_numbers = #tpu.dot_dimension_numbers<[1], [1], [0], [0], [0, 0, 1, 0], [], []>} : vector<1x32xbf16>, vector<8x32xbf16>, vector<1x8xf32> -> vector<1x8xf32>
    %cst_18 = arith.constant dense<0xFF800000> : vector<1xf32>
    %23 = vector.multi_reduction <maximumf>, %22, %cst_18 [1] : vector<1x8xf32> to vector<1xf32>
    %24 = vector.shape_cast %23 : vector<1xf32> to vector<1x1xf32>
    %25 = vector.broadcast %24 : vector<1x1xf32> to vector<1x8xf32>
    %26 = arith.subf %22, %25 : vector<1x8xf32>
    %27 = math.exp %26 : vector<1x8xf32>
    %cst_19 = arith.constant dense<0.000000e+00> : vector<1xf32>
    %28 = vector.multi_reduction <add>, %27, %cst_19 [1] : vector<1x8xf32> to vector<1xf32>
    %29 = vector.shape_cast %28 : vector<1xf32> to vector<1x1xf32>
    %30 = tpu.reciprocal %29 {approx = true} : vector<1x1xf32> -> vector<1x1xf32>
    %31 = vector.broadcast %30 : vector<1x1xf32> to vector<1x8xf32>
    %32 = arith.mulf %27, %31 : vector<1x8xf32>
    %33 = arith.truncf %32 : vector<1x8xf32> to vector<1x8xbf16>
    %34 = arith.truncf %19 : vector<8x32xf32> to vector<8x32xbf16>
    %cst_20 = arith.constant dense<0.000000e+00> : vector<1x32xf32>
    %35 = tpu.matmul %33, %34, %cst_20 {dimension_numbers = #tpu.dot_dimension_numbers<[1], [0], [0], [1], [0, 0, 1, 1], [], []>} : vector<1x8xbf16>, vector<8x32xbf16>, vector<1x32xf32> -> vector<1x32xf32>
    %c0_21 = arith.constant 0 : index
    %c1 = arith.constant 1 : index
    %c0_22 = arith.constant 0 : index
    %c0_23 = arith.constant 0 : index
    %36 = vector.load %arg1[%c0_21, %c1, %c0_22, %c0_23] : memref<1x4x8x32xf32, #tpu.memory_space<vmem>>, vector<1x1x8x32xf32>
    %37 = vector.shape_cast %36 : vector<1x1x8x32xf32> to vector<8x32xf32>
    %38 = vector.extract_strided_slice %37 {offsets = [7, 0], sizes = [1, 32], strides = [1, 1]} : vector<8x32xf32> to vector<1x32xf32>
    %39 = arith.truncf %38 : vector<1x32xf32> to vector<1x32xbf16>
    %cst_24 = arith.constant dense<0.000000e+00> : vector<1x32xf32>
    %40 = tpu.matmul %39, %0, %cst_24 {dimension_numbers = #tpu.dot_dimension_numbers<[1], [0], [0], [1], [0, 0, 1, 1], [], []>} : vector<1x32xbf16>, vector<32x32xbf16>, vector<1x32xf32> -> vector<1x32xf32>
    %41 = arith.addf %40, %1 : vector<1x32xf32>
    %42 = arith.truncf %37 : vector<8x32xf32> to vector<8x32xbf16>
    %cst_25 = arith.constant dense<0.000000e+00> : vector<8x32xf32>
    %43 = tpu.matmul %42, %2, %cst_25 {dimension_numbers = #tpu.dot_dimension_numbers<[1], [0], [0], [1], [0, 0, 1, 1], [], []>} : vector<8x32xbf16>, vector<32x32xbf16>, vector<8x32xf32> -> vector<8x32xf32>
    %44 = vector.broadcast %3 : vector<1x32xf32> to vector<8x32xf32>
    %45 = arith.addf %43, %44 : vector<8x32xf32>
    %46 = arith.truncf %37 : vector<8x32xf32> to vector<8x32xbf16>
    %cst_26 = arith.constant dense<0.000000e+00> : vector<8x32xf32>
    %47 = tpu.matmul %46, %4, %cst_26 {dimension_numbers = #tpu.dot_dimension_numbers<[1], [0], [0], [1], [0, 0, 1, 1], [], []>} : vector<8x32xbf16>, vector<32x32xbf16>, vector<8x32xf32> -> vector<8x32xf32>
    %48 = vector.broadcast %5 : vector<1x32xf32> to vector<8x32xf32>
    %49 = arith.addf %47, %48 : vector<8x32xf32>
    %50 = arith.truncf %41 : vector<1x32xf32> to vector<1x32xbf16>
    %51 = arith.truncf %45 : vector<8x32xf32> to vector<8x32xbf16>
    %cst_27 = arith.constant dense<0.000000e+00> : vector<1x8xf32>
    %52 = tpu.matmul %50, %51, %cst_27 {dimension_numbers = #tpu.dot_dimension_numbers<[1], [1], [0], [0], [0, 0, 1, 0], [], []>} : vector<1x32xbf16>, vector<8x32xbf16>, vector<1x8xf32> -> vector<1x8xf32>
    %cst_28 = arith.constant dense<0xFF800000> : vector<1xf32>
    %53 = vector.multi_reduction <maximumf>, %52, %cst_28 [1] : vector<1x8xf32> to vector<1xf32>
    %54 = vector.shape_cast %53 : vector<1xf32> to vector<1x1xf32>
    %55 = vector.broadcast %54 : vector<1x1xf32> to vector<1x8xf32>
    %56 = arith.subf %52, %55 : vector<1x8xf32>
    %57 = math.exp %56 : vector<1x8xf32>
    %cst_29 = arith.constant dense<0.000000e+00> : vector<1xf32>
    %58 = vector.multi_reduction <add>, %57, %cst_29 [1] : vector<1x8xf32> to vector<1xf32>
    %59 = vector.shape_cast %58 : vector<1xf32> to vector<1x1xf32>
    %60 = tpu.reciprocal %59 {approx = true} : vector<1x1xf32> -> vector<1x1xf32>
    %61 = vector.broadcast %60 : vector<1x1xf32> to vector<1x8xf32>
    %62 = arith.mulf %57, %61 : vector<1x8xf32>
    %63 = arith.truncf %62 : vector<1x8xf32> to vector<1x8xbf16>
    %64 = arith.truncf %49 : vector<8x32xf32> to vector<8x32xbf16>
    %cst_30 = arith.constant dense<0.000000e+00> : vector<1x32xf32>
    %65 = tpu.matmul %63, %64, %cst_30 {dimension_numbers = #tpu.dot_dimension_numbers<[1], [0], [0], [1], [0, 0, 1, 1], [], []>} : vector<1x8xbf16>, vector<8x32xbf16>, vector<1x32xf32> -> vector<1x32xf32>
    %c0_31 = arith.constant 0 : index
    %c2 = arith.constant 2 : index
    %c0_32 = arith.constant 0 : index
    %c0_33 = arith.constant 0 : index
    %66 = vector.load %arg1[%c0_31, %c2, %c0_32, %c0_33] : memref<1x4x8x32xf32, #tpu.memory_space<vmem>>, vector<1x1x8x32xf32>
    %67 = vector.shape_cast %66 : vector<1x1x8x32xf32> to vector<8x32xf32>
    %68 = vector.extract_strided_slice %67 {offsets = [7, 0], sizes = [1, 32], strides = [1, 1]} : vector<8x32xf32> to vector<1x32xf32>
    %69 = arith.truncf %68 : vector<1x32xf32> to vector<1x32xbf16>
    %cst_34 = arith.constant dense<0.000000e+00> : vector<1x32xf32>
    %70 = tpu.matmul %69, %0, %cst_34 {dimension_numbers = #tpu.dot_dimension_numbers<[1], [0], [0], [1], [0, 0, 1, 1], [], []>} : vector<1x32xbf16>, vector<32x32xbf16>, vector<1x32xf32> -> vector<1x32xf32>
    %71 = arith.addf %70, %1 : vector<1x32xf32>
    %72 = arith.truncf %67 : vector<8x32xf32> to vector<8x32xbf16>
    %cst_35 = arith.constant dense<0.000000e+00> : vector<8x32xf32>
    %73 = tpu.matmul %72, %2, %cst_35 {dimension_numbers = #tpu.dot_dimension_numbers<[1], [0], [0], [1], [0, 0, 1, 1], [], []>} : vector<8x32xbf16>, vector<32x32xbf16>, vector<8x32xf32> -> vector<8x32xf32>
    %74 = vector.broadcast %3 : vector<1x32xf32> to vector<8x32xf32>
    %75 = arith.addf %73, %74 : vector<8x32xf32>
    %76 = arith.truncf %67 : vector<8x32xf32> to vector<8x32xbf16>
    %cst_36 = arith.constant dense<0.000000e+00> : vector<8x32xf32>
    %77 = tpu.matmul %76, %4, %cst_36 {dimension_numbers = #tpu.dot_dimension_numbers<[1], [0], [0], [1], [0, 0, 1, 1], [], []>} : vector<8x32xbf16>, vector<32x32xbf16>, vector<8x32xf32> -> vector<8x32xf32>
    %78 = vector.broadcast %5 : vector<1x32xf32> to vector<8x32xf32>
    %79 = arith.addf %77, %78 : vector<8x32xf32>
    %80 = arith.truncf %71 : vector<1x32xf32> to vector<1x32xbf16>
    %81 = arith.truncf %75 : vector<8x32xf32> to vector<8x32xbf16>
    %cst_37 = arith.constant dense<0.000000e+00> : vector<1x8xf32>
    %82 = tpu.matmul %80, %81, %cst_37 {dimension_numbers = #tpu.dot_dimension_numbers<[1], [1], [0], [0], [0, 0, 1, 0], [], []>} : vector<1x32xbf16>, vector<8x32xbf16>, vector<1x8xf32> -> vector<1x8xf32>
    %cst_38 = arith.constant dense<0xFF800000> : vector<1xf32>
    %83 = vector.multi_reduction <maximumf>, %82, %cst_38 [1] : vector<1x8xf32> to vector<1xf32>
    %84 = vector.shape_cast %83 : vector<1xf32> to vector<1x1xf32>
    %85 = vector.broadcast %84 : vector<1x1xf32> to vector<1x8xf32>
    %86 = arith.subf %82, %85 : vector<1x8xf32>
    %87 = math.exp %86 : vector<1x8xf32>
    %cst_39 = arith.constant dense<0.000000e+00> : vector<1xf32>
    %88 = vector.multi_reduction <add>, %87, %cst_39 [1] : vector<1x8xf32> to vector<1xf32>
    %89 = vector.shape_cast %88 : vector<1xf32> to vector<1x1xf32>
    %90 = tpu.reciprocal %89 {approx = true} : vector<1x1xf32> -> vector<1x1xf32>
    %91 = vector.broadcast %90 : vector<1x1xf32> to vector<1x8xf32>
    %92 = arith.mulf %87, %91 : vector<1x8xf32>
    %93 = arith.truncf %92 : vector<1x8xf32> to vector<1x8xbf16>
    %94 = arith.truncf %79 : vector<8x32xf32> to vector<8x32xbf16>
    %cst_40 = arith.constant dense<0.000000e+00> : vector<1x32xf32>
    %95 = tpu.matmul %93, %94, %cst_40 {dimension_numbers = #tpu.dot_dimension_numbers<[1], [0], [0], [1], [0, 0, 1, 1], [], []>} : vector<1x8xbf16>, vector<8x32xbf16>, vector<1x32xf32> -> vector<1x32xf32>
    %c0_41 = arith.constant 0 : index
    %c3 = arith.constant 3 : index
    %c0_42 = arith.constant 0 : index
    %c0_43 = arith.constant 0 : index
    %96 = vector.load %arg1[%c0_41, %c3, %c0_42, %c0_43] : memref<1x4x8x32xf32, #tpu.memory_space<vmem>>, vector<1x1x8x32xf32>
    %97 = vector.shape_cast %96 : vector<1x1x8x32xf32> to vector<8x32xf32>
    %98 = vector.extract_strided_slice %97 {offsets = [7, 0], sizes = [1, 32], strides = [1, 1]} : vector<8x32xf32> to vector<1x32xf32>
    %99 = arith.truncf %98 : vector<1x32xf32> to vector<1x32xbf16>
    %cst_44 = arith.constant dense<0.000000e+00> : vector<1x32xf32>
    %100 = tpu.matmul %99, %0, %cst_44 {dimension_numbers = #tpu.dot_dimension_numbers<[1], [0], [0], [1], [0, 0, 1, 1], [], []>} : vector<1x32xbf16>, vector<32x32xbf16>, vector<1x32xf32> -> vector<1x32xf32>
    %101 = arith.addf %100, %1 : vector<1x32xf32>
    %102 = arith.truncf %97 : vector<8x32xf32> to vector<8x32xbf16>
    %cst_45 = arith.constant dense<0.000000e+00> : vector<8x32xf32>
    %103 = tpu.matmul %102, %2, %cst_45 {dimension_numbers = #tpu.dot_dimension_numbers<[1], [0], [0], [1], [0, 0, 1, 1], [], []>} : vector<8x32xbf16>, vector<32x32xbf16>, vector<8x32xf32> -> vector<8x32xf32>
    %104 = vector.broadcast %3 : vector<1x32xf32> to vector<8x32xf32>
    %105 = arith.addf %103, %104 : vector<8x32xf32>
    %106 = arith.truncf %97 : vector<8x32xf32> to vector<8x32xbf16>
    %cst_46 = arith.constant dense<0.000000e+00> : vector<8x32xf32>
    %107 = tpu.matmul %106, %4, %cst_46 {dimension_numbers = #tpu.dot_dimension_numbers<[1], [0], [0], [1], [0, 0, 1, 1], [], []>} : vector<8x32xbf16>, vector<32x32xbf16>, vector<8x32xf32> -> vector<8x32xf32>
    %108 = vector.broadcast %5 : vector<1x32xf32> to vector<8x32xf32>
    %109 = arith.addf %107, %108 : vector<8x32xf32>
    %110 = arith.truncf %101 : vector<1x32xf32> to vector<1x32xbf16>
    %111 = arith.truncf %105 : vector<8x32xf32> to vector<8x32xbf16>
    %cst_47 = arith.constant dense<0.000000e+00> : vector<1x8xf32>
    %112 = tpu.matmul %110, %111, %cst_47 {dimension_numbers = #tpu.dot_dimension_numbers<[1], [1], [0], [0], [0, 0, 1, 0], [], []>} : vector<1x32xbf16>, vector<8x32xbf16>, vector<1x8xf32> -> vector<1x8xf32>
    %cst_48 = arith.constant dense<0xFF800000> : vector<1xf32>
    %113 = vector.multi_reduction <maximumf>, %112, %cst_48 [1] : vector<1x8xf32> to vector<1xf32>
    %114 = vector.shape_cast %113 : vector<1xf32> to vector<1x1xf32>
    %115 = vector.broadcast %114 : vector<1x1xf32> to vector<1x8xf32>
    %116 = arith.subf %112, %115 : vector<1x8xf32>
    %117 = math.exp %116 : vector<1x8xf32>
    %cst_49 = arith.constant dense<0.000000e+00> : vector<1xf32>
    %118 = vector.multi_reduction <add>, %117, %cst_49 [1] : vector<1x8xf32> to vector<1xf32>
    %119 = vector.shape_cast %118 : vector<1xf32> to vector<1x1xf32>
    %120 = tpu.reciprocal %119 {approx = true} : vector<1x1xf32> -> vector<1x1xf32>
    %121 = vector.broadcast %120 : vector<1x1xf32> to vector<1x8xf32>
    %122 = arith.mulf %117, %121 : vector<1x8xf32>
    %123 = arith.truncf %122 : vector<1x8xf32> to vector<1x8xbf16>
    %124 = arith.truncf %109 : vector<8x32xf32> to vector<8x32xbf16>
    %cst_50 = arith.constant dense<0.000000e+00> : vector<1x32xf32>
    %125 = tpu.matmul %123, %124, %cst_50 {dimension_numbers = #tpu.dot_dimension_numbers<[1], [0], [0], [1], [0, 0, 1, 1], [], []>} : vector<1x8xbf16>, vector<8x32xbf16>, vector<1x32xf32> -> vector<1x32xf32>
    %126 = tpu.concatenate %35, %65, %95, %125 in 0 : vector<1x32xf32>, vector<1x32xf32>, vector<1x32xf32>, vector<1x32xf32> -> vector<4x32xf32>
    %c0_51 = arith.constant 0 : index
    %c0_52 = arith.constant 0 : index
    %127 = vector.load %arg8[%c0_51, %c0_52] : memref<32x32xbf16, #tpu.memory_space<vmem>>, vector<32x32xbf16>
    %128 = arith.truncf %126 : vector<4x32xf32> to vector<4x32xbf16>
    %cst_53 = arith.constant dense<0.000000e+00> : vector<4x32xf32>
    %129 = tpu.matmul %128, %127, %cst_53 {dimension_numbers = #tpu.dot_dimension_numbers<[1], [0], [0], [1], [0, 0, 1, 1], [], []>} : vector<4x32xbf16>, vector<32x32xbf16>, vector<4x32xf32> -> vector<4x32xf32>
    %c0_54 = arith.constant 0 : index
    %c0_55 = arith.constant 0 : index
    %130 = vector.load %arg9[%c0_54, %c0_55] : memref<1x32xf32, #tpu.memory_space<vmem>>, vector<1x32xf32>
    %131 = vector.broadcast %130 : vector<1x32xf32> to vector<4x32xf32>
    %132 = arith.addf %129, %131 : vector<4x32xf32>
    %c0_56 = arith.constant 0 : index
    %c0_57 = arith.constant 0 : index
    %133 = vector.load %arg10[%c0_56, %c0_57] : memref<32x32xbf16, #tpu.memory_space<vmem>>, vector<32x32xbf16>
    %134 = arith.truncf %132 : vector<4x32xf32> to vector<4x32xbf16>
    %cst_58 = arith.constant dense<0.000000e+00> : vector<4x32xf32>
    %135 = tpu.matmul %134, %133, %cst_58 {dimension_numbers = #tpu.dot_dimension_numbers<[1], [0], [0], [1], [0, 0, 1, 1], [], []>} : vector<4x32xbf16>, vector<32x32xbf16>, vector<4x32xf32> -> vector<4x32xf32>
    %c0_59 = arith.constant 0 : index
    %c0_60 = arith.constant 0 : index
    %136 = vector.load %arg11[%c0_59, %c0_60] : memref<1x32xf32, #tpu.memory_space<vmem>>, vector<1x32xf32>
    %137 = vector.broadcast %136 : vector<1x32xf32> to vector<4x32xf32>
    %138 = arith.addf %135, %137 : vector<4x32xf32>
    %cst_61 = arith.constant 0.000000e+00 : f32
    %139 = vector.broadcast %cst_61 : f32 to vector<4x32xf32>
    %140 = arith.maximumf %138, %139 : vector<4x32xf32>
    %c0_62 = arith.constant 0 : index
    %c0_63 = arith.constant 0 : index
    %141 = vector.load %arg12[%c0_62, %c0_63] : memref<32x8xbf16, #tpu.memory_space<vmem>>, vector<32x8xbf16>
    %142 = arith.truncf %140 : vector<4x32xf32> to vector<4x32xbf16>
    %cst_64 = arith.constant dense<0.000000e+00> : vector<4x8xf32>
    %143 = tpu.matmul %142, %141, %cst_64 {dimension_numbers = #tpu.dot_dimension_numbers<[1], [0], [0], [1], [0, 0, 1, 1], [], []>} : vector<4x32xbf16>, vector<32x8xbf16>, vector<4x8xf32> -> vector<4x8xf32>
    %c0_65 = arith.constant 0 : index
    %c0_66 = arith.constant 0 : index
    %144 = vector.load %arg13[%c0_65, %c0_66] : memref<1x8xf32, #tpu.memory_space<vmem>>, vector<1x8xf32>
    %145 = vector.broadcast %144 : vector<1x8xf32> to vector<4x8xf32>
    %146 = arith.addf %143, %145 : vector<4x8xf32>
    %c0_67 = arith.constant 0 : index
    %c0_68 = arith.constant 0 : index
    %147 = vector.load %arg14[%c0_67, %c0_68] : memref<1x8xf32, #tpu.memory_space<vmem>>, vector<1x8xf32>
    %c0_69 = arith.constant 0 : index
    %c0_70 = arith.constant 0 : index
    %148 = vector.load %arg15[%c0_69, %c0_70] : memref<1x8xf32, #tpu.memory_space<vmem>>, vector<1x8xf32>
    %cst_71 = arith.constant dense<0.000000e+00> : vector<4xf32>
    %149 = vector.multi_reduction <add>, %146, %cst_71 [1] : vector<4x8xf32> to vector<4xf32>
    %150 = vector.shape_cast %149 : vector<4xf32> to vector<4x1xf32>
    %cst_72 = arith.constant 8.000000e+00 : f32
    %151 = vector.broadcast %cst_72 : f32 to vector<4x1xf32>
    %152 = arith.divf %150, %151 : vector<4x1xf32>
    %153 = vector.broadcast %152 : vector<4x1xf32> to vector<4x8xf32>
    %154 = arith.subf %146, %153 : vector<4x8xf32>
    %155 = arith.mulf %154, %154 : vector<4x8xf32>
    %cst_73 = arith.constant dense<0.000000e+00> : vector<4xf32>
    %156 = vector.multi_reduction <add>, %155, %cst_73 [1] : vector<4x8xf32> to vector<4xf32>
    %157 = vector.shape_cast %156 : vector<4xf32> to vector<4x1xf32>
    %cst_74 = arith.constant 8.000000e+00 : f32
    %158 = vector.broadcast %cst_74 : f32 to vector<4x1xf32>
    %159 = arith.divf %157, %158 : vector<4x1xf32>
    %160 = vector.broadcast %152 : vector<4x1xf32> to vector<4x8xf32>
    %161 = arith.subf %146, %160 : vector<4x8xf32>
    %cst_75 = arith.constant 9.99999974E-6 : f32
    %162 = vector.broadcast %cst_75 : f32 to vector<4x1xf32>
    %163 = arith.addf %159, %162 : vector<4x1xf32>
    %164 = math.rsqrt %163 : vector<4x1xf32>
    %165 = vector.broadcast %164 : vector<4x1xf32> to vector<4x8xf32>
    %166 = arith.mulf %161, %165 : vector<4x8xf32>
    %167 = vector.broadcast %147 : vector<1x8xf32> to vector<4x8xf32>
    %168 = arith.mulf %166, %167 : vector<4x8xf32>
    %169 = vector.broadcast %148 : vector<1x8xf32> to vector<4x8xf32>
    %170 = arith.addf %168, %169 : vector<4x8xf32>
    %c0_76 = arith.constant 0 : index
    %c0_77 = arith.constant 0 : index
    %c0_78 = arith.constant 0 : index
    %171 = vector.load %arg42[%c0_76, %c0_77, %c0_78] : memref<1x4x8xf32, #tpu.memory_space<vmem>>, vector<1x4x8xf32>
    %172 = vector.shape_cast %171 : vector<1x4x8xf32> to vector<4x8xf32>
    %173 = vector.shape_cast %170 : vector<4x8xf32> to vector<1x4x8xf32>
    tpu.vector_store %arg42[%c0_76, %c0_77, %c0_78], %173 {strides = array<i32>} : memref<1x4x8xf32, #tpu.memory_space<vmem>>, vector<1x4x8xf32>,
    %c0_79 = arith.constant 0 : index
    %c0_80 = arith.constant 0 : index
    %174 = vector.load %arg16[%c0_79, %c0_80] : memref<1x32xf32, #tpu.memory_space<vmem>>, vector<1x32xf32>
    %c0_81 = arith.constant 0 : index
    %c0_82 = arith.constant 0 : index
    %175 = vector.load %arg17[%c0_81, %c0_82] : memref<32x32xbf16, #tpu.memory_space<vmem>>, vector<32x32xbf16>
    %c0_83 = arith.constant 0 : index
    %c0_84 = arith.constant 0 : index
    %176 = vector.load %arg18[%c0_83, %c0_84] : memref<1x32xf32, #tpu.memory_space<vmem>>, vector<1x32xf32>
    %c0_85 = arith.constant 0 : index
    %c0_86 = arith.constant 0 : index
    %177 = vector.load %arg19[%c0_85, %c0_86] : memref<32x32xbf16, #tpu.memory_space<vmem>>, vector<32x32xbf16>
    %c0_87 = arith.constant 0 : index
    %c0_88 = arith.constant 0 : index
    %178 = vector.load %arg20[%c0_87, %c0_88] : memref<1x32xf32, #tpu.memory_space<vmem>>, vector<1x32xf32>
    %c0_89 = arith.constant 0 : index
    %c0_90 = arith.constant 0 : index
    %179 = vector.load %arg21[%c0_89, %c0_90] : memref<32x32xbf16, #tpu.memory_space<vmem>>, vector<32x32xbf16>
    %c0_91 = arith.constant 0 : index
    %c0_92 = arith.constant 0 : index
    %180 = vector.load %arg22[%c0_91, %c0_92] : memref<1x32xf32, #tpu.memory_space<vmem>>, vector<1x32xf32>
    %c0_93 = arith.constant 0 : index
    %c0_94 = arith.constant 0 : index
    %181 = vector.load %arg23[%c0_93, %c0_94] : memref<32x32xbf16, #tpu.memory_space<vmem>>, vector<32x32xbf16>
    %c0_95 = arith.constant 0 : index
    %c0_96 = arith.constant 0 : index
    %182 = vector.load %arg24[%c0_95, %c0_96] : memref<1x32xf32, #tpu.memory_space<vmem>>, vector<1x32xf32>
    %183 = arith.truncf %174 : vector<1x32xf32> to vector<1x32xbf16>
    %cst_97 = arith.constant dense<0.000000e+00> : vector<1x32xf32>
    %184 = tpu.matmul %183, %175, %cst_97 {dimension_numbers = #tpu.dot_dimension_numbers<[1], [0], [0], [1], [0, 0, 1, 1], [], []>} : vector<1x32xbf16>, vector<32x32xbf16>, vector<1x32xf32> -> vector<1x32xf32>
    %185 = arith.addf %184, %176 : vector<1x32xf32>
    %186 = arith.truncf %132 : vector<4x32xf32> to vector<4x32xbf16>
    %cst_98 = arith.constant dense<0.000000e+00> : vector<4x32xf32>
    %187 = tpu.matmul %186, %177, %cst_98 {dimension_numbers = #tpu.dot_dimension_numbers<[1], [0], [0], [1], [0, 0, 1, 1], [], []>} : vector<4x32xbf16>, vector<32x32xbf16>, vector<4x32xf32> -> vector<4x32xf32>
    %188 = vector.broadcast %178 : vector<1x32xf32> to vector<4x32xf32>
    %189 = arith.addf %187, %188 : vector<4x32xf32>
    %190 = arith.truncf %132 : vector<4x32xf32> to vector<4x32xbf16>
    %cst_99 = arith.constant dense<0.000000e+00> : vector<4x32xf32>
    %191 = tpu.matmul %190, %179, %cst_99 {dimension_numbers = #tpu.dot_dimension_numbers<[1], [0], [0], [1], [0, 0, 1, 1], [], []>} : vector<4x32xbf16>, vector<32x32xbf16>, vector<4x32xf32> -> vector<4x32xf32>
    %192 = vector.broadcast %180 : vector<1x32xf32> to vector<4x32xf32>
    %193 = arith.addf %191, %192 : vector<4x32xf32>
    %194 = arith.truncf %185 : vector<1x32xf32> to vector<1x32xbf16>
    %195 = arith.truncf %189 : vector<4x32xf32> to vector<4x32xbf16>
    %cst_100 = arith.constant dense<0.000000e+00> : vector<1x4xf32>
    %196 = tpu.matmul %194, %195, %cst_100 {dimension_numbers = #tpu.dot_dimension_numbers<[1], [1], [0], [0], [0, 0, 1, 0], [], []>} : vector<1x32xbf16>, vector<4x32xbf16>, vector<1x4xf32> -> vector<1x4xf32>
    %cst_101 = arith.constant dense<0xFF800000> : vector<1xf32>
    %197 = vector.multi_reduction <maximumf>, %196, %cst_101 [1] : vector<1x4xf32> to vector<1xf32>
    %198 = vector.shape_cast %197 : vector<1xf32> to vector<1x1xf32>
    %199 = vector.broadcast %198 : vector<1x1xf32> to vector<1x4xf32>
    %200 = arith.subf %196, %199 : vector<1x4xf32>
    %201 = math.exp %200 : vector<1x4xf32>
    %cst_102 = arith.constant dense<0.000000e+00> : vector<1xf32>
    %202 = vector.multi_reduction <add>, %201, %cst_102 [1] : vector<1x4xf32> to vector<1xf32>
    %203 = vector.shape_cast %202 : vector<1xf32> to vector<1x1xf32>
    %204 = tpu.reciprocal %203 {approx = true} : vector<1x1xf32> -> vector<1x1xf32>
    %205 = vector.broadcast %204 : vector<1x1xf32> to vector<1x4xf32>
    %206 = arith.mulf %201, %205 : vector<1x4xf32>
    %207 = arith.truncf %206 : vector<1x4xf32> to vector<1x4xbf16>
    %208 = arith.truncf %193 : vector<4x32xf32> to vector<4x32xbf16>
    %cst_103 = arith.constant dense<0.000000e+00> : vector<1x32xf32>
    %209 = tpu.matmul %207, %208, %cst_103 {dimension_numbers = #tpu.dot_dimension_numbers<[1], [0], [0], [1], [0, 0, 1, 1], [], []>} : vector<1x4xbf16>, vector<4x32xbf16>, vector<1x32xf32> -> vector<1x32xf32>
    %210 = arith.truncf %209 : vector<1x32xf32> to vector<1x32xbf16>
    %cst_104 = arith.constant dense<0.000000e+00> : vector<1x32xf32>
    %211 = tpu.matmul %210, %181, %cst_104 {dimension_numbers = #tpu.dot_dimension_numbers<[1], [0], [0], [1], [0, 0, 1, 1], [], []>} : vector<1x32xbf16>, vector<32x32xbf16>, vector<1x32xf32> -> vector<1x32xf32>
    %212 = arith.addf %211, %182 : vector<1x32xf32>
    %c0_105 = arith.constant 0 : index
    %c0_106 = arith.constant 0 : index
    %213 = vector.load %arg25[%c0_105, %c0_106] : memref<1x32xf32, #tpu.memory_space<vmem>>, vector<1x32xf32>
    %c0_107 = arith.constant 0 : index
    %c0_108 = arith.constant 0 : index
    %214 = vector.load %arg26[%c0_107, %c0_108] : memref<1x32xf32, #tpu.memory_space<vmem>>, vector<1x32xf32>
    %cst_109 = arith.constant dense<0.000000e+00> : vector<1xf32>
    %215 = vector.multi_reduction <add>, %212, %cst_109 [1] : vector<1x32xf32> to vector<1xf32>
    %216 = vector.shape_cast %215 : vector<1xf32> to vector<1x1xf32>
    %cst_110 = arith.constant 3.200000e+01 : f32
    %217 = vector.broadcast %cst_110 : f32 to vector<1x1xf32>
    %218 = arith.divf %216, %217 : vector<1x1xf32>
    %219 = vector.broadcast %218 : vector<1x1xf32> to vector<1x32xf32>
    %220 = arith.subf %212, %219 : vector<1x32xf32>
    %221 = arith.mulf %220, %220 : vector<1x32xf32>
    %cst_111 = arith.constant dense<0.000000e+00> : vector<1xf32>
    %222 = vector.multi_reduction <add>, %221, %cst_111 [1] : vector<1x32xf32> to vector<1xf32>
    %223 = vector.shape_cast %222 : vector<1xf32> to vector<1x1xf32>
    %cst_112 = arith.constant 3.200000e+01 : f32
    %224 = vector.broadcast %cst_112 : f32 to vector<1x1xf32>
    %225 = arith.divf %223, %224 : vector<1x1xf32>
    %226 = vector.broadcast %218 : vector<1x1xf32> to vector<1x32xf32>
    %227 = arith.subf %212, %226 : vector<1x32xf32>
    %cst_113 = arith.constant 9.99999974E-6 : f32
    %228 = vector.broadcast %cst_113 : f32 to vector<1x1xf32>
    %229 = arith.addf %225, %228 : vector<1x1xf32>
    %230 = math.rsqrt %229 : vector<1x1xf32>
    %231 = vector.broadcast %230 : vector<1x1xf32> to vector<1x32xf32>
    %232 = arith.mulf %227, %231 : vector<1x32xf32>
    %233 = arith.mulf %232, %213 : vector<1x32xf32>
    %234 = arith.addf %233, %214 : vector<1x32xf32>
    %c0_114 = arith.constant 0 : index
    %c0_115 = arith.constant 0 : index
    %c0_116 = arith.constant 0 : index
    %235 = vector.load %arg43[%c0_114, %c0_115, %c0_116] : memref<1x1x32xf32, #tpu.memory_space<vmem>>, vector<1x1x32xf32>
    %236 = vector.shape_cast %235 : vector<1x1x32xf32> to vector<1x32xf32>
    %237 = vector.shape_cast %234 : vector<1x32xf32> to vector<1x1x32xf32>
    tpu.vector_store %arg43[%c0_114, %c0_115, %c0_116], %237 {strides = array<i32>} : memref<1x1x32xf32, #tpu.memory_space<vmem>>, vector<1x1x32xf32>,
    %c0_117 = arith.constant 0 : index
    %c0_118 = arith.constant 0 : index
    %238 = vector.load %arg27[%c0_117, %c0_118] : memref<3x32xf32, #tpu.memory_space<vmem>>, vector<3x32xf32>
    %c0_119 = arith.constant 0 : index
    %c0_120 = arith.constant 0 : index
    %239 = vector.load %arg28[%c0_119, %c0_120] : memref<32x32xbf16, #tpu.memory_space<vmem>>, vector<32x32xbf16>
    %c0_121 = arith.constant 0 : index
    %c0_122 = arith.constant 0 : index
    %240 = vector.load %arg29[%c0_121, %c0_122] : memref<1x32xf32, #tpu.memory_space<vmem>>, vector<1x32xf32>
    %c0_123 = arith.constant 0 : index
    %c0_124 = arith.constant 0 : index
    %241 = vector.load %arg30[%c0_123, %c0_124] : memref<32x32xbf16, #tpu.memory_space<vmem>>, vector<32x32xbf16>
    %c0_125 = arith.constant 0 : index
    %c0_126 = arith.constant 0 : index
    %242 = vector.load %arg31[%c0_125, %c0_126] : memref<1x32xf32, #tpu.memory_space<vmem>>, vector<1x32xf32>
    %c0_127 = arith.constant 0 : index
    %c0_128 = arith.constant 0 : index
    %243 = vector.load %arg32[%c0_127, %c0_128] : memref<32x32xbf16, #tpu.memory_space<vmem>>, vector<32x32xbf16>
    %c0_129 = arith.constant 0 : index
    %c0_130 = arith.constant 0 : index
    %244 = vector.load %arg33[%c0_129, %c0_130] : memref<1x32xf32, #tpu.memory_space<vmem>>, vector<1x32xf32>
    %c0_131 = arith.constant 0 : index
    %c0_132 = arith.constant 0 : index
    %245 = vector.load %arg34[%c0_131, %c0_132] : memref<32x32xbf16, #tpu.memory_space<vmem>>, vector<32x32xbf16>
    %c0_133 = arith.constant 0 : index
    %c0_134 = arith.constant 0 : index
    %246 = vector.load %arg35[%c0_133, %c0_134] : memref<1x32xf32, #tpu.memory_space<vmem>>, vector<1x32xf32>
    %247 = arith.truncf %238 : vector<3x32xf32> to vector<3x32xbf16>
    %cst_135 = arith.constant dense<0.000000e+00> : vector<3x32xf32>
    %248 = tpu.matmul %247, %239, %cst_135 {dimension_numbers = #tpu.dot_dimension_numbers<[1], [0], [0], [1], [0, 0, 1, 1], [], []>} : vector<3x32xbf16>, vector<32x32xbf16>, vector<3x32xf32> -> vector<3x32xf32>
    %249 = vector.broadcast %240 : vector<1x32xf32> to vector<3x32xf32>
    %250 = arith.addf %248, %249 : vector<3x32xf32>
    %251 = arith.truncf %132 : vector<4x32xf32> to vector<4x32xbf16>
    %cst_136 = arith.constant dense<0.000000e+00> : vector<4x32xf32>
    %252 = tpu.matmul %251, %241, %cst_136 {dimension_numbers = #tpu.dot_dimension_numbers<[1], [0], [0], [1], [0, 0, 1, 1], [], []>} : vector<4x32xbf16>, vector<32x32xbf16>, vector<4x32xf32> -> vector<4x32xf32>
    %253 = vector.broadcast %242 : vector<1x32xf32> to vector<4x32xf32>
    %254 = arith.addf %252, %253 : vector<4x32xf32>
    %255 = arith.truncf %132 : vector<4x32xf32> to vector<4x32xbf16>
    %cst_137 = arith.constant dense<0.000000e+00> : vector<4x32xf32>
    %256 = tpu.matmul %255, %243, %cst_137 {dimension_numbers = #tpu.dot_dimension_numbers<[1], [0], [0], [1], [0, 0, 1, 1], [], []>} : vector<4x32xbf16>, vector<32x32xbf16>, vector<4x32xf32> -> vector<4x32xf32>
    %257 = vector.broadcast %244 : vector<1x32xf32> to vector<4x32xf32>
    %258 = arith.addf %256, %257 : vector<4x32xf32>
    %259 = arith.truncf %250 : vector<3x32xf32> to vector<3x32xbf16>
    %260 = arith.truncf %254 : vector<4x32xf32> to vector<4x32xbf16>
    %cst_138 = arith.constant dense<0.000000e+00> : vector<3x4xf32>
    %261 = tpu.matmul %259, %260, %cst_138 {dimension_numbers = #tpu.dot_dimension_numbers<[1], [1], [0], [0], [0, 0, 1, 0], [], []>} : vector<3x32xbf16>, vector<4x32xbf16>, vector<3x4xf32> -> vector<3x4xf32>
    %cst_139 = arith.constant dense<0xFF800000> : vector<3xf32>
    %262 = vector.multi_reduction <maximumf>, %261, %cst_139 [1] : vector<3x4xf32> to vector<3xf32>
    %263 = vector.shape_cast %262 : vector<3xf32> to vector<3x1xf32>
    %264 = vector.broadcast %263 : vector<3x1xf32> to vector<3x4xf32>
    %265 = arith.subf %261, %264 : vector<3x4xf32>
    %266 = math.exp %265 : vector<3x4xf32>
    %cst_140 = arith.constant dense<0.000000e+00> : vector<3xf32>
    %267 = vector.multi_reduction <add>, %266, %cst_140 [1] : vector<3x4xf32> to vector<3xf32>
    %268 = vector.shape_cast %267 : vector<3xf32> to vector<3x1xf32>
    %269 = tpu.reciprocal %268 {approx = true} : vector<3x1xf32> -> vector<3x1xf32>
    %270 = vector.broadcast %269 : vector<3x1xf32> to vector<3x4xf32>
    %271 = arith.mulf %266, %270 : vector<3x4xf32>
    %272 = arith.truncf %271 : vector<3x4xf32> to vector<3x4xbf16>
    %273 = arith.truncf %258 : vector<4x32xf32> to vector<4x32xbf16>
    %cst_141 = arith.constant dense<0.000000e+00> : vector<3x32xf32>
    %274 = tpu.matmul %272, %273, %cst_141 {dimension_numbers = #tpu.dot_dimension_numbers<[1], [0], [0], [1], [0, 0, 1, 1], [], []>} : vector<3x4xbf16>, vector<4x32xbf16>, vector<3x32xf32> -> vector<3x32xf32>
    %275 = arith.truncf %274 : vector<3x32xf32> to vector<3x32xbf16>
    %cst_142 = arith.constant dense<0.000000e+00> : vector<3x32xf32>
    %276 = tpu.matmul %275, %245, %cst_142 {dimension_numbers = #tpu.dot_dimension_numbers<[1], [0], [0], [1], [0, 0, 1, 1], [], []>} : vector<3x32xbf16>, vector<32x32xbf16>, vector<3x32xf32> -> vector<3x32xf32>
    %277 = vector.broadcast %246 : vector<1x32xf32> to vector<3x32xf32>
    %278 = arith.addf %276, %277 : vector<3x32xf32>
    %c0_143 = arith.constant 0 : index
    %c0_144 = arith.constant 0 : index
    %279 = vector.load %arg36[%c0_143, %c0_144] : memref<1x32xf32, #tpu.memory_space<vmem>>, vector<1x32xf32>
    %c0_145 = arith.constant 0 : index
    %c0_146 = arith.constant 0 : index
    %280 = vector.load %arg37[%c0_145, %c0_146] : memref<1x32xf32, #tpu.memory_space<vmem>>, vector<1x32xf32>
    %cst_147 = arith.constant dense<0.000000e+00> : vector<3xf32>
    %281 = vector.multi_reduction <add>, %278, %cst_147 [1] : vector<3x32xf32> to vector<3xf32>
    %282 = vector.shape_cast %281 : vector<3xf32> to vector<3x1xf32>
    %cst_148 = arith.constant 3.200000e+01 : f32
    %283 = vector.broadcast %cst_148 : f32 to vector<3x1xf32>
    %284 = arith.divf %282, %283 : vector<3x1xf32>
    %285 = vector.broadcast %284 : vector<3x1xf32> to vector<3x32xf32>
    %286 = arith.subf %278, %285 : vector<3x32xf32>
    %287 = arith.mulf %286, %286 : vector<3x32xf32>
    %cst_149 = arith.constant dense<0.000000e+00> : vector<3xf32>
    %288 = vector.multi_reduction <add>, %287, %cst_149 [1] : vector<3x32xf32> to vector<3xf32>
    %289 = vector.shape_cast %288 : vector<3xf32> to vector<3x1xf32>
    %cst_150 = arith.constant 3.200000e+01 : f32
    %290 = vector.broadcast %cst_150 : f32 to vector<3x1xf32>
    %291 = arith.divf %289, %290 : vector<3x1xf32>
    %292 = vector.broadcast %284 : vector<3x1xf32> to vector<3x32xf32>
    %293 = arith.subf %278, %292 : vector<3x32xf32>
    %cst_151 = arith.constant 9.99999974E-6 : f32
    %294 = vector.broadcast %cst_151 : f32 to vector<3x1xf32>
    %295 = arith.addf %291, %294 : vector<3x1xf32>
    %296 = math.rsqrt %295 : vector<3x1xf32>
    %297 = vector.broadcast %296 : vector<3x1xf32> to vector<3x32xf32>
    %298 = arith.mulf %293, %297 : vector<3x32xf32>
    %299 = vector.broadcast %279 : vector<1x32xf32> to vector<3x32xf32>
    %300 = arith.mulf %298, %299 : vector<3x32xf32>
    %301 = vector.broadcast %280 : vector<1x32xf32> to vector<3x32xf32>
    %302 = arith.addf %300, %301 : vector<3x32xf32>
    %c0_152 = arith.constant 0 : index
    %c0_153 = arith.constant 0 : index
    %303 = vector.load %arg38[%c0_152, %c0_153] : memref<32x32xbf16, #tpu.memory_space<vmem>>, vector<32x32xbf16>
    %304 = arith.truncf %302 : vector<3x32xf32> to vector<3x32xbf16>
    %cst_154 = arith.constant dense<0.000000e+00> : vector<3x32xf32>
    %305 = tpu.matmul %304, %303, %cst_154 {dimension_numbers = #tpu.dot_dimension_numbers<[1], [0], [0], [1], [0, 0, 1, 1], [], []>} : vector<3x32xbf16>, vector<32x32xbf16>, vector<3x32xf32> -> vector<3x32xf32>
    %c0_155 = arith.constant 0 : index
    %c0_156 = arith.constant 0 : index
    %306 = vector.load %arg39[%c0_155, %c0_156] : memref<1x32xf32, #tpu.memory_space<vmem>>, vector<1x32xf32>
    %307 = vector.broadcast %306 : vector<1x32xf32> to vector<3x32xf32>
    %308 = arith.addf %305, %307 : vector<3x32xf32>
    %cst_157 = arith.constant 0.000000e+00 : f32
    %309 = vector.broadcast %cst_157 : f32 to vector<3x32xf32>
    %310 = arith.maximumf %308, %309 : vector<3x32xf32>
    %c0_158 = arith.constant 0 : index
    %c0_159 = arith.constant 0 : index
    %311 = vector.load %arg40[%c0_158, %c0_159] : memref<32x4xbf16, #tpu.memory_space<vmem>>, vector<32x4xbf16>
    %312 = arith.truncf %310 : vector<3x32xf32> to vector<3x32xbf16>
    %cst_160 = arith.constant dense<0.000000e+00> : vector<3x4xf32>
    %313 = tpu.matmul %312, %311, %cst_160 {dimension_numbers = #tpu.dot_dimension_numbers<[1], [0], [0], [1], [0, 0, 1, 1], [], []>} : vector<3x32xbf16>, vector<32x4xbf16>, vector<3x4xf32> -> vector<3x4xf32>
    %c0_161 = arith.constant 0 : index
    %c0_162 = arith.constant 0 : index
    %314 = vector.load %arg41[%c0_161, %c0_162] : memref<1x4xf32, #tpu.memory_space<vmem>>, vector<1x4xf32>
    %315 = vector.broadcast %314 : vector<1x4xf32> to vector<3x4xf32>
    %316 = arith.addf %313, %315 : vector<3x4xf32>
    %c0_163 = arith.constant 0 : index
    %c0_164 = arith.constant 0 : index
    %c0_165 = arith.constant 0 : index
    %317 = vector.load %arg44[%c0_163, %c0_164, %c0_165] : memref<1x3x4xf32, #tpu.memory_space<vmem>>, vector<1x3x4xf32>
    %318 = vector.shape_cast %317 : vector<1x3x4xf32> to vector<3x4xf32>
    %319 = vector.shape_cast %316 : vector<3x4xf32> to vector<1x3x4xf32>
    tpu.vector_store %arg44[%c0_163, %c0_164, %c0_165], %319 {strides = array<i32>} : memref<1x3x4xf32, #tpu.memory_space<vmem>>, vector<1x3x4xf32>,
    return
  }
  func.func @transform_0(%arg0: i32) -> (i32, i32, i32, i32) {
    %c0_i32 = arith.constant 0 : i32
    %c0_i32_0 = arith.constant 0 : i32
    %c0_i32_1 = arith.constant 0 : i32
    %c0_i32_2 = arith.constant 0 : i32
    return %arg0, %c0_i32, %c0_i32_0, %c0_i32_1 : i32, i32, i32, i32
  }
  func.func @transform_1(%arg0: i32) -> (i32, i32) {
    %c0_i32 = arith.constant 0 : i32
    %c0_i32_0 = arith.constant 0 : i32
    %c0_i32_1 = arith.constant 0 : i32
    return %c0_i32, %c0_i32_0 : i32, i32
  }
  func.func @transform_2(%arg0: i32) -> (i32, i32) {
    %c0_i32 = arith.constant 0 : i32
    %c0_i32_0 = arith.constant 0 : i32
    %c0_i32_1 = arith.constant 0 : i32
    return %c0_i32, %c0_i32_0 : i32, i32
  }
  func.func @transform_3(%arg0: i32) -> (i32, i32) {
    %c0_i32 = arith.constant 0 : i32
    %c0_i32_0 = arith.constant 0 : i32
    %c0_i32_1 = arith.constant 0 : i32
    return %c0_i32, %c0_i32_0 : i32, i32
  }
  func.func @transform_4(%arg0: i32) -> (i32, i32) {
    %c0_i32 = arith.constant 0 : i32
    %c0_i32_0 = arith.constant 0 : i32
    %c0_i32_1 = arith.constant 0 : i32
    return %c0_i32, %c0_i32_0 : i32, i32
  }
  func.func @transform_5(%arg0: i32) -> (i32, i32) {
    %c0_i32 = arith.constant 0 : i32
    %c0_i32_0 = arith.constant 0 : i32
    %c0_i32_1 = arith.constant 0 : i32
    return %c0_i32, %c0_i32_0 : i32, i32
  }
  func.func @transform_6(%arg0: i32) -> (i32, i32) {
    %c0_i32 = arith.constant 0 : i32
    %c0_i32_0 = arith.constant 0 : i32
    %c0_i32_1 = arith.constant 0 : i32
    return %c0_i32, %c0_i32_0 : i32, i32
  }
  func.func @transform_7(%arg0: i32) -> (i32, i32) {
    %c0_i32 = arith.constant 0 : i32
    %c0_i32_0 = arith.constant 0 : i32
    %c0_i32_1 = arith.constant 0 : i32
    return %c0_i32, %c0_i32_0 : i32, i32
  }
  func.func @transform_8(%arg0: i32) -> (i32, i32) {
    %c0_i32 = arith.constant 0 : i32
    %c0_i32_0 = arith.constant 0 : i32
    %c0_i32_1 = arith.constant 0 : i32
    return %c0_i32, %c0_i32_0 : i32, i32
  }
  func.func @transform_9(%arg0: i32) -> (i32, i32) {
    %c0_i32 = arith.constant 0 : i32
    %c0_i32_0 = arith.constant 0 : i32
    %c0_i32_1 = arith.constant 0 : i32
    return %c0_i32, %c0_i32_0 : i32, i32
  }
  func.func @transform_10(%arg0: i32) -> (i32, i32) {
    %c0_i32 = arith.constant 0 : i32
    %c0_i32_0 = arith.constant 0 : i32
    %c0_i32_1 = arith.constant 0 : i32
    return %c0_i32, %c0_i32_0 : i32, i32
  }
  func.func @transform_11(%arg0: i32) -> (i32, i32) {
    %c0_i32 = arith.constant 0 : i32
    %c0_i32_0 = arith.constant 0 : i32
    %c0_i32_1 = arith.constant 0 : i32
    return %c0_i32, %c0_i32_0 : i32, i32
  }
  func.func @transform_12(%arg0: i32) -> (i32, i32) {
    %c0_i32 = arith.constant 0 : i32
    %c0_i32_0 = arith.constant 0 : i32
    %c0_i32_1 = arith.constant 0 : i32
    return %c0_i32, %c0_i32_0 : i32, i32
  }
  func.func @transform_13(%arg0: i32) -> (i32, i32) {
    %c0_i32 = arith.constant 0 : i32
    %c0_i32_0 = arith.constant 0 : i32
    %c0_i32_1 = arith.constant 0 : i32
    return %c0_i32, %c0_i32_0 : i32, i32
  }
  func.func @transform_14(%arg0: i32) -> (i32, i32) {
    %c0_i32 = arith.constant 0 : i32
    %c0_i32_0 = arith.constant 0 : i32
    %c0_i32_1 = arith.constant 0 : i32
    return %c0_i32, %c0_i32_0 : i32, i32
  }
  func.func @transform_15(%arg0: i32) -> (i32, i32) {
    %c0_i32 = arith.constant 0 : i32
    %c0_i32_0 = arith.constant 0 : i32
    %c0_i32_1 = arith.constant 0 : i32
    return %c0_i32, %c0_i32_0 : i32, i32
  }
  func.func @transform_16(%arg0: i32) -> (i32, i32) {
    %c0_i32 = arith.constant 0 : i32
    %c0_i32_0 = arith.constant 0 : i32
    %c0_i32_1 = arith.constant 0 : i32
    return %c0_i32, %c0_i32_0 : i32, i32
  }
  func.func @transform_17(%arg0: i32) -> (i32, i32) {
    %c0_i32 = arith.constant 0 : i32
    %c0_i32_0 = arith.constant 0 : i32
    %c0_i32_1 = arith.constant 0 : i32
    return %c0_i32, %c0_i32_0 : i32, i32
  }
  func.func @transform_18(%arg0: i32) -> (i32, i32) {
    %c0_i32 = arith.constant 0 : i32
    %c0_i32_0 = arith.constant 0 : i32
    %c0_i32_1 = arith.constant 0 : i32
    return %c0_i32, %c0_i32_0 : i32, i32
  }
  func.func @transform_19(%arg0: i32) -> (i32, i32) {
    %c0_i32 = arith.constant 0 : i32
    %c0_i32_0 = arith.constant 0 : i32
    %c0_i32_1 = arith.constant 0 : i32
    return %c0_i32, %c0_i32_0 : i32, i32
  }
  func.func @transform_20(%arg0: i32) -> (i32, i32) {
    %c0_i32 = arith.constant 0 : i32
    %c0_i32_0 = arith.constant 0 : i32
    %c0_i32_1 = arith.constant 0 : i32
    return %c0_i32, %c0_i32_0 : i32, i32
  }
  func.func @transform_21(%arg0: i32) -> (i32, i32) {
    %c0_i32 = arith.constant 0 : i32
    %c0_i32_0 = arith.constant 0 : i32
    %c0_i32_1 = arith.constant 0 : i32
    return %c0_i32, %c0_i32_0 : i32, i32
  }
  func.func @transform_22(%arg0: i32) -> (i32, i32) {
    %c0_i32 = arith.constant 0 : i32
    %c0_i32_0 = arith.constant 0 : i32
    %c0_i32_1 = arith.constant 0 : i32
    return %c0_i32, %c0_i32_0 : i32, i32
  }
  func.func @transform_23(%arg0: i32) -> (i32, i32) {
    %c0_i32 = arith.constant 0 : i32
    %c0_i32_0 = arith.constant 0 : i32
    %c0_i32_1 = arith.constant 0 : i32
    return %c0_i32, %c0_i32_0 : i32, i32
  }
  func.func @transform_24(%arg0: i32) -> (i32, i32) {
    %c0_i32 = arith.constant 0 : i32
    %c0_i32_0 = arith.constant 0 : i32
    %c0_i32_1 = arith.constant 0 : i32
    return %c0_i32, %c0_i32_0 : i32, i32
  }
  func.func @transform_25(%arg0: i32) -> (i32, i32) {
    %c0_i32 = arith.constant 0 : i32
    %c0_i32_0 = arith.constant 0 : i32
    %c0_i32_1 = arith.constant 0 : i32
    return %c0_i32, %c0_i32_0 : i32, i32
  }
  func.func @transform_26(%arg0: i32) -> (i32, i32) {
    %c0_i32 = arith.constant 0 : i32
    %c0_i32_0 = arith.constant 0 : i32
    %c0_i32_1 = arith.constant 0 : i32
    return %c0_i32, %c0_i32_0 : i32, i32
  }
  func.func @transform_27(%arg0: i32) -> (i32, i32) {
    %c0_i32 = arith.constant 0 : i32
    %c0_i32_0 = arith.constant 0 : i32
    %c0_i32_1 = arith.constant 0 : i32
    return %c0_i32, %c0_i32_0 : i32, i32
  }
  func.func @transform_28(%arg0: i32) -> (i32, i32) {
    %c0_i32 = arith.constant 0 : i32
    %c0_i32_0 = arith.constant 0 : i32
    %c0_i32_1 = arith.constant 0 : i32
    return %c0_i32, %c0_i32_0 : i32, i32
  }
  func.func @transform_29(%arg0: i32) -> (i32, i32) {
    %c0_i32 = arith.constant 0 : i32
    %c0_i32_0 = arith.constant 0 : i32
    %c0_i32_1 = arith.constant 0 : i32
    return %c0_i32, %c0_i32_0 : i32, i32
  }
  func.func @transform_30(%arg0: i32) -> (i32, i32) {
    %c0_i32 = arith.constant 0 : i32
    %c0_i32_0 = arith.constant 0 : i32
    %c0_i32_1 = arith.constant 0 : i32
    return %c0_i32, %c0_i32_0 : i32, i32
  }
  func.func @transform_31(%arg0: i32) -> (i32, i32) {
    %c0_i32 = arith.constant 0 : i32
    %c0_i32_0 = arith.constant 0 : i32
    %c0_i32_1 = arith.constant 0 : i32
    return %c0_i32, %c0_i32_0 : i32, i32
  }
  func.func @transform_32(%arg0: i32) -> (i32, i32) {
    %c0_i32 = arith.constant 0 : i32
    %c0_i32_0 = arith.constant 0 : i32
    %c0_i32_1 = arith.constant 0 : i32
    return %c0_i32, %c0_i32_0 : i32, i32
  }
  func.func @transform_33(%arg0: i32) -> (i32, i32) {
    %c0_i32 = arith.constant 0 : i32
    %c0_i32_0 = arith.constant 0 : i32
    %c0_i32_1 = arith.constant 0 : i32
    return %c0_i32, %c0_i32_0 : i32, i32
  }
  func.func @transform_34(%arg0: i32) -> (i32, i32) {
    %c0_i32 = arith.constant 0 : i32
    %c0_i32_0 = arith.constant 0 : i32
    %c0_i32_1 = arith.constant 0 : i32
    return %c0_i32, %c0_i32_0 : i32, i32
  }
  func.func @transform_35(%arg0: i32) -> (i32, i32) {
    %c0_i32 = arith.constant 0 : i32
    %c0_i32_0 = arith.constant 0 : i32
    %c0_i32_1 = arith.constant 0 : i32
    return %c0_i32, %c0_i32_0 : i32, i32
  }
  func.func @transform_36(%arg0: i32) -> (i32, i32) {
    %c0_i32 = arith.constant 0 : i32
    %c0_i32_0 = arith.constant 0 : i32
    %c0_i32_1 = arith.constant 0 : i32
    return %c0_i32, %c0_i32_0 : i32, i32
  }
  func.func @transform_37(%arg0: i32) -> (i32, i32) {
    %c0_i32 = arith.constant 0 : i32
    %c0_i32_0 = arith.constant 0 : i32
    %c0_i32_1 = arith.constant 0 : i32
    return %c0_i32, %c0_i32_0 : i32, i32
  }
  func.func @transform_38(%arg0: i32) -> (i32, i32) {
    %c0_i32 = arith.constant 0 : i32
    %c0_i32_0 = arith.constant 0 : i32
    %c0_i32_1 = arith.constant 0 : i32
    return %c0_i32, %c0_i32_0 : i32, i32
  }
  func.func @transform_39(%arg0: i32) -> (i32, i32) {
    %c0_i32 = arith.constant 0 : i32
    %c0_i32_0 = arith.constant 0 : i32
    %c0_i32_1 = arith.constant 0 : i32
    return %c0_i32, %c0_i32_0 : i32, i32
  }
  func.func @transform_40(%arg0: i32) -> (i32, i32) {
    %c0_i32 = arith.constant 0 : i32
    %c0_i32_0 = arith.constant 0 : i32
    %c0_i32_1 = arith.constant 0 : i32
    return %c0_i32, %c0_i32_0 : i32, i32
  }
  func.func @transform_41(%arg0: i32) -> (i32, i32, i32) {
    %c0_i32 = arith.constant 0 : i32
    %c0_i32_0 = arith.constant 0 : i32
    %c0_i32_1 = arith.constant 0 : i32
    return %arg0, %c0_i32, %c0_i32_0 : i32, i32, i32
  }
  func.func @transform_42(%arg0: i32) -> (i32, i32, i32) {
    %c0_i32 = arith.constant 0 : i32
    %c0_i32_0 = arith.constant 0 : i32
    %c0_i32_1 = arith.constant 0 : i32
    return %arg0, %c0_i32, %c0_i32_0 : i32, i32, i32
  }
  func.func @transform_43(%arg0: i32) -> (i32, i32, i32) {
    %c0_i32 = arith.constant 0 : i32
    %c0_i32_0 = arith.constant 0 : i32
    %c0_i32_1 = arith.constant 0 : i32
    return %arg0, %c0_i32, %c0_i32_0 : i32, i32, i32
  }
}

</mosaic_0001>

<llo_original>
// kernel: wave_transformer_forward.3
$region0: #{wave_transformer_forward.3}
  #allocation0 [shape = 'u32[]', space=smem, size = 0x4, offset = 0x4, fixed_abs, tag = 'smem constant byte address 0x4 - core index']
  #allocation1 [shape = 'u32[144,128]{1,0:T(1,128)}', space=vmem, size = 0x12000, scoped, tag = 'internal scratch']
  %s0 = inlined_call_operand.smem [shape: u32[44], index: -1, kind: input, shape index: {}]
  %s1 = sld [smem:[%s0]]
  %s2 = scalar_lea.smem %s0, 1
  %s3 = sld [smem:[%s2]]
  %s4 = scalar_lea.smem %s0, 2
  %s5 = sld [smem:[%s4]]
  %s6 = scalar_lea.smem %s0, 3
  %s7 = sld [smem:[%s6]]
  %s8 = scalar_lea.smem %s0, 4
  %s9 = sld [smem:[%s8]]
  %s10 = scalar_lea.smem %s0, 5
  %s11 = sld [smem:[%s10]]
  %s12 = scalar_lea.smem %s0, 6
  %s13 = sld [smem:[%s12]]
  %s14 = scalar_lea.smem %s0, 7
  %s15 = sld [smem:[%s14]]
  %s16 = scalar_lea.smem %s0, 8
  %s17 = sld [smem:[%s16]]
  %s18 = scalar_lea.smem %s0, 9
  %s19 = sld [smem:[%s18]]
  %s20 = scalar_lea.smem %s0, 10
  %s21 = sld [smem:[%s20]]
  %s22 = scalar_lea.smem %s0, 11
  %s23 = sld [smem:[%s22]]
  %s24 = scalar_lea.smem %s0, 12
  %s25 = sld [smem:[%s24]]
  %s26 = scalar_lea.smem %s0, 13
  %s27 = sld [smem:[%s26]]
  %s28 = scalar_lea.smem %s0, 14
  %s29 = sld [smem:[%s28]]
  %s30 = scalar_lea.smem %s0, 15
  %s31 = sld [smem:[%s30]]
  %s32 = scalar_lea.smem %s0, 16
  %s33 = sld [smem:[%s32]]
  %s34 = scalar_lea.smem %s0, 17
  %s35 = sld [smem:[%s34]]
  %s36 = scalar_lea.smem %s0, 18
  %s37 = sld [smem:[%s36]]
  %s38 = scalar_lea.smem %s0, 19
  %s39 = sld [smem:[%s38]]
  %s40 = scalar_lea.smem %s0, 20
  %s41 = sld [smem:[%s40]]
  %s42 = scalar_lea.smem %s0, 21
  %s43 = sld [smem:[%s42]]
  %s44 = scalar_lea.smem %s0, 22
  %s45 = sld [smem:[%s44]]
  %s46 = scalar_lea.smem %s0, 23
  %s47 = sld [smem:[%s46]]
  %s48 = scalar_lea.smem %s0, 24
  %s49 = sld [smem:[%s48]]
  %s50 = scalar_lea.smem %s0, 25
  %s51 = sld [smem:[%s50]]
  %s52 = scalar_lea.smem %s0, 26
  %s53 = sld [smem:[%s52]]
  %s54 = scalar_lea.smem %s0, 27
  %s55 = sld [smem:[%s54]]
  %s56 = scalar_lea.smem %s0, 28
  %s57 = sld [smem:[%s56]]
  %s58 = scalar_lea.smem %s0, 29
  %s59 = sld [smem:[%s58]]
  %s60 = scalar_lea.smem %s0, 30
  %s61 = sld [smem:[%s60]]
  %s62 = scalar_lea.smem %s0, 31
  %s63 = sld [smem:[%s62]]
  %s64 = scalar_lea.smem %s0, 32
  %s65 = sld [smem:[%s64]]
  %s66 = scalar_lea.smem %s0, 33
  %s67 = sld [smem:[%s66]]
  %s68 = scalar_lea.smem %s0, 34
  %s69 = sld [smem:[%s68]]
  %s70 = scalar_lea.smem %s0, 35
  %s71 = sld [smem:[%s70]]
  %s72 = scalar_lea.smem %s0, 36
  %s73 = sld [smem:[%s72]]
  %s74 = scalar_lea.smem %s0, 37
  %s75 = sld [smem:[%s74]]
  %s76 = scalar_lea.smem %s0, 38
  %s77 = sld [smem:[%s76]]
  %s78 = scalar_lea.smem %s0, 39
  %s79 = sld [smem:[%s78]]
  %s80 = scalar_lea.smem %s0, 40
  %s81 = sld [smem:[%s80]]
  %s82 = scalar_lea.smem %s0, 41
  %s83 = sld [smem:[%s82]]
  %s84 = scalar_lea.smem %s0, 42
  %s85 = sld [smem:[%s84]]
  %s86 = scalar_lea.smem %s0, 43
  %s87 = sld [smem:[%s86]]
  %88 = xla_tuple %s83, %s85, %s87
  %s89 = sld [smem:[#allocation0]]
  $region293: #{wave_transformer_forward.3} parent=0
    _
  %s91 = ssub.s32 1, %s89
  %s92 = scalar_select 0, %s91, %s89
  $region1: #{wave_transformer_forward.3} parent=0
    #allocation2 [shape = 'u8[512]{0}', space=vmem, size = 0x400, scoped, tag = 'input window, operand 8, single buffered']
    #allocation3 [shape = 's32[2]{0}', space=sflag, size = 0x8, scoped, tag = 'scoped memory for wave_transformer_forward.3']
    #allocation4 [shape = 's32[2]{0}', space=sflag, size = 0x8, scoped, tag = 'scoped memory for wave_transformer_forward.3']
    #allocation5 [shape = 'u8[512]{0}', space=vmem, size = 0x400, scoped, tag = 'input window, operand 10, single buffered']
    #allocation6 [shape = 's32[1]{0}', space=sflag, size = 0x4, scoped, tag = 'scoped memory for wave_transformer_forward.3']
    #allocation7 [shape = 'u8[512]{0}', space=vmem, size = 0x400, scoped, tag = 'input window, operand 12, single buffered']
    #allocation8 [shape = 'u8[512]{0}', space=vmem, size = 0x400, scoped, tag = 'input window, operand 13, single buffered']
    #allocation9 [shape = 's32[1]{0}', space=sflag, size = 0x4, scoped, tag = 'scoped memory for wave_transformer_forward.3']
    #allocation10 [shape = 'u8[512]{0}', space=vmem, size = 0x400, scoped, tag = 'input window, operand 14, single buffered']
    #allocation11 [shape = 'u8[512]{0}', space=vmem, size = 0x400, scoped, tag = 'input window, operand 15, single buffered']
    #allocation12 [shape = 's32[1]{0}', space=sflag, size = 0x4, scoped, tag = 'scoped memory for wave_transformer_forward.3']
    #allocation13 [shape = 'u8[512]{0}', space=vmem, size = 0x400, scoped, tag = 'input window, operand 17, single buffered']
    #allocation14 [shape = 'u8[512]{0}', space=vmem, size = 0x400, scoped, tag = 'input window, operand 19, single buffered']
    #allocation15 [shape = 's32[1]{0}', space=sflag, size = 0x4, scoped, tag = 'scoped memory for wave_transformer_forward.3']
    #allocation16 [shape = 'u8[512]{0}', space=vmem, size = 0x400, scoped, tag = 'input window, operand 21, single buffered']
    #allocation17 [shape = 'u8[512]{0}', space=vmem, size = 0x400, scoped, tag = 'input window, operand 23, single buffered']
    #allocation18 [shape = 's32[1]{0}', space=sflag, size = 0x4, scoped, tag = 'scoped memory for wave_transformer_forward.3']
    #allocation19 [shape = 'u8[512]{0}', space=vmem, size = 0x400, scoped, tag = 'input window, operand 24, single buffered']
    #allocation20 [shape = 'u8[512]{0}', space=vmem, size = 0x400, scoped, tag = 'input window, operand 25, single buffered']
    #allocation21 [shape = 's32[1]{0}', space=sflag, size = 0x4, scoped, tag = 'scoped memory for wave_transformer_forward.3']
    #allocation22 [shape = 'u8[512]{0}', space=vmem, size = 0x400, scoped, tag = 'input window, operand 28, single buffered']
    #allocation23 [shape = 'u8[512]{0}', space=vmem, size = 0x400, scoped, tag = 'input window, operand 30, single buffered']
    #allocation24 [shape = 's32[1]{0}', space=sflag, size = 0x4, scoped, tag = 'scoped memory for wave_transformer_forward.3']
    #allocation25 [shape = 'u8[512]{0}', space=vmem, size = 0x400, scoped, tag = 'input window, operand 32, single buffered']
    #allocation26 [shape = 'u8[512]{0}', space=vmem, size = 0x400, scoped, tag = 'input window, operand 34, single buffered']
    #allocation27 [shape = 's32[1]{0}', space=sflag, size = 0x4, scoped, tag = 'scoped memory for wave_transformer_forward.3']
    #allocation28 [shape = 'u8[512]{0}', space=vmem, size = 0x400, scoped, tag = 'input window, operand 35, single buffered']
    #allocation29 [shape = 'u8[512]{0}', space=vmem, size = 0x400, scoped, tag = 'input window, operand 36, single buffered']
    #allocation30 [shape = 's32[1]{0}', space=sflag, size = 0x4, scoped, tag = 'scoped memory for wave_transformer_forward.3']
    #allocation31 [shape = 'u8[512]{0}', space=vmem, size = 0x400, scoped, tag = 'input window, operand 38, single buffered']
    #allocation32 [shape = 'u8[512]{0}', space=vmem, size = 0x400, scoped, tag = 'input window, operand 40, single buffered']
    #allocation33 [shape = 's32[1]{0}', space=sflag, size = 0x4, scoped, tag = 'scoped memory for wave_transformer_forward.3']
    #allocation34 [shape = 'u8[4096]{0}', space=vmem, size = 0x1000, scoped, tag = 'output window, operand 0']
    #allocation35 [shape = 'u8[1024]{0}', space=vmem, size = 0x400, scoped, tag = 'output window, operand 1']
    #allocation36 [shape = 's32[2]{0}', space=sflag, size = 0x8, scoped, tag = 'scoped memory for wave_transformer_forward.3']
    %93 = vsyncpa [#allocation3], 0
    %94 = vsyncpa [#allocation6], 0
    %95 = vsyncpa [#allocation9], 0
    %96 = vsyncpa [#allocation12], 0
    %97 = vsyncpa [#allocation15], 0
    %98 = vsyncpa [#allocation18], 0
    %99 = vsyncpa [#allocation21], 0
    %100 = vsyncpa [#allocation24], 0
    %101 = vsyncpa [#allocation27], 0
    %102 = vsyncpa [#allocation30], 0
    %103 = vsyncpa [#allocation33], 0
    %104 = vsyncpa [#allocation4], 0
    %s105 = scalar_lea.sflag [#allocation4], 1
    %106 = vsyncpa %s105, 0
    %107 = vsyncpa [#allocation36], 0
    %s108 = scalar_lea.sflag [#allocation36], 1
    %109 = vsyncpa %s108, 0
    loop: start=0, step=1, limit=4
    $region2: #{wave_transformer_forward.3} parent=1 // loop_pre_header
      _
    $region3: #{wave_transformer_forward.3} parent=1 // loop_header
      %s111 = sphi 0, %s115
      %p112 = scmp.ge.s32.totalorder %s111, 4
      %s121 = sphi 0, %s123
      %s124 = sphi 0, %s121
      %s125 = sphi 0, %s124
      %s141 = sphi 0, %s125
      %s145 = sphi 0, %s145
      %s147 = sphi 0, %s145
      %s148 = sphi 0, %s147
      %s162 = sphi 0, %s148
      %s166 = sphi 0, %s166
      %s168 = sphi 0, %s166
      %s169 = sphi 0, %s168
      %s183 = sphi 0, %s169
      %s187 = sphi 0, %s187
      %s189 = sphi 0, %s187
      %s190 = sphi 0, %s189
      %s204 = sphi 0, %s190
      %s208 = sphi 0, %s208
      %s210 = sphi 0, %s208
      %s211 = sphi 0, %s210
      %s225 = sphi 0, %s211
      %s229 = sphi 0, %s229
      %s231 = sphi 0, %s229
      %s232 = sphi 0, %s231
      %s246 = sphi 0, %s232
      %s250 = sphi 0, %s250
      %s252 = sphi 0, %s250
      %s253 = sphi 0, %s252
      %s267 = sphi 0, %s253
      %s271 = sphi 0, %s271
      %s273 = sphi 0, %s271
      %s274 = sphi 0, %s273
      %s288 = sphi 0, %s274
      %s292 = sphi 0, %s292
      %s294 = sphi 0, %s292
      %s295 = sphi 0, %s294
      %s309 = sphi 0, %s295
      %s313 = sphi 0, %s313
      %s315 = sphi 0, %s313
      %s316 = sphi 0, %s315
      %s330 = sphi 0, %s316
      %s334 = sphi 0, %s334
      %s336 = sphi 0, %s334
      %s337 = sphi 0, %s336
      %s351 = sphi 0, %s337
      %s355 = sphi 0, %s355
      %s357 = sphi 0, %s355
      %s358 = sphi 0, %s357
      %s372 = sphi 0, %s358
      %s376 = sphi 0, %s376
      %s378 = sphi 0, %s376
      %s379 = sphi 0, %s378
      %s393 = sphi 0, %s379
      %s397 = sphi 0, %s397
      %s399 = sphi 0, %s397
      %s400 = sphi 0, %s399
      %s414 = sphi 0, %s400
      %s418 = sphi 0, %s418
      %s420 = sphi 0, %s418
      %s421 = sphi 0, %s420
      %s435 = sphi 0, %s421
      %s439 = sphi 0, %s439
      %s441 = sphi 0, %s439
      %s442 = sphi 0, %s441
      %s456 = sphi 0, %s442
      %s460 = sphi 0, %s460
      %s462 = sphi 0, %s460
      %s463 = sphi 0, %s462
      %s477 = sphi 0, %s463
      %s481 = sphi 0, %s481
      %s483 = sphi 0, %s481
      %s484 = sphi 0, %s483
      %s498 = sphi 0, %s484
      %s502 = sphi 0, %s502
      %s504 = sphi 0, %s502
      %s505 = sphi 0, %s504
      %s519 = sphi 0, %s505
      %s523 = sphi 0, %s523
      %s525 = sphi 0, %s523
      %s526 = sphi 0, %s525
      %s540 = sphi 0, %s526
      %s544 = sphi 0, %s544
      %s546 = sphi 0, %s544
      %s547 = sphi 0, %s546
      %s561 = sphi 0, %s547
      %s565 = sphi 0, %s565
      %s567 = sphi 0, %s565
      %s568 = sphi 0, %s567
      %s582 = sphi 0, %s568
      %s586 = sphi 0, %s586
      %s588 = sphi 0, %s586
      %s589 = sphi 0, %s588
      %s603 = sphi 0, %s589
      %s607 = sphi 0, %s607
      %s609 = sphi 0, %s607
      %s610 = sphi 0, %s609
      %s624 = sphi 0, %s610
      %s628 = sphi 0, %s628
      %s630 = sphi 0, %s628
      %s631 = sphi 0, %s630
      %s645 = sphi 0, %s631
      %s649 = sphi 0, %s649
      %s651 = sphi 0, %s649
      %s652 = sphi 0, %s651
      %s666 = sphi 0, %s652
      %s670 = sphi 0, %s670
      %s672 = sphi 0, %s670
      %s673 = sphi 0, %s672
      %s687 = sphi 0, %s673
      %s691 = sphi 0, %s691
      %s693 = sphi 0, %s691
      %s694 = sphi 0, %s693
      %s708 = sphi 0, %s694
      %s712 = sphi 0, %s712
      %s714 = sphi 0, %s712
      %s715 = sphi 0, %s714
      %s729 = sphi 0, %s715
      %s733 = sphi 0, %s733
      %s735 = sphi 0, %s733
      %s736 = sphi 0, %s735
      %s750 = sphi 0, %s736
      %s754 = sphi 0, %s754
      %s756 = sphi 0, %s754
      %s757 = sphi 0, %s756
      %s771 = sphi 0, %s757
      %s775 = sphi 0, %s775
      %s777 = sphi 0, %s775
      %s778 = sphi 0, %s777
      %s792 = sphi 0, %s778
      %s796 = sphi 0, %s796
      %s798 = sphi 0, %s796
      %s799 = sphi 0, %s798
      %s813 = sphi 0, %s799
      %s817 = sphi 0, %s817
      %s819 = sphi 0, %s817
      %s820 = sphi 0, %s819
      %s834 = sphi 0, %s820
      %s838 = sphi 0, %s838
      %s840 = sphi 0, %s838
      %s841 = sphi 0, %s840
      %s855 = sphi 0, %s841
      %s859 = sphi 0, %s859
      %s861 = sphi 0, %s859
      %s862 = sphi 0, %s861
      %s876 = sphi 0, %s862
      %s880 = sphi 0, %s880
      %s882 = sphi 0, %s880
      %s883 = sphi 0, %s882
      %s897 = sphi 0, %s883
      %s901 = sphi 0, %s901
      %s903 = sphi 0, %s901
      %s904 = sphi 0, %s903
      %s918 = sphi 0, %s904
      %s922 = sphi 0, %s922
      %s924 = sphi 0, %s922
      %s925 = sphi 0, %s924
      %s939 = sphi 0, %s925
      %s943 = sphi 0, %s943
      %s945 = sphi 0, %s943
      %s946 = sphi 0, %s945
      %s960 = sphi 0, %s946
      %s964 = sphi 0, %s964
      %s966 = sphi 0, %s964
      %s967 = sphi 0, %s966
      %s981 = sphi 0, %s967
      %s987 = sphi 0, %s989
      %s990 = sphi 0, %s987
      %s991 = sphi 0, %s990
      %s1007 = sphi 0, %s991
      %s1013 = sphi 0, %s1015
      %s1016 = sphi 0, %s1013
      %s1017 = sphi 0, %s1016
      %s1033 = sphi 0, %s1017
      %s1039 = sphi 0, %s1041
      %s1042 = sphi 0, %s1039
      %s1043 = sphi 0, %s1042
      %s1059 = sphi 0, %s1043
    $region4: #{wave_transformer_forward.3} parent=1 // loop_header_branch
      %114 = sbr.rel (%p112) target = $region8
    $region5: #{wave_transformer_forward.3} parent=1 // loop_body
      %s116 = ssub.s32 %s111, 1
      %s117 = ssub.s32 %s111, 2
      %s118 = sadd.s32 %s111, 1
      %s119 = ssub.s32 %s111, %s118
      %p120 = scmp.eq.s32.totalorder %s119, 0
      %s122 = sadd.s32 %s121, 1
      %s123 = scalar_select %p120, %s121, %s122
      %p126 = pneg %p120
      %p127 = scmp.eq.s32.totalorder %s111, 1
      %p128 = por %p126, %p127
      %p129 = scmp.ne.s32.totalorder %s121, %s124
      %p130 = scmp.eq.s32.totalorder %s111, 0
      %p131 = por %p129, %p130
      %p132 = scmp.ne.s32.totalorder %s121, %s124
      %p133 = scmp.eq.s32.totalorder %s116, 1
      %p134 = por %p132, %p133
      %p135 = scmp.ne.s32.totalorder %s124, %s125
      %p136 = scmp.eq.s32.totalorder %s116, 0
      %p137 = por %p135, %p136
      %p138 = scmp.ne.s32.totalorder %s124, %s125
      %p139 = scmp.eq.s32.totalorder %s117, 1
      %p140 = por %p138, %p139
      %p142 = scmp.ne.s32.totalorder %s125, %s141
      %p143 = scmp.eq.s32.totalorder %s117, 0
      %p144 = por %p142, %p143
      %s146 = sadd.s32 %s145, 1
      %p149 = scmp.eq.s32.totalorder %s111, 1
      %p150 = scmp.ne.s32.totalorder %s145, %s147
      %p151 = scmp.eq.s32.totalorder %s111, 0
      %p152 = por %p150, %p151
      %p153 = scmp.ne.s32.totalorder %s145, %s147
      %p154 = scmp.eq.s32.totalorder %s116, 1
      %p155 = por %p153, %p154
      %p156 = scmp.ne.s32.totalorder %s147, %s148
      %p157 = scmp.eq.s32.totalorder %s116, 0
      %p158 = por %p156, %p157
      %p159 = scmp.ne.s32.totalorder %s147, %s148
      %p160 = scmp.eq.s32.totalorder %s117, 1
      %p161 = por %p159, %p160
      %p163 = scmp.ne.s32.totalorder %s148, %s162
      %p164 = scmp.eq.s32.totalorder %s117, 0
      %p165 = por %p163, %p164
      %s167 = sadd.s32 %s166, 1
      %p170 = scmp.eq.s32.totalorder %s111, 1
      %p171 = scmp.ne.s32.totalorder %s166, %s168
      %p172 = scmp.eq.s32.totalorder %s111, 0
      %p173 = por %p171, %p172
      %p174 = scmp.ne.s32.totalorder %s166, %s168
      %p175 = scmp.eq.s32.totalorder %s116, 1
      %p176 = por %p174, %p175
      %p177 = scmp.ne.s32.totalorder %s168, %s169
      %p178 = scmp.eq.s32.totalorder %s116, 0
      %p179 = por %p177, %p178
      %p180 = scmp.ne.s32.totalorder %s168, %s169
      %p181 = scmp.eq.s32.totalorder %s117, 1
      %p182 = por %p180, %p181
      %p184 = scmp.ne.s32.totalorder %s169, %s183
      %p185 = scmp.eq.s32.totalorder %s117, 0
      %p186 = por %p184, %p185
      %s188 = sadd.s32 %s187, 1
      %p191 = scmp.eq.s32.totalorder %s111, 1
      %p192 = scmp.ne.s32.totalorder %s187, %s189
      %p193 = scmp.eq.s32.totalorder %s111, 0
      %p194 = por %p192, %p193
      %p195 = scmp.ne.s32.totalorder %s187, %s189
      %p196 = scmp.eq.s32.totalorder %s116, 1
      %p197 = por %p195, %p196
      %p198 = scmp.ne.s32.totalorder %s189, %s190
      %p199 = scmp.eq.s32.totalorder %s116, 0
      %p200 = por %p198, %p199
      %p201 = scmp.ne.s32.totalorder %s189, %s190
      %p202 = scmp.eq.s32.totalorder %s117, 1
      %p203 = por %p201, %p202
      %p205 = scmp.ne.s32.totalorder %s190, %s204
      %p206 = scmp.eq.s32.totalorder %s117, 0
      %p207 = por %p205, %p206
      %s209 = sadd.s32 %s208, 1
      %p212 = scmp.eq.s32.totalorder %s111, 1
      %p213 = scmp.ne.s32.totalorder %s208, %s210
      %p214 = scmp.eq.s32.totalorder %s111, 0
      %p215 = por %p213, %p214
      %p216 = scmp.ne.s32.totalorder %s208, %s210
      %p217 = scmp.eq.s32.totalorder %s116, 1
      %p218 = por %p216, %p217
      %p219 = scmp.ne.s32.totalorder %s210, %s211
      %p220 = scmp.eq.s32.totalorder %s116, 0
      %p221 = por %p219, %p220
      %p222 = scmp.ne.s32.totalorder %s210, %s211
      %p223 = scmp.eq.s32.totalorder %s117, 1
      %p224 = por %p222, %p223
      %p226 = scmp.ne.s32.totalorder %s211, %s225
      %p227 = scmp.eq.s32.totalorder %s117, 0
      %p228 = por %p226, %p227
      %s230 = sadd.s32 %s229, 1
      %p233 = scmp.eq.s32.totalorder %s111, 1
      %p234 = scmp.ne.s32.totalorder %s229, %s231
      %p235 = scmp.eq.s32.totalorder %s111, 0
      %p236 = por %p234, %p235
      %p237 = scmp.ne.s32.totalorder %s229, %s231
      %p238 = scmp.eq.s32.totalorder %s116, 1
      %p239 = por %p237, %p238
      %p240 = scmp.ne.s32.totalorder %s231, %s232
      %p241 = scmp.eq.s32.totalorder %s116, 0
      %p242 = por %p240, %p241
      %p243 = scmp.ne.s32.totalorder %s231, %s232
      %p244 = scmp.eq.s32.totalorder %s117, 1
      %p245 = por %p243, %p244
      %p247 = scmp.ne.s32.totalorder %s232, %s246
      %p248 = scmp.eq.s32.totalorder %s117, 0
      %p249 = por %p247, %p248
      %s251 = sadd.s32 %s250, 1
      %p254 = scmp.eq.s32.totalorder %s111, 1
      %p255 = scmp.ne.s32.totalorder %s250, %s252
      %p256 = scmp.eq.s32.totalorder %s111, 0
      %p257 = por %p255, %p256
      %p258 = scmp.ne.s32.totalorder %s250, %s252
      %p259 = scmp.eq.s32.totalorder %s116, 1
      %p260 = por %p258, %p259
      %p261 = scmp.ne.s32.totalorder %s252, %s253
      %p262 = scmp.eq.s32.totalorder %s116, 0
      %p263 = por %p261, %p262
      %p264 = scmp.ne.s32.totalorder %s252, %s253
      %p265 = scmp.eq.s32.totalorder %s117, 1
      %p266 = por %p264, %p265
      %p268 = scmp.ne.s32.totalorder %s253, %s267
      %p269 = scmp.eq.s32.totalorder %s117, 0
      %p270 = por %p268, %p269
      %s272 = sadd.s32 %s271, 1
      %p275 = scmp.eq.s32.totalorder %s111, 1
      %p276 = scmp.ne.s32.totalorder %s271, %s273
      %p277 = scmp.eq.s32.totalorder %s111, 0
      %p278 = por %p276, %p277
      %p279 = scmp.ne.s32.totalorder %s271, %s273
      %p280 = scmp.eq.s32.totalorder %s116, 1
      %p281 = por %p279, %p280
      %p282 = scmp.ne.s32.totalorder %s273, %s274
      %p283 = scmp.eq.s32.totalorder %s116, 0
      %p284 = por %p282, %p283
      %p285 = scmp.ne.s32.totalorder %s273, %s274
      %p286 = scmp.eq.s32.totalorder %s117, 1
      %p287 = por %p285, %p286
      %p289 = scmp.ne.s32.totalorder %s274, %s288
      %p290 = scmp.eq.s32.totalorder %s117, 0
      %p291 = por %p289, %p290
      %s293 = sadd.s32 %s292, 1
      %p296 = scmp.eq.s32.totalorder %s111, 1
      %p297 = scmp.ne.s32.totalorder %s292, %s294
      %p298 = scmp.eq.s32.totalorder %s111, 0
      %p299 = por %p297, %p298
      %p300 = scmp.ne.s32.totalorder %s292, %s294
      %p301 = scmp.eq.s32.totalorder %s116, 1
      %p302 = por %p300, %p301
      %p303 = scmp.ne.s32.totalorder %s294, %s295
      %p304 = scmp.eq.s32.totalorder %s116, 0
      %p305 = por %p303, %p304
      %p306 = scmp.ne.s32.totalorder %s294, %s295
      %p307 = scmp.eq.s32.totalorder %s117, 1
      %p308 = por %p306, %p307
      %p310 = scmp.ne.s32.totalorder %s295, %s309
      %p311 = scmp.eq.s32.totalorder %s117, 0
      %p312 = por %p310, %p311
      %s314 = sadd.s32 %s313, 1
      %p317 = scmp.eq.s32.totalorder %s111, 1
      %p318 = scmp.ne.s32.totalorder %s313, %s315
      %p319 = scmp.eq.s32.totalorder %s111, 0
      %p320 = por %p318, %p319
      %p321 = scmp.ne.s32.totalorder %s313, %s315
      %p322 = scmp.eq.s32.totalorder %s116, 1
      %p323 = por %p321, %p322
      %p324 = scmp.ne.s32.totalorder %s315, %s316
      %p325 = scmp.eq.s32.totalorder %s116, 0
      %p326 = por %p324, %p325
      %p327 = scmp.ne.s32.totalorder %s315, %s316
      %p328 = scmp.eq.s32.totalorder %s117, 1
      %p329 = por %p327, %p328
      %p331 = scmp.ne.s32.totalorder %s316, %s330
      %p332 = scmp.eq.s32.totalorder %s117, 0
      %p333 = por %p331, %p332
      %s335 = sadd.s32 %s334, 1
      %p338 = scmp.eq.s32.totalorder %s111, 1
      %p339 = scmp.ne.s32.totalorder %s334, %s336
      %p340 = scmp.eq.s32.totalorder %s111, 0
      %p341 = por %p339, %p340
      %p342 = scmp.ne.s32.totalorder %s334, %s336
      %p343 = scmp.eq.s32.totalorder %s116, 1
      %p344 = por %p342, %p343
      %p345 = scmp.ne.s32.totalorder %s336, %s337
      %p346 = scmp.eq.s32.totalorder %s116, 0
      %p347 = por %p345, %p346
      %p348 = scmp.ne.s32.totalorder %s336, %s337
      %p349 = scmp.eq.s32.totalorder %s117, 1
      %p350 = por %p348, %p349
      %p352 = scmp.ne.s32.totalorder %s337, %s351
      %p353 = scmp.eq.s32.totalorder %s117, 0
      %p354 = por %p352, %p353
      %s356 = sadd.s32 %s355, 1
      %p359 = scmp.eq.s32.totalorder %s111, 1
      %p360 = scmp.ne.s32.totalorder %s355, %s357
      %p361 = scmp.eq.s32.totalorder %s111, 0
      %p362 = por %p360, %p361
      %p363 = scmp.ne.s32.totalorder %s355, %s357
      %p364 = scmp.eq.s32.totalorder %s116, 1
      %p365 = por %p363, %p364
      %p366 = scmp.ne.s32.totalorder %s357, %s358
      %p367 = scmp.eq.s32.totalorder %s116, 0
      %p368 = por %p366, %p367
      %p369 = scmp.ne.s32.totalorder %s357, %s358
      %p370 = scmp.eq.s32.totalorder %s117, 1
      %p371 = por %p369, %p370
      %p373 = scmp.ne.s32.totalorder %s358, %s372
      %p374 = scmp.eq.s32.totalorder %s117, 0
      %p375 = por %p373, %p374
      %s377 = sadd.s32 %s376, 1
      %p380 = scmp.eq.s32.totalorder %s111, 1
      %p381 = scmp.ne.s32.totalorder %s376, %s378
      %p382 = scmp.eq.s32.totalorder %s111, 0
      %p383 = por %p381, %p382
      %p384 = scmp.ne.s32.totalorder %s376, %s378
      %p385 = scmp.eq.s32.totalorder %s116, 1
      %p386 = por %p384, %p385
      %p387 = scmp.ne.s32.totalorder %s378, %s379
      %p388 = scmp.eq.s32.totalorder %s116, 0
      %p389 = por %p387, %p388
      %p390 = scmp.ne.s32.totalorder %s378, %s379
      %p391 = scmp.eq.s32.totalorder %s117, 1
      %p392 = por %p390, %p391
      %p394 = scmp.ne.s32.totalorder %s379, %s393
      %p395 = scmp.eq.s32.totalorder %s117, 0
      %p396 = por %p394, %p395
      %s398 = sadd.s32 %s397, 1
      %p401 = scmp.eq.s32.totalorder %s111, 1
      %p402 = scmp.ne.s32.totalorder %s397, %s399
      %p403 = scmp.eq.s32.totalorder %s111, 0
      %p404 = por %p402, %p403
      %p405 = scmp.ne.s32.totalorder %s397, %s399
      %p406 = scmp.eq.s32.totalorder %s116, 1
      %p407 = por %p405, %p406
      %p408 = scmp.ne.s32.totalorder %s399, %s400
      %p409 = scmp.eq.s32.totalorder %s116, 0
      %p410 = por %p408, %p409
      %p411 = scmp.ne.s32.totalorder %s399, %s400
      %p412 = scmp.eq.s32.totalorder %s117, 1
      %p413 = por %p411, %p412
      %p415 = scmp.ne.s32.totalorder %s400, %s414
      %p416 = scmp.eq.s32.totalorder %s117, 0
      %p417 = por %p415, %p416
      %s419 = sadd.s32 %s418, 1
      %p422 = scmp.eq.s32.totalorder %s111, 1
      %p423 = scmp.ne.s32.totalorder %s418, %s420
      %p424 = scmp.eq.s32.totalorder %s111, 0
      %p425 = por %p423, %p424
      %p426 = scmp.ne.s32.totalorder %s418, %s420
      %p427 = scmp.eq.s32.totalorder %s116, 1
      %p428 = por %p426, %p427
      %p429 = scmp.ne.s32.totalorder %s420, %s421
      %p430 = scmp.eq.s32.totalorder %s116, 0
      %p431 = por %p429, %p430
      %p432 = scmp.ne.s32.totalorder %s420, %s421
      %p433 = scmp.eq.s32.totalorder %s117, 1
      %p434 = por %p432, %p433
      %p436 = scmp.ne.s32.totalorder %s421, %s435
      %p437 = scmp.eq.s32.totalorder %s117, 0
      %p438 = por %p436, %p437
      %s440 = sadd.s32 %s439, 1
      %p443 = scmp.eq.s32.totalorder %s111, 1
      %p444 = scmp.ne.s32.totalorder %s439, %s441
      %p445 = scmp.eq.s32.totalorder %s111, 0
      %p446 = por %p444, %p445
      %p447 = scmp.ne.s32.totalorder %s439, %s441
      %p448 = scmp.eq.s32.totalorder %s116, 1
      %p449 = por %p447, %p448
      %p450 = scmp.ne.s32.totalorder %s441, %s442
      %p451 = scmp.eq.s32.totalorder %s116, 0
      %p452 = por %p450, %p451
      %p453 = scmp.ne.s32.totalorder %s441, %s442
      %p454 = scmp.eq.s32.totalorder %s117, 1
      %p455 = por %p453, %p454
      %p457 = scmp.ne.s32.totalorder %s442, %s456
      %p458 = scmp.eq.s32.totalorder %s117, 0
      %p459 = por %p457, %p458
      %s461 = sadd.s32 %s460, 1
      %p464 = scmp.eq.s32.totalorder %s111, 1
      %p465 = scmp.ne.s32.totalorder %s460, %s462
      %p466 = scmp.eq.s32.totalorder %s111, 0
      %p467 = por %p465, %p466
      %p468 = scmp.ne.s32.totalorder %s460, %s462
      %p469 = scmp.eq.s32.totalorder %s116, 1
      %p470 = por %p468, %p469
      %p471 = scmp.ne.s32.totalorder %s462, %s463
      %p472 = scmp.eq.s32.totalorder %s116, 0
      %p473 = por %p471, %p472
      %p474 = scmp.ne.s32.totalorder %s462, %s463
      %p475 = scmp.eq.s32.totalorder %s117, 1
      %p476 = por %p474, %p475
      %p478 = scmp.ne.s32.totalorder %s463, %s477
      %p479 = scmp.eq.s32.totalorder %s117, 0
      %p480 = por %p478, %p479
      %s482 = sadd.s32 %s481, 1
      %p485 = scmp.eq.s32.totalorder %s111, 1
      %p486 = scmp.ne.s32.totalorder %s481, %s483
      %p487 = scmp.eq.s32.totalorder %s111, 0
      %p488 = por %p486, %p487
      %p489 = scmp.ne.s32.totalorder %s481, %s483
      %p490 = scmp.eq.s32.totalorder %s116, 1
      %p491 = por %p489, %p490
      %p492 = scmp.ne.s32.totalorder %s483, %s484
      %p493 = scmp.eq.s32.totalorder %s116, 0
      %p494 = por %p492, %p493
      %p495 = scmp.ne.s32.totalorder %s483, %s484
      %p496 = scmp.eq.s32.totalorder %s117, 1
      %p497 = por %p495, %p496
      %p499 = scmp.ne.s32.totalorder %s484, %s498
      %p500 = scmp.eq.s32.totalorder %s117, 0
      %p501 = por %p499, %p500
      %s503 = sadd.s32 %s502, 1
      %p506 = scmp.eq.s32.totalorder %s111, 1
      %p507 = scmp.ne.s32.totalorder %s502, %s504
      %p508 = scmp.eq.s32.totalorder %s111, 0
      %p509 = por %p507, %p508
      %p510 = scmp.ne.s32.totalorder %s502, %s504
      %p511 = scmp.eq.s32.totalorder %s116, 1
      %p512 = por %p510, %p511
      %p513 = scmp.ne.s32.totalorder %s504, %s505
      %p514 = scmp.eq.s32.totalorder %s116, 0
      %p515 = por %p513, %p514
      %p516 = scmp.ne.s32.totalorder %s504, %s505
      %p517 = scmp.eq.s32.totalorder %s117, 1
      %p518 = por %p516, %p517
      %p520 = scmp.ne.s32.totalorder %s505, %s519
      %p521 = scmp.eq.s32.totalorder %s117, 0
      %p522 = por %p520, %p521
      %s524 = sadd.s32 %s523, 1
      %p527 = scmp.eq.s32.totalorder %s111, 1
      %p528 = scmp.ne.s32.totalorder %s523, %s525
      %p529 = scmp.eq.s32.totalorder %s111, 0
      %p530 = por %p528, %p529
      %p531 = scmp.ne.s32.totalorder %s523, %s525
      %p532 = scmp.eq.s32.totalorder %s116, 1
      %p533 = por %p531, %p532
      %p534 = scmp.ne.s32.totalorder %s525, %s526
      %p535 = scmp.eq.s32.totalorder %s116, 0
      %p536 = por %p534, %p535
      %p537 = scmp.ne.s32.totalorder %s525, %s526
      %p538 = scmp.eq.s32.totalorder %s117, 1
      %p539 = por %p537, %p538
      %p541 = scmp.ne.s32.totalorder %s526, %s540
      %p542 = scmp.eq.s32.totalorder %s117, 0
      %p543 = por %p541, %p542
      %s545 = sadd.s32 %s544, 1
      %p548 = scmp.eq.s32.totalorder %s111, 1
      %p549 = scmp.ne.s32.totalorder %s544, %s546
      %p550 = scmp.eq.s32.totalorder %s111, 0
      %p551 = por %p549, %p550
      %p552 = scmp.ne.s32.totalorder %s544, %s546
      %p553 = scmp.eq.s32.totalorder %s116, 1
      %p554 = por %p552, %p553
      %p555 = scmp.ne.s32.totalorder %s546, %s547
      %p556 = scmp.eq.s32.totalorder %s116, 0
      %p557 = por %p555, %p556
      %p558 = scmp.ne.s32.totalorder %s546, %s547
      %p559 = scmp.eq.s32.totalorder %s117, 1
      %p560 = por %p558, %p559
      %p562 = scmp.ne.s32.totalorder %s547, %s561
      %p563 = scmp.eq.s32.totalorder %s117, 0
      %p564 = por %p562, %p563
      %s566 = sadd.s32 %s565, 1
      %p569 = scmp.eq.s32.totalorder %s111, 1
      %p570 = scmp.ne.s32.totalorder %s565, %s567
      %p571 = scmp.eq.s32.totalorder %s111, 0
      %p572 = por %p570, %p571
      %p573 = scmp.ne.s32.totalorder %s565, %s567
      %p574 = scmp.eq.s32.totalorder %s116, 1
      %p575 = por %p573, %p574
      %p576 = scmp.ne.s32.totalorder %s567, %s568
      %p577 = scmp.eq.s32.totalorder %s116, 0
      %p578 = por %p576, %p577
      %p579 = scmp.ne.s32.totalorder %s567, %s568
      %p580 = scmp.eq.s32.totalorder %s117, 1
      %p581 = por %p579, %p580
      %p583 = scmp.ne.s32.totalorder %s568, %s582
      %p584 = scmp.eq.s32.totalorder %s117, 0
      %p585 = por %p583, %p584
      %s587 = sadd.s32 %s586, 1
      %p590 = scmp.eq.s32.totalorder %s111, 1
      %p591 = scmp.ne.s32.totalorder %s586, %s588
      %p592 = scmp.eq.s32.totalorder %s111, 0
      %p593 = por %p591, %p592
      %p594 = scmp.ne.s32.totalorder %s586, %s588
      %p595 = scmp.eq.s32.totalorder %s116, 1
      %p596 = por %p594, %p595
      %p597 = scmp.ne.s32.totalorder %s588, %s589
      %p598 = scmp.eq.s32.totalorder %s116, 0
      %p599 = por %p597, %p598
      %p600 = scmp.ne.s32.totalorder %s588, %s589
      %p601 = scmp.eq.s32.totalorder %s117, 1
      %p602 = por %p600, %p601
      %p604 = scmp.ne.s32.totalorder %s589, %s603
      %p605 = scmp.eq.s32.totalorder %s117, 0
      %p606 = por %p604, %p605
      %s608 = sadd.s32 %s607, 1
      %p611 = scmp.eq.s32.totalorder %s111, 1
      %p612 = scmp.ne.s32.totalorder %s607, %s609
      %p613 = scmp.eq.s32.totalorder %s111, 0
      %p614 = por %p612, %p613
      %p615 = scmp.ne.s32.totalorder %s607, %s609
      %p616 = scmp.eq.s32.totalorder %s116, 1
      %p617 = por %p615, %p616
      %p618 = scmp.ne.s32.totalorder %s609, %s610
      %p619 = scmp.eq.s32.totalorder %s116, 0
      %p620 = por %p618, %p619
      %p621 = scmp.ne.s32.totalorder %s609, %s610
      %p622 = scmp.eq.s32.totalorder %s117, 1
      %p623 = por %p621, %p622
      %p625 = scmp.ne.s32.totalorder %s610, %s624
      %p626 = scmp.eq.s32.totalorder %s117, 0
      %p627 = por %p625, %p626
      %s629 = sadd.s32 %s628, 1
      %p632 = scmp.eq.s32.totalorder %s111, 1
      %p633 = scmp.ne.s32.totalorder %s628, %s630
      %p634 = scmp.eq.s32.totalorder %s111, 0
      %p635 = por %p633, %p634
      %p636 = scmp.ne.s32.totalorder %s628, %s630
      %p637 = scmp.eq.s32.totalorder %s116, 1
      %p638 = por %p636, %p637
      %p639 = scmp.ne.s32.totalorder %s630, %s631
      %p640 = scmp.eq.s32.totalorder %s116, 0
      %p641 = por %p639, %p640
      %p642 = scmp.ne.s32.totalorder %s630, %s631
      %p643 = scmp.eq.s32.totalorder %s117, 1
      %p644 = por %p642, %p643
      %p646 = scmp.ne.s32.totalorder %s631, %s645
      %p647 = scmp.eq.s32.totalorder %s117, 0
      %p648 = por %p646, %p647
      %s650 = sadd.s32 %s649, 1
      %p653 = scmp.eq.s32.totalorder %s111, 1
      %p654 = scmp.ne.s32.totalorder %s649, %s651
      %p655 = scmp.eq.s32.totalorder %s111, 0
      %p656 = por %p654, %p655
      %p657 = scmp.ne.s32.totalorder %s649, %s651
      %p658 = scmp.eq.s32.totalorder %s116, 1
      %p659 = por %p657, %p658
      %p660 = scmp.ne.s32.totalorder %s651, %s652
      %p661 = scmp.eq.s32.totalorder %s116, 0
      %p662 = por %p660, %p661
      %p663 = scmp.ne.s32.totalorder %s651, %s652
      %p664 = scmp.eq.s32.totalorder %s117, 1
      %p665 = por %p663, %p664
      %p667 = scmp.ne.s32.totalorder %s652, %s666
      %p668 = scmp.eq.s32.totalorder %s117, 0
      %p669 = por %p667, %p668
      %s671 = sadd.s32 %s670, 1
      %p674 = scmp.eq.s32.totalorder %s111, 1
      %p675 = scmp.ne.s32.totalorder %s670, %s672
      %p676 = scmp.eq.s32.totalorder %s111, 0
      %p677 = por %p675, %p676
      %p678 = scmp.ne.s32.totalorder %s670, %s672
      %p679 = scmp.eq.s32.totalorder %s116, 1
      %p680 = por %p678, %p679
      %p681 = scmp.ne.s32.totalorder %s672, %s673
      %p682 = scmp.eq.s32.totalorder %s116, 0
      %p683 = por %p681, %p682
      %p684 = scmp.ne.s32.totalorder %s672, %s673
      %p685 = scmp.eq.s32.totalorder %s117, 1
      %p686 = por %p684, %p685
      %p688 = scmp.ne.s32.totalorder %s673, %s687
      %p689 = scmp.eq.s32.totalorder %s117, 0
      %p690 = por %p688, %p689
      %s692 = sadd.s32 %s691, 1
      %p695 = scmp.eq.s32.totalorder %s111, 1
      %p696 = scmp.ne.s32.totalorder %s691, %s693
      %p697 = scmp.eq.s32.totalorder %s111, 0
      %p698 = por %p696, %p697
      %p699 = scmp.ne.s32.totalorder %s691, %s693
      %p700 = scmp.eq.s32.totalorder %s116, 1
      %p701 = por %p699, %p700
      %p702 = scmp.ne.s32.totalorder %s693, %s694
      %p703 = scmp.eq.s32.totalorder %s116, 0
      %p704 = por %p702, %p703
      %p705 = scmp.ne.s32.totalorder %s693, %s694
      %p706 = scmp.eq.s32.totalorder %s117, 1
      %p707 = por %p705, %p706
      %p709 = scmp.ne.s32.totalorder %s694, %s708
      %p710 = scmp.eq.s32.totalorder %s117, 0
      %p711 = por %p709, %p710
      %s713 = sadd.s32 %s712, 1
      %p716 = scmp.eq.s32.totalorder %s111, 1
      %p717 = scmp.ne.s32.totalorder %s712, %s714
      %p718 = scmp.eq.s32.totalorder %s111, 0
      %p719 = por %p717, %p718
      %p720 = scmp.ne.s32.totalorder %s712, %s714
      %p721 = scmp.eq.s32.totalorder %s116, 1
      %p722 = por %p720, %p721
      %p723 = scmp.ne.s32.totalorder %s714, %s715
      %p724 = scmp.eq.s32.totalorder %s116, 0
      %p725 = por %p723, %p724
      %p726 = scmp.ne.s32.totalorder %s714, %s715
      %p727 = scmp.eq.s32.totalorder %s117, 1
      %p728 = por %p726, %p727
      %p730 = scmp.ne.s32.totalorder %s715, %s729
      %p731 = scmp.eq.s32.totalorder %s117, 0
      %p732 = por %p730, %p731
      %s734 = sadd.s32 %s733, 1
      %p737 = scmp.eq.s32.totalorder %s111, 1
      %p738 = scmp.ne.s32.totalorder %s733, %s735
      %p739 = scmp.eq.s32.totalorder %s111, 0
      %p740 = por %p738, %p739
      %p741 = scmp.ne.s32.totalorder %s733, %s735
      %p742 = scmp.eq.s32.totalorder %s116, 1
      %p743 = por %p741, %p742
      %p744 = scmp.ne.s32.totalorder %s735, %s736
      %p745 = scmp.eq.s32.totalorder %s116, 0
      %p746 = por %p744, %p745
      %p747 = scmp.ne.s32.totalorder %s735, %s736
      %p748 = scmp.eq.s32.totalorder %s117, 1
      %p749 = por %p747, %p748
      %p751 = scmp.ne.s32.totalorder %s736, %s750
      %p752 = scmp.eq.s32.totalorder %s117, 0
      %p753 = por %p751, %p752
      %s755 = sadd.s32 %s754, 1
      %p758 = scmp.eq.s32.totalorder %s111, 1
      %p759 = scmp.ne.s32.totalorder %s754, %s756
      %p760 = scmp.eq.s32.totalorder %s111, 0
      %p761 = por %p759, %p760
      %p762 = scmp.ne.s32.totalorder %s754, %s756
      %p763 = scmp.eq.s32.totalorder %s116, 1
      %p764 = por %p762, %p763
      %p765 = scmp.ne.s32.totalorder %s756, %s757
      %p766 = scmp.eq.s32.totalorder %s116, 0
      %p767 = por %p765, %p766
      %p768 = scmp.ne.s32.totalorder %s756, %s757
      %p769 = scmp.eq.s32.totalorder %s117, 1
      %p770 = por %p768, %p769
      %p772 = scmp.ne.s32.totalorder %s757, %s771
      %p773 = scmp.eq.s32.totalorder %s117, 0
      %p774 = por %p772, %p773
      %s776 = sadd.s32 %s775, 1
      %p779 = scmp.eq.s32.totalorder %s111, 1
      %p780 = scmp.ne.s32.totalorder %s775, %s777
      %p781 = scmp.eq.s32.totalorder %s111, 0
      %p782 = por %p780, %p781
      %p783 = scmp.ne.s32.totalorder %s775, %s777
      %p784 = scmp.eq.s32.totalorder %s116, 1
      %p785 = por %p783, %p784
      %p786 = scmp.ne.s32.totalorder %s777, %s778
      %p787 = scmp.eq.s32.totalorder %s116, 0
      %p788 = por %p786, %p787
      %p789 = scmp.ne.s32.totalorder %s777, %s778
      %p790 = scmp.eq.s32.totalorder %s117, 1
      %p791 = por %p789, %p790
      %p793 = scmp.ne.s32.totalorder %s778, %s792
      %p794 = scmp.eq.s32.totalorder %s117, 0
      %p795 = por %p793, %p794
      %s797 = sadd.s32 %s796, 1
      %p800 = scmp.eq.s32.totalorder %s111, 1
      %p801 = scmp.ne.s32.totalorder %s796, %s798
      %p802 = scmp.eq.s32.totalorder %s111, 0
      %p803 = por %p801, %p802
      %p804 = scmp.ne.s32.totalorder %s796, %s798
      %p805 = scmp.eq.s32.totalorder %s116, 1
      %p806 = por %p804, %p805
      %p807 = scmp.ne.s32.totalorder %s798, %s799
      %p808 = scmp.eq.s32.totalorder %s116, 0
      %p809 = por %p807, %p808
      %p810 = scmp.ne.s32.totalorder %s798, %s799
      %p811 = scmp.eq.s32.totalorder %s117, 1
      %p812 = por %p810, %p811
      %p814 = scmp.ne.s32.totalorder %s799, %s813
      %p815 = scmp.eq.s32.totalorder %s117, 0
      %p816 = por %p814, %p815
      %s818 = sadd.s32 %s817, 1
      %p821 = scmp.eq.s32.totalorder %s111, 1
      %p822 = scmp.ne.s32.totalorder %s817, %s819
      %p823 = scmp.eq.s32.totalorder %s111, 0
      %p824 = por %p822, %p823
      %p825 = scmp.ne.s32.totalorder %s817, %s819
      %p826 = scmp.eq.s32.totalorder %s116, 1
      %p827 = por %p825, %p826
      %p828 = scmp.ne.s32.totalorder %s819, %s820
      %p829 = scmp.eq.s32.totalorder %s116, 0
      %p830 = por %p828, %p829
      %p831 = scmp.ne.s32.totalorder %s819, %s820
      %p832 = scmp.eq.s32.totalorder %s117, 1
      %p833 = por %p831, %p832
      %p835 = scmp.ne.s32.totalorder %s820, %s834
      %p836 = scmp.eq.s32.totalorder %s117, 0
      %p837 = por %p835, %p836
      %s839 = sadd.s32 %s838, 1
      %p842 = scmp.eq.s32.totalorder %s111, 1
      %p843 = scmp.ne.s32.totalorder %s838, %s840
      %p844 = scmp.eq.s32.totalorder %s111, 0
      %p845 = por %p843, %p844
      %p846 = scmp.ne.s32.totalorder %s838, %s840
      %p847 = scmp.eq.s32.totalorder %s116, 1
      %p848 = por %p846, %p847
      %p849 = scmp.ne.s32.totalorder %s840, %s841
      %p850 = scmp.eq.s32.totalorder %s116, 0
      %p851 = por %p849, %p850
      %p852 = scmp.ne.s32.totalorder %s840, %s841
      %p853 = scmp.eq.s32.totalorder %s117, 1
      %p854 = por %p852, %p853
      %p856 = scmp.ne.s32.totalorder %s841, %s855
      %p857 = scmp.eq.s32.totalorder %s117, 0
      %p858 = por %p856, %p857
      %s860 = sadd.s32 %s859, 1
      %p863 = scmp.eq.s32.totalorder %s111, 1
      %p864 = scmp.ne.s32.totalorder %s859, %s861
      %p865 = scmp.eq.s32.totalorder %s111, 0
      %p866 = por %p864, %p865
      %p867 = scmp.ne.s32.totalorder %s859, %s861
      %p868 = scmp.eq.s32.totalorder %s116, 1
      %p869 = por %p867, %p868
      %p870 = scmp.ne.s32.totalorder %s861, %s862
      %p871 = scmp.eq.s32.totalorder %s116, 0
      %p872 = por %p870, %p871
      %p873 = scmp.ne.s32.totalorder %s861, %s862
      %p874 = scmp.eq.s32.totalorder %s117, 1
      %p875 = por %p873, %p874
      %p877 = scmp.ne.s32.totalorder %s862, %s876
      %p878 = scmp.eq.s32.totalorder %s117, 0
      %p879 = por %p877, %p878
      %s881 = sadd.s32 %s880, 1
      %p884 = scmp.eq.s32.totalorder %s111, 1
      %p885 = scmp.ne.s32.totalorder %s880, %s882
      %p886 = scmp.eq.s32.totalorder %s111, 0
      %p887 = por %p885, %p886
      %p888 = scmp.ne.s32.totalorder %s880, %s882
      %p889 = scmp.eq.s32.totalorder %s116, 1
      %p890 = por %p888, %p889
      %p891 = scmp.ne.s32.totalorder %s882, %s883
      %p892 = scmp.eq.s32.totalorder %s116, 0
      %p893 = por %p891, %p892
      %p894 = scmp.ne.s32.totalorder %s882, %s883
      %p895 = scmp.eq.s32.totalorder %s117, 1
      %p896 = por %p894, %p895
      %p898 = scmp.ne.s32.totalorder %s883, %s897
      %p899 = scmp.eq.s32.totalorder %s117, 0
      %p900 = por %p898, %p899
      %s902 = sadd.s32 %s901, 1
      %p905 = scmp.eq.s32.totalorder %s111, 1
      %p906 = scmp.ne.s32.totalorder %s901, %s903
      %p907 = scmp.eq.s32.totalorder %s111, 0
      %p908 = por %p906, %p907
      %p909 = scmp.ne.s32.totalorder %s901, %s903
      %p910 = scmp.eq.s32.totalorder %s116, 1
      %p911 = por %p909, %p910
      %p912 = scmp.ne.s32.totalorder %s903, %s904
      %p913 = scmp.eq.s32.totalorder %s116, 0
      %p914 = por %p912, %p913
      %p915 = scmp.ne.s32.totalorder %s903, %s904
      %p916 = scmp.eq.s32.totalorder %s117, 1
      %p917 = por %p915, %p916
      %p919 = scmp.ne.s32.totalorder %s904, %s918
      %p920 = scmp.eq.s32.totalorder %s117, 0
      %p921 = por %p919, %p920
      %s923 = sadd.s32 %s922, 1
      %p926 = scmp.eq.s32.totalorder %s111, 1
      %p927 = scmp.ne.s32.totalorder %s922, %s924
      %p928 = scmp.eq.s32.totalorder %s111, 0
      %p929 = por %p927, %p928
      %p930 = scmp.ne.s32.totalorder %s922, %s924
      %p931 = scmp.eq.s32.totalorder %s116, 1
      %p932 = por %p930, %p931
      %p933 = scmp.ne.s32.totalorder %s924, %s925
      %p934 = scmp.eq.s32.totalorder %s116, 0
      %p935 = por %p933, %p934
      %p936 = scmp.ne.s32.totalorder %s924, %s925
      %p937 = scmp.eq.s32.totalorder %s117, 1
      %p938 = por %p936, %p937
      %p940 = scmp.ne.s32.totalorder %s925, %s939
      %p941 = scmp.eq.s32.totalorder %s117, 0
      %p942 = por %p940, %p941
      %s944 = sadd.s32 %s943, 1
      %p947 = scmp.eq.s32.totalorder %s111, 1
      %p948 = scmp.ne.s32.totalorder %s943, %s945
      %p949 = scmp.eq.s32.totalorder %s111, 0
      %p950 = por %p948, %p949
      %p951 = scmp.ne.s32.totalorder %s943, %s945
      %p952 = scmp.eq.s32.totalorder %s116, 1
      %p953 = por %p951, %p952
      %p954 = scmp.ne.s32.totalorder %s945, %s946
      %p955 = scmp.eq.s32.totalorder %s116, 0
      %p956 = por %p954, %p955
      %p957 = scmp.ne.s32.totalorder %s945, %s946
      %p958 = scmp.eq.s32.totalorder %s117, 1
      %p959 = por %p957, %p958
      %p961 = scmp.ne.s32.totalorder %s946, %s960
      %p962 = scmp.eq.s32.totalorder %s117, 0
      %p963 = por %p961, %p962
      %s965 = sadd.s32 %s964, 1
      %p968 = scmp.eq.s32.totalorder %s111, 1
      %p969 = scmp.ne.s32.totalorder %s964, %s966
      %p970 = scmp.eq.s32.totalorder %s111, 0
      %p971 = por %p969, %p970
      %p972 = scmp.ne.s32.totalorder %s964, %s966
      %p973 = scmp.eq.s32.totalorder %s116, 1
      %p974 = por %p972, %p973
      %p975 = scmp.ne.s32.totalorder %s966, %s967
      %p976 = scmp.eq.s32.totalorder %s116, 0
      %p977 = por %p975, %p976
      %p978 = scmp.ne.s32.totalorder %s966, %s967
      %p979 = scmp.eq.s32.totalorder %s117, 1
      %p980 = por %p978, %p979
      %p982 = scmp.ne.s32.totalorder %s967, %s981
      %p983 = scmp.eq.s32.totalorder %s117, 0
      %p984 = por %p982, %p983
      %s985 = ssub.s32 %s111, %s118
      %p986 = scmp.eq.s32.totalorder %s985, 0
      %s988 = sadd.s32 %s987, 1
      %s989 = scalar_select %p986, %s987, %s988
      %p992 = pneg %p986
      %p993 = scmp.eq.s32.totalorder %s111, 1
      %p994 = por %p992, %p993
      %p995 = scmp.ne.s32.totalorder %s987, %s990
      %p996 = scmp.eq.s32.totalorder %s111, 0
      %p997 = por %p995, %p996
      %p998 = scmp.ne.s32.totalorder %s987, %s990
      %p999 = scmp.eq.s32.totalorder %s116, 1
      %p1000 = por %p998, %p999
      %p1001 = scmp.ne.s32.totalorder %s990, %s991
      %p1002 = scmp.eq.s32.totalorder %s116, 0
      %p1003 = por %p1001, %p1002
      %p1004 = scmp.ne.s32.totalorder %s990, %s991
      %p1005 = scmp.eq.s32.totalorder %s117, 1
      %p1006 = por %p1004, %p1005
      %p1008 = scmp.ne.s32.totalorder %s991, %s1007
      %p1009 = scmp.eq.s32.totalorder %s117, 0
      %p1010 = por %p1008, %p1009
      %s1011 = ssub.s32 %s111, %s118
      %p1012 = scmp.eq.s32.totalorder %s1011, 0
      %s1014 = sadd.s32 %s1013, 1
      %s1015 = scalar_select %p1012, %s1013, %s1014
      %p1018 = pneg %p1012
      %p1019 = scmp.eq.s32.totalorder %s111, 1
      %p1020 = por %p1018, %p1019
      %p1021 = scmp.ne.s32.totalorder %s1013, %s1016
      %p1022 = scmp.eq.s32.totalorder %s111, 0
      %p1023 = por %p1021, %p1022
      %p1024 = scmp.ne.s32.totalorder %s1013, %s1016
      %p1025 = scmp.eq.s32.totalorder %s116, 1
      %p1026 = por %p1024, %p1025
      %p1027 = scmp.ne.s32.totalorder %s1016, %s1017
      %p1028 = scmp.eq.s32.totalorder %s116, 0
      %p1029 = por %p1027, %p1028
      %p1030 = scmp.ne.s32.totalorder %s1016, %s1017
      %p1031 = scmp.eq.s32.totalorder %s117, 1
      %p1032 = por %p1030, %p1031
      %p1034 = scmp.ne.s32.totalorder %s1017, %s1033
      %p1035 = scmp.eq.s32.totalorder %s117, 0
      %p1036 = por %p1034, %p1035
      %s1037 = ssub.s32 %s111, %s118
      %p1038 = scmp.eq.s32.totalorder %s1037, 0
      %s1040 = sadd.s32 %s1039, 1
      %s1041 = scalar_select %p1038, %s1039, %s1040
      %p1044 = pneg %p1038
      %p1045 = scmp.eq.s32.totalorder %s111, 1
      %p1046 = por %p1044, %p1045
      %p1047 = scmp.ne.s32.totalorder %s1039, %s1042
      %p1048 = scmp.eq.s32.totalorder %s111, 0
      %p1049 = por %p1047, %p1048
      %p1050 = scmp.ne.s32.totalorder %s1039, %s1042
      %p1051 = scmp.eq.s32.totalorder %s116, 1
      %p1052 = por %p1050, %p1051
      %p1053 = scmp.ne.s32.totalorder %s1042, %s1043
      %p1054 = scmp.eq.s32.totalorder %s116, 0
      %p1055 = por %p1053, %p1054
      %p1056 = scmp.ne.s32.totalorder %s1042, %s1043
      %p1057 = scmp.eq.s32.totalorder %s117, 1
      %p1058 = por %p1056, %p1057
      %p1060 = scmp.ne.s32.totalorder %s1043, %s1059
      %p1061 = scmp.eq.s32.totalorder %s117, 0
      %p1062 = por %p1060, %p1061
      %p1063 = scmp.le.s32.totalorder 1, %s111
      %p1064 = scmp.lt.s32.totalorder %s111, 3
      %p1065 = pnand %p1063, %p1064
      %p1066 = pneg %p1065
      // Predicated region
      $region9: #{wave_transformer_forward.3} parent=5 // pred_check
        _
      $region10: #{wave_transformer_forward.3} parent=5 // pred_check_branch
        %1068 = sbr.rel (%p1065) target = $region12
      $region11: #{wave_transformer_forward.3} parent=5 // pred_region
        %s1069 = ssub.s32 %s111, 1
        // Predicated region
        $region13: #{wave_transformer_forward.3} parent=11 // pred_check
          %p1070 = pneg %p158
        $region14: #{wave_transformer_forward.3} parent=11 // pred_check_branch
          %1072 = sbr.rel (%p1070) target = $region16
        $region15: #{wave_transformer_forward.3} parent=11 // pred_region
          _
        $region16: #{wave_transformer_forward.3} parent=11 // pred_fallthru
          _
        // Predicated region
        $region17: #{wave_transformer_forward.3} parent=11 // pred_check
          %p1073 = pneg %p179
        $region18: #{wave_transformer_forward.3} parent=11 // pred_check_branch
          %1075 = sbr.rel (%p1073) target = $region20
        $region19: #{wave_transformer_forward.3} parent=11 // pred_region
          _
        $region20: #{wave_transformer_forward.3} parent=11 // pred_fallthru
          _
        // Predicated region
        $region21: #{wave_transformer_forward.3} parent=11 // pred_check
          %p1076 = pneg %p200
        $region22: #{wave_transformer_forward.3} parent=11 // pred_check_branch
          %1078 = sbr.rel (%p1076) target = $region24
        $region23: #{wave_transformer_forward.3} parent=11 // pred_region
          _
        $region24: #{wave_transformer_forward.3} parent=11 // pred_fallthru
          _
        // Predicated region
        $region25: #{wave_transformer_forward.3} parent=11 // pred_check
          %p1079 = pneg %p221
        $region26: #{wave_transformer_forward.3} parent=11 // pred_check_branch
          %1081 = sbr.rel (%p1079) target = $region28
        $region27: #{wave_transformer_forward.3} parent=11 // pred_region
          _
        $region28: #{wave_transformer_forward.3} parent=11 // pred_fallthru
          _
        // Predicated region
        $region29: #{wave_transformer_forward.3} parent=11 // pred_check
          %p1082 = pneg %p242
        $region30: #{wave_transformer_forward.3} parent=11 // pred_check_branch
          %1084 = sbr.rel (%p1082) target = $region32
        $region31: #{wave_transformer_forward.3} parent=11 // pred_region
          _
        $region32: #{wave_transformer_forward.3} parent=11 // pred_fallthru
          _
        // Predicated region
        $region33: #{wave_transformer_forward.3} parent=11 // pred_check
          %p1085 = pneg %p263
        $region34: #{wave_transformer_forward.3} parent=11 // pred_check_branch
          %1087 = sbr.rel (%p1085) target = $region36
        $region35: #{wave_transformer_forward.3} parent=11 // pred_region
          _
        $region36: #{wave_transformer_forward.3} parent=11 // pred_fallthru
          _
        // Predicated region
        $region37: #{wave_transformer_forward.3} parent=11 // pred_check
          %p1088 = pneg %p284
        $region38: #{wave_transformer_forward.3} parent=11 // pred_check_branch
          %1090 = sbr.rel (%p1088) target = $region40
        $region39: #{wave_transformer_forward.3} parent=11 // pred_region
          _
        $region40: #{wave_transformer_forward.3} parent=11 // pred_fallthru
          _
        // Predicated region
        $region41: #{wave_transformer_forward.3} parent=11 // pred_check
          %p1091 = pneg %p305
        $region42: #{wave_transformer_forward.3} parent=11 // pred_check_branch
          %1093 = sbr.rel (%p1091) target = $region44
        $region43: #{wave_transformer_forward.3} parent=11 // pred_region
          %s1095 = ssub.s32 16, 16
          %1096 = vsyncadd [#allocation3], %s1095
          %s1098 = sshll.u32 [#allocation2], 4
          %s1099 = int_to_ptr.vmem [resolvable:$true] %s1098
          %1101 = dma.hbm_to_vmem [thread:$0]  %s17, 16, %s1099, [#allocation3]
        $region44: #{wave_transformer_forward.3} parent=11 // pred_fallthru
          _
        // Predicated region
        $region45: #{wave_transformer_forward.3} parent=11 // pred_check
          %p1102 = pneg %p326
        $region46: #{wave_transformer_forward.3} parent=11 // pred_check_branch
          %1104 = sbr.rel (%p1102) target = $region48
        $region47: #{wave_transformer_forward.3} parent=11 // pred_region
          _
        $region48: #{wave_transformer_forward.3} parent=11 // pred_fallthru
          _
        // Predicated region
        $region49: #{wave_transformer_forward.3} parent=11 // pred_check
          %p1105 = pneg %p347
        $region50: #{wave_transformer_forward.3} parent=11 // pred_check_branch
          %1107 = sbr.rel (%p1105) target = $region52
        $region51: #{wave_transformer_forward.3} parent=11 // pred_region
          %s1109 = ssub.s32 16, 16
          %1110 = vsyncadd [#allocation6], %s1109
          %s1112 = sshll.u32 [#allocation5], 4
          %s1113 = int_to_ptr.vmem [resolvable:$true] %s1112
          %1115 = dma.hbm_to_vmem [thread:$0]  %s21, 16, %s1113, [#allocation6]
        $region52: #{wave_transformer_forward.3} parent=11 // pred_fallthru
          _
        // Predicated region
        $region53: #{wave_transformer_forward.3} parent=11 // pred_check
          %p1116 = pneg %p368
        $region54: #{wave_transformer_forward.3} parent=11 // pred_check_branch
          %1118 = sbr.rel (%p1116) target = $region56
        $region55: #{wave_transformer_forward.3} parent=11 // pred_region
          _
        $region56: #{wave_transformer_forward.3} parent=11 // pred_fallthru
          _
        // Predicated region
        $region57: #{wave_transformer_forward.3} parent=11 // pred_check
          %p1119 = pneg %p389
        $region58: #{wave_transformer_forward.3} parent=11 // pred_check_branch
          %1121 = sbr.rel (%p1119) target = $region60
        $region59: #{wave_transformer_forward.3} parent=11 // pred_region
          %s1123 = ssub.s32 16, 16
          %1124 = vsyncadd [#allocation6], %s1123
          %s1126 = sshll.u32 [#allocation7], 4
          %s1127 = int_to_ptr.vmem [resolvable:$true] %s1126
          %1129 = dma.hbm_to_vmem [thread:$0]  %s25, 16, %s1127, [#allocation6]
        $region60: #{wave_transformer_forward.3} parent=11 // pred_fallthru
          _
        // Predicated region
        $region61: #{wave_transformer_forward.3} parent=11 // pred_check
          %p1130 = pneg %p410
        $region62: #{wave_transformer_forward.3} parent=11 // pred_check_branch
          %1132 = sbr.rel (%p1130) target = $region64
        $region63: #{wave_transformer_forward.3} parent=11 // pred_region
          %s1134 = ssub.s32 16, 16
          %1135 = vsyncadd [#allocation9], %s1134
          %s1137 = sshll.u32 [#allocation8], 4
          %s1138 = int_to_ptr.vmem [resolvable:$true] %s1137
          %1140 = dma.hbm_to_vmem [thread:$0]  %s27, 16, %s1138, [#allocation9]
        $region64: #{wave_transformer_forward.3} parent=11 // pred_fallthru
          _
        // Predicated region
        $region65: #{wave_transformer_forward.3} parent=11 // pred_check
          %p1141 = pneg %p431
        $region66: #{wave_transformer_forward.3} parent=11 // pred_check_branch
          %1143 = sbr.rel (%p1141) target = $region68
        $region67: #{wave_transformer_forward.3} parent=11 // pred_region
          %s1145 = ssub.s32 16, 16
          %1146 = vsyncadd [#allocation9], %s1145
          %s1148 = sshll.u32 [#allocation10], 4
          %s1149 = int_to_ptr.vmem [resolvable:$true] %s1148
          %1151 = dma.hbm_to_vmem [thread:$0]  %s29, 16, %s1149, [#allocation9]
        $region68: #{wave_transformer_forward.3} parent=11 // pred_fallthru
          _
        // Predicated region
        $region69: #{wave_transformer_forward.3} parent=11 // pred_check
          %p1152 = pneg %p452
        $region70: #{wave_transformer_forward.3} parent=11 // pred_check_branch
          %1154 = sbr.rel (%p1152) target = $region72
        $region71: #{wave_transformer_forward.3} parent=11 // pred_region
          %s1156 = ssub.s32 16, 16
          %1157 = vsyncadd [#allocation12], %s1156
          %s1159 = sshll.u32 [#allocation11], 4
          %s1160 = int_to_ptr.vmem [resolvable:$true] %s1159
          %1162 = dma.hbm_to_vmem [thread:$0]  %s31, 16, %s1160, [#allocation12]
        $region72: #{wave_transformer_forward.3} parent=11 // pred_fallthru
          _
        // Predicated region
        $region73: #{wave_transformer_forward.3} parent=11 // pred_check
          %p1163 = pneg %p473
        $region74: #{wave_transformer_forward.3} parent=11 // pred_check_branch
          %1165 = sbr.rel (%p1163) target = $region76
        $region75: #{wave_transformer_forward.3} parent=11 // pred_region
          _
        $region76: #{wave_transformer_forward.3} parent=11 // pred_fallthru
          _
        // Predicated region
        $region77: #{wave_transformer_forward.3} parent=11 // pred_check
          %p1166 = pneg %p494
        $region78: #{wave_transformer_forward.3} parent=11 // pred_check_branch
          %1168 = sbr.rel (%p1166) target = $region80
        $region79: #{wave_transformer_forward.3} parent=11 // pred_region
          %s1170 = ssub.s32 16, 16
          %1171 = vsyncadd [#allocation12], %s1170
          %s1173 = sshll.u32 [#allocation13], 4
          %s1174 = int_to_ptr.vmem [resolvable:$true] %s1173
          %1176 = dma.hbm_to_vmem [thread:$0]  %s35, 16, %s1174, [#allocation12]
        $region80: #{wave_transformer_forward.3} parent=11 // pred_fallthru
          _
        // Predicated region
        $region81: #{wave_transformer_forward.3} parent=11 // pred_check
          %p1177 = pneg %p515
        $region82: #{wave_transformer_forward.3} parent=11 // pred_check_branch
          %1179 = sbr.rel (%p1177) target = $region84
        $region83: #{wave_transformer_forward.3} parent=11 // pred_region
          _
        $region84: #{wave_transformer_forward.3} parent=11 // pred_fallthru
          _
        // Predicated region
        $region85: #{wave_transformer_forward.3} parent=11 // pred_check
          %p1180 = pneg %p536
        $region86: #{wave_transformer_forward.3} parent=11 // pred_check_branch
          %1182 = sbr.rel (%p1180) target = $region88
        $region87: #{wave_transformer_forward.3} parent=11 // pred_region
          %s1184 = ssub.s32 16, 16
          %1185 = vsyncadd [#allocation15], %s1184
          %s1187 = sshll.u32 [#allocation14], 4
          %s1188 = int_to_ptr.vmem [resolvable:$true] %s1187
          %1190 = dma.hbm_to_vmem [thread:$0]  %s39, 16, %s1188, [#allocation15]
        $region88: #{wave_transformer_forward.3} parent=11 // pred_fallthru
          _
        // Predicated region
        $region89: #{wave_transformer_forward.3} parent=11 // pred_check
          %p1191 = pneg %p557
        $region90: #{wave_transformer_forward.3} parent=11 // pred_check_branch
          %1193 = sbr.rel (%p1191) target = $region92
        $region91: #{wave_transformer_forward.3} parent=11 // pred_region
          _
        $region92: #{wave_transformer_forward.3} parent=11 // pred_fallthru
          _
        // Predicated region
        $region93: #{wave_transformer_forward.3} parent=11 // pred_check
          %p1194 = pneg %p578
        $region94: #{wave_transformer_forward.3} parent=11 // pred_check_branch
          %1196 = sbr.rel (%p1194) target = $region96
        $region95: #{wave_transformer_forward.3} parent=11 // pred_region
          %s1198 = ssub.s32 16, 16
          %1199 = vsyncadd [#allocation15], %s1198
          %s1201 = sshll.u32 [#allocation16], 4
          %s1202 = int_to_ptr.vmem [resolvable:$true] %s1201
          %1204 = dma.hbm_to_vmem [thread:$0]  %s43, 16, %s1202, [#allocation15]
        $region96: #{wave_transformer_forward.3} parent=11 // pred_fallthru
          _
        // Predicated region
        $region97: #{wave_transformer_forward.3} parent=11 // pred_check
          %p1205 = pneg %p599
        $region98: #{wave_transformer_forward.3} parent=11 // pred_check_branch
          %1207 = sbr.rel (%p1205) target = $region100
        $region99: #{wave_transformer_forward.3} parent=11 // pred_region
          _
        $region100: #{wave_transformer_forward.3} parent=11 // pred_fallthru
          _
        // Predicated region
        $region101: #{wave_transformer_forward.3} parent=11 // pred_check
          %p1208 = pneg %p620
        $region102: #{wave_transformer_forward.3} parent=11 // pred_check_branch
          %1210 = sbr.rel (%p1208) target = $region104
        $region103: #{wave_transformer_forward.3} parent=11 // pred_region
          %s1212 = ssub.s32 16, 16
          %1213 = vsyncadd [#allocation18], %s1212
          %s1215 = sshll.u32 [#allocation17], 4
          %s1216 = int_to_ptr.vmem [resolvable:$true] %s1215
          %1218 = dma.hbm_to_vmem [thread:$0]  %s47, 16, %s1216, [#allocation18]
        $region104: #{wave_transformer_forward.3} parent=11 // pred_fallthru
          _
        // Predicated region
        $region105: #{wave_transformer_forward.3} parent=11 // pred_check
          %p1219 = pneg %p641
        $region106: #{wave_transformer_forward.3} parent=11 // pred_check_branch
          %1221 = sbr.rel (%p1219) target = $region108
        $region107: #{wave_transformer_forward.3} parent=11 // pred_region
          %s1223 = ssub.s32 16, 16
          %1224 = vsyncadd [#allocation18], %s1223
          %s1226 = sshll.u32 [#allocation19], 4
          %s1227 = int_to_ptr.vmem [resolvable:$true] %s1226
          %1229 = dma.hbm_to_vmem [thread:$0]  %s49, 16, %s1227, [#allocation18]
        $region108: #{wave_transformer_forward.3} parent=11 // pred_fallthru
          _
        // Predicated region
        $region109: #{wave_transformer_forward.3} parent=11 // pred_check
          %p1230 = pneg %p662
        $region110: #{wave_transformer_forward.3} parent=11 // pred_check_branch
          %1232 = sbr.rel (%p1230) target = $region112
        $region111: #{wave_transformer_forward.3} parent=11 // pred_region
          %s1234 = ssub.s32 16, 16
          %1235 = vsyncadd [#allocation21], %s1234
          %s1237 = sshll.u32 [#allocation20], 4
          %s1238 = int_to_ptr.vmem [resolvable:$true] %s1237
          %1240 = dma.hbm_to_vmem [thread:$0]  %s51, 16, %s1238, [#allocation21]
        $region112: #{wave_transformer_forward.3} parent=11 // pred_fallthru
          _
        // Predicated region
        $region113: #{wave_transformer_forward.3} parent=11 // pred_check
          %p1241 = pneg %p683
        $region114: #{wave_transformer_forward.3} parent=11 // pred_check_branch
          %1243 = sbr.rel (%p1241) target = $region116
        $region115: #{wave_transformer_forward.3} parent=11 // pred_region
          _
        $region116: #{wave_transformer_forward.3} parent=11 // pred_fallthru
          _
        // Predicated region
        $region117: #{wave_transformer_forward.3} parent=11 // pred_check
          %p1244 = pneg %p704
        $region118: #{wave_transformer_forward.3} parent=11 // pred_check_branch
          %1246 = sbr.rel (%p1244) target = $region120
        $region119: #{wave_transformer_forward.3} parent=11 // pred_region
          _
        $region120: #{wave_transformer_forward.3} parent=11 // pred_fallthru
          _
        // Predicated region
        $region121: #{wave_transformer_forward.3} parent=11 // pred_check
          %p1247 = pneg %p725
        $region122: #{wave_transformer_forward.3} parent=11 // pred_check_branch
          %1249 = sbr.rel (%p1247) target = $region124
        $region123: #{wave_transformer_forward.3} parent=11 // pred_region
          %s1251 = ssub.s32 16, 16
          %1252 = vsyncadd [#allocation21], %s1251
          %s1254 = sshll.u32 [#allocation22], 4
          %s1255 = int_to_ptr.vmem [resolvable:$true] %s1254
          %1257 = dma.hbm_to_vmem [thread:$0]  %s57, 16, %s1255, [#allocation21]
        $region124: #{wave_transformer_forward.3} parent=11 // pred_fallthru
          _
        // Predicated region
        $region125: #{wave_transformer_forward.3} parent=11 // pred_check
          %p1258 = pneg %p746
        $region126: #{wave_transformer_forward.3} parent=11 // pred_check_branch
          %1260 = sbr.rel (%p1258) target = $region128
        $region127: #{wave_transformer_forward.3} parent=11 // pred_region
          _
        $region128: #{wave_transformer_forward.3} parent=11 // pred_fallthru
          _
        // Predicated region
        $region129: #{wave_transformer_forward.3} parent=11 // pred_check
          %p1261 = pneg %p767
        $region130: #{wave_transformer_forward.3} parent=11 // pred_check_branch
          %1263 = sbr.rel (%p1261) target = $region132
        $region131: #{wave_transformer_forward.3} parent=11 // pred_region
          %s1265 = ssub.s32 16, 16
          %1266 = vsyncadd [#allocation24], %s1265
          %s1268 = sshll.u32 [#allocation23], 4
          %s1269 = int_to_ptr.vmem [resolvable:$true] %s1268
          %1271 = dma.hbm_to_vmem [thread:$0]  %s61, 16, %s1269, [#allocation24]
        $region132: #{wave_transformer_forward.3} parent=11 // pred_fallthru
          _
        // Predicated region
        $region133: #{wave_transformer_forward.3} parent=11 // pred_check
          %p1272 = pneg %p788
        $region134: #{wave_transformer_forward.3} parent=11 // pred_check_branch
          %1274 = sbr.rel (%p1272) target = $region136
        $region135: #{wave_transformer_forward.3} parent=11 // pred_region
          _
        $region136: #{wave_transformer_forward.3} parent=11 // pred_fallthru
          _
        // Predicated region
        $region137: #{wave_transformer_forward.3} parent=11 // pred_check
          %p1275 = pneg %p809
        $region138: #{wave_transformer_forward.3} parent=11 // pred_check_branch
          %1277 = sbr.rel (%p1275) target = $region140
        $region139: #{wave_transformer_forward.3} parent=11 // pred_region
          %s1279 = ssub.s32 16, 16
          %1280 = vsyncadd [#allocation24], %s1279
          %s1282 = sshll.u32 [#allocation25], 4
          %s1283 = int_to_ptr.vmem [resolvable:$true] %s1282
          %1285 = dma.hbm_to_vmem [thread:$0]  %s65, 16, %s1283, [#allocation24]
        $region140: #{wave_transformer_forward.3} parent=11 // pred_fallthru
          _
        // Predicated region
        $region141: #{wave_transformer_forward.3} parent=11 // pred_check
          %p1286 = pneg %p830
        $region142: #{wave_transformer_forward.3} parent=11 // pred_check_branch
          %1288 = sbr.rel (%p1286) target = $region144
        $region143: #{wave_transformer_forward.3} parent=11 // pred_region
          _
        $region144: #{wave_transformer_forward.3} parent=11 // pred_fallthru
          _
        // Predicated region
        $region145: #{wave_transformer_forward.3} parent=11 // pred_check
          %p1289 = pneg %p851
        $region146: #{wave_transformer_forward.3} parent=11 // pred_check_branch
          %1291 = sbr.rel (%p1289) target = $region148
        $region147: #{wave_transformer_forward.3} parent=11 // pred_region
          %s1293 = ssub.s32 16, 16
          %1294 = vsyncadd [#allocation27], %s1293
          %s1296 = sshll.u32 [#allocation26], 4
          %s1297 = int_to_ptr.vmem [resolvable:$true] %s1296
          %1299 = dma.hbm_to_vmem [thread:$0]  %s69, 16, %s1297, [#allocation27]
        $region148: #{wave_transformer_forward.3} parent=11 // pred_fallthru
          _
        // Predicated region
        $region149: #{wave_transformer_forward.3} parent=11 // pred_check
          %p1300 = pneg %p872
        $region150: #{wave_transformer_forward.3} parent=11 // pred_check_branch
          %1302 = sbr.rel (%p1300) target = $region152
        $region151: #{wave_transformer_forward.3} parent=11 // pred_region
          %s1304 = ssub.s32 16, 16
          %1305 = vsyncadd [#allocation27], %s1304
          %s1307 = sshll.u32 [#allocation28], 4
          %s1308 = int_to_ptr.vmem [resolvable:$true] %s1307
          %1310 = dma.hbm_to_vmem [thread:$0]  %s71, 16, %s1308, [#allocation27]
        $region152: #{wave_transformer_forward.3} parent=11 // pred_fallthru
          _
        // Predicated region
        $region153: #{wave_transformer_forward.3} parent=11 // pred_check
          %p1311 = pneg %p893
        $region154: #{wave_transformer_forward.3} parent=11 // pred_check_branch
          %1313 = sbr.rel (%p1311) target = $region156
        $region155: #{wave_transformer_forward.3} parent=11 // pred_region
          %s1315 = ssub.s32 16, 16
          %1316 = vsyncadd [#allocation30], %s1315
          %s1318 = sshll.u32 [#allocation29], 4
          %s1319 = int_to_ptr.vmem [resolvable:$true] %s1318
          %1321 = dma.hbm_to_vmem [thread:$0]  %s73, 16, %s1319, [#allocation30]
        $region156: #{wave_transformer_forward.3} parent=11 // pred_fallthru
          _
        // Predicated region
        $region157: #{wave_transformer_forward.3} parent=11 // pred_check
          %p1322 = pneg %p914
        $region158: #{wave_transformer_forward.3} parent=11 // pred_check_branch
          %1324 = sbr.rel (%p1322) target = $region160
        $region159: #{wave_transformer_forward.3} parent=11 // pred_region
          _
        $region160: #{wave_transformer_forward.3} parent=11 // pred_fallthru
          _
        // Predicated region
        $region161: #{wave_transformer_forward.3} parent=11 // pred_check
          %p1325 = pneg %p935
        $region162: #{wave_transformer_forward.3} parent=11 // pred_check_branch
          %1327 = sbr.rel (%p1325) target = $region164
        $region163: #{wave_transformer_forward.3} parent=11 // pred_region
          %s1329 = ssub.s32 16, 16
          %1330 = vsyncadd [#allocation30], %s1329
          %s1332 = sshll.u32 [#allocation31], 4
          %s1333 = int_to_ptr.vmem [resolvable:$true] %s1332
          %1335 = dma.hbm_to_vmem [thread:$0]  %s77, 16, %s1333, [#allocation30]
        $region164: #{wave_transformer_forward.3} parent=11 // pred_fallthru
          _
        // Predicated region
        $region165: #{wave_transformer_forward.3} parent=11 // pred_check
          %p1336 = pneg %p956
        $region166: #{wave_transformer_forward.3} parent=11 // pred_check_branch
          %1338 = sbr.rel (%p1336) target = $region168
        $region167: #{wave_transformer_forward.3} parent=11 // pred_region
          _
        $region168: #{wave_transformer_forward.3} parent=11 // pred_fallthru
          _
        // Predicated region
        $region169: #{wave_transformer_forward.3} parent=11 // pred_check
          %p1339 = pneg %p977
        $region170: #{wave_transformer_forward.3} parent=11 // pred_check_branch
          %1341 = sbr.rel (%p1339) target = $region172
        $region171: #{wave_transformer_forward.3} parent=11 // pred_region
          %s1343 = ssub.s32 16, 16
          %1344 = vsyncadd [#allocation33], %s1343
          %s1346 = sshll.u32 [#allocation32], 4
          %s1347 = int_to_ptr.vmem [resolvable:$true] %s1346
          %1349 = dma.hbm_to_vmem [thread:$0]  %s81, 16, %s1347, [#allocation33]
        $region172: #{wave_transformer_forward.3} parent=11 // pred_fallthru
          _
      $region12: #{wave_transformer_forward.3} parent=5 // pred_fallthru
        _
      %p1350 = scmp.lt.s32.totalorder %s111, 2
      // Predicated region
      $region173: #{wave_transformer_forward.3} parent=5 // pred_check
        %p1351 = pneg %p1350
      $region174: #{wave_transformer_forward.3} parent=5 // pred_check_branch
        %1353 = sbr.rel (%p1351) target = $region176
      $region175: #{wave_transformer_forward.3} parent=5 // pred_region
        // Predicated region
        $region177: #{wave_transformer_forward.3} parent=175 // pred_check
          %p1354 = pneg %p131
        $region178: #{wave_transformer_forward.3} parent=175 // pred_check_branch
          %1356 = sbr.rel (%p1354) target = $region180
        $region179: #{wave_transformer_forward.3} parent=175 // pred_region
          %p1357 = scmp.lt.s32.totalorder %s111, 1
          %s1358 = scalar_select %p1357, %s111, 1
          %s1359 = smul.addr %s1358, 4
          %s1360 = smul.addr %s1359, 8
          %s1361 = scalar_lea.vmem %s1, %s1360
        $region180: #{wave_transformer_forward.3} parent=175 // pred_fallthru
          _
      $region176: #{wave_transformer_forward.3} parent=5 // pred_fallthru
        _
      %p1362 = scmp.le.s32.totalorder 1, %s111
      %p1363 = scmp.lt.s32.totalorder %s111, 3
      %p1364 = pnand %p1362, %p1363
      %p1365 = pneg %p1364
      // Predicated region
      $region181: #{wave_transformer_forward.3} parent=5 // pred_check
        _
      $region182: #{wave_transformer_forward.3} parent=5 // pred_check_branch
        %1367 = sbr.rel (%p1364) target = $region184
      $region183: #{wave_transformer_forward.3} parent=5 // pred_region
        %s1368 = ssub.s32 %s111, 1
        // Predicated region
        $region185: #{wave_transformer_forward.3} parent=183 // pred_check
          %p1369 = pneg %p305
        $region186: #{wave_transformer_forward.3} parent=183 // pred_check_branch
          %1371 = sbr.rel (%p1369) target = $region188
        $region187: #{wave_transformer_forward.3} parent=183 // pred_region
          %1372 = dma.done [#allocation3], 16
        $region188: #{wave_transformer_forward.3} parent=183 // pred_fallthru
          _
        // Predicated region
        $region189: #{wave_transformer_forward.3} parent=183 // pred_check
          %p1373 = pneg %p347
        $region190: #{wave_transformer_forward.3} parent=183 // pred_check_branch
          %1375 = sbr.rel (%p1373) target = $region192
        $region191: #{wave_transformer_forward.3} parent=183 // pred_region
          %1376 = dma.done [#allocation6], 16
        $region192: #{wave_transformer_forward.3} parent=183 // pred_fallthru
          _
        // Predicated region
        $region193: #{wave_transformer_forward.3} parent=183 // pred_check
          %p1377 = pneg %p389
        $region194: #{wave_transformer_forward.3} parent=183 // pred_check_branch
          %1379 = sbr.rel (%p1377) target = $region196
        $region195: #{wave_transformer_forward.3} parent=183 // pred_region
          %1380 = dma.done [#allocation6], 16
        $region196: #{wave_transformer_forward.3} parent=183 // pred_fallthru
          _
        // Predicated region
        $region197: #{wave_transformer_forward.3} parent=183 // pred_check
          %p1381 = pneg %p410
        $region198: #{wave_transformer_forward.3} parent=183 // pred_check_branch
          %1383 = sbr.rel (%p1381) target = $region200
        $region199: #{wave_transformer_forward.3} parent=183 // pred_region
          %1384 = dma.done [#allocation9], 16
        $region200: #{wave_transformer_forward.3} parent=183 // pred_fallthru
          _
        // Predicated region
        $region201: #{wave_transformer_forward.3} parent=183 // pred_check
          %p1385 = pneg %p431
        $region202: #{wave_transformer_forward.3} parent=183 // pred_check_branch
          %1387 = sbr.rel (%p1385) target = $region204
        $region203: #{wave_transformer_forward.3} parent=183 // pred_region
          %1388 = dma.done [#allocation9], 16
        $region204: #{wave_transformer_forward.3} parent=183 // pred_fallthru
          _
        // Predicated region
        $region205: #{wave_transformer_forward.3} parent=183 // pred_check
          %p1389 = pneg %p452
        $region206: #{wave_transformer_forward.3} parent=183 // pred_check_branch
          %1391 = sbr.rel (%p1389) target = $region208
        $region207: #{wave_transformer_forward.3} parent=183 // pred_region
          %1392 = dma.done [#allocation12], 16
        $region208: #{wave_transformer_forward.3} parent=183 // pred_fallthru
          _
        // Predicated region
        $region209: #{wave_transformer_forward.3} parent=183 // pred_check
          %p1393 = pneg %p494
        $region210: #{wave_transformer_forward.3} parent=183 // pred_check_branch
          %1395 = sbr.rel (%p1393) target = $region212
        $region211: #{wave_transformer_forward.3} parent=183 // pred_region
          %1396 = dma.done [#allocation12], 16
        $region212: #{wave_transformer_forward.3} parent=183 // pred_fallthru
          _
        // Predicated region
        $region213: #{wave_transformer_forward.3} parent=183 // pred_check
          %p1397 = pneg %p536
        $region214: #{wave_transformer_forward.3} parent=183 // pred_check_branch
          %1399 = sbr.rel (%p1397) target = $region216
        $region215: #{wave_transformer_forward.3} parent=183 // pred_region
          %1400 = dma.done [#allocation15], 16
        $region216: #{wave_transformer_forward.3} parent=183 // pred_fallthru
          _
        // Predicated region
        $region217: #{wave_transformer_forward.3} parent=183 // pred_check
          %p1401 = pneg %p578
        $region218: #{wave_transformer_forward.3} parent=183 // pred_check_branch
          %1403 = sbr.rel (%p1401) target = $region220
        $region219: #{wave_transformer_forward.3} parent=183 // pred_region
          %1404 = dma.done [#allocation15], 16
        $region220: #{wave_transformer_forward.3} parent=183 // pred_fallthru
          _
        // Predicated region
        $region221: #{wave_transformer_forward.3} parent=183 // pred_check
          %p1405 = pneg %p620
        $region222: #{wave_transformer_forward.3} parent=183 // pred_check_branch
          %1407 = sbr.rel (%p1405) target = $region224
        $region223: #{wave_transformer_forward.3} parent=183 // pred_region
          %1408 = dma.done [#allocation18], 16
        $region224: #{wave_transformer_forward.3} parent=183 // pred_fallthru
          _
        // Predicated region
        $region225: #{wave_transformer_forward.3} parent=183 // pred_check
          %p1409 = pneg %p641
        $region226: #{wave_transformer_forward.3} parent=183 // pred_check_branch
          %1411 = sbr.rel (%p1409) target = $region228
        $region227: #{wave_transformer_forward.3} parent=183 // pred_region
          %1412 = dma.done [#allocation18], 16
        $region228: #{wave_transformer_forward.3} parent=183 // pred_fallthru
          _
        // Predicated region
        $region229: #{wave_transformer_forward.3} parent=183 // pred_check
          %p1413 = pneg %p662
        $region230: #{wave_transformer_forward.3} parent=183 // pred_check_branch
          %1415 = sbr.rel (%p1413) target = $region232
        $region231: #{wave_transformer_forward.3} parent=183 // pred_region
          %1416 = dma.done [#allocation21], 16
        $region232: #{wave_transformer_forward.3} parent=183 // pred_fallthru
          _
        // Predicated region
        $region233: #{wave_transformer_forward.3} parent=183 // pred_check
          %p1417 = pneg %p725
        $region234: #{wave_transformer_forward.3} parent=183 // pred_check_branch
          %1419 = sbr.rel (%p1417) target = $region236
        $region235: #{wave_transformer_forward.3} parent=183 // pred_region
          %1420 = dma.done [#allocation21], 16
        $region236: #{wave_transformer_forward.3} parent=183 // pred_fallthru
          _
        // Predicated region
        $region237: #{wave_transformer_forward.3} parent=183 // pred_check
          %p1421 = pneg %p767
        $region238: #{wave_transformer_forward.3} parent=183 // pred_check_branch
          %1423 = sbr.rel (%p1421) target = $region240
        $region239: #{wave_transformer_forward.3} parent=183 // pred_region
          %1424 = dma.done [#allocation24], 16
        $region240: #{wave_transformer_forward.3} parent=183 // pred_fallthru
          _
        // Predicated region
        $region241: #{wave_transformer_forward.3} parent=183 // pred_check
          %p1425 = pneg %p809
        $region242: #{wave_transformer_forward.3} parent=183 // pred_check_branch
          %1427 = sbr.rel (%p1425) target = $region244
        $region243: #{wave_transformer_forward.3} parent=183 // pred_region
          %1428 = dma.done [#allocation24], 16
        $region244: #{wave_transformer_forward.3} parent=183 // pred_fallthru
          _
        // Predicated region
        $region245: #{wave_transformer_forward.3} parent=183 // pred_check
          %p1429 = pneg %p851
        $region246: #{wave_transformer_forward.3} parent=183 // pred_check_branch
          %1431 = sbr.rel (%p1429) target = $region248
        $region247: #{wave_transformer_forward.3} parent=183 // pred_region
          %1432 = dma.done [#allocation27], 16
        $region248: #{wave_transformer_forward.3} parent=183 // pred_fallthru
          _
        // Predicated region
        $region249: #{wave_transformer_forward.3} parent=183 // pred_check
          %p1433 = pneg %p872
        $region250: #{wave_transformer_forward.3} parent=183 // pred_check_branch
          %1435 = sbr.rel (%p1433) target = $region252
        $region251: #{wave_transformer_forward.3} parent=183 // pred_region
          %1436 = dma.done [#allocation27], 16
        $region252: #{wave_transformer_forward.3} parent=183 // pred_fallthru
          _
        // Predicated region
        $region253: #{wave_transformer_forward.3} parent=183 // pred_check
          %p1437 = pneg %p893
        $region254: #{wave_transformer_forward.3} parent=183 // pred_check_branch
          %1439 = sbr.rel (%p1437) target = $region256
        $region255: #{wave_transformer_forward.3} parent=183 // pred_region
          %1440 = dma.done [#allocation30], 16
        $region256: #{wave_transformer_forward.3} parent=183 // pred_fallthru
          _
        // Predicated region
        $region257: #{wave_transformer_forward.3} parent=183 // pred_check
          %p1441 = pneg %p935
        $region258: #{wave_transformer_forward.3} parent=183 // pred_check_branch
          %1443 = sbr.rel (%p1441) target = $region260
        $region259: #{wave_transformer_forward.3} parent=183 // pred_region
          %1444 = dma.done [#allocation30], 16
        $region260: #{wave_transformer_forward.3} parent=183 // pred_fallthru
          _
        // Predicated region
        $region261: #{wave_transformer_forward.3} parent=183 // pred_check
          %p1445 = pneg %p977
        $region262: #{wave_transformer_forward.3} parent=183 // pred_check_branch
          %1447 = sbr.rel (%p1445) target = $region264
        $region263: #{wave_transformer_forward.3} parent=183 // pred_region
          %1448 = dma.done [#allocation33], 16
        $region264: #{wave_transformer_forward.3} parent=183 // pred_fallthru
          _
        %p1449 = scmp.lt.s32.totalorder %s116, 1
        %s1450 = scalar_select %p1449, %s116, 1
        %s1451 = smul.addr %s1450, 4
        %s1452 = smul.addr %s1451, 8
        %s1453 = scalar_lea.vmem %s1, %s1452
        %p1454 = pneg %p137
        %p1455 = pneg %p134
        %p1456 = pneg %p158
        %p1457 = pneg %p155
        %p1458 = pneg %p179
        %p1459 = pneg %p176
        %p1460 = pneg %p200
        %p1461 = pneg %p197
        %p1462 = pneg %p221
        %p1463 = pneg %p218
        %p1464 = pneg %p242
        %p1465 = pneg %p239
        %p1466 = pneg %p263
        %p1467 = pneg %p260
        %p1468 = pneg %p284
        %p1469 = pneg %p281
        %p1470 = pneg %p305
        %p1471 = pneg %p302
        %p1472 = pneg %p326
        %p1473 = pneg %p323
        %p1474 = pneg %p347
        %p1475 = pneg %p344
        %p1476 = pneg %p368
        %p1477 = pneg %p365
        %p1478 = pneg %p389
        %p1479 = pneg %p386
        %p1480 = pneg %p410
        %p1481 = pneg %p407
        %p1482 = pneg %p431
        %p1483 = pneg %p428
        %p1484 = pneg %p452
        %p1485 = pneg %p449
        %p1486 = pneg %p473
        %p1487 = pneg %p470
        %p1488 = pneg %p494
        %p1489 = pneg %p491
        %p1490 = pneg %p515
        %p1491 = pneg %p512
        %p1492 = pneg %p536
        %p1493 = pneg %p533
        %p1494 = pneg %p557
        %p1495 = pneg %p554
        %p1496 = pneg %p578
        %p1497 = pneg %p575
        %p1498 = pneg %p599
        %p1499 = pneg %p596
        %p1500 = pneg %p620
        %p1501 = pneg %p617
        %p1502 = pneg %p641
        %p1503 = pneg %p638
        %p1504 = pneg %p662
        %p1505 = pneg %p659
        %p1506 = pneg %p683
        %p1507 = pneg %p680
        %p1508 = pneg %p704
        %p1509 = pneg %p701
        %p1510 = pneg %p725
        %p1511 = pneg %p722
        %p1512 = pneg %p746
        %p1513 = pneg %p743
        %p1514 = pneg %p767
        %p1515 = pneg %p764
        %p1516 = pneg %p788
        %p1517 = pneg %p785
        %p1518 = pneg %p809
        %p1519 = pneg %p806
        %p1520 = pneg %p830
        %p1521 = pneg %p827
        %p1522 = pneg %p851
        %p1523 = pneg %p848
        %p1524 = pneg %p872
        %p1525 = pneg %p869
        %p1526 = pneg %p893
        %p1527 = pneg %p890
        %p1528 = pneg %p914
        %p1529 = pneg %p911
        %p1530 = pneg %p935
        %p1531 = pneg %p932
        %p1532 = pneg %p956
        %p1533 = pneg %p953
        %p1534 = pneg %p977
        %p1535 = pneg %p974
        %p1536 = pneg %p1003
        %p1537 = pneg %p1000
        %s1538 = sand.u32 %s990, 1
        %s1539 = scalar_lea.sflag [#allocation4], %s1538
        %s1540 = sand.u32 %s990, 1
        %s1541 = smul.addr %s1540, 4
        %s1542 = scalar_lea.vmem [#allocation34], %s1541
        %p1543 = pneg %p1029
        %p1544 = pneg %p1026
        %s1545 = sand.u32 %s1016, 1
        %s1546 = scalar_lea.sflag [#allocation36], %s1545
        %s1547 = sand.u32 %s1016, 1
        %s1548 = scalar_lea.vmem [#allocation35], %s1547
        %p1549 = pneg %p1055
        %p1550 = pneg %p1052
        %p1551 = scmp.lt.s32.totalorder %s116, 1
        %s1552 = scalar_select %p1551, %s116, 1
        %s1553 = smul.addr %s1552, 4
        %s1554 = scalar_lea.vmem %s87, %s1553
        %p1555 = scmp.lt.s32.totalorder %s116, 1
        %s1556 = scalar_select %p1555, %s116, 1
        %s1557 = smul.addr %s1556, 4
        %s1558 = smul.addr %s1557, 8
        %s1559 = scalar_lea.vmem %s1, %s1558
        %p1560 = scmp.lt.s32.totalorder %s116, 1
        %s1561 = scalar_select %p1560, %s116, 1
        %s1562 = smul.addr %s1561, 4
        %s1563 = scalar_lea.vmem %s87, %s1562
        %v1565 = vld [vmem:[%s3] sm:$0xf]
        %v1566 = vld [vmem:[%s3 + $0x4] sm:$0xf]
        %v1567 = vld [vmem:[%s3 + $0x8] sm:$0xf]
        %v1568 = vld [vmem:[%s3 + $0xc] sm:$0xf]
        %v1569 = vld [vmem:[%s5] sm:$0x1]
        %v1570 = vld [vmem:[%s7] sm:$0xf]
        %v1571 = vld [vmem:[%s7 + $0x4] sm:$0xf]
        %v1572 = vld [vmem:[%s7 + $0x8] sm:$0xf]
        %v1573 = vld [vmem:[%s7 + $0xc] sm:$0xf]
        %v1574 = vld [vmem:[%s9] sm:$0x1]
        %v1575 = vld [vmem:[%s11] sm:$0xf]
        %v1576 = vld [vmem:[%s11 + $0x4] sm:$0xf]
        %v1577 = vld [vmem:[%s11 + $0x8] sm:$0xf]
        %v1578 = vld [vmem:[%s11 + $0xc] sm:$0xf]
        %v1579 = vld [vmem:[%s13] sm:$0x1]
        %v1580 = vld [vmem:[%s1559] sm:$0xff]
        %v1581 = vpack.c.bf16 %v1580, %v1580
        %v1583 = vshrl.u32 %v1581, 16
        %v1585 = vrot.slane %v1583, 3
        %v1590 = vunpack.c.l.b16 %v1565
        %v1591 = vunpack.c.l.b16 %v1566
        %v1592 = vunpack.c.l.b16 %v1567
        %v1593 = vunpack.c.l.b16 %v1568
        %v1594 = vpack.c.b16 %v1591, %v1590
        %v1595 = vpack.c.b16 %v1593, %v1592
        %vm1598 = vcmask 261120
        %v1600 = vsel %vm1598, %v1585, 0
        %1602 = vmatprep.subr.bf16.mxu0 0
        %1603 = vmatpush1.bf16.msra.mxu0 %v1594
        %1604 = vmatprep.subr.bf16.mxu0 0
        %1605 = vmatpush1.bf16.msra.mxu0 %v1595
        %1606 = vmatprep.subr.bf16.mxu0 0
        %1607 = vmatpush1.bf16.msra.mxu0 0
        %1608 = vmatprep.subr.bf16.mxu0 0
        %1609 = vmatpush1.bf16.msra.mxu0 0
        %1610 = vmatprep.subr.bf16.mxu0 0
        %1611 = vmatpush1.bf16.msra.mxu0 0
        %1612 = vmatprep.subr.bf16.mxu0 0
        %1613 = vmatpush1.bf16.msra.mxu0 0
        %1614 = vmatprep.subr.bf16.mxu0 0
        %1615 = vmatpush1.bf16.msra.mxu0 0
        %1616 = vmatprep.subr.bf16.mxu0 0
        %1617 = vmatpush1.bf16.msra.mxu0 0
        %1618 = vmatprep.subr.bf16.mxu0 0
        %1619 = vmatpush1.bf16.msra.mxu0 0
        %1620 = vmatprep.subr.bf16.mxu0 0
        %1621 = vmatpush1.bf16.msra.mxu0 0
        %1622 = vmatprep.subr.bf16.mxu0 0
        %1623 = vmatpush1.bf16.msra.mxu0 0
        %1624 = vmatprep.subr.bf16.mxu0 0
        %1625 = vmatpush1.bf16.msra.mxu0 0
        %1626 = vmatprep.subr.bf16.mxu0 0
        %1627 = vmatpush1.bf16.msra.mxu0 0
        %1628 = vmatprep.subr.bf16.mxu0 0
        %1629 = vmatpush1.bf16.msra.mxu0 0
        %1630 = vmatprep.subr.bf16.mxu0 0
        %1631 = vmatpush1.bf16.msra.mxu0 0
        %1632 = vmatprep.subr.bf16.mxu0 0
        %1633 = vmatpush1.bf16.msra.mxu0 0
        %1634 = vmatprep.mubr.bf16.mxu0 0
        %1635 = vmatmul.mubr.bf16.gmra.mrb[0].mxu0 %v1600
        %v1636 = vpop.f32.mrb[0].mxu0
        %v1637 = vadd.f32 %v1569, %v1636
        %v1638 = vpop.f32.mrb[0].mxu0
        %v1639 = vpop.f32.mrb[0].mxu0
        %v1640 = vpop.f32.mrb[0].mxu0
        %1641 = vdwg.mxu0
        %v1643 = vlaneseq
        %v1644 = vshrl.u32 %v1643, 7
        %v1645 = vsub.s32 0, %v1644
        %v1646 = vrot.slane %v1574, %v1645
        %v1652 = vunpack.c.l.b16 %v1570
        %v1653 = vunpack.c.l.b16 %v1571
        %v1654 = vunpack.c.l.b16 %v1572
        %v1655 = vunpack.c.l.b16 %v1573
        %v1656 = vpack.c.b16 %v1653, %v1652
        %v1657 = vpack.c.b16 %v1655, %v1654
        %v1660 = vsel %vm1598, %v1581, 0
        %1662 = vmatprep.subr.bf16.mxu0 0
        %1663 = vmatpush1.bf16.msra.mxu0 %v1656
        %1664 = vmatprep.subr.bf16.mxu0 0
        %1665 = vmatpush1.bf16.msra.mxu0 %v1657
        %1666 = vmatprep.subr.bf16.mxu0 0
        %1667 = vmatpush1.bf16.msra.mxu0 0
        %1668 = vmatprep.subr.bf16.mxu0 0
        %1669 = vmatpush1.bf16.msra.mxu0 0
        %1670 = vmatprep.subr.bf16.mxu0 0
        %1671 = vmatpush1.bf16.msra.mxu0 0
        %1672 = vmatprep.subr.bf16.mxu0 0
        %1673 = vmatpush1.bf16.msra.mxu0 0
        %1674 = vmatprep.subr.bf16.mxu0 0
        %1675 = vmatpush1.bf16.msra.mxu0 0
        %1676 = vmatprep.subr.bf16.mxu0 0
        %1677 = vmatpush1.bf16.msra.mxu0 0
        %1678 = vmatprep.subr.bf16.mxu0 0
        %1679 = vmatpush1.bf16.msra.mxu0 0
        %1680 = vmatprep.subr.bf16.mxu0 0
        %1681 = vmatpush1.bf16.msra.mxu0 0
        %1682 = vmatprep.subr.bf16.mxu0 0
        %1683 = vmatpush1.bf16.msra.mxu0 0
        %1684 = vmatprep.subr.bf16.mxu0 0
        %1685 = vmatpush1.bf16.msra.mxu0 0
        %1686 = vmatprep.subr.bf16.mxu0 0
        %1687 = vmatpush1.bf16.msra.mxu0 0
        %1688 = vmatprep.subr.bf16.mxu0 0
        %1689 = vmatpush1.bf16.msra.mxu0 0
        %1690 = vmatprep.subr.bf16.mxu0 0
        %1691 = vmatpush1.bf16.msra.mxu0 0
        %1692 = vmatprep.subr.bf16.mxu0 0
        %1693 = vmatpush1.bf16.msra.mxu0 0
        %1694 = vmatprep.mubr.bf16.mxu0 0
        %1695 = vmatmul.mubr.bf16.gmra.mrb[0].mxu0 %v1660
        %v1696 = vpop.f32.mrb[0].mxu0
        %v1697 = vadd.f32 %v1646, %v1696
        %v1698 = vpop.f32.mrb[0].mxu0
        %v1699 = vpop.f32.mrb[0].mxu0
        %v1700 = vpop.f32.mrb[0].mxu0
        %1701 = vdwg.mxu0
        %v1703 = vlaneseq
        %v1704 = vshrl.u32 %v1703, 7
        %v1705 = vsub.s32 0, %v1704
        %v1706 = vrot.slane %v1579, %v1705
        %v1712 = vunpack.c.l.b16 %v1575
        %v1713 = vunpack.c.l.b16 %v1576
        %v1714 = vunpack.c.l.b16 %v1577
        %v1715 = vunpack.c.l.b16 %v1578
        %v1716 = vpack.c.b16 %v1713, %v1712
        %v1717 = vpack.c.b16 %v1715, %v1714
        %1720 = vmatprep.subr.bf16.mxu0 0
        %1721 = vmatpush1.bf16.msra.mxu0 %v1716
        %1722 = vmatprep.subr.bf16.mxu0 0
        %1723 = vmatpush1.bf16.msra.mxu0 %v1717
        %1724 = vmatprep.subr.bf16.mxu0 0
        %1725 = vmatpush1.bf16.msra.mxu0 0
        %1726 = vmatprep.subr.bf16.mxu0 0
        %1727 = vmatpush1.bf16.msra.mxu0 0
        %1728 = vmatprep.subr.bf16.mxu0 0
        %1729 = vmatpush1.bf16.msra.mxu0 0
        %1730 = vmatprep.subr.bf16.mxu0 0
        %1731 = vmatpush1.bf16.msra.mxu0 0
        %1732 = vmatprep.subr.bf16.mxu0 0
        %1733 = vmatpush1.bf16.msra.mxu0 0
        %1734 = vmatprep.subr.bf16.mxu0 0
        %1735 = vmatpush1.bf16.msra.mxu0 0
        %1736 = vmatprep.subr.bf16.mxu0 0
        %1737 = vmatpush1.bf16.msra.mxu0 0
        %1738 = vmatprep.subr.bf16.mxu0 0
        %1739 = vmatpush1.bf16.msra.mxu0 0
        %1740 = vmatprep.subr.bf16.mxu0 0
        %1741 = vmatpush1.bf16.msra.mxu0 0
        %1742 = vmatprep.subr.bf16.mxu0 0
        %1743 = vmatpush1.bf16.msra.mxu0 0
        %1744 = vmatprep.subr.bf16.mxu0 0
        %1745 = vmatpush1.bf16.msra.mxu0 0
        %1746 = vmatprep.subr.bf16.mxu0 0
        %1747 = vmatpush1.bf16.msra.mxu0 0
        %1748 = vmatprep.subr.bf16.mxu0 0
        %1749 = vmatpush1.bf16.msra.mxu0 0
        %1750 = vmatprep.subr.bf16.mxu0 0
        %1751 = vmatpush1.bf16.msra.mxu0 0
        %1752 = vmatprep.mubr.bf16.mxu0 0
        %1753 = vmatmul.mubr.bf16.gmra.mrb[0].mxu0 %v1660
        %v1754 = vpop.f32.mrb[0].mxu0
        %v1755 = vadd.f32 %v1706, %v1754
        %v1756 = vpop.f32.mrb[0].mxu0
        %v1757 = vpop.f32.mrb[0].mxu0
        %v1758 = vpop.f32.mrb[0].mxu0
        %1759 = vdwg.mxu0
        %v1760 = vpack.c.bf16 %v1637, %v1637
        %v1761 = vpack.c.bf16 %v1697, %v1697
        %v1763 = vsel %vm1598, %v1760, 0
        %v1766 = vsel %vm1598, %v1761, 0
        %1768 = vmatprep.subr.bf16.mxu0 0
        %1769 = vmatpush1.bf16.xpose.msra.mxu0 %v1766
        %1770 = vmatprep.subr.bf16.mxu0 0
        %1771 = vmatpush1.bf16.xpose.msra.mxu0 0
        %1772 = vmatprep.subr.bf16.mxu0 0
        %1773 = vmatpush1.bf16.xpose.msra.mxu0 0
        %1774 = vmatprep.subr.bf16.mxu0 0
        %1775 = vmatpush1.bf16.xpose.msra.mxu0 0
        %1776 = vmatprep.subr.bf16.mxu0 0
        %1777 = vmatpush1.bf16.xpose.msra.mxu0 0
        %1778 = vmatprep.subr.bf16.mxu0 0
        %1779 = vmatpush1.bf16.xpose.msra.mxu0 0
        %1780 = vmatprep.subr.bf16.mxu0 0
        %1781 = vmatpush1.bf16.xpose.msra.mxu0 0
        %1782 = vmatprep.subr.bf16.mxu0 0
        %1783 = vmatpush1.bf16.xpose.msra.mxu0 0
        %1784 = vmatprep.subr.bf16.mxu0 0
        %1785 = vmatpush1.bf16.xpose.msra.mxu0 0
        %1786 = vmatprep.subr.bf16.mxu0 0
        %1787 = vmatpush1.bf16.xpose.msra.mxu0 0
        %1788 = vmatprep.subr.bf16.mxu0 0
        %1789 = vmatpush1.bf16.xpose.msra.mxu0 0
        %1790 = vmatprep.subr.bf16.mxu0 0
        %1791 = vmatpush1.bf16.xpose.msra.mxu0 0
        %1792 = vmatprep.subr.bf16.mxu0 0
        %1793 = vmatpush1.bf16.xpose.msra.mxu0 0
        %1794 = vmatprep.subr.bf16.mxu0 0
        %1795 = vmatpush1.bf16.xpose.msra.mxu0 0
        %1796 = vmatprep.subr.bf16.mxu0 0
        %1797 = vmatpush1.bf16.xpose.msra.mxu0 0
        %1798 = vmatprep.subr.bf16.mxu0 0
        %1799 = vmatpush1.bf16.xpose.msra.mxu0 0
        %1800 = vmatprep.mubr.bf16.mxu0 0
        %1801 = vmatmul.mubr.bf16.gmra.mrb[0].mxu0 %v1763
        %v1802 = vpop.f32.mrb[0].mxu0
        %v1803 = vadd.f32 0.0, %v1802
        %v1804 = vpop.f32.mrb[0].mxu0
        %v1805 = vpop.f32.mrb[0].mxu0
        %v1806 = vpop.f32.mrb[0].mxu0
        %1807 = vdwg.mxu0
        %vm1808 = vcmask 57344
        %v1809 = vsel %vm1808, %v1803, -inf
        %1810 = vmax.xlane.f32.xlu0 %v1809
        %v1811 = vpop.xlane.xlu0 %1810
        %v1812 = vsub.f32 %v1803, %v1811
        %v1813 = vmul.f32 %v1812, 1.442695
        %v1814 = vpow.pop %v1813
        %v1815 = vsel %vm1808, %v1814, 0.0
        %1816 = vadd.xlane.f32.xlu0 %v1815
        %v1817 = vpop.xlane.xlu0 %1816
        %v1818 = vrcp.pop %v1817
        %v1819 = vmul.f32 %v1814, %v1818
        %v1820 = vpack.c.bf16 %v1819, %v1819
        %v1821 = vpack.c.bf16 %v1755, %v1755
        %vm1822 = vcmask 64512
        %v1824 = vsel %vm1822, %v1820, 0
        %vm1826 = vcmask 1043456
        %v1828 = vsel %vm1826, %v1821, 0
        %1830 = vmatprep.subr.bf16.mxu0 0
        %1831 = vmatpush1.bf16.msra.mxu0 %v1828
        %1832 = vmatprep.subr.bf16.mxu0 0
        %1833 = vmatpush1.bf16.msra.mxu0 0
        %1834 = vmatprep.subr.bf16.mxu0 0
        %1835 = vmatpush1.bf16.msra.mxu0 0
        %1836 = vmatprep.subr.bf16.mxu0 0
        %1837 = vmatpush1.bf16.msra.mxu0 0
        %1838 = vmatprep.subr.bf16.mxu0 0
        %1839 = vmatpush1.bf16.msra.mxu0 0
        %1840 = vmatprep.subr.bf16.mxu0 0
        %1841 = vmatpush1.bf16.msra.mxu0 0
        %1842 = vmatprep.subr.bf16.mxu0 0
        %1843 = vmatpush1.bf16.msra.mxu0 0
        %1844 = vmatprep.subr.bf16.mxu0 0
        %1845 = vmatpush1.bf16.msra.mxu0 0
        %1846 = vmatprep.subr.bf16.mxu0 0
        %1847 = vmatpush1.bf16.msra.mxu0 0
        %1848 = vmatprep.subr.bf16.mxu0 0
        %1849 = vmatpush1.bf16.msra.mxu0 0
        %1850 = vmatprep.subr.bf16.mxu0 0
        %1851 = vmatpush1.bf16.msra.mxu0 0
        %1852 = vmatprep.subr.bf16.mxu0 0
        %1853 = vmatpush1.bf16.msra.mxu0 0
        %1854 = vmatprep.subr.bf16.mxu0 0
        %1855 = vmatpush1.bf16.msra.mxu0 0
        %1856 = vmatprep.subr.bf16.mxu0 0
        %1857 = vmatpush1.bf16.msra.mxu0 0
        %1858 = vmatprep.subr.bf16.mxu0 0
        %1859 = vmatpush1.bf16.msra.mxu0 0
        %1860 = vmatprep.subr.bf16.mxu0 0
        %1861 = vmatpush1.bf16.msra.mxu0 0
        %1862 = vmatprep.mubr.bf16.mxu0 0
        %1863 = vmatmul.mubr.bf16.gmra.mrb[0].mxu0 %v1824
        %v1864 = vpop.f32.mrb[0].mxu0
        %v1865 = vadd.f32 0.0, %v1864
        %v1866 = vpop.f32.mrb[0].mxu0
        %v1867 = vpop.f32.mrb[0].mxu0
        %v1868 = vpop.f32.mrb[0].mxu0
        %1869 = vdwg.mxu0
        %s1870 = scalar_lea.vmem %s1559, 8
        %v1871 = vld [vmem:[%s1870] sm:$0xff]
        %v1872 = vpack.c.bf16 %v1871, %v1871
        %v1874 = vshrl.u32 %v1872, 16
        %v1876 = vrot.slane %v1874, 3
        %v1878 = vsel %vm1598, %v1876, 0
        %1880 = vmatprep.subr.bf16.mxu0 0
        %1881 = vmatpush1.bf16.msra.mxu0 %v1594
        %1882 = vmatprep.subr.bf16.mxu0 0
        %1883 = vmatpush1.bf16.msra.mxu0 %v1595
        %1884 = vmatprep.subr.bf16.mxu0 0
        %1885 = vmatpush1.bf16.msra.mxu0 0
        %1886 = vmatprep.subr.bf16.mxu0 0
        %1887 = vmatpush1.bf16.msra.mxu0 0
        %1888 = vmatprep.subr.bf16.mxu0 0
        %1889 = vmatpush1.bf16.msra.mxu0 0
        %1890 = vmatprep.subr.bf16.mxu0 0
        %1891 = vmatpush1.bf16.msra.mxu0 0
        %1892 = vmatprep.subr.bf16.mxu0 0
        %1893 = vmatpush1.bf16.msra.mxu0 0
        %1894 = vmatprep.subr.bf16.mxu0 0
        %1895 = vmatpush1.bf16.msra.mxu0 0
        %1896 = vmatprep.subr.bf16.mxu0 0
        %1897 = vmatpush1.bf16.msra.mxu0 0
        %1898 = vmatprep.subr.bf16.mxu0 0
        %1899 = vmatpush1.bf16.msra.mxu0 0
        %1900 = vmatprep.subr.bf16.mxu0 0
        %1901 = vmatpush1.bf16.msra.mxu0 0
        %1902 = vmatprep.subr.bf16.mxu0 0
        %1903 = vmatpush1.bf16.msra.mxu0 0
        %1904 = vmatprep.subr.bf16.mxu0 0
        %1905 = vmatpush1.bf16.msra.mxu0 0
        %1906 = vmatprep.subr.bf16.mxu0 0
        %1907 = vmatpush1.bf16.msra.mxu0 0
        %1908 = vmatprep.subr.bf16.mxu0 0
        %1909 = vmatpush1.bf16.msra.mxu0 0
        %1910 = vmatprep.subr.bf16.mxu0 0
        %1911 = vmatpush1.bf16.msra.mxu0 0
        %1912 = vmatprep.mubr.bf16.mxu0 0
        %1913 = vmatmul.mubr.bf16.gmra.mrb[0].mxu0 %v1878
        %v1914 = vpop.f32.mrb[0].mxu0
        %v1915 = vadd.f32 %v1569, %v1914
        %v1916 = vpop.f32.mrb[0].mxu0
        %v1917 = vpop.f32.mrb[0].mxu0
        %v1918 = vpop.f32.mrb[0].mxu0
        %1919 = vdwg.mxu0
        %v1920 = vsel %vm1598, %v1872, 0
        %1922 = vmatprep.subr.bf16.mxu0 0
        %1923 = vmatpush1.bf16.msra.mxu0 %v1656
        %1924 = vmatprep.subr.bf16.mxu0 0
        %1925 = vmatpush1.bf16.msra.mxu0 %v1657
        %1926 = vmatprep.subr.bf16.mxu0 0
        %1927 = vmatpush1.bf16.msra.mxu0 0
        %1928 = vmatprep.subr.bf16.mxu0 0
        %1929 = vmatpush1.bf16.msra.mxu0 0
        %1930 = vmatprep.subr.bf16.mxu0 0
        %1931 = vmatpush1.bf16.msra.mxu0 0
        %1932 = vmatprep.subr.bf16.mxu0 0
        %1933 = vmatpush1.bf16.msra.mxu0 0
        %1934 = vmatprep.subr.bf16.mxu0 0
        %1935 = vmatpush1.bf16.msra.mxu0 0
        %1936 = vmatprep.subr.bf16.mxu0 0
        %1937 = vmatpush1.bf16.msra.mxu0 0
        %1938 = vmatprep.subr.bf16.mxu0 0
        %1939 = vmatpush1.bf16.msra.mxu0 0
        %1940 = vmatprep.subr.bf16.mxu0 0
        %1941 = vmatpush1.bf16.msra.mxu0 0
        %1942 = vmatprep.subr.bf16.mxu0 0
        %1943 = vmatpush1.bf16.msra.mxu0 0
        %1944 = vmatprep.subr.bf16.mxu0 0
        %1945 = vmatpush1.bf16.msra.mxu0 0
        %1946 = vmatprep.subr.bf16.mxu0 0
        %1947 = vmatpush1.bf16.msra.mxu0 0
        %1948 = vmatprep.subr.bf16.mxu0 0
        %1949 = vmatpush1.bf16.msra.mxu0 0
        %1950 = vmatprep.subr.bf16.mxu0 0
        %1951 = vmatpush1.bf16.msra.mxu0 0
        %1952 = vmatprep.subr.bf16.mxu0 0
        %1953 = vmatpush1.bf16.msra.mxu0 0
        %1954 = vmatprep.mubr.bf16.mxu0 0
        %1955 = vmatmul.mubr.bf16.gmra.mrb[0].mxu0 %v1920
        %v1956 = vpop.f32.mrb[0].mxu0
        %v1957 = vadd.f32 %v1646, %v1956
        %v1958 = vpop.f32.mrb[0].mxu0
        %v1959 = vpop.f32.mrb[0].mxu0
        %v1960 = vpop.f32.mrb[0].mxu0
        %1961 = vdwg.mxu0
        %1962 = vmatprep.subr.bf16.mxu0 0
        %1963 = vmatpush1.bf16.msra.mxu0 %v1716
        %1964 = vmatprep.subr.bf16.mxu0 0
        %1965 = vmatpush1.bf16.msra.mxu0 %v1717
        %1966 = vmatprep.subr.bf16.mxu0 0
        %1967 = vmatpush1.bf16.msra.mxu0 0
        %1968 = vmatprep.subr.bf16.mxu0 0
        %1969 = vmatpush1.bf16.msra.mxu0 0
        %1970 = vmatprep.subr.bf16.mxu0 0
        %1971 = vmatpush1.bf16.msra.mxu0 0
        %1972 = vmatprep.subr.bf16.mxu0 0
        %1973 = vmatpush1.bf16.msra.mxu0 0
        %1974 = vmatprep.subr.bf16.mxu0 0
        %1975 = vmatpush1.bf16.msra.mxu0 0
        %1976 = vmatprep.subr.bf16.mxu0 0
        %1977 = vmatpush1.bf16.msra.mxu0 0
        %1978 = vmatprep.subr.bf16.mxu0 0
        %1979 = vmatpush1.bf16.msra.mxu0 0
        %1980 = vmatprep.subr.bf16.mxu0 0
        %1981 = vmatpush1.bf16.msra.mxu0 0
        %1982 = vmatprep.subr.bf16.mxu0 0
        %1983 = vmatpush1.bf16.msra.mxu0 0
        %1984 = vmatprep.subr.bf16.mxu0 0
        %1985 = vmatpush1.bf16.msra.mxu0 0
        %1986 = vmatprep.subr.bf16.mxu0 0
        %1987 = vmatpush1.bf16.msra.mxu0 0
        %1988 = vmatprep.subr.bf16.mxu0 0
        %1989 = vmatpush1.bf16.msra.mxu0 0
        %1990 = vmatprep.subr.bf16.mxu0 0
        %1991 = vmatpush1.bf16.msra.mxu0 0
        %1992 = vmatprep.subr.bf16.mxu0 0
        %1993 = vmatpush1.bf16.msra.mxu0 0
        %1994 = vmatprep.mubr.bf16.mxu0 0
        %1995 = vmatmul.mubr.bf16.gmra.mrb[0].mxu0 %v1920
        %v1996 = vpop.f32.mrb[0].mxu0
        %v1997 = vadd.f32 %v1706, %v1996
        %v1998 = vpop.f32.mrb[0].mxu0
        %v1999 = vpop.f32.mrb[0].mxu0
        %v2000 = vpop.f32.mrb[0].mxu0
        %2001 = vdwg.mxu0
        %v2002 = vpack.c.bf16 %v1915, %v1915
        %v2003 = vpack.c.bf16 %v1957, %v1957
        %v2005 = vsel %vm1598, %v2002, 0
        %v2008 = vsel %vm1598, %v2003, 0
        %2010 = vmatprep.subr.bf16.mxu0 0
        %2011 = vmatpush1.bf16.xpose.msra.mxu0 %v2008
        %2012 = vmatprep.subr.bf16.mxu0 0
        %2013 = vmatpush1.bf16.xpose.msra.mxu0 0
        %2014 = vmatprep.subr.bf16.mxu0 0
        %2015 = vmatpush1.bf16.xpose.msra.mxu0 0
        %2016 = vmatprep.subr.bf16.mxu0 0
        %2017 = vmatpush1.bf16.xpose.msra.mxu0 0
        %2018 = vmatprep.subr.bf16.mxu0 0
        %2019 = vmatpush1.bf16.xpose.msra.mxu0 0
        %2020 = vmatprep.subr.bf16.mxu0 0
        %2021 = vmatpush1.bf16.xpose.msra.mxu0 0
        %2022 = vmatprep.subr.bf16.mxu0 0
        %2023 = vmatpush1.bf16.xpose.msra.mxu0 0
        %2024 = vmatprep.subr.bf16.mxu0 0
        %2025 = vmatpush1.bf16.xpose.msra.mxu0 0
        %2026 = vmatprep.subr.bf16.mxu0 0
        %2027 = vmatpush1.bf16.xpose.msra.mxu0 0
        %2028 = vmatprep.subr.bf16.mxu0 0
        %2029 = vmatpush1.bf16.xpose.msra.mxu0 0
        %2030 = vmatprep.subr.bf16.mxu0 0
        %2031 = vmatpush1.bf16.xpose.msra.mxu0 0
        %2032 = vmatprep.subr.bf16.mxu0 0
        %2033 = vmatpush1.bf16.xpose.msra.mxu0 0
        %2034 = vmatprep.subr.bf16.mxu0 0
        %2035 = vmatpush1.bf16.xpose.msra.mxu0 0
        %2036 = vmatprep.subr.bf16.mxu0 0
        %2037 = vmatpush1.bf16.xpose.msra.mxu0 0
        %2038 = vmatprep.subr.bf16.mxu0 0
        %2039 = vmatpush1.bf16.xpose.msra.mxu0 0
        %2040 = vmatprep.subr.bf16.mxu0 0
        %2041 = vmatpush1.bf16.xpose.msra.mxu0 0
        %2042 = vmatprep.mubr.bf16.mxu0 0
        %2043 = vmatmul.mubr.bf16.gmra.mrb[0].mxu0 %v2005
        %v2044 = vpop.f32.mrb[0].mxu0
        %v2045 = vadd.f32 0.0, %v2044
        %v2046 = vpop.f32.mrb[0].mxu0
        %v2047 = vpop.f32.mrb[0].mxu0
        %v2048 = vpop.f32.mrb[0].mxu0
        %2049 = vdwg.mxu0
        %v2050 = vsel %vm1808, %v2045, -inf
        %2051 = vmax.xlane.f32.xlu0 %v2050
        %v2052 = vpop.xlane.xlu0 %2051
        %v2053 = vsub.f32 %v2045, %v2052
        %v2054 = vmul.f32 %v2053, 1.442695
        %v2055 = vpow.pop %v2054
        %v2056 = vsel %vm1808, %v2055, 0.0
        %2057 = vadd.xlane.f32.xlu0 %v2056
        %v2058 = vpop.xlane.xlu0 %2057
        %v2059 = vrcp.pop %v2058
        %v2060 = vmul.f32 %v2055, %v2059
        %v2061 = vpack.c.bf16 %v2060, %v2060
        %v2062 = vpack.c.bf16 %v1997, %v1997
        %v2064 = vsel %vm1822, %v2061, 0
        %v2067 = vsel %vm1826, %v2062, 0
        %2069 = vmatprep.subr.bf16.mxu0 0
        %2070 = vmatpush1.bf16.msra.mxu0 %v2067
        %2071 = vmatprep.subr.bf16.mxu0 0
        %2072 = vmatpush1.bf16.msra.mxu0 0
        %2073 = vmatprep.subr.bf16.mxu0 0
        %2074 = vmatpush1.bf16.msra.mxu0 0
        %2075 = vmatprep.subr.bf16.mxu0 0
        %2076 = vmatpush1.bf16.msra.mxu0 0
        %2077 = vmatprep.subr.bf16.mxu0 0
        %2078 = vmatpush1.bf16.msra.mxu0 0
        %2079 = vmatprep.subr.bf16.mxu0 0
        %2080 = vmatpush1.bf16.msra.mxu0 0
        %2081 = vmatprep.subr.bf16.mxu0 0
        %2082 = vmatpush1.bf16.msra.mxu0 0
        %2083 = vmatprep.subr.bf16.mxu0 0
        %2084 = vmatpush1.bf16.msra.mxu0 0
        %2085 = vmatprep.subr.bf16.mxu0 0
        %2086 = vmatpush1.bf16.msra.mxu0 0
        %2087 = vmatprep.subr.bf16.mxu0 0
        %2088 = vmatpush1.bf16.msra.mxu0 0
        %2089 = vmatprep.subr.bf16.mxu0 0
        %2090 = vmatpush1.bf16.msra.mxu0 0
        %2091 = vmatprep.subr.bf16.mxu0 0
        %2092 = vmatpush1.bf16.msra.mxu0 0
        %2093 = vmatprep.subr.bf16.mxu0 0
        %2094 = vmatpush1.bf16.msra.mxu0 0
        %2095 = vmatprep.subr.bf16.mxu0 0
        %2096 = vmatpush1.bf16.msra.mxu0 0
        %2097 = vmatprep.subr.bf16.mxu0 0
        %2098 = vmatpush1.bf16.msra.mxu0 0
        %2099 = vmatprep.subr.bf16.mxu0 0
        %2100 = vmatpush1.bf16.msra.mxu0 0
        %2101 = vmatprep.mubr.bf16.mxu0 0
        %2102 = vmatmul.mubr.bf16.gmra.mrb[0].mxu0 %v2064
        %v2103 = vpop.f32.mrb[0].mxu0
        %v2104 = vadd.f32 0.0, %v2103
        %v2105 = vpop.f32.mrb[0].mxu0
        %v2106 = vpop.f32.mrb[0].mxu0
        %v2107 = vpop.f32.mrb[0].mxu0
        %2108 = vdwg.mxu0
        %s2109 = scalar_lea.vmem %s1559, 16
        %v2110 = vld [vmem:[%s2109] sm:$0xff]
        %v2111 = vpack.c.bf16 %v2110, %v2110
        %v2113 = vshrl.u32 %v2111, 16
        %v2115 = vrot.slane %v2113, 3
        %v2117 = vsel %vm1598, %v2115, 0
        %2119 = vmatprep.subr.bf16.mxu0 0
        %2120 = vmatpush1.bf16.msra.mxu0 %v1594
        %2121 = vmatprep.subr.bf16.mxu0 0
        %2122 = vmatpush1.bf16.msra.mxu0 %v1595
        %2123 = vmatprep.subr.bf16.mxu0 0
        %2124 = vmatpush1.bf16.msra.mxu0 0
        %2125 = vmatprep.subr.bf16.mxu0 0
        %2126 = vmatpush1.bf16.msra.mxu0 0
        %2127 = vmatprep.subr.bf16.mxu0 0
        %2128 = vmatpush1.bf16.msra.mxu0 0
        %2129 = vmatprep.subr.bf16.mxu0 0
        %2130 = vmatpush1.bf16.msra.mxu0 0
        %2131 = vmatprep.subr.bf16.mxu0 0
        %2132 = vmatpush1.bf16.msra.mxu0 0
        %2133 = vmatprep.subr.bf16.mxu0 0
        %2134 = vmatpush1.bf16.msra.mxu0 0
        %2135 = vmatprep.subr.bf16.mxu0 0
        %2136 = vmatpush1.bf16.msra.mxu0 0
        %2137 = vmatprep.subr.bf16.mxu0 0
        %2138 = vmatpush1.bf16.msra.mxu0 0
        %2139 = vmatprep.subr.bf16.mxu0 0
        %2140 = vmatpush1.bf16.msra.mxu0 0
        %2141 = vmatprep.subr.bf16.mxu0 0
        %2142 = vmatpush1.bf16.msra.mxu0 0
        %2143 = vmatprep.subr.bf16.mxu0 0
        %2144 = vmatpush1.bf16.msra.mxu0 0
        %2145 = vmatprep.subr.bf16.mxu0 0
        %2146 = vmatpush1.bf16.msra.mxu0 0
        %2147 = vmatprep.subr.bf16.mxu0 0
        %2148 = vmatpush1.bf16.msra.mxu0 0
        %2149 = vmatprep.subr.bf16.mxu0 0
        %2150 = vmatpush1.bf16.msra.mxu0 0
        %2151 = vmatprep.mubr.bf16.mxu0 0
        %2152 = vmatmul.mubr.bf16.gmra.mrb[0].mxu0 %v2117
        %v2153 = vpop.f32.mrb[0].mxu0
        %v2154 = vadd.f32 %v1569, %v2153
        %v2155 = vpop.f32.mrb[0].mxu0
        %v2156 = vpop.f32.mrb[0].mxu0
        %v2157 = vpop.f32.mrb[0].mxu0
        %2158 = vdwg.mxu0
        %v2159 = vsel %vm1598, %v2111, 0
        %2161 = vmatprep.subr.bf16.mxu0 0
        %2162 = vmatpush1.bf16.msra.mxu0 %v1656
        %2163 = vmatprep.subr.bf16.mxu0 0
        %2164 = vmatpush1.bf16.msra.mxu0 %v1657
        %2165 = vmatprep.subr.bf16.mxu0 0
        %2166 = vmatpush1.bf16.msra.mxu0 0
        %2167 = vmatprep.subr.bf16.mxu0 0
        %2168 = vmatpush1.bf16.msra.mxu0 0
        %2169 = vmatprep.subr.bf16.mxu0 0
        %2170 = vmatpush1.bf16.msra.mxu0 0
        %2171 = vmatprep.subr.bf16.mxu0 0
        %2172 = vmatpush1.bf16.msra.mxu0 0
        %2173 = vmatprep.subr.bf16.mxu0 0
        %2174 = vmatpush1.bf16.msra.mxu0 0
        %2175 = vmatprep.subr.bf16.mxu0 0
        %2176 = vmatpush1.bf16.msra.mxu0 0
        %2177 = vmatprep.subr.bf16.mxu0 0
        %2178 = vmatpush1.bf16.msra.mxu0 0
        %2179 = vmatprep.subr.bf16.mxu0 0
        %2180 = vmatpush1.bf16.msra.mxu0 0
        %2181 = vmatprep.subr.bf16.mxu0 0
        %2182 = vmatpush1.bf16.msra.mxu0 0
        %2183 = vmatprep.subr.bf16.mxu0 0
        %2184 = vmatpush1.bf16.msra.mxu0 0
        %2185 = vmatprep.subr.bf16.mxu0 0
        %2186 = vmatpush1.bf16.msra.mxu0 0
        %2187 = vmatprep.subr.bf16.mxu0 0
        %2188 = vmatpush1.bf16.msra.mxu0 0
        %2189 = vmatprep.subr.bf16.mxu0 0
        %2190 = vmatpush1.bf16.msra.mxu0 0
        %2191 = vmatprep.subr.bf16.mxu0 0
        %2192 = vmatpush1.bf16.msra.mxu0 0
        %2193 = vmatprep.mubr.bf16.mxu0 0
        %2194 = vmatmul.mubr.bf16.gmra.mrb[0].mxu0 %v2159
        %v2195 = vpop.f32.mrb[0].mxu0
        %v2196 = vadd.f32 %v1646, %v2195
        %v2197 = vpop.f32.mrb[0].mxu0
        %v2198 = vpop.f32.mrb[0].mxu0
        %v2199 = vpop.f32.mrb[0].mxu0
        %2200 = vdwg.mxu0
        %2201 = vmatprep.subr.bf16.mxu0 0
        %2202 = vmatpush1.bf16.msra.mxu0 %v1716
        %2203 = vmatprep.subr.bf16.mxu0 0
        %2204 = vmatpush1.bf16.msra.mxu0 %v1717
        %2205 = vmatprep.subr.bf16.mxu0 0
        %2206 = vmatpush1.bf16.msra.mxu0 0
        %2207 = vmatprep.subr.bf16.mxu0 0
        %2208 = vmatpush1.bf16.msra.mxu0 0
        %2209 = vmatprep.subr.bf16.mxu0 0
        %2210 = vmatpush1.bf16.msra.mxu0 0
        %2211 = vmatprep.subr.bf16.mxu0 0
        %2212 = vmatpush1.bf16.msra.mxu0 0
        %2213 = vmatprep.subr.bf16.mxu0 0
        %2214 = vmatpush1.bf16.msra.mxu0 0
        %2215 = vmatprep.subr.bf16.mxu0 0
        %2216 = vmatpush1.bf16.msra.mxu0 0
        %2217 = vmatprep.subr.bf16.mxu0 0
        %2218 = vmatpush1.bf16.msra.mxu0 0
        %2219 = vmatprep.subr.bf16.mxu0 0
        %2220 = vmatpush1.bf16.msra.mxu0 0
        %2221 = vmatprep.subr.bf16.mxu0 0
        %2222 = vmatpush1.bf16.msra.mxu0 0
        %2223 = vmatprep.subr.bf16.mxu0 0
        %2224 = vmatpush1.bf16.msra.mxu0 0
        %2225 = vmatprep.subr.bf16.mxu0 0
        %2226 = vmatpush1.bf16.msra.mxu0 0
        %2227 = vmatprep.subr.bf16.mxu0 0
        %2228 = vmatpush1.bf16.msra.mxu0 0
        %2229 = vmatprep.subr.bf16.mxu0 0
        %2230 = vmatpush1.bf16.msra.mxu0 0
        %2231 = vmatprep.subr.bf16.mxu0 0
        %2232 = vmatpush1.bf16.msra.mxu0 0
        %2233 = vmatprep.mubr.bf16.mxu0 0
        %2234 = vmatmul.mubr.bf16.gmra.mrb[0].mxu0 %v2159
        %v2235 = vpop.f32.mrb[0].mxu0
        %v2236 = vadd.f32 %v1706, %v2235
        %v2237 = vpop.f32.mrb[0].mxu0
        %v2238 = vpop.f32.mrb[0].mxu0
        %v2239 = vpop.f32.mrb[0].mxu0
        %2240 = vdwg.mxu0
        %v2241 = vpack.c.bf16 %v2154, %v2154
        %v2242 = vpack.c.bf16 %v2196, %v2196
        %v2244 = vsel %vm1598, %v2241, 0
        %v2247 = vsel %vm1598, %v2242, 0
        %2249 = vmatprep.subr.bf16.mxu0 0
        %2250 = vmatpush1.bf16.xpose.msra.mxu0 %v2247
        %2251 = vmatprep.subr.bf16.mxu0 0
        %2252 = vmatpush1.bf16.xpose.msra.mxu0 0
        %2253 = vmatprep.subr.bf16.mxu0 0
        %2254 = vmatpush1.bf16.xpose.msra.mxu0 0
        %2255 = vmatprep.subr.bf16.mxu0 0
        %2256 = vmatpush1.bf16.xpose.msra.mxu0 0
        %2257 = vmatprep.subr.bf16.mxu0 0
        %2258 = vmatpush1.bf16.xpose.msra.mxu0 0
        %2259 = vmatprep.subr.bf16.mxu0 0
        %2260 = vmatpush1.bf16.xpose.msra.mxu0 0
        %2261 = vmatprep.subr.bf16.mxu0 0
        %2262 = vmatpush1.bf16.xpose.msra.mxu0 0
        %2263 = vmatprep.subr.bf16.mxu0 0
        %2264 = vmatpush1.bf16.xpose.msra.mxu0 0
        %2265 = vmatprep.subr.bf16.mxu0 0
        %2266 = vmatpush1.bf16.xpose.msra.mxu0 0
        %2267 = vmatprep.subr.bf16.mxu0 0
        %2268 = vmatpush1.bf16.xpose.msra.mxu0 0
        %2269 = vmatprep.subr.bf16.mxu0 0
        %2270 = vmatpush1.bf16.xpose.msra.mxu0 0
        %2271 = vmatprep.subr.bf16.mxu0 0
        %2272 = vmatpush1.bf16.xpose.msra.mxu0 0
        %2273 = vmatprep.subr.bf16.mxu0 0
        %2274 = vmatpush1.bf16.xpose.msra.mxu0 0
        %2275 = vmatprep.subr.bf16.mxu0 0
        %2276 = vmatpush1.bf16.xpose.msra.mxu0 0
        %2277 = vmatprep.subr.bf16.mxu0 0
        %2278 = vmatpush1.bf16.xpose.msra.mxu0 0
        %2279 = vmatprep.subr.bf16.mxu0 0
        %2280 = vmatpush1.bf16.xpose.msra.mxu0 0
        %2281 = vmatprep.mubr.bf16.mxu0 0
        %2282 = vmatmul.mubr.bf16.gmra.mrb[0].mxu0 %v2244
        %v2283 = vpop.f32.mrb[0].mxu0
        %v2284 = vadd.f32 0.0, %v2283
        %v2285 = vpop.f32.mrb[0].mxu0
        %v2286 = vpop.f32.mrb[0].mxu0
        %v2287 = vpop.f32.mrb[0].mxu0
        %2288 = vdwg.mxu0
        %v2289 = vsel %vm1808, %v2284, -inf
        %2290 = vmax.xlane.f32.xlu0 %v2289
        %v2291 = vpop.xlane.xlu0 %2290
        %v2292 = vsub.f32 %v2284, %v2291
        %v2293 = vmul.f32 %v2292, 1.442695
        %v2294 = vpow.pop %v2293
        %v2295 = vsel %vm1808, %v2294, 0.0
        %2296 = vadd.xlane.f32.xlu0 %v2295
        %v2297 = vpop.xlane.xlu0 %2296
        %v2298 = vrcp.pop %v2297
        %v2299 = vmul.f32 %v2294, %v2298
        %v2300 = vpack.c.bf16 %v2299, %v2299
        %v2301 = vpack.c.bf16 %v2236, %v2236
        %v2303 = vsel %vm1822, %v2300, 0
        %v2306 = vsel %vm1826, %v2301, 0
        %2308 = vmatprep.subr.bf16.mxu0 0
        %2309 = vmatpush1.bf16.msra.mxu0 %v2306
        %2310 = vmatprep.subr.bf16.mxu0 0
        %2311 = vmatpush1.bf16.msra.mxu0 0
        %2312 = vmatprep.subr.bf16.mxu0 0
        %2313 = vmatpush1.bf16.msra.mxu0 0
        %2314 = vmatprep.subr.bf16.mxu0 0
        %2315 = vmatpush1.bf16.msra.mxu0 0
        %2316 = vmatprep.subr.bf16.mxu0 0
        %2317 = vmatpush1.bf16.msra.mxu0 0
        %2318 = vmatprep.subr.bf16.mxu0 0
        %2319 = vmatpush1.bf16.msra.mxu0 0
        %2320 = vmatprep.subr.bf16.mxu0 0
        %2321 = vmatpush1.bf16.msra.mxu0 0
        %2322 = vmatprep.subr.bf16.mxu0 0
        %2323 = vmatpush1.bf16.msra.mxu0 0
        %2324 = vmatprep.subr.bf16.mxu0 0
        %2325 = vmatpush1.bf16.msra.mxu0 0
        %2326 = vmatprep.subr.bf16.mxu0 0
        %2327 = vmatpush1.bf16.msra.mxu0 0
        %2328 = vmatprep.subr.bf16.mxu0 0
        %2329 = vmatpush1.bf16.msra.mxu0 0
        %2330 = vmatprep.subr.bf16.mxu0 0
        %2331 = vmatpush1.bf16.msra.mxu0 0
        %2332 = vmatprep.subr.bf16.mxu0 0
        %2333 = vmatpush1.bf16.msra.mxu0 0
        %2334 = vmatprep.subr.bf16.mxu0 0
        %2335 = vmatpush1.bf16.msra.mxu0 0
        %2336 = vmatprep.subr.bf16.mxu0 0
        %2337 = vmatpush1.bf16.msra.mxu0 0
        %2338 = vmatprep.subr.bf16.mxu0 0
        %2339 = vmatpush1.bf16.msra.mxu0 0
        %2340 = vmatprep.mubr.bf16.mxu0 0
        %2341 = vmatmul.mubr.bf16.gmra.mrb[0].mxu0 %v2303
        %v2342 = vpop.f32.mrb[0].mxu0
        %v2343 = vadd.f32 0.0, %v2342
        %v2344 = vpop.f32.mrb[0].mxu0
        %v2345 = vpop.f32.mrb[0].mxu0
        %v2346 = vpop.f32.mrb[0].mxu0
        %2347 = vdwg.mxu0
        %s2348 = scalar_lea.vmem %s1559, 24
        %v2349 = vld [vmem:[%s2348] sm:$0xff]
        %v2350 = vpack.c.bf16 %v2349, %v2349
        %v2352 = vshrl.u32 %v2350, 16
        %v2354 = vrot.slane %v2352, 3
        %v2356 = vsel %vm1598, %v2354, 0
        %2358 = vmatprep.subr.bf16.mxu0 0
        %2359 = vmatpush1.bf16.msra.mxu0 %v1594
        %2360 = vmatprep.subr.bf16.mxu0 0
        %2361 = vmatpush1.bf16.msra.mxu0 %v1595
        %2362 = vmatprep.subr.bf16.mxu0 0
        %2363 = vmatpush1.bf16.msra.mxu0 0
        %2364 = vmatprep.subr.bf16.mxu0 0
        %2365 = vmatpush1.bf16.msra.mxu0 0
        %2366 = vmatprep.subr.bf16.mxu0 0
        %2367 = vmatpush1.bf16.msra.mxu0 0
        %2368 = vmatprep.subr.bf16.mxu0 0
        %2369 = vmatpush1.bf16.msra.mxu0 0
        %2370 = vmatprep.subr.bf16.mxu0 0
        %2371 = vmatpush1.bf16.msra.mxu0 0
        %2372 = vmatprep.subr.bf16.mxu0 0
        %2373 = vmatpush1.bf16.msra.mxu0 0
        %2374 = vmatprep.subr.bf16.mxu0 0
        %2375 = vmatpush1.bf16.msra.mxu0 0
        %2376 = vmatprep.subr.bf16.mxu0 0
        %2377 = vmatpush1.bf16.msra.mxu0 0
        %2378 = vmatprep.subr.bf16.mxu0 0
        %2379 = vmatpush1.bf16.msra.mxu0 0
        %2380 = vmatprep.subr.bf16.mxu0 0
        %2381 = vmatpush1.bf16.msra.mxu0 0
        %2382 = vmatprep.subr.bf16.mxu0 0
        %2383 = vmatpush1.bf16.msra.mxu0 0
        %2384 = vmatprep.subr.bf16.mxu0 0
        %2385 = vmatpush1.bf16.msra.mxu0 0
        %2386 = vmatprep.subr.bf16.mxu0 0
        %2387 = vmatpush1.bf16.msra.mxu0 0
        %2388 = vmatprep.subr.bf16.mxu0 0
        %2389 = vmatpush1.bf16.msra.mxu0 0
        %2390 = vmatprep.mubr.bf16.mxu0 0
        %2391 = vmatmul.mubr.bf16.gmra.mrb[0].mxu0 %v2356
        %v2392 = vpop.f32.mrb[0].mxu0
        %v2393 = vadd.f32 %v1569, %v2392
        %v2394 = vpop.f32.mrb[0].mxu0
        %v2395 = vpop.f32.mrb[0].mxu0
        %v2396 = vpop.f32.mrb[0].mxu0
        %2397 = vdwg.mxu0
        %v2398 = vsel %vm1598, %v2350, 0
        %2400 = vmatprep.subr.bf16.mxu0 0
        %2401 = vmatpush1.bf16.msra.mxu0 %v1656
        %2402 = vmatprep.subr.bf16.mxu0 0
        %2403 = vmatpush1.bf16.msra.mxu0 %v1657
        %2404 = vmatprep.subr.bf16.mxu0 0
        %2405 = vmatpush1.bf16.msra.mxu0 0
        %2406 = vmatprep.subr.bf16.mxu0 0
        %2407 = vmatpush1.bf16.msra.mxu0 0
        %2408 = vmatprep.subr.bf16.mxu0 0
        %2409 = vmatpush1.bf16.msra.mxu0 0
        %2410 = vmatprep.subr.bf16.mxu0 0
        %2411 = vmatpush1.bf16.msra.mxu0 0
        %2412 = vmatprep.subr.bf16.mxu0 0
        %2413 = vmatpush1.bf16.msra.mxu0 0
        %2414 = vmatprep.subr.bf16.mxu0 0
        %2415 = vmatpush1.bf16.msra.mxu0 0
        %2416 = vmatprep.subr.bf16.mxu0 0
        %2417 = vmatpush1.bf16.msra.mxu0 0
        %2418 = vmatprep.subr.bf16.mxu0 0
        %2419 = vmatpush1.bf16.msra.mxu0 0
        %2420 = vmatprep.subr.bf16.mxu0 0
        %2421 = vmatpush1.bf16.msra.mxu0 0
        %2422 = vmatprep.subr.bf16.mxu0 0
        %2423 = vmatpush1.bf16.msra.mxu0 0
        %2424 = vmatprep.subr.bf16.mxu0 0
        %2425 = vmatpush1.bf16.msra.mxu0 0
        %2426 = vmatprep.subr.bf16.mxu0 0
        %2427 = vmatpush1.bf16.msra.mxu0 0
        %2428 = vmatprep.subr.bf16.mxu0 0
        %2429 = vmatpush1.bf16.msra.mxu0 0
        %2430 = vmatprep.subr.bf16.mxu0 0
        %2431 = vmatpush1.bf16.msra.mxu0 0
        %2432 = vmatprep.mubr.bf16.mxu0 0
        %2433 = vmatmul.mubr.bf16.gmra.mrb[0].mxu0 %v2398
        %v2434 = vpop.f32.mrb[0].mxu0
        %v2435 = vadd.f32 %v1646, %v2434
        %v2436 = vpop.f32.mrb[0].mxu0
        %v2437 = vpop.f32.mrb[0].mxu0
        %v2438 = vpop.f32.mrb[0].mxu0
        %2439 = vdwg.mxu0
        %2440 = vmatprep.subr.bf16.mxu0 0
        %2441 = vmatpush1.bf16.msra.mxu0 %v1716
        %2442 = vmatprep.subr.bf16.mxu0 0
        %2443 = vmatpush1.bf16.msra.mxu0 %v1717
        %2444 = vmatprep.subr.bf16.mxu0 0
        %2445 = vmatpush1.bf16.msra.mxu0 0
        %2446 = vmatprep.subr.bf16.mxu0 0
        %2447 = vmatpush1.bf16.msra.mxu0 0
        %2448 = vmatprep.subr.bf16.mxu0 0
        %2449 = vmatpush1.bf16.msra.mxu0 0
        %2450 = vmatprep.subr.bf16.mxu0 0
        %2451 = vmatpush1.bf16.msra.mxu0 0
        %2452 = vmatprep.subr.bf16.mxu0 0
        %2453 = vmatpush1.bf16.msra.mxu0 0
        %2454 = vmatprep.subr.bf16.mxu0 0
        %2455 = vmatpush1.bf16.msra.mxu0 0
        %2456 = vmatprep.subr.bf16.mxu0 0
        %2457 = vmatpush1.bf16.msra.mxu0 0
        %2458 = vmatprep.subr.bf16.mxu0 0
        %2459 = vmatpush1.bf16.msra.mxu0 0
        %2460 = vmatprep.subr.bf16.mxu0 0
        %2461 = vmatpush1.bf16.msra.mxu0 0
        %2462 = vmatprep.subr.bf16.mxu0 0
        %2463 = vmatpush1.bf16.msra.mxu0 0
        %2464 = vmatprep.subr.bf16.mxu0 0
        %2465 = vmatpush1.bf16.msra.mxu0 0
        %2466 = vmatprep.subr.bf16.mxu0 0
        %2467 = vmatpush1.bf16.msra.mxu0 0
        %2468 = vmatprep.subr.bf16.mxu0 0
        %2469 = vmatpush1.bf16.msra.mxu0 0
        %2470 = vmatprep.subr.bf16.mxu0 0
        %2471 = vmatpush1.bf16.msra.mxu0 0
        %2472 = vmatprep.mubr.bf16.mxu0 0
        %2473 = vmatmul.mubr.bf16.gmra.mrb[0].mxu0 %v2398
        %v2474 = vpop.f32.mrb[0].mxu0
        %v2475 = vadd.f32 %v1706, %v2474
        %v2476 = vpop.f32.mrb[0].mxu0
        %v2477 = vpop.f32.mrb[0].mxu0
        %v2478 = vpop.f32.mrb[0].mxu0
        %2479 = vdwg.mxu0
        %v2480 = vpack.c.bf16 %v2393, %v2393
        %v2481 = vpack.c.bf16 %v2435, %v2435
        %v2483 = vsel %vm1598, %v2480, 0
        %v2486 = vsel %vm1598, %v2481, 0
        %2488 = vmatprep.subr.bf16.mxu0 0
        %2489 = vmatpush1.bf16.xpose.msra.mxu0 %v2486
        %2490 = vmatprep.subr.bf16.mxu0 0
        %2491 = vmatpush1.bf16.xpose.msra.mxu0 0
        %2492 = vmatprep.subr.bf16.mxu0 0
        %2493 = vmatpush1.bf16.xpose.msra.mxu0 0
        %2494 = vmatprep.subr.bf16.mxu0 0
        %2495 = vmatpush1.bf16.xpose.msra.mxu0 0
        %2496 = vmatprep.subr.bf16.mxu0 0
        %2497 = vmatpush1.bf16.xpose.msra.mxu0 0
        %2498 = vmatprep.subr.bf16.mxu0 0
        %2499 = vmatpush1.bf16.xpose.msra.mxu0 0
        %2500 = vmatprep.subr.bf16.mxu0 0
        %2501 = vmatpush1.bf16.xpose.msra.mxu0 0
        %2502 = vmatprep.subr.bf16.mxu0 0
        %2503 = vmatpush1.bf16.xpose.msra.mxu0 0
        %2504 = vmatprep.subr.bf16.mxu0 0
        %2505 = vmatpush1.bf16.xpose.msra.mxu0 0
        %2506 = vmatprep.subr.bf16.mxu0 0
        %2507 = vmatpush1.bf16.xpose.msra.mxu0 0
        %2508 = vmatprep.subr.bf16.mxu0 0
        %2509 = vmatpush1.bf16.xpose.msra.mxu0 0
        %2510 = vmatprep.subr.bf16.mxu0 0
        %2511 = vmatpush1.bf16.xpose.msra.mxu0 0
        %2512 = vmatprep.subr.bf16.mxu0 0
        %2513 = vmatpush1.bf16.xpose.msra.mxu0 0
        %2514 = vmatprep.subr.bf16.mxu0 0
        %2515 = vmatpush1.bf16.xpose.msra.mxu0 0
        %2516 = vmatprep.subr.bf16.mxu0 0
        %2517 = vmatpush1.bf16.xpose.msra.mxu0 0
        %2518 = vmatprep.subr.bf16.mxu0 0
        %2519 = vmatpush1.bf16.xpose.msra.mxu0 0
        %2520 = vmatprep.mubr.bf16.mxu0 0
        %2521 = vmatmul.mubr.bf16.gmra.mrb[0].mxu0 %v2483
        %v2522 = vpop.f32.mrb[0].mxu0
        %v2523 = vadd.f32 0.0, %v2522
        %v2524 = vpop.f32.mrb[0].mxu0
        %v2525 = vpop.f32.mrb[0].mxu0
        %v2526 = vpop.f32.mrb[0].mxu0
        %2527 = vdwg.mxu0
        %v2528 = vsel %vm1808, %v2523, -inf
        %2529 = vmax.xlane.f32.xlu0 %v2528
        %v2530 = vpop.xlane.xlu0 %2529
        %v2531 = vsub.f32 %v2523, %v2530
        %v2532 = vmul.f32 %v2531, 1.442695
        %v2533 = vpow.pop %v2532
        %v2534 = vsel %vm1808, %v2533, 0.0
        %2535 = vadd.xlane.f32.xlu0 %v2534
        %v2536 = vpop.xlane.xlu0 %2535
        %v2537 = vrcp.pop %v2536
        %v2538 = vmul.f32 %v2533, %v2537
        %v2539 = vpack.c.bf16 %v2538, %v2538
        %v2540 = vpack.c.bf16 %v2475, %v2475
        %v2542 = vsel %vm1822, %v2539, 0
        %v2545 = vsel %vm1826, %v2540, 0
        %2547 = vmatprep.subr.bf16.mxu0 0
        %2548 = vmatpush1.bf16.msra.mxu0 %v2545
        %2549 = vmatprep.subr.bf16.mxu0 0
        %2550 = vmatpush1.bf16.msra.mxu0 0
        %2551 = vmatprep.subr.bf16.mxu0 0
        %2552 = vmatpush1.bf16.msra.mxu0 0
        %2553 = vmatprep.subr.bf16.mxu0 0
        %2554 = vmatpush1.bf16.msra.mxu0 0
        %2555 = vmatprep.subr.bf16.mxu0 0
        %2556 = vmatpush1.bf16.msra.mxu0 0
        %2557 = vmatprep.subr.bf16.mxu0 0
        %2558 = vmatpush1.bf16.msra.mxu0 0
        %2559 = vmatprep.subr.bf16.mxu0 0
        %2560 = vmatpush1.bf16.msra.mxu0 0
        %2561 = vmatprep.subr.bf16.mxu0 0
        %2562 = vmatpush1.bf16.msra.mxu0 0
        %2563 = vmatprep.subr.bf16.mxu0 0
        %2564 = vmatpush1.bf16.msra.mxu0 0
        %2565 = vmatprep.subr.bf16.mxu0 0
        %2566 = vmatpush1.bf16.msra.mxu0 0
        %2567 = vmatprep.subr.bf16.mxu0 0
        %2568 = vmatpush1.bf16.msra.mxu0 0
        %2569 = vmatprep.subr.bf16.mxu0 0
        %2570 = vmatpush1.bf16.msra.mxu0 0
        %2571 = vmatprep.subr.bf16.mxu0 0
        %2572 = vmatpush1.bf16.msra.mxu0 0
        %2573 = vmatprep.subr.bf16.mxu0 0
        %2574 = vmatpush1.bf16.msra.mxu0 0
        %2575 = vmatprep.subr.bf16.mxu0 0
        %2576 = vmatpush1.bf16.msra.mxu0 0
        %2577 = vmatprep.subr.bf16.mxu0 0
        %2578 = vmatpush1.bf16.msra.mxu0 0
        %2579 = vmatprep.mubr.bf16.mxu0 0
        %2580 = vmatmul.mubr.bf16.gmra.mrb[0].mxu0 %v2542
        %v2581 = vpop.f32.mrb[0].mxu0
        %v2582 = vadd.f32 0.0, %v2581
        %v2583 = vpop.f32.mrb[0].mxu0
        %v2584 = vpop.f32.mrb[0].mxu0
        %v2585 = vpop.f32.mrb[0].mxu0
        %2586 = vdwg.mxu0
        %v2588 = vrot.slane %v2104, 7
        %v2591 = vrot.slane %v2343, 6
        %v2594 = vrot.slane %v2582, 5
        %vm2596 = vcmask 1040384
        %v2597 = vsel %vm2596, %v1865, %v2588
        %vm2598 = vcmask 1041408
        %v2599 = vsel %vm2598, %v2597, %v2591
        %vm2600 = vcmask 1042432
        %v2601 = vsel %vm2600, %v2599, %v2594
        %v2602 = vld [vmem:[%s15] sm:$0xf]
        %v2603 = vld [vmem:[%s15 + $0x4] sm:$0xf]
        %v2604 = vld [vmem:[%s15 + $0x8] sm:$0xf]
        %v2605 = vld [vmem:[%s15 + $0xc] sm:$0xf]
        %v2606 = vpack.c.bf16 %v2601, %v2601
        %v2607 = vld [vmem:[#allocation2] sm:$0x1]
        %v2609 = vlaneseq
        %v2610 = vshrl.u32 %v2609, 7
        %v2611 = vsub.s32 0, %v2610
        %v2612 = vrot.slane %v2607, %v2611
        %v2618 = vunpack.c.l.b16 %v2602
        %v2619 = vunpack.c.l.b16 %v2603
        %v2620 = vunpack.c.l.b16 %v2604
        %v2621 = vunpack.c.l.b16 %v2605
        %v2622 = vpack.c.b16 %v2619, %v2618
        %v2623 = vpack.c.b16 %v2621, %v2620
        %v2627 = vsel %vm1598, %v2606, 0
        %2629 = vmatprep.subr.bf16.mxu0 0
        %2630 = vmatpush1.bf16.msra.mxu0 %v2622
        %2631 = vmatprep.subr.bf16.mxu0 0
        %2632 = vmatpush1.bf16.msra.mxu0 %v2623
        %2633 = vmatprep.subr.bf16.mxu0 0
        %2634 = vmatpush1.bf16.msra.mxu0 0
        %2635 = vmatprep.subr.bf16.mxu0 0
        %2636 = vmatpush1.bf16.msra.mxu0 0
        %2637 = vmatprep.subr.bf16.mxu0 0
        %2638 = vmatpush1.bf16.msra.mxu0 0
        %2639 = vmatprep.subr.bf16.mxu0 0
        %2640 = vmatpush1.bf16.msra.mxu0 0
        %2641 = vmatprep.subr.bf16.mxu0 0
        %2642 = vmatpush1.bf16.msra.mxu0 0
        %2643 = vmatprep.subr.bf16.mxu0 0
        %2644 = vmatpush1.bf16.msra.mxu0 0
        %2645 = vmatprep.subr.bf16.mxu0 0
        %2646 = vmatpush1.bf16.msra.mxu0 0
        %2647 = vmatprep.subr.bf16.mxu0 0
        %2648 = vmatpush1.bf16.msra.mxu0 0
        %2649 = vmatprep.subr.bf16.mxu0 0
        %2650 = vmatpush1.bf16.msra.mxu0 0
        %2651 = vmatprep.subr.bf16.mxu0 0
        %2652 = vmatpush1.bf16.msra.mxu0 0
        %2653 = vmatprep.subr.bf16.mxu0 0
        %2654 = vmatpush1.bf16.msra.mxu0 0
        %2655 = vmatprep.subr.bf16.mxu0 0
        %2656 = vmatpush1.bf16.msra.mxu0 0
        %2657 = vmatprep.subr.bf16.mxu0 0
        %2658 = vmatpush1.bf16.msra.mxu0 0
        %2659 = vmatprep.subr.bf16.mxu0 0
        %2660 = vmatpush1.bf16.msra.mxu0 0
        %2661 = vmatprep.mubr.bf16.mxu0 0
        %2662 = vmatmul.mubr.bf16.gmra.mrb[0].mxu0 %v2627
        %v2663 = vpop.f32.mrb[0].mxu0
        %v2664 = vadd.f32 %v2612, %v2663
        %v2665 = vpop.f32.mrb[0].mxu0
        %v2666 = vpop.f32.mrb[0].mxu0
        %v2667 = vpop.f32.mrb[0].mxu0
        %2668 = vdwg.mxu0
        %v2669 = vld [vmem:[%s19] sm:$0xf]
        %v2670 = vld [vmem:[%s19 + $0x4] sm:$0xf]
        %v2671 = vld [vmem:[%s19 + $0x8] sm:$0xf]
        %v2672 = vld [vmem:[%s19 + $0xc] sm:$0xf]
        %v2673 = vpack.c.bf16 %v2664, %v2664
        %v2674 = vld [vmem:[#allocation5] sm:$0x1]
        %v2676 = vlaneseq
        %v2677 = vshrl.u32 %v2676, 7
        %v2678 = vsub.s32 0, %v2677
        %v2679 = vrot.slane %v2674, %v2678
        %v2685 = vunpack.c.l.b16 %v2669
        %v2686 = vunpack.c.l.b16 %v2670
        %v2687 = vunpack.c.l.b16 %v2671
        %v2688 = vunpack.c.l.b16 %v2672
        %v2689 = vpack.c.b16 %v2686, %v2685
        %v2690 = vpack.c.b16 %v2688, %v2687
        %v2694 = vsel %vm1598, %v2673, 0
        %2696 = vmatprep.subr.bf16.mxu0 0
        %2697 = vmatpush1.bf16.msra.mxu0 %v2689
        %2698 = vmatprep.subr.bf16.mxu0 0
        %2699 = vmatpush1.bf16.msra.mxu0 %v2690
        %2700 = vmatprep.subr.bf16.mxu0 0
        %2701 = vmatpush1.bf16.msra.mxu0 0
        %2702 = vmatprep.subr.bf16.mxu0 0
        %2703 = vmatpush1.bf16.msra.mxu0 0
        %2704 = vmatprep.subr.bf16.mxu0 0
        %2705 = vmatpush1.bf16.msra.mxu0 0
        %2706 = vmatprep.subr.bf16.mxu0 0
        %2707 = vmatpush1.bf16.msra.mxu0 0
        %2708 = vmatprep.subr.bf16.mxu0 0
        %2709 = vmatpush1.bf16.msra.mxu0 0
        %2710 = vmatprep.subr.bf16.mxu0 0
        %2711 = vmatpush1.bf16.msra.mxu0 0
        %2712 = vmatprep.subr.bf16.mxu0 0
        %2713 = vmatpush1.bf16.msra.mxu0 0
        %2714 = vmatprep.subr.bf16.mxu0 0
        %2715 = vmatpush1.bf16.msra.mxu0 0
        %2716 = vmatprep.subr.bf16.mxu0 0
        %2717 = vmatpush1.bf16.msra.mxu0 0
        %2718 = vmatprep.subr.bf16.mxu0 0
        %2719 = vmatpush1.bf16.msra.mxu0 0
        %2720 = vmatprep.subr.bf16.mxu0 0
        %2721 = vmatpush1.bf16.msra.mxu0 0
        %2722 = vmatprep.subr.bf16.mxu0 0
        %2723 = vmatpush1.bf16.msra.mxu0 0
        %2724 = vmatprep.subr.bf16.mxu0 0
        %2725 = vmatpush1.bf16.msra.mxu0 0
        %2726 = vmatprep.subr.bf16.mxu0 0
        %2727 = vmatpush1.bf16.msra.mxu0 0
        %2728 = vmatprep.mubr.bf16.mxu0 0
        %2729 = vmatmul.mubr.bf16.gmra.mrb[0].mxu0 %v2694
        %v2730 = vpop.f32.mrb[0].mxu0
        %v2731 = vadd.f32 %v2679, %v2730
        %v2732 = vpop.f32.mrb[0].mxu0
        %v2733 = vpop.f32.mrb[0].mxu0
        %v2734 = vpop.f32.mrb[0].mxu0
        %2735 = vdwg.mxu0
        %v2736 = vmax.f32 %v2731, 0.0
        %v2737 = vld [vmem:[%s23] sm:$0xf]
        %v2738 = vld [vmem:[%s23 + $0x4] sm:$0xf]
        %v2739 = vld [vmem:[%s23 + $0x8] sm:$0xf]
        %v2740 = vld [vmem:[%s23 + $0xc] sm:$0xf]
        %v2741 = vpack.c.bf16 %v2736, %v2736
        %v2742 = vld [vmem:[#allocation7] sm:$0x1]
        %v2744 = vlaneseq
        %v2745 = vshrl.u32 %v2744, 7
        %v2746 = vsub.s32 0, %v2745
        %v2747 = vrot.slane %v2742, %v2746
        %v2753 = vunpack.c.l.b16 %v2737
        %v2754 = vunpack.c.l.b16 %v2738
        %v2755 = vunpack.c.l.b16 %v2739
        %v2756 = vunpack.c.l.b16 %v2740
        %v2757 = vpack.c.b16 %v2754, %v2753
        %v2758 = vpack.c.b16 %v2756, %v2755
        %v2762 = vsel %vm1598, %v2741, 0
        %2764 = vmatprep.subr.bf16.mxu0 0
        %2765 = vmatpush1.bf16.msra.mxu0 %v2757
        %2766 = vmatprep.subr.bf16.mxu0 0
        %2767 = vmatpush1.bf16.msra.mxu0 %v2758
        %2768 = vmatprep.subr.bf16.mxu0 0
        %2769 = vmatpush1.bf16.msra.mxu0 0
        %2770 = vmatprep.subr.bf16.mxu0 0
        %2771 = vmatpush1.bf16.msra.mxu0 0
        %2772 = vmatprep.subr.bf16.mxu0 0
        %2773 = vmatpush1.bf16.msra.mxu0 0
        %2774 = vmatprep.subr.bf16.mxu0 0
        %2775 = vmatpush1.bf16.msra.mxu0 0
        %2776 = vmatprep.subr.bf16.mxu0 0
        %2777 = vmatpush1.bf16.msra.mxu0 0
        %2778 = vmatprep.subr.bf16.mxu0 0
        %2779 = vmatpush1.bf16.msra.mxu0 0
        %2780 = vmatprep.subr.bf16.mxu0 0
        %2781 = vmatpush1.bf16.msra.mxu0 0
        %2782 = vmatprep.subr.bf16.mxu0 0
        %2783 = vmatpush1.bf16.msra.mxu0 0
        %2784 = vmatprep.subr.bf16.mxu0 0
        %2785 = vmatpush1.bf16.msra.mxu0 0
        %2786 = vmatprep.subr.bf16.mxu0 0
        %2787 = vmatpush1.bf16.msra.mxu0 0
        %2788 = vmatprep.subr.bf16.mxu0 0
        %2789 = vmatpush1.bf16.msra.mxu0 0
        %2790 = vmatprep.subr.bf16.mxu0 0
        %2791 = vmatpush1.bf16.msra.mxu0 0
        %2792 = vmatprep.subr.bf16.mxu0 0
        %2793 = vmatpush1.bf16.msra.mxu0 0
        %2794 = vmatprep.subr.bf16.mxu0 0
        %2795 = vmatpush1.bf16.msra.mxu0 0
        %2796 = vmatprep.mubr.bf16.mxu0 0
        %2797 = vmatmul.mubr.bf16.gmra.mrb[0].mxu0 %v2762
        %v2798 = vpop.f32.mrb[0].mxu0
        %v2799 = vadd.f32 %v2747, %v2798
        %v2800 = vpop.f32.mrb[0].mxu0
        %v2801 = vpop.f32.mrb[0].mxu0
        %v2802 = vpop.f32.mrb[0].mxu0
        %2803 = vdwg.mxu0
        %v2804 = vld [vmem:[#allocation8] sm:$0x1]
        %v2805 = vld [vmem:[#allocation10] sm:$0x1]
        %vm2806 = vcmask 60416
        %v2807 = vsel %vm2806, %v2799, 0.0
        %2808 = vadd.xlane.f32.xlu0 %v2807
        %v2809 = vpop.xlane.xlu0 %2808
        %v2810 = vrcp.pop 8.0
        %v2811 = vmul.f32 %v2809, %v2810
        %v2812 = vsub.f32 %v2799, %v2811
        %v2813 = vmul.f32 %v2812, %v2812
        %v2814 = vsel %vm2806, %v2813, 0.0
        %2815 = vadd.xlane.f32.xlu0 %v2814
        %v2816 = vpop.xlane.xlu0 %2815
        %v2817 = vmul.f32 %v2816, %v2810
        %v2818 = vadd.f32 %v2817, 1e-05
        %v2819 = vrsqrt.pop %v2818
        %v2820 = vmul.f32 %v2812, %v2819
        %v2822 = vlaneseq
        %v2823 = vshrl.u32 %v2822, 7
        %v2824 = vsub.s32 0, %v2823
        %v2825 = vrot.slane %v2804, %v2824
        %v2827 = vmul.f32 %v2820, %v2825
        %v2829 = vlaneseq
        %v2830 = vshrl.u32 %v2829, 7
        %v2831 = vsub.s32 0, %v2830
        %v2832 = vrot.slane %v2805, %v2831
        %v2834 = vadd.f32 %v2827, %v2832
        %2835 = vst.msk [vmem:[%s1542] sm:$0xf] %vm2806, %v2834
        %v2836 = vld [vmem:[#allocation11] sm:$0x1]
        %v2837 = vld [vmem:[%s33] sm:$0xf]
        %v2838 = vld [vmem:[%s33 + $0x4] sm:$0xf]
        %v2839 = vld [vmem:[%s33 + $0x8] sm:$0xf]
        %v2840 = vld [vmem:[%s33 + $0xc] sm:$0xf]
        %v2841 = vld [vmem:[#allocation13] sm:$0x1]
        %v2842 = vld [vmem:[%s37] sm:$0xf]
        %v2843 = vld [vmem:[%s37 + $0x4] sm:$0xf]
        %v2844 = vld [vmem:[%s37 + $0x8] sm:$0xf]
        %v2845 = vld [vmem:[%s37 + $0xc] sm:$0xf]
        %v2846 = vld [vmem:[#allocation14] sm:$0x1]
        %v2847 = vld [vmem:[%s41] sm:$0xf]
        %v2848 = vld [vmem:[%s41 + $0x4] sm:$0xf]
        %v2849 = vld [vmem:[%s41 + $0x8] sm:$0xf]
        %v2850 = vld [vmem:[%s41 + $0xc] sm:$0xf]
        %v2851 = vld [vmem:[#allocation16] sm:$0x1]
        %v2852 = vld [vmem:[%s45] sm:$0xf]
        %v2853 = vld [vmem:[%s45 + $0x4] sm:$0xf]
        %v2854 = vld [vmem:[%s45 + $0x8] sm:$0xf]
        %v2855 = vld [vmem:[%s45 + $0xc] sm:$0xf]
        %v2856 = vld [vmem:[#allocation17] sm:$0x1]
        %v2857 = vpack.c.bf16 %v2836, %v2836
        %v2862 = vunpack.c.l.b16 %v2837
        %v2863 = vunpack.c.l.b16 %v2838
        %v2864 = vunpack.c.l.b16 %v2839
        %v2865 = vunpack.c.l.b16 %v2840
        %v2866 = vpack.c.b16 %v2863, %v2862
        %v2867 = vpack.c.b16 %v2865, %v2864
        %v2871 = vsel %vm1598, %v2857, 0
        %2873 = vmatprep.subr.bf16.mxu0 0
        %2874 = vmatpush1.bf16.msra.mxu0 %v2866
        %2875 = vmatprep.subr.bf16.mxu0 0
        %2876 = vmatpush1.bf16.msra.mxu0 %v2867
        %2877 = vmatprep.subr.bf16.mxu0 0
        %2878 = vmatpush1.bf16.msra.mxu0 0
        %2879 = vmatprep.subr.bf16.mxu0 0
        %2880 = vmatpush1.bf16.msra.mxu0 0
        %2881 = vmatprep.subr.bf16.mxu0 0
        %2882 = vmatpush1.bf16.msra.mxu0 0
        %2883 = vmatprep.subr.bf16.mxu0 0
        %2884 = vmatpush1.bf16.msra.mxu0 0
        %2885 = vmatprep.subr.bf16.mxu0 0
        %2886 = vmatpush1.bf16.msra.mxu0 0
        %2887 = vmatprep.subr.bf16.mxu0 0
        %2888 = vmatpush1.bf16.msra.mxu0 0
        %2889 = vmatprep.subr.bf16.mxu0 0
        %2890 = vmatpush1.bf16.msra.mxu0 0
        %2891 = vmatprep.subr.bf16.mxu0 0
        %2892 = vmatpush1.bf16.msra.mxu0 0
        %2893 = vmatprep.subr.bf16.mxu0 0
        %2894 = vmatpush1.bf16.msra.mxu0 0
        %2895 = vmatprep.subr.bf16.mxu0 0
        %2896 = vmatpush1.bf16.msra.mxu0 0
        %2897 = vmatprep.subr.bf16.mxu0 0
        %2898 = vmatpush1.bf16.msra.mxu0 0
        %2899 = vmatprep.subr.bf16.mxu0 0
        %2900 = vmatpush1.bf16.msra.mxu0 0
        %2901 = vmatprep.subr.bf16.mxu0 0
        %2902 = vmatpush1.bf16.msra.mxu0 0
        %2903 = vmatprep.subr.bf16.mxu0 0
        %2904 = vmatpush1.bf16.msra.mxu0 0
        %2905 = vmatprep.mubr.bf16.mxu0 0
        %2906 = vmatmul.mubr.bf16.gmra.mrb[0].mxu0 %v2871
        %v2907 = vpop.f32.mrb[0].mxu0
        %v2908 = vadd.f32 %v2841, %v2907
        %v2909 = vpop.f32.mrb[0].mxu0
        %v2910 = vpop.f32.mrb[0].mxu0
        %v2911 = vpop.f32.mrb[0].mxu0
        %2912 = vdwg.mxu0
        %v2914 = vlaneseq
        %v2915 = vshrl.u32 %v2914, 7
        %v2916 = vsub.s32 0, %v2915
        %v2917 = vrot.slane %v2846, %v2916
        %v2923 = vunpack.c.l.b16 %v2842
        %v2924 = vunpack.c.l.b16 %v2843
        %v2925 = vunpack.c.l.b16 %v2844
        %v2926 = vunpack.c.l.b16 %v2845
        %v2927 = vpack.c.b16 %v2924, %v2923
        %v2928 = vpack.c.b16 %v2926, %v2925
        %2931 = vmatprep.subr.bf16.mxu0 0
        %2932 = vmatpush1.bf16.msra.mxu0 %v2927
        %2933 = vmatprep.subr.bf16.mxu0 0
        %2934 = vmatpush1.bf16.msra.mxu0 %v2928
        %2935 = vmatprep.subr.bf16.mxu0 0
        %2936 = vmatpush1.bf16.msra.mxu0 0
        %2937 = vmatprep.subr.bf16.mxu0 0
        %2938 = vmatpush1.bf16.msra.mxu0 0
        %2939 = vmatprep.subr.bf16.mxu0 0
        %2940 = vmatpush1.bf16.msra.mxu0 0
        %2941 = vmatprep.subr.bf16.mxu0 0
        %2942 = vmatpush1.bf16.msra.mxu0 0
        %2943 = vmatprep.subr.bf16.mxu0 0
        %2944 = vmatpush1.bf16.msra.mxu0 0
        %2945 = vmatprep.subr.bf16.mxu0 0
        %2946 = vmatpush1.bf16.msra.mxu0 0
        %2947 = vmatprep.subr.bf16.mxu0 0
        %2948 = vmatpush1.bf16.msra.mxu0 0
        %2949 = vmatprep.subr.bf16.mxu0 0
        %2950 = vmatpush1.bf16.msra.mxu0 0
        %2951 = vmatprep.subr.bf16.mxu0 0
        %2952 = vmatpush1.bf16.msra.mxu0 0
        %2953 = vmatprep.subr.bf16.mxu0 0
        %2954 = vmatpush1.bf16.msra.mxu0 0
        %2955 = vmatprep.subr.bf16.mxu0 0
        %2956 = vmatpush1.bf16.msra.mxu0 0
        %2957 = vmatprep.subr.bf16.mxu0 0
        %2958 = vmatpush1.bf16.msra.mxu0 0
        %2959 = vmatprep.subr.bf16.mxu0 0
        %2960 = vmatpush1.bf16.msra.mxu0 0
        %2961 = vmatprep.subr.bf16.mxu0 0
        %2962 = vmatpush1.bf16.msra.mxu0 0
        %2963 = vmatprep.mubr.bf16.mxu0 0
        %2964 = vmatmul.mubr.bf16.gmra.mrb[0].mxu0 %v2694
        %v2965 = vpop.f32.mrb[0].mxu0
        %v2966 = vadd.f32 %v2917, %v2965
        %v2967 = vpop.f32.mrb[0].mxu0
        %v2968 = vpop.f32.mrb[0].mxu0
        %v2969 = vpop.f32.mrb[0].mxu0
        %2970 = vdwg.mxu0
        %v2972 = vlaneseq
        %v2973 = vshrl.u32 %v2972, 7
        %v2974 = vsub.s32 0, %v2973
        %v2975 = vrot.slane %v2851, %v2974
        %v2981 = vunpack.c.l.b16 %v2847
        %v2982 = vunpack.c.l.b16 %v2848
        %v2983 = vunpack.c.l.b16 %v2849
        %v2984 = vunpack.c.l.b16 %v2850
        %v2985 = vpack.c.b16 %v2982, %v2981
        %v2986 = vpack.c.b16 %v2984, %v2983
        %2989 = vmatprep.subr.bf16.mxu0 0
        %2990 = vmatpush1.bf16.msra.mxu0 %v2985
        %2991 = vmatprep.subr.bf16.mxu0 0
        %2992 = vmatpush1.bf16.msra.mxu0 %v2986
        %2993 = vmatprep.subr.bf16.mxu0 0
        %2994 = vmatpush1.bf16.msra.mxu0 0
        %2995 = vmatprep.subr.bf16.mxu0 0
        %2996 = vmatpush1.bf16.msra.mxu0 0
        %2997 = vmatprep.subr.bf16.mxu0 0
        %2998 = vmatpush1.bf16.msra.mxu0 0
        %2999 = vmatprep.subr.bf16.mxu0 0
        %3000 = vmatpush1.bf16.msra.mxu0 0
        %3001 = vmatprep.subr.bf16.mxu0 0
        %3002 = vmatpush1.bf16.msra.mxu0 0
        %3003 = vmatprep.subr.bf16.mxu0 0
        %3004 = vmatpush1.bf16.msra.mxu0 0
        %3005 = vmatprep.subr.bf16.mxu0 0
        %3006 = vmatpush1.bf16.msra.mxu0 0
        %3007 = vmatprep.subr.bf16.mxu0 0
        %3008 = vmatpush1.bf16.msra.mxu0 0
        %3009 = vmatprep.subr.bf16.mxu0 0
        %3010 = vmatpush1.bf16.msra.mxu0 0
        %3011 = vmatprep.subr.bf16.mxu0 0
        %3012 = vmatpush1.bf16.msra.mxu0 0
        %3013 = vmatprep.subr.bf16.mxu0 0
        %3014 = vmatpush1.bf16.msra.mxu0 0
        %3015 = vmatprep.subr.bf16.mxu0 0
        %3016 = vmatpush1.bf16.msra.mxu0 0
        %3017 = vmatprep.subr.bf16.mxu0 0
        %3018 = vmatpush1.bf16.msra.mxu0 0
        %3019 = vmatprep.subr.bf16.mxu0 0
        %3020 = vmatpush1.bf16.msra.mxu0 0
        %3021 = vmatprep.mubr.bf16.mxu0 0
        %3022 = vmatmul.mubr.bf16.gmra.mrb[0].mxu0 %v2694
        %v3023 = vpop.f32.mrb[0].mxu0
        %v3024 = vadd.f32 %v2975, %v3023
        %v3025 = vpop.f32.mrb[0].mxu0
        %v3026 = vpop.f32.mrb[0].mxu0
        %v3027 = vpop.f32.mrb[0].mxu0
        %3028 = vdwg.mxu0
        %v3029 = vpack.c.bf16 %v2908, %v2908
        %v3030 = vpack.c.bf16 %v2966, %v2966
        %v3032 = vsel %vm1598, %v3029, 0
        %v3035 = vsel %vm1598, %v3030, 0
        %3037 = vmatprep.subr.bf16.mxu0 0
        %3038 = vmatpush1.bf16.xpose.msra.mxu0 %v3035
        %3039 = vmatprep.subr.bf16.mxu0 0
        %3040 = vmatpush1.bf16.xpose.msra.mxu0 0
        %3041 = vmatprep.subr.bf16.mxu0 0
        %3042 = vmatpush1.bf16.xpose.msra.mxu0 0
        %3043 = vmatprep.subr.bf16.mxu0 0
        %3044 = vmatpush1.bf16.xpose.msra.mxu0 0
        %3045 = vmatprep.subr.bf16.mxu0 0
        %3046 = vmatpush1.bf16.xpose.msra.mxu0 0
        %3047 = vmatprep.subr.bf16.mxu0 0
        %3048 = vmatpush1.bf16.xpose.msra.mxu0 0
        %3049 = vmatprep.subr.bf16.mxu0 0
        %3050 = vmatpush1.bf16.xpose.msra.mxu0 0
        %3051 = vmatprep.subr.bf16.mxu0 0
        %3052 = vmatpush1.bf16.xpose.msra.mxu0 0
        %3053 = vmatprep.subr.bf16.mxu0 0
        %3054 = vmatpush1.bf16.xpose.msra.mxu0 0
        %3055 = vmatprep.subr.bf16.mxu0 0
        %3056 = vmatpush1.bf16.xpose.msra.mxu0 0
        %3057 = vmatprep.subr.bf16.mxu0 0
        %3058 = vmatpush1.bf16.xpose.msra.mxu0 0
        %3059 = vmatprep.subr.bf16.mxu0 0
        %3060 = vmatpush1.bf16.xpose.msra.mxu0 0
        %3061 = vmatprep.subr.bf16.mxu0 0
        %3062 = vmatpush1.bf16.xpose.msra.mxu0 0
        %3063 = vmatprep.subr.bf16.mxu0 0
        %3064 = vmatpush1.bf16.xpose.msra.mxu0 0
        %3065 = vmatprep.subr.bf16.mxu0 0
        %3066 = vmatpush1.bf16.xpose.msra.mxu0 0
        %3067 = vmatprep.subr.bf16.mxu0 0
        %3068 = vmatpush1.bf16.xpose.msra.mxu0 0
        %3069 = vmatprep.mubr.bf16.mxu0 0
        %3070 = vmatmul.mubr.bf16.gmra.mrb[0].mxu0 %v3032
        %v3071 = vpop.f32.mrb[0].mxu0
        %v3072 = vadd.f32 0.0, %v3071
        %v3073 = vpop.f32.mrb[0].mxu0
        %v3074 = vpop.f32.mrb[0].mxu0
        %v3075 = vpop.f32.mrb[0].mxu0
        %3076 = vdwg.mxu0
        %vm3077 = vcmask 24576
        %v3078 = vsel %vm3077, %v3072, -inf
        %3079 = vmax.xlane.f32.xlu0 %v3078
        %v3080 = vpop.xlane.xlu0 %3079
        %v3081 = vsub.f32 %v3072, %v3080
        %v3082 = vmul.f32 %v3081, 1.442695
        %v3083 = vpow.pop %v3082
        %v3084 = vsel %vm3077, %v3083, 0.0
        %3085 = vadd.xlane.f32.xlu0 %v3084
        %v3086 = vpop.xlane.xlu0 %3085
        %v3087 = vrcp.pop %v3086
        %v3088 = vmul.f32 %v3083, %v3087
        %v3089 = vpack.c.bf16 %v3088, %v3088
        %v3090 = vpack.c.bf16 %v3024, %v3024
        %vm3091 = vcmask 31744
        %v3093 = vsel %vm3091, %v3089, 0
        %v3096 = vsel %vm2598, %v3090, 0
        %3098 = vmatprep.subr.bf16.mxu0 0
        %3099 = vmatpush1.bf16.msra.mxu0 %v3096
        %3100 = vmatprep.subr.bf16.mxu0 0
        %3101 = vmatpush1.bf16.msra.mxu0 0
        %3102 = vmatprep.subr.bf16.mxu0 0
        %3103 = vmatpush1.bf16.msra.mxu0 0
        %3104 = vmatprep.subr.bf16.mxu0 0
        %3105 = vmatpush1.bf16.msra.mxu0 0
        %3106 = vmatprep.subr.bf16.mxu0 0
        %3107 = vmatpush1.bf16.msra.mxu0 0
        %3108 = vmatprep.subr.bf16.mxu0 0
        %3109 = vmatpush1.bf16.msra.mxu0 0
        %3110 = vmatprep.subr.bf16.mxu0 0
        %3111 = vmatpush1.bf16.msra.mxu0 0
        %3112 = vmatprep.subr.bf16.mxu0 0
        %3113 = vmatpush1.bf16.msra.mxu0 0
        %3114 = vmatprep.subr.bf16.mxu0 0
        %3115 = vmatpush1.bf16.msra.mxu0 0
        %3116 = vmatprep.subr.bf16.mxu0 0
        %3117 = vmatpush1.bf16.msra.mxu0 0
        %3118 = vmatprep.subr.bf16.mxu0 0
        %3119 = vmatpush1.bf16.msra.mxu0 0
        %3120 = vmatprep.subr.bf16.mxu0 0
        %3121 = vmatpush1.bf16.msra.mxu0 0
        %3122 = vmatprep.subr.bf16.mxu0 0
        %3123 = vmatpush1.bf16.msra.mxu0 0
        %3124 = vmatprep.subr.bf16.mxu0 0
        %3125 = vmatpush1.bf16.msra.mxu0 0
        %3126 = vmatprep.subr.bf16.mxu0 0
        %3127 = vmatpush1.bf16.msra.mxu0 0
        %3128 = vmatprep.subr.bf16.mxu0 0
        %3129 = vmatpush1.bf16.msra.mxu0 0
        %3130 = vmatprep.mubr.bf16.mxu0 0
        %3131 = vmatmul.mubr.bf16.gmra.mrb[0].mxu0 %v3093
        %v3132 = vpop.f32.mrb[0].mxu0
        %v3133 = vadd.f32 0.0, %v3132
        %v3134 = vpop.f32.mrb[0].mxu0
        %v3135 = vpop.f32.mrb[0].mxu0
        %v3136 = vpop.f32.mrb[0].mxu0
        %3137 = vdwg.mxu0
        %v3138 = vpack.c.bf16 %v3133, %v3133
        %v3143 = vunpack.c.l.b16 %v2852
        %v3144 = vunpack.c.l.b16 %v2853
        %v3145 = vunpack.c.l.b16 %v2854
        %v3146 = vunpack.c.l.b16 %v2855
        %v3147 = vpack.c.b16 %v3144, %v3143
        %v3148 = vpack.c.b16 %v3146, %v3145
        %v3152 = vsel %vm1598, %v3138, 0
        %3154 = vmatprep.subr.bf16.mxu0 0
        %3155 = vmatpush1.bf16.msra.mxu0 %v3147
        %3156 = vmatprep.subr.bf16.mxu0 0
        %3157 = vmatpush1.bf16.msra.mxu0 %v3148
        %3158 = vmatprep.subr.bf16.mxu0 0
        %3159 = vmatpush1.bf16.msra.mxu0 0
        %3160 = vmatprep.subr.bf16.mxu0 0
        %3161 = vmatpush1.bf16.msra.mxu0 0
        %3162 = vmatprep.subr.bf16.mxu0 0
        %3163 = vmatpush1.bf16.msra.mxu0 0
        %3164 = vmatprep.subr.bf16.mxu0 0
        %3165 = vmatpush1.bf16.msra.mxu0 0
        %3166 = vmatprep.subr.bf16.mxu0 0
        %3167 = vmatpush1.bf16.msra.mxu0 0
        %3168 = vmatprep.subr.bf16.mxu0 0
        %3169 = vmatpush1.bf16.msra.mxu0 0
        %3170 = vmatprep.subr.bf16.mxu0 0
        %3171 = vmatpush1.bf16.msra.mxu0 0
        %3172 = vmatprep.subr.bf16.mxu0 0
        %3173 = vmatpush1.bf16.msra.mxu0 0
        %3174 = vmatprep.subr.bf16.mxu0 0
        %3175 = vmatpush1.bf16.msra.mxu0 0
        %3176 = vmatprep.subr.bf16.mxu0 0
        %3177 = vmatpush1.bf16.msra.mxu0 0
        %3178 = vmatprep.subr.bf16.mxu0 0
        %3179 = vmatpush1.bf16.msra.mxu0 0
        %3180 = vmatprep.subr.bf16.mxu0 0
        %3181 = vmatpush1.bf16.msra.mxu0 0
        %3182 = vmatprep.subr.bf16.mxu0 0
        %3183 = vmatpush1.bf16.msra.mxu0 0
        %3184 = vmatprep.subr.bf16.mxu0 0
        %3185 = vmatpush1.bf16.msra.mxu0 0
        %3186 = vmatprep.mubr.bf16.mxu0 0
        %3187 = vmatmul.mubr.bf16.gmra.mrb[0].mxu0 %v3152
        %v3188 = vpop.f32.mrb[0].mxu0
        %v3189 = vadd.f32 %v2856, %v3188
        %v3190 = vpop.f32.mrb[0].mxu0
        %v3191 = vpop.f32.mrb[0].mxu0
        %v3192 = vpop.f32.mrb[0].mxu0
        %3193 = vdwg.mxu0
        %v3194 = vld [vmem:[#allocation19] sm:$0x1]
        %v3195 = vld [vmem:[#allocation20] sm:$0x1]
        %vm3196 = vcmask 253952
        %v3197 = vsel %vm3196, %v3189, 0.0
        %3198 = vadd.xlane.f32.xlu0 %v3197
        %v3199 = vpop.xlane.xlu0 %3198
        %v3200 = vrcp.pop 32.0
        %v3201 = vmul.f32 %v3199, %v3200
        %v3202 = vsub.f32 %v3189, %v3201
        %v3203 = vmul.f32 %v3202, %v3202
        %v3204 = vsel %vm3196, %v3203, 0.0
        %3205 = vadd.xlane.f32.xlu0 %v3204
        %v3206 = vpop.xlane.xlu0 %3205
        %v3207 = vmul.f32 %v3206, %v3200
        %v3208 = vadd.f32 %v3207, 1e-05
        %v3209 = vrsqrt.pop %v3208
        %v3210 = vmul.f32 %v3202, %v3209
        %v3211 = vmul.f32 %v3210, %v3194
        %v3212 = vadd.f32 %v3211, %v3195
        %3213 = vst.msk [vmem:[%s1548] sm:$0x1] %vm3196, %v3212
        %v3214 = vld [vmem:[%s53] sm:$0x7]
        %v3215 = vld [vmem:[%s55] sm:$0xf]
        %v3216 = vld [vmem:[%s55 + $0x4] sm:$0xf]
        %v3217 = vld [vmem:[%s55 + $0x8] sm:$0xf]
        %v3218 = vld [vmem:[%s55 + $0xc] sm:$0xf]
        %v3219 = vld [vmem:[#allocation22] sm:$0x1]
        %v3220 = vld [vmem:[%s59] sm:$0xf]
        %v3221 = vld [vmem:[%s59 + $0x4] sm:$0xf]
        %v3222 = vld [vmem:[%s59 + $0x8] sm:$0xf]
        %v3223 = vld [vmem:[%s59 + $0xc] sm:$0xf]
        %v3224 = vld [vmem:[#allocation23] sm:$0x1]
        %v3225 = vld [vmem:[%s63] sm:$0xf]
        %v3226 = vld [vmem:[%s63 + $0x4] sm:$0xf]
        %v3227 = vld [vmem:[%s63 + $0x8] sm:$0xf]
        %v3228 = vld [vmem:[%s63 + $0xc] sm:$0xf]
        %v3229 = vld [vmem:[#allocation25] sm:$0x1]
        %v3230 = vld [vmem:[%s67] sm:$0xf]
        %v3231 = vld [vmem:[%s67 + $0x4] sm:$0xf]
        %v3232 = vld [vmem:[%s67 + $0x8] sm:$0xf]
        %v3233 = vld [vmem:[%s67 + $0xc] sm:$0xf]
        %v3234 = vld [vmem:[#allocation26] sm:$0x1]
        %v3235 = vpack.c.bf16 %v3214, %v3214
        %v3237 = vlaneseq
        %v3238 = vshrl.u32 %v3237, 7
        %v3239 = vsub.s32 0, %v3238
        %v3240 = vrot.slane %v3219, %v3239
        %v3246 = vunpack.c.l.b16 %v3215
        %v3247 = vunpack.c.l.b16 %v3216
        %v3248 = vunpack.c.l.b16 %v3217
        %v3249 = vunpack.c.l.b16 %v3218
        %v3250 = vpack.c.b16 %v3247, %v3246
        %v3251 = vpack.c.b16 %v3249, %v3248
        %v3255 = vsel %vm1598, %v3235, 0
        %3257 = vmatprep.subr.bf16.mxu0 0
        %3258 = vmatpush1.bf16.msra.mxu0 %v3250
        %3259 = vmatprep.subr.bf16.mxu0 0
        %3260 = vmatpush1.bf16.msra.mxu0 %v3251
        %3261 = vmatprep.subr.bf16.mxu0 0
        %3262 = vmatpush1.bf16.msra.mxu0 0
        %3263 = vmatprep.subr.bf16.mxu0 0
        %3264 = vmatpush1.bf16.msra.mxu0 0
        %3265 = vmatprep.subr.bf16.mxu0 0
        %3266 = vmatpush1.bf16.msra.mxu0 0
        %3267 = vmatprep.subr.bf16.mxu0 0
        %3268 = vmatpush1.bf16.msra.mxu0 0
        %3269 = vmatprep.subr.bf16.mxu0 0
        %3270 = vmatpush1.bf16.msra.mxu0 0
        %3271 = vmatprep.subr.bf16.mxu0 0
        %3272 = vmatpush1.bf16.msra.mxu0 0
        %3273 = vmatprep.subr.bf16.mxu0 0
        %3274 = vmatpush1.bf16.msra.mxu0 0
        %3275 = vmatprep.subr.bf16.mxu0 0
        %3276 = vmatpush1.bf16.msra.mxu0 0
        %3277 = vmatprep.subr.bf16.mxu0 0
        %3278 = vmatpush1.bf16.msra.mxu0 0
        %3279 = vmatprep.subr.bf16.mxu0 0
        %3280 = vmatpush1.bf16.msra.mxu0 0
        %3281 = vmatprep.subr.bf16.mxu0 0
        %3282 = vmatpush1.bf16.msra.mxu0 0
        %3283 = vmatprep.subr.bf16.mxu0 0
        %3284 = vmatpush1.bf16.msra.mxu0 0
        %3285 = vmatprep.subr.bf16.mxu0 0
        %3286 = vmatpush1.bf16.msra.mxu0 0
        %3287 = vmatprep.subr.bf16.mxu0 0
        %3288 = vmatpush1.bf16.msra.mxu0 0
        %3289 = vmatprep.mubr.bf16.mxu0 0
        %3290 = vmatmul.mubr.bf16.gmra.mrb[0].mxu0 %v3255
        %v3291 = vpop.f32.mrb[0].mxu0
        %v3292 = vadd.f32 %v3240, %v3291
        %v3293 = vpop.f32.mrb[0].mxu0
        %v3294 = vpop.f32.mrb[0].mxu0
        %v3295 = vpop.f32.mrb[0].mxu0
        %3296 = vdwg.mxu0
        %v3298 = vlaneseq
        %v3299 = vshrl.u32 %v3298, 7
        %v3300 = vsub.s32 0, %v3299
        %v3301 = vrot.slane %v3224, %v3300
        %v3307 = vunpack.c.l.b16 %v3220
        %v3308 = vunpack.c.l.b16 %v3221
        %v3309 = vunpack.c.l.b16 %v3222
        %v3310 = vunpack.c.l.b16 %v3223
        %v3311 = vpack.c.b16 %v3308, %v3307
        %v3312 = vpack.c.b16 %v3310, %v3309
        %3315 = vmatprep.subr.bf16.mxu0 0
        %3316 = vmatpush1.bf16.msra.mxu0 %v3311
        %3317 = vmatprep.subr.bf16.mxu0 0
        %3318 = vmatpush1.bf16.msra.mxu0 %v3312
        %3319 = vmatprep.subr.bf16.mxu0 0
        %3320 = vmatpush1.bf16.msra.mxu0 0
        %3321 = vmatprep.subr.bf16.mxu0 0
        %3322 = vmatpush1.bf16.msra.mxu0 0
        %3323 = vmatprep.subr.bf16.mxu0 0
        %3324 = vmatpush1.bf16.msra.mxu0 0
        %3325 = vmatprep.subr.bf16.mxu0 0
        %3326 = vmatpush1.bf16.msra.mxu0 0
        %3327 = vmatprep.subr.bf16.mxu0 0
        %3328 = vmatpush1.bf16.msra.mxu0 0
        %3329 = vmatprep.subr.bf16.mxu0 0
        %3330 = vmatpush1.bf16.msra.mxu0 0
        %3331 = vmatprep.subr.bf16.mxu0 0
        %3332 = vmatpush1.bf16.msra.mxu0 0
        %3333 = vmatprep.subr.bf16.mxu0 0
        %3334 = vmatpush1.bf16.msra.mxu0 0
        %3335 = vmatprep.subr.bf16.mxu0 0
        %3336 = vmatpush1.bf16.msra.mxu0 0
        %3337 = vmatprep.subr.bf16.mxu0 0
        %3338 = vmatpush1.bf16.msra.mxu0 0
        %3339 = vmatprep.subr.bf16.mxu0 0
        %3340 = vmatpush1.bf16.msra.mxu0 0
        %3341 = vmatprep.subr.bf16.mxu0 0
        %3342 = vmatpush1.bf16.msra.mxu0 0
        %3343 = vmatprep.subr.bf16.mxu0 0
        %3344 = vmatpush1.bf16.msra.mxu0 0
        %3345 = vmatprep.subr.bf16.mxu0 0
        %3346 = vmatpush1.bf16.msra.mxu0 0
        %3347 = vmatprep.mubr.bf16.mxu0 0
        %3348 = vmatmul.mubr.bf16.gmra.mrb[0].mxu0 %v2694
        %v3349 = vpop.f32.mrb[0].mxu0
        %v3350 = vadd.f32 %v3301, %v3349
        %v3351 = vpop.f32.mrb[0].mxu0
        %v3352 = vpop.f32.mrb[0].mxu0
        %v3353 = vpop.f32.mrb[0].mxu0
        %3354 = vdwg.mxu0
        %v3356 = vlaneseq
        %v3357 = vshrl.u32 %v3356, 7
        %v3358 = vsub.s32 0, %v3357
        %v3359 = vrot.slane %v3229, %v3358
        %v3365 = vunpack.c.l.b16 %v3225
        %v3366 = vunpack.c.l.b16 %v3226
        %v3367 = vunpack.c.l.b16 %v3227
        %v3368 = vunpack.c.l.b16 %v3228
        %v3369 = vpack.c.b16 %v3366, %v3365
        %v3370 = vpack.c.b16 %v3368, %v3367
        %3373 = vmatprep.subr.bf16.mxu0 0
        %3374 = vmatpush1.bf16.msra.mxu0 %v3369
        %3375 = vmatprep.subr.bf16.mxu0 0
        %3376 = vmatpush1.bf16.msra.mxu0 %v3370
        %3377 = vmatprep.subr.bf16.mxu0 0
        %3378 = vmatpush1.bf16.msra.mxu0 0
        %3379 = vmatprep.subr.bf16.mxu0 0
        %3380 = vmatpush1.bf16.msra.mxu0 0
        %3381 = vmatprep.subr.bf16.mxu0 0
        %3382 = vmatpush1.bf16.msra.mxu0 0
        %3383 = vmatprep.subr.bf16.mxu0 0
        %3384 = vmatpush1.bf16.msra.mxu0 0
        %3385 = vmatprep.subr.bf16.mxu0 0
        %3386 = vmatpush1.bf16.msra.mxu0 0
        %3387 = vmatprep.subr.bf16.mxu0 0
        %3388 = vmatpush1.bf16.msra.mxu0 0
        %3389 = vmatprep.subr.bf16.mxu0 0
        %3390 = vmatpush1.bf16.msra.mxu0 0
        %3391 = vmatprep.subr.bf16.mxu0 0
        %3392 = vmatpush1.bf16.msra.mxu0 0
        %3393 = vmatprep.subr.bf16.mxu0 0
        %3394 = vmatpush1.bf16.msra.mxu0 0
        %3395 = vmatprep.subr.bf16.mxu0 0
        %3396 = vmatpush1.bf16.msra.mxu0 0
        %3397 = vmatprep.subr.bf16.mxu0 0
        %3398 = vmatpush1.bf16.msra.mxu0 0
        %3399 = vmatprep.subr.bf16.mxu0 0
        %3400 = vmatpush1.bf16.msra.mxu0 0
        %3401 = vmatprep.subr.bf16.mxu0 0
        %3402 = vmatpush1.bf16.msra.mxu0 0
        %3403 = vmatprep.subr.bf16.mxu0 0
        %3404 = vmatpush1.bf16.msra.mxu0 0
        %3405 = vmatprep.mubr.bf16.mxu0 0
        %3406 = vmatmul.mubr.bf16.gmra.mrb[0].mxu0 %v2694
        %v3407 = vpop.f32.mrb[0].mxu0
        %v3408 = vadd.f32 %v3359, %v3407
        %v3409 = vpop.f32.mrb[0].mxu0
        %v3410 = vpop.f32.mrb[0].mxu0
        %v3411 = vpop.f32.mrb[0].mxu0
        %3412 = vdwg.mxu0
        %v3413 = vpack.c.bf16 %v3292, %v3292
        %v3414 = vpack.c.bf16 %v3350, %v3350
        %v3416 = vsel %vm1598, %v3413, 0
        %v3419 = vsel %vm1598, %v3414, 0
        %3421 = vmatprep.subr.bf16.mxu0 0
        %3422 = vmatpush1.bf16.xpose.msra.mxu0 %v3419
        %3423 = vmatprep.subr.bf16.mxu0 0
        %3424 = vmatpush1.bf16.xpose.msra.mxu0 0
        %3425 = vmatprep.subr.bf16.mxu0 0
        %3426 = vmatpush1.bf16.xpose.msra.mxu0 0
        %3427 = vmatprep.subr.bf16.mxu0 0
        %3428 = vmatpush1.bf16.xpose.msra.mxu0 0
        %3429 = vmatprep.subr.bf16.mxu0 0
        %3430 = vmatpush1.bf16.xpose.msra.mxu0 0
        %3431 = vmatprep.subr.bf16.mxu0 0
        %3432 = vmatpush1.bf16.xpose.msra.mxu0 0
        %3433 = vmatprep.subr.bf16.mxu0 0
        %3434 = vmatpush1.bf16.xpose.msra.mxu0 0
        %3435 = vmatprep.subr.bf16.mxu0 0
        %3436 = vmatpush1.bf16.xpose.msra.mxu0 0
        %3437 = vmatprep.subr.bf16.mxu0 0
        %3438 = vmatpush1.bf16.xpose.msra.mxu0 0
        %3439 = vmatprep.subr.bf16.mxu0 0
        %3440 = vmatpush1.bf16.xpose.msra.mxu0 0
        %3441 = vmatprep.subr.bf16.mxu0 0
        %3442 = vmatpush1.bf16.xpose.msra.mxu0 0
        %3443 = vmatprep.subr.bf16.mxu0 0
        %3444 = vmatpush1.bf16.xpose.msra.mxu0 0
        %3445 = vmatprep.subr.bf16.mxu0 0
        %3446 = vmatpush1.bf16.xpose.msra.mxu0 0
        %3447 = vmatprep.subr.bf16.mxu0 0
        %3448 = vmatpush1.bf16.xpose.msra.mxu0 0
        %3449 = vmatprep.subr.bf16.mxu0 0
        %3450 = vmatpush1.bf16.xpose.msra.mxu0 0
        %3451 = vmatprep.subr.bf16.mxu0 0
        %3452 = vmatpush1.bf16.xpose.msra.mxu0 0
        %3453 = vmatprep.mubr.bf16.mxu0 0
        %3454 = vmatmul.mubr.bf16.gmra.mrb[0].mxu0 %v3416
        %v3455 = vpop.f32.mrb[0].mxu0
        %v3456 = vadd.f32 0.0, %v3455
        %v3457 = vpop.f32.mrb[0].mxu0
        %v3458 = vpop.f32.mrb[0].mxu0
        %v3459 = vpop.f32.mrb[0].mxu0
        %3460 = vdwg.mxu0
        %vm3461 = vcmask 26624
        %v3462 = vsel %vm3461, %v3456, -inf
        %3463 = vmax.xlane.f32.xlu0 %v3462
        %v3464 = vpop.xlane.xlu0 %3463
        %v3465 = vsub.f32 %v3456, %v3464
        %v3466 = vmul.f32 %v3465, 1.442695
        %v3467 = vpow.pop %v3466
        %v3468 = vsel %vm3461, %v3467, 0.0
        %3469 = vadd.xlane.f32.xlu0 %v3468
        %v3470 = vpop.xlane.xlu0 %3469
        %v3471 = vrcp.pop %v3470
        %v3472 = vmul.f32 %v3467, %v3471
        %v3473 = vpack.c.bf16 %v3472, %v3472
        %v3474 = vpack.c.bf16 %v3408, %v3408
        %v3476 = vsel %vm3091, %v3473, 0
        %v3479 = vsel %vm2598, %v3474, 0
        %3481 = vmatprep.subr.bf16.mxu0 0
        %3482 = vmatpush1.bf16.msra.mxu0 %v3479
        %3483 = vmatprep.subr.bf16.mxu0 0
        %3484 = vmatpush1.bf16.msra.mxu0 0
        %3485 = vmatprep.subr.bf16.mxu0 0
        %3486 = vmatpush1.bf16.msra.mxu0 0
        %3487 = vmatprep.subr.bf16.mxu0 0
        %3488 = vmatpush1.bf16.msra.mxu0 0
        %3489 = vmatprep.subr.bf16.mxu0 0
        %3490 = vmatpush1.bf16.msra.mxu0 0
        %3491 = vmatprep.subr.bf16.mxu0 0
        %3492 = vmatpush1.bf16.msra.mxu0 0
        %3493 = vmatprep.subr.bf16.mxu0 0
        %3494 = vmatpush1.bf16.msra.mxu0 0
        %3495 = vmatprep.subr.bf16.mxu0 0
        %3496 = vmatpush1.bf16.msra.mxu0 0
        %3497 = vmatprep.subr.bf16.mxu0 0
        %3498 = vmatpush1.bf16.msra.mxu0 0
        %3499 = vmatprep.subr.bf16.mxu0 0
        %3500 = vmatpush1.bf16.msra.mxu0 0
        %3501 = vmatprep.subr.bf16.mxu0 0
        %3502 = vmatpush1.bf16.msra.mxu0 0
        %3503 = vmatprep.subr.bf16.mxu0 0
        %3504 = vmatpush1.bf16.msra.mxu0 0
        %3505 = vmatprep.subr.bf16.mxu0 0
        %3506 = vmatpush1.bf16.msra.mxu0 0
        %3507 = vmatprep.subr.bf16.mxu0 0
        %3508 = vmatpush1.bf16.msra.mxu0 0
        %3509 = vmatprep.subr.bf16.mxu0 0
        %3510 = vmatpush1.bf16.msra.mxu0 0
        %3511 = vmatprep.subr.bf16.mxu0 0
        %3512 = vmatpush1.bf16.msra.mxu0 0
        %3513 = vmatprep.mubr.bf16.mxu0 0
        %3514 = vmatmul.mubr.bf16.gmra.mrb[0].mxu0 %v3476
        %v3515 = vpop.f32.mrb[0].mxu0
        %v3516 = vadd.f32 0.0, %v3515
        %v3517 = vpop.f32.mrb[0].mxu0
        %v3518 = vpop.f32.mrb[0].mxu0
        %v3519 = vpop.f32.mrb[0].mxu0
        %3520 = vdwg.mxu0
        %v3521 = vpack.c.bf16 %v3516, %v3516
        %v3523 = vlaneseq
        %v3524 = vshrl.u32 %v3523, 7
        %v3525 = vsub.s32 0, %v3524
        %v3526 = vrot.slane %v3234, %v3525
        %v3532 = vunpack.c.l.b16 %v3230
        %v3533 = vunpack.c.l.b16 %v3231
        %v3534 = vunpack.c.l.b16 %v3232
        %v3535 = vunpack.c.l.b16 %v3233
        %v3536 = vpack.c.b16 %v3533, %v3532
        %v3537 = vpack.c.b16 %v3535, %v3534
        %v3541 = vsel %vm1598, %v3521, 0
        %3543 = vmatprep.subr.bf16.mxu0 0
        %3544 = vmatpush1.bf16.msra.mxu0 %v3536
        %3545 = vmatprep.subr.bf16.mxu0 0
        %3546 = vmatpush1.bf16.msra.mxu0 %v3537
        %3547 = vmatprep.subr.bf16.mxu0 0
        %3548 = vmatpush1.bf16.msra.mxu0 0
        %3549 = vmatprep.subr.bf16.mxu0 0
        %3550 = vmatpush1.bf16.msra.mxu0 0
        %3551 = vmatprep.subr.bf16.mxu0 0
        %3552 = vmatpush1.bf16.msra.mxu0 0
        %3553 = vmatprep.subr.bf16.mxu0 0
        %3554 = vmatpush1.bf16.msra.mxu0 0
        %3555 = vmatprep.subr.bf16.mxu0 0
        %3556 = vmatpush1.bf16.msra.mxu0 0
        %3557 = vmatprep.subr.bf16.mxu0 0
        %3558 = vmatpush1.bf16.msra.mxu0 0
        %3559 = vmatprep.subr.bf16.mxu0 0
        %3560 = vmatpush1.bf16.msra.mxu0 0
        %3561 = vmatprep.subr.bf16.mxu0 0
        %3562 = vmatpush1.bf16.msra.mxu0 0
        %3563 = vmatprep.subr.bf16.mxu0 0
        %3564 = vmatpush1.bf16.msra.mxu0 0
        %3565 = vmatprep.subr.bf16.mxu0 0
        %3566 = vmatpush1.bf16.msra.mxu0 0
        %3567 = vmatprep.subr.bf16.mxu0 0
        %3568 = vmatpush1.bf16.msra.mxu0 0
        %3569 = vmatprep.subr.bf16.mxu0 0
        %3570 = vmatpush1.bf16.msra.mxu0 0
        %3571 = vmatprep.subr.bf16.mxu0 0
        %3572 = vmatpush1.bf16.msra.mxu0 0
        %3573 = vmatprep.subr.bf16.mxu0 0
        %3574 = vmatpush1.bf16.msra.mxu0 0
        %3575 = vmatprep.mubr.bf16.mxu0 0
        %3576 = vmatmul.mubr.bf16.gmra.mrb[0].mxu0 %v3541
        %v3577 = vpop.f32.mrb[0].mxu0
        %v3578 = vadd.f32 %v3526, %v3577
        %v3579 = vpop.f32.mrb[0].mxu0
        %v3580 = vpop.f32.mrb[0].mxu0
        %v3581 = vpop.f32.mrb[0].mxu0
        %3582 = vdwg.mxu0
        %v3583 = vld [vmem:[#allocation28] sm:$0x1]
        %v3584 = vld [vmem:[#allocation29] sm:$0x1]
        %vm3585 = vcmask 256000
        %v3586 = vsel %vm3585, %v3578, 0.0
        %3587 = vadd.xlane.f32.xlu0 %v3586
        %v3588 = vpop.xlane.xlu0 %3587
        %v3589 = vmul.f32 %v3588, %v3200
        %v3590 = vsub.f32 %v3578, %v3589
        %v3591 = vmul.f32 %v3590, %v3590
        %v3592 = vsel %vm3585, %v3591, 0.0
        %3593 = vadd.xlane.f32.xlu0 %v3592
        %v3594 = vpop.xlane.xlu0 %3593
        %v3595 = vmul.f32 %v3594, %v3200
        %v3596 = vadd.f32 %v3595, 1e-05
        %v3597 = vrsqrt.pop %v3596
        %v3598 = vmul.f32 %v3590, %v3597
        %v3600 = vlaneseq
        %v3601 = vshrl.u32 %v3600, 7
        %v3602 = vsub.s32 0, %v3601
        %v3603 = vrot.slane %v3583, %v3602
        %v3605 = vmul.f32 %v3598, %v3603
        %v3607 = vlaneseq
        %v3608 = vshrl.u32 %v3607, 7
        %v3609 = vsub.s32 0, %v3608
        %v3610 = vrot.slane %v3584, %v3609
        %v3612 = vadd.f32 %v3605, %v3610
        %v3613 = vld [vmem:[%s75] sm:$0xf]
        %v3614 = vld [vmem:[%s75 + $0x4] sm:$0xf]
        %v3615 = vld [vmem:[%s75 + $0x8] sm:$0xf]
        %v3616 = vld [vmem:[%s75 + $0xc] sm:$0xf]
        %v3617 = vpack.c.bf16 %v3612, %v3612
        %v3618 = vld [vmem:[#allocation31] sm:$0x1]
        %v3620 = vlaneseq
        %v3621 = vshrl.u32 %v3620, 7
        %v3622 = vsub.s32 0, %v3621
        %v3623 = vrot.slane %v3618, %v3622
        %v3629 = vunpack.c.l.b16 %v3613
        %v3630 = vunpack.c.l.b16 %v3614
        %v3631 = vunpack.c.l.b16 %v3615
        %v3632 = vunpack.c.l.b16 %v3616
        %v3633 = vpack.c.b16 %v3630, %v3629
        %v3634 = vpack.c.b16 %v3632, %v3631
        %v3638 = vsel %vm1598, %v3617, 0
        %3640 = vmatprep.subr.bf16.mxu0 0
        %3641 = vmatpush1.bf16.msra.mxu0 %v3633
        %3642 = vmatprep.subr.bf16.mxu0 0
        %3643 = vmatpush1.bf16.msra.mxu0 %v3634
        %3644 = vmatprep.subr.bf16.mxu0 0
        %3645 = vmatpush1.bf16.msra.mxu0 0
        %3646 = vmatprep.subr.bf16.mxu0 0
        %3647 = vmatpush1.bf16.msra.mxu0 0
        %3648 = vmatprep.subr.bf16.mxu0 0
        %3649 = vmatpush1.bf16.msra.mxu0 0
        %3650 = vmatprep.subr.bf16.mxu0 0
        %3651 = vmatpush1.bf16.msra.mxu0 0
        %3652 = vmatprep.subr.bf16.mxu0 0
        %3653 = vmatpush1.bf16.msra.mxu0 0
        %3654 = vmatprep.subr.bf16.mxu0 0
        %3655 = vmatpush1.bf16.msra.mxu0 0
        %3656 = vmatprep.subr.bf16.mxu0 0
        %3657 = vmatpush1.bf16.msra.mxu0 0
        %3658 = vmatprep.subr.bf16.mxu0 0
        %3659 = vmatpush1.bf16.msra.mxu0 0
        %3660 = vmatprep.subr.bf16.mxu0 0
        %3661 = vmatpush1.bf16.msra.mxu0 0
        %3662 = vmatprep.subr.bf16.mxu0 0
        %3663 = vmatpush1.bf16.msra.mxu0 0
        %3664 = vmatprep.subr.bf16.mxu0 0
        %3665 = vmatpush1.bf16.msra.mxu0 0
        %3666 = vmatprep.subr.bf16.mxu0 0
        %3667 = vmatpush1.bf16.msra.mxu0 0
        %3668 = vmatprep.subr.bf16.mxu0 0
        %3669 = vmatpush1.bf16.msra.mxu0 0
        %3670 = vmatprep.subr.bf16.mxu0 0
        %3671 = vmatpush1.bf16.msra.mxu0 0
        %3672 = vmatprep.mubr.bf16.mxu0 0
        %3673 = vmatmul.mubr.bf16.gmra.mrb[0].mxu0 %v3638
        %v3674 = vpop.f32.mrb[0].mxu0
        %v3675 = vadd.f32 %v3623, %v3674
        %v3676 = vpop.f32.mrb[0].mxu0
        %v3677 = vpop.f32.mrb[0].mxu0
        %v3678 = vpop.f32.mrb[0].mxu0
        %3679 = vdwg.mxu0
        %v3680 = vmax.f32 %v3675, 0.0
        %v3681 = vld [vmem:[%s79] sm:$0xf]
        %v3682 = vld [vmem:[%s79 + $0x4] sm:$0xf]
        %v3683 = vld [vmem:[%s79 + $0x8] sm:$0xf]
        %v3684 = vld [vmem:[%s79 + $0xc] sm:$0xf]
        %v3685 = vpack.c.bf16 %v3680, %v3680
        %v3686 = vld [vmem:[#allocation32] sm:$0x1]
        %v3688 = vlaneseq
        %v3689 = vshrl.u32 %v3688, 7
        %v3690 = vsub.s32 0, %v3689
        %v3691 = vrot.slane %v3686, %v3690
        %v3697 = vunpack.c.l.b16 %v3681
        %v3698 = vunpack.c.l.b16 %v3682
        %v3699 = vunpack.c.l.b16 %v3683
        %v3700 = vunpack.c.l.b16 %v3684
        %v3701 = vpack.c.b16 %v3698, %v3697
        %v3702 = vpack.c.b16 %v3700, %v3699
        %v3706 = vsel %vm1598, %v3685, 0
        %3708 = vmatprep.subr.bf16.mxu0 0
        %3709 = vmatpush1.bf16.msra.mxu0 %v3701
        %3710 = vmatprep.subr.bf16.mxu0 0
        %3711 = vmatpush1.bf16.msra.mxu0 %v3702
        %3712 = vmatprep.subr.bf16.mxu0 0
        %3713 = vmatpush1.bf16.msra.mxu0 0
        %3714 = vmatprep.subr.bf16.mxu0 0
        %3715 = vmatpush1.bf16.msra.mxu0 0
        %3716 = vmatprep.subr.bf16.mxu0 0
        %3717 = vmatpush1.bf16.msra.mxu0 0
        %3718 = vmatprep.subr.bf16.mxu0 0
        %3719 = vmatpush1.bf16.msra.mxu0 0
        %3720 = vmatprep.subr.bf16.mxu0 0
        %3721 = vmatpush1.bf16.msra.mxu0 0
        %3722 = vmatprep.subr.bf16.mxu0 0
        %3723 = vmatpush1.bf16.msra.mxu0 0
        %3724 = vmatprep.subr.bf16.mxu0 0
        %3725 = vmatpush1.bf16.msra.mxu0 0
        %3726 = vmatprep.subr.bf16.mxu0 0
        %3727 = vmatpush1.bf16.msra.mxu0 0
        %3728 = vmatprep.subr.bf16.mxu0 0
        %3729 = vmatpush1.bf16.msra.mxu0 0
        %3730 = vmatprep.subr.bf16.mxu0 0
        %3731 = vmatpush1.bf16.msra.mxu0 0
        %3732 = vmatprep.subr.bf16.mxu0 0
        %3733 = vmatpush1.bf16.msra.mxu0 0
        %3734 = vmatprep.subr.bf16.mxu0 0
        %3735 = vmatpush1.bf16.msra.mxu0 0
        %3736 = vmatprep.subr.bf16.mxu0 0
        %3737 = vmatpush1.bf16.msra.mxu0 0
        %3738 = vmatprep.subr.bf16.mxu0 0
        %3739 = vmatpush1.bf16.msra.mxu0 0
        %3740 = vmatprep.mubr.bf16.mxu0 0
        %3741 = vmatmul.mubr.bf16.gmra.mrb[0].mxu0 %v3706
        %v3742 = vpop.f32.mrb[0].mxu0
        %v3743 = vadd.f32 %v3691, %v3742
        %v3744 = vpop.f32.mrb[0].mxu0
        %v3745 = vpop.f32.mrb[0].mxu0
        %v3746 = vpop.f32.mrb[0].mxu0
        %3747 = vdwg.mxu0
        %3748 = vst.msk [vmem:[%s1563] sm:$0x7] %vm3461, %v3743
        %s3749 = sand.u32 %s990, 1
        %s3750 = scalar_lea.sflag [#allocation4], %s3749
        %s3751 = sand.u32 %s990, 1
        %s3752 = smul.addr %s3751, 4
        %s3753 = scalar_lea.vmem [#allocation34], %s3752
        %s3754 = sand.u32 %s1016, 1
        %s3755 = scalar_lea.sflag [#allocation36], %s3754
        %s3756 = sand.u32 %s1016, 1
        %s3757 = scalar_lea.vmem [#allocation35], %s3756
        %p3758 = scmp.lt.s32.totalorder %s116, 1
        %s3759 = scalar_select %p3758, %s116, 1
        %s3760 = smul.addr %s3759, 4
        %s3761 = scalar_lea.vmem %s87, %s3760
        // Predicated region
        $region265: #{wave_transformer_forward.3} parent=183 // pred_check
          %p3762 = pneg %p1000
        $region266: #{wave_transformer_forward.3} parent=183 // pred_check_branch
          %3764 = sbr.rel (%p3762) target = $region268
        $region267: #{wave_transformer_forward.3} parent=183 // pred_region
          %s3766 = ssub.s32 64, 64
          %3767 = vsyncadd %s3750, %s3766
          %s3768 = smul.addr %s116, 64
          %s3769 = scalar_lea.hbm %s83, %s3768
          %s3771 = sshll.u32 %s3753, 4
          %s3772 = int_to_ptr.vmem [resolvable:$true] %s3771
          %3774 = dma.vmem_to_hbm [thread:$0]  %s3772, 64, %s3769, %s3750
        $region268: #{wave_transformer_forward.3} parent=183 // pred_fallthru
          _
        // Predicated region
        $region269: #{wave_transformer_forward.3} parent=183 // pred_check
          %p3775 = pneg %p1026
        $region270: #{wave_transformer_forward.3} parent=183 // pred_check_branch
          %3777 = sbr.rel (%p3775) target = $region272
        $region271: #{wave_transformer_forward.3} parent=183 // pred_region
          %s3779 = ssub.s32 16, 16
          %3780 = vsyncadd %s3755, %s3779
          %s3781 = smul.addr %s116, 16
          %s3782 = scalar_lea.hbm %s85, %s3781
          %s3784 = sshll.u32 %s3757, 4
          %s3785 = int_to_ptr.vmem [resolvable:$true] %s3784
          %3787 = dma.vmem_to_hbm [thread:$0]  %s3785, 16, %s3782, %s3755
        $region272: #{wave_transformer_forward.3} parent=183 // pred_fallthru
          _
        // Predicated region
        $region273: #{wave_transformer_forward.3} parent=183 // pred_check
          %p3788 = pneg %p1052
        $region274: #{wave_transformer_forward.3} parent=183 // pred_check_branch
          %3790 = sbr.rel (%p3788) target = $region276
        $region275: #{wave_transformer_forward.3} parent=183 // pred_region
          _
        $region276: #{wave_transformer_forward.3} parent=183 // pred_fallthru
          _
      $region184: #{wave_transformer_forward.3} parent=5 // pred_fallthru
        _
      %p3791 = scmp.le.s32.totalorder 2, %s111
      // Predicated region
      $region277: #{wave_transformer_forward.3} parent=5 // pred_check
        %p3792 = pneg %p3791
      $region278: #{wave_transformer_forward.3} parent=5 // pred_check_branch
        %3794 = sbr.rel (%p3792) target = $region280
      $region279: #{wave_transformer_forward.3} parent=5 // pred_region
        %s3795 = ssub.s32 %s111, 2
        // Predicated region
        $region281: #{wave_transformer_forward.3} parent=279 // pred_check
          %p3796 = pneg %p1006
        $region282: #{wave_transformer_forward.3} parent=279 // pred_check_branch
          %3798 = sbr.rel (%p3796) target = $region284
        $region283: #{wave_transformer_forward.3} parent=279 // pred_region
          %s3799 = sand.u32 %s991, 1
          %s3800 = scalar_lea.sflag [#allocation4], %s3799
          %s3801 = sand.u32 %s991, 1
          %s3802 = smul.addr %s3801, 4
          %s3803 = scalar_lea.vmem [#allocation34], %s3802
          %3804 = dma.done %s3800, 64
        $region284: #{wave_transformer_forward.3} parent=279 // pred_fallthru
          _
        // Predicated region
        $region285: #{wave_transformer_forward.3} parent=279 // pred_check
          %p3805 = pneg %p1032
        $region286: #{wave_transformer_forward.3} parent=279 // pred_check_branch
          %3807 = sbr.rel (%p3805) target = $region288
        $region287: #{wave_transformer_forward.3} parent=279 // pred_region
          %s3808 = sand.u32 %s1017, 1
          %s3809 = scalar_lea.sflag [#allocation36], %s3808
          %s3810 = sand.u32 %s1017, 1
          %s3811 = scalar_lea.vmem [#allocation35], %s3810
          %3812 = dma.done %s3809, 16
        $region288: #{wave_transformer_forward.3} parent=279 // pred_fallthru
          _
        // Predicated region
        $region289: #{wave_transformer_forward.3} parent=279 // pred_check
          %p3813 = pneg %p1058
        $region290: #{wave_transformer_forward.3} parent=279 // pred_check_branch
          %3815 = sbr.rel (%p3813) target = $region292
        $region291: #{wave_transformer_forward.3} parent=279 // pred_region
          %p3816 = scmp.lt.s32.totalorder %s117, 1
          %s3817 = scalar_select %p3816, %s117, 1
          %s3818 = smul.addr %s3817, 4
          %s3819 = scalar_lea.vmem %s87, %s3818
        $region292: #{wave_transformer_forward.3} parent=279 // pred_fallthru
          _
      $region280: #{wave_transformer_forward.3} parent=5 // pred_fallthru
        _
    $region6: #{wave_transformer_forward.3} parent=1 // loop_footer
      %s115 = sadd.s32 1, %s111
    $region7: #{wave_transformer_forward.3} parent=1 // loop_footer_branch
      %110 = sbr.rel target = $region3
    $region8: #{wave_transformer_forward.3} parent=1 // loop_exit
      _
    %3820 = vsyncpa [#allocation3], 1
    %s3821 = scalar_lea.sflag [#allocation3], 1
    %3822 = vsyncpa %s3821, 1
    %3823 = vsyncpa [#allocation6], 1
    %3824 = vsyncpa [#allocation9], 1
    %3825 = vsyncpa [#allocation12], 1
    %3826 = vsyncpa [#allocation15], 1
    %3827 = vsyncpa [#allocation18], 1
    %3828 = vsyncpa [#allocation21], 1
    %3829 = vsyncpa [#allocation24], 1
    %3830 = vsyncpa [#allocation27], 1
    %3831 = vsyncpa [#allocation30], 1
    %3832 = vsyncpa [#allocation33], 1
    %3833 = vsyncpa [#allocation4], 1
    %s3834 = scalar_lea.sflag [#allocation4], 1
    %3835 = vsyncpa %s3834, 1
    %3836 = vsyncpa [#allocation36], 1
    %s3837 = scalar_lea.sflag [#allocation36], 1
    %3838 = vsyncpa %s3837, 1

// kernel: wave_transformer_forward.2
$region0: #{wave_transformer_forward.2}
  #allocation0 [shape = 'u32[]', space=smem, size = 0x4, offset = 0x4, fixed_abs, tag = 'smem constant byte address 0x4 - core index']
  #allocation1 [shape = 'u32[144,128]{1,0:T(1,128)}', space=vmem, size = 0x12000, scoped, tag = 'internal scratch']
  %s0 = inlined_call_operand.vmem [shape: f32[2,32,8], index: 0, kind: input, shape index: {}]
  %s1 = inlined_call_operand.vmem [shape: f32[2,32,32], index: 1, kind: input, shape index: {}]
  %s2 = inlined_call_operand.vmem [shape: bf16[8,32], index: 2, kind: input, shape index: {}]
  %s3 = inlined_call_operand.vmem [shape: f32[1,32], index: 3, kind: input, shape index: {}]
  %s4 = inlined_call_operand.vmem [shape: f32[1,32], index: 4, kind: input, shape index: {}]
  %s5 = inlined_call_operand.vmem [shape: f32[1,32], index: 5, kind: input, shape index: {}]
  %s6 = inlined_call_operand.vmem [shape: bf16[2,32,96], index: 6, kind: input, shape index: {}]
  %s7 = inlined_call_operand.vmem [shape: f32[2,1,96], index: 7, kind: input, shape index: {}]
  %s8 = inlined_call_operand.vmem [shape: bf16[2,32,32], index: 8, kind: input, shape index: {}]
  %s9 = inlined_call_operand.vmem [shape: f32[2,1,32], index: 9, kind: input, shape index: {}]
  %s10 = inlined_call_operand.vmem [shape: f32[2,1,32], index: 10, kind: input, shape index: {}]
  %s11 = inlined_call_operand.vmem [shape: f32[2,1,32], index: 11, kind: input, shape index: {}]
  %s12 = inlined_call_operand.vmem [shape: bf16[2,32,128], index: 12, kind: input, shape index: {}]
  %s13 = inlined_call_operand.vmem [shape: f32[2,1,128], index: 13, kind: input, shape index: {}]
  %s14 = inlined_call_operand.vmem [shape: bf16[2,128,32], index: 14, kind: input, shape index: {}]
  %s15 = inlined_call_operand.vmem [shape: f32[2,1,32], index: 15, kind: input, shape index: {}]
  %s16 = inlined_call_operand.vmem [shape: f32[2,1,32], index: 16, kind: input, shape index: {}]
  %s17 = inlined_call_operand.vmem [shape: f32[2,1,32], index: 17, kind: input, shape index: {}]
  %s18 = inlined_call_operand.vmem [shape: bf16[2,32,32], index: 18, kind: input, shape index: {}]
  %s19 = inlined_call_operand.vmem [shape: f32[2,1,32], index: 19, kind: input, shape index: {}]
  %s20 = inlined_call_operand.vmem [shape: f32[1,32], index: 20, kind: input, shape index: {}]
  %s21 = inlined_call_operand.vmem [shape: f32[1,32], index: 21, kind: input, shape index: {}]
  %s22 = inlined_call_operand.vmem [shape: f32[2,32,32], index: 22, kind: output, shape index: {}]
  %s23 = sld [smem:[#allocation0]]
  $region121: #{wave_transformer_forward.2} parent=0
    _
  %s25 = ssub.s32 1, %s23
  %s26 = scalar_select 0, %s25, %s23
  loop: start=0, step=1, limit=4
  $region2: #{wave_transformer_forward.2} parent=0 // loop_pre_header
    _
  $region3: #{wave_transformer_forward.2} parent=0 // loop_header
    %s28 = sphi 0, %s32
    %p29 = scmp.ge.s32.totalorder %s28, 4
    %s38 = sphi 0, %s40
    %s41 = sphi 0, %s38
    %s42 = sphi 0, %s41
    %s58 = sphi 0, %s42
    %s64 = sphi 0, %s66
    %s67 = sphi 0, %s64
    %s68 = sphi 0, %s67
    %s84 = sphi 0, %s68
    %s88 = sphi 0, %s88
    %s90 = sphi 0, %s88
    %s91 = sphi 0, %s90
    %s105 = sphi 0, %s91
    %s109 = sphi 0, %s109
    %s111 = sphi 0, %s109
    %s112 = sphi 0, %s111
    %s126 = sphi 0, %s112
    %s130 = sphi 0, %s130
    %s132 = sphi 0, %s130
    %s133 = sphi 0, %s132
    %s147 = sphi 0, %s133
    %s151 = sphi 0, %s151
    %s153 = sphi 0, %s151
    %s154 = sphi 0, %s153
    %s168 = sphi 0, %s154
    %s172 = sphi 0, %s172
    %s174 = sphi 0, %s172
    %s175 = sphi 0, %s174
    %s189 = sphi 0, %s175
    %s193 = sphi 0, %s193
    %s195 = sphi 0, %s193
    %s196 = sphi 0, %s195
    %s210 = sphi 0, %s196
    %s214 = sphi 0, %s214
    %s216 = sphi 0, %s214
    %s217 = sphi 0, %s216
    %s231 = sphi 0, %s217
    %s235 = sphi 0, %s235
    %s237 = sphi 0, %s235
    %s238 = sphi 0, %s237
    %s252 = sphi 0, %s238
    %s256 = sphi 0, %s256
    %s258 = sphi 0, %s256
    %s259 = sphi 0, %s258
    %s273 = sphi 0, %s259
    %s277 = sphi 0, %s277
    %s279 = sphi 0, %s277
    %s280 = sphi 0, %s279
    %s294 = sphi 0, %s280
    %s298 = sphi 0, %s298
    %s300 = sphi 0, %s298
    %s301 = sphi 0, %s300
    %s315 = sphi 0, %s301
    %s319 = sphi 0, %s319
    %s321 = sphi 0, %s319
    %s322 = sphi 0, %s321
    %s336 = sphi 0, %s322
    %s340 = sphi 0, %s340
    %s342 = sphi 0, %s340
    %s343 = sphi 0, %s342
    %s357 = sphi 0, %s343
    %s361 = sphi 0, %s361
    %s363 = sphi 0, %s361
    %s364 = sphi 0, %s363
    %s378 = sphi 0, %s364
    %s382 = sphi 0, %s382
    %s384 = sphi 0, %s382
    %s385 = sphi 0, %s384
    %s399 = sphi 0, %s385
    %s403 = sphi 0, %s403
    %s405 = sphi 0, %s403
    %s406 = sphi 0, %s405
    %s420 = sphi 0, %s406
    %s424 = sphi 0, %s424
    %s426 = sphi 0, %s424
    %s427 = sphi 0, %s426
    %s441 = sphi 0, %s427
    %s445 = sphi 0, %s445
    %s447 = sphi 0, %s445
    %s448 = sphi 0, %s447
    %s462 = sphi 0, %s448
    %s466 = sphi 0, %s466
    %s468 = sphi 0, %s466
    %s469 = sphi 0, %s468
    %s483 = sphi 0, %s469
    %s487 = sphi 0, %s487
    %s489 = sphi 0, %s487
    %s490 = sphi 0, %s489
    %s504 = sphi 0, %s490
    %s510 = sphi 0, %s512
    %s513 = sphi 0, %s510
    %s514 = sphi 0, %s513
    %s530 = sphi 0, %s514
  $region4: #{wave_transformer_forward.2} parent=0 // loop_header_branch
    %31 = sbr.rel (%p29) target = $region8
  $region5: #{wave_transformer_forward.2} parent=0 // loop_body
    %s33 = ssub.s32 %s28, 1
    %s34 = ssub.s32 %s28, 2
    %s35 = sadd.s32 %s28, 1
    %s36 = ssub.s32 %s28, %s35
    %p37 = scmp.eq.s32.totalorder %s36, 0
    %s39 = sadd.s32 %s38, 1
    %s40 = scalar_select %p37, %s38, %s39
    %p43 = pneg %p37
    %p44 = scmp.eq.s32.totalorder %s28, 1
    %p45 = por %p43, %p44
    %p46 = scmp.ne.s32.totalorder %s38, %s41
    %p47 = scmp.eq.s32.totalorder %s28, 0
    %p48 = por %p46, %p47
    %p49 = scmp.ne.s32.totalorder %s38, %s41
    %p50 = scmp.eq.s32.totalorder %s33, 1
    %p51 = por %p49, %p50
    %p52 = scmp.ne.s32.totalorder %s41, %s42
    %p53 = scmp.eq.s32.totalorder %s33, 0
    %p54 = por %p52, %p53
    %p55 = scmp.ne.s32.totalorder %s41, %s42
    %p56 = scmp.eq.s32.totalorder %s34, 1
    %p57 = por %p55, %p56
    %p59 = scmp.ne.s32.totalorder %s42, %s58
    %p60 = scmp.eq.s32.totalorder %s34, 0
    %p61 = por %p59, %p60
    %s62 = ssub.s32 %s28, %s35
    %p63 = scmp.eq.s32.totalorder %s62, 0
    %s65 = sadd.s32 %s64, 1
    %s66 = scalar_select %p63, %s64, %s65
    %p69 = pneg %p63
    %p70 = scmp.eq.s32.totalorder %s28, 1
    %p71 = por %p69, %p70
    %p72 = scmp.ne.s32.totalorder %s64, %s67
    %p73 = scmp.eq.s32.totalorder %s28, 0
    %p74 = por %p72, %p73
    %p75 = scmp.ne.s32.totalorder %s64, %s67
    %p76 = scmp.eq.s32.totalorder %s33, 1
    %p77 = por %p75, %p76
    %p78 = scmp.ne.s32.totalorder %s67, %s68
    %p79 = scmp.eq.s32.totalorder %s33, 0
    %p80 = por %p78, %p79
    %p81 = scmp.ne.s32.totalorder %s67, %s68
    %p82 = scmp.eq.s32.totalorder %s34, 1
    %p83 = por %p81, %p82
    %p85 = scmp.ne.s32.totalorder %s68, %s84
    %p86 = scmp.eq.s32.totalorder %s34, 0
    %p87 = por %p85, %p86
    %s89 = sadd.s32 %s88, 1
    %p92 = scmp.eq.s32.totalorder %s28, 1
    %p93 = scmp.ne.s32.totalorder %s88, %s90
    %p94 = scmp.eq.s32.totalorder %s28, 0
    %p95 = por %p93, %p94
    %p96 = scmp.ne.s32.totalorder %s88, %s90
    %p97 = scmp.eq.s32.totalorder %s33, 1
    %p98 = por %p96, %p97
    %p99 = scmp.ne.s32.totalorder %s90, %s91
    %p100 = scmp.eq.s32.totalorder %s33, 0
    %p101 = por %p99, %p100
    %p102 = scmp.ne.s32.totalorder %s90, %s91
    %p103 = scmp.eq.s32.totalorder %s34, 1
    %p104 = por %p102, %p103
    %p106 = scmp.ne.s32.totalorder %s91, %s105
    %p107 = scmp.eq.s32.totalorder %s34, 0
    %p108 = por %p106, %p107
    %s110 = sadd.s32 %s109, 1
    %p113 = scmp.eq.s32.totalorder %s28, 1
    %p114 = scmp.ne.s32.totalorder %s109, %s111
    %p115 = scmp.eq.s32.totalorder %s28, 0
    %p116 = por %p114, %p115
    %p117 = scmp.ne.s32.totalorder %s109, %s111
    %p118 = scmp.eq.s32.totalorder %s33, 1
    %p119 = por %p117, %p118
    %p120 = scmp.ne.s32.totalorder %s111, %s112
    %p121 = scmp.eq.s32.totalorder %s33, 0
    %p122 = por %p120, %p121
    %p123 = scmp.ne.s32.totalorder %s111, %s112
    %p124 = scmp.eq.s32.totalorder %s34, 1
    %p125 = por %p123, %p124
    %p127 = scmp.ne.s32.totalorder %s112, %s126
    %p128 = scmp.eq.s32.totalorder %s34, 0
    %p129 = por %p127, %p128
    %s131 = sadd.s32 %s130, 1
    %p134 = scmp.eq.s32.totalorder %s28, 1
    %p135 = scmp.ne.s32.totalorder %s130, %s132
    %p136 = scmp.eq.s32.totalorder %s28, 0
    %p137 = por %p135, %p136
    %p138 = scmp.ne.s32.totalorder %s130, %s132
    %p139 = scmp.eq.s32.totalorder %s33, 1
    %p140 = por %p138, %p139
    %p141 = scmp.ne.s32.totalorder %s132, %s133
    %p142 = scmp.eq.s32.totalorder %s33, 0
    %p143 = por %p141, %p142
    %p144 = scmp.ne.s32.totalorder %s132, %s133
    %p145 = scmp.eq.s32.totalorder %s34, 1
    %p146 = por %p144, %p145
    %p148 = scmp.ne.s32.totalorder %s133, %s147
    %p149 = scmp.eq.s32.totalorder %s34, 0
    %p150 = por %p148, %p149
    %s152 = sadd.s32 %s151, 1
    %p155 = scmp.eq.s32.totalorder %s28, 1
    %p156 = scmp.ne.s32.totalorder %s151, %s153
    %p157 = scmp.eq.s32.totalorder %s28, 0
    %p158 = por %p156, %p157
    %p159 = scmp.ne.s32.totalorder %s151, %s153
    %p160 = scmp.eq.s32.totalorder %s33, 1
    %p161 = por %p159, %p160
    %p162 = scmp.ne.s32.totalorder %s153, %s154
    %p163 = scmp.eq.s32.totalorder %s33, 0
    %p164 = por %p162, %p163
    %p165 = scmp.ne.s32.totalorder %s153, %s154
    %p166 = scmp.eq.s32.totalorder %s34, 1
    %p167 = por %p165, %p166
    %p169 = scmp.ne.s32.totalorder %s154, %s168
    %p170 = scmp.eq.s32.totalorder %s34, 0
    %p171 = por %p169, %p170
    %s173 = sadd.s32 %s172, 1
    %p176 = scmp.eq.s32.totalorder %s28, 1
    %p177 = scmp.ne.s32.totalorder %s172, %s174
    %p178 = scmp.eq.s32.totalorder %s28, 0
    %p179 = por %p177, %p178
    %p180 = scmp.ne.s32.totalorder %s172, %s174
    %p181 = scmp.eq.s32.totalorder %s33, 1
    %p182 = por %p180, %p181
    %p183 = scmp.ne.s32.totalorder %s174, %s175
    %p184 = scmp.eq.s32.totalorder %s33, 0
    %p185 = por %p183, %p184
    %p186 = scmp.ne.s32.totalorder %s174, %s175
    %p187 = scmp.eq.s32.totalorder %s34, 1
    %p188 = por %p186, %p187
    %p190 = scmp.ne.s32.totalorder %s175, %s189
    %p191 = scmp.eq.s32.totalorder %s34, 0
    %p192 = por %p190, %p191
    %s194 = sadd.s32 %s193, 1
    %p197 = scmp.eq.s32.totalorder %s28, 1
    %p198 = scmp.ne.s32.totalorder %s193, %s195
    %p199 = scmp.eq.s32.totalorder %s28, 0
    %p200 = por %p198, %p199
    %p201 = scmp.ne.s32.totalorder %s193, %s195
    %p202 = scmp.eq.s32.totalorder %s33, 1
    %p203 = por %p201, %p202
    %p204 = scmp.ne.s32.totalorder %s195, %s196
    %p205 = scmp.eq.s32.totalorder %s33, 0
    %p206 = por %p204, %p205
    %p207 = scmp.ne.s32.totalorder %s195, %s196
    %p208 = scmp.eq.s32.totalorder %s34, 1
    %p209 = por %p207, %p208
    %p211 = scmp.ne.s32.totalorder %s196, %s210
    %p212 = scmp.eq.s32.totalorder %s34, 0
    %p213 = por %p211, %p212
    %s215 = sadd.s32 %s214, 1
    %p218 = scmp.eq.s32.totalorder %s28, 1
    %p219 = scmp.ne.s32.totalorder %s214, %s216
    %p220 = scmp.eq.s32.totalorder %s28, 0
    %p221 = por %p219, %p220
    %p222 = scmp.ne.s32.totalorder %s214, %s216
    %p223 = scmp.eq.s32.totalorder %s33, 1
    %p224 = por %p222, %p223
    %p225 = scmp.ne.s32.totalorder %s216, %s217
    %p226 = scmp.eq.s32.totalorder %s33, 0
    %p227 = por %p225, %p226
    %p228 = scmp.ne.s32.totalorder %s216, %s217
    %p229 = scmp.eq.s32.totalorder %s34, 1
    %p230 = por %p228, %p229
    %p232 = scmp.ne.s32.totalorder %s217, %s231
    %p233 = scmp.eq.s32.totalorder %s34, 0
    %p234 = por %p232, %p233
    %s236 = sadd.s32 %s235, 1
    %p239 = scmp.eq.s32.totalorder %s28, 1
    %p240 = scmp.ne.s32.totalorder %s235, %s237
    %p241 = scmp.eq.s32.totalorder %s28, 0
    %p242 = por %p240, %p241
    %p243 = scmp.ne.s32.totalorder %s235, %s237
    %p244 = scmp.eq.s32.totalorder %s33, 1
    %p245 = por %p243, %p244
    %p246 = scmp.ne.s32.totalorder %s237, %s238
    %p247 = scmp.eq.s32.totalorder %s33, 0
    %p248 = por %p246, %p247
    %p249 = scmp.ne.s32.totalorder %s237, %s238
    %p250 = scmp.eq.s32.totalorder %s34, 1
    %p251 = por %p249, %p250
    %p253 = scmp.ne.s32.totalorder %s238, %s252
    %p254 = scmp.eq.s32.totalorder %s34, 0
    %p255 = por %p253, %p254
    %s257 = sadd.s32 %s256, 1
    %p260 = scmp.eq.s32.totalorder %s28, 1
    %p261 = scmp.ne.s32.totalorder %s256, %s258
    %p262 = scmp.eq.s32.totalorder %s28, 0
    %p263 = por %p261, %p262
    %p264 = scmp.ne.s32.totalorder %s256, %s258
    %p265 = scmp.eq.s32.totalorder %s33, 1
    %p266 = por %p264, %p265
    %p267 = scmp.ne.s32.totalorder %s258, %s259
    %p268 = scmp.eq.s32.totalorder %s33, 0
    %p269 = por %p267, %p268
    %p270 = scmp.ne.s32.totalorder %s258, %s259
    %p271 = scmp.eq.s32.totalorder %s34, 1
    %p272 = por %p270, %p271
    %p274 = scmp.ne.s32.totalorder %s259, %s273
    %p275 = scmp.eq.s32.totalorder %s34, 0
    %p276 = por %p274, %p275
    %s278 = sadd.s32 %s277, 1
    %p281 = scmp.eq.s32.totalorder %s28, 1
    %p282 = scmp.ne.s32.totalorder %s277, %s279
    %p283 = scmp.eq.s32.totalorder %s28, 0
    %p284 = por %p282, %p283
    %p285 = scmp.ne.s32.totalorder %s277, %s279
    %p286 = scmp.eq.s32.totalorder %s33, 1
    %p287 = por %p285, %p286
    %p288 = scmp.ne.s32.totalorder %s279, %s280
    %p289 = scmp.eq.s32.totalorder %s33, 0
    %p290 = por %p288, %p289
    %p291 = scmp.ne.s32.totalorder %s279, %s280
    %p292 = scmp.eq.s32.totalorder %s34, 1
    %p293 = por %p291, %p292
    %p295 = scmp.ne.s32.totalorder %s280, %s294
    %p296 = scmp.eq.s32.totalorder %s34, 0
    %p297 = por %p295, %p296
    %s299 = sadd.s32 %s298, 1
    %p302 = scmp.eq.s32.totalorder %s28, 1
    %p303 = scmp.ne.s32.totalorder %s298, %s300
    %p304 = scmp.eq.s32.totalorder %s28, 0
    %p305 = por %p303, %p304
    %p306 = scmp.ne.s32.totalorder %s298, %s300
    %p307 = scmp.eq.s32.totalorder %s33, 1
    %p308 = por %p306, %p307
    %p309 = scmp.ne.s32.totalorder %s300, %s301
    %p310 = scmp.eq.s32.totalorder %s33, 0
    %p311 = por %p309, %p310
    %p312 = scmp.ne.s32.totalorder %s300, %s301
    %p313 = scmp.eq.s32.totalorder %s34, 1
    %p314 = por %p312, %p313
    %p316 = scmp.ne.s32.totalorder %s301, %s315
    %p317 = scmp.eq.s32.totalorder %s34, 0
    %p318 = por %p316, %p317
    %s320 = sadd.s32 %s319, 1
    %p323 = scmp.eq.s32.totalorder %s28, 1
    %p324 = scmp.ne.s32.totalorder %s319, %s321
    %p325 = scmp.eq.s32.totalorder %s28, 0
    %p326 = por %p324, %p325
    %p327 = scmp.ne.s32.totalorder %s319, %s321
    %p328 = scmp.eq.s32.totalorder %s33, 1
    %p329 = por %p327, %p328
    %p330 = scmp.ne.s32.totalorder %s321, %s322
    %p331 = scmp.eq.s32.totalorder %s33, 0
    %p332 = por %p330, %p331
    %p333 = scmp.ne.s32.totalorder %s321, %s322
    %p334 = scmp.eq.s32.totalorder %s34, 1
    %p335 = por %p333, %p334
    %p337 = scmp.ne.s32.totalorder %s322, %s336
    %p338 = scmp.eq.s32.totalorder %s34, 0
    %p339 = por %p337, %p338
    %s341 = sadd.s32 %s340, 1
    %p344 = scmp.eq.s32.totalorder %s28, 1
    %p345 = scmp.ne.s32.totalorder %s340, %s342
    %p346 = scmp.eq.s32.totalorder %s28, 0
    %p347 = por %p345, %p346
    %p348 = scmp.ne.s32.totalorder %s340, %s342
    %p349 = scmp.eq.s32.totalorder %s33, 1
    %p350 = por %p348, %p349
    %p351 = scmp.ne.s32.totalorder %s342, %s343
    %p352 = scmp.eq.s32.totalorder %s33, 0
    %p353 = por %p351, %p352
    %p354 = scmp.ne.s32.totalorder %s342, %s343
    %p355 = scmp.eq.s32.totalorder %s34, 1
    %p356 = por %p354, %p355
    %p358 = scmp.ne.s32.totalorder %s343, %s357
    %p359 = scmp.eq.s32.totalorder %s34, 0
    %p360 = por %p358, %p359
    %s362 = sadd.s32 %s361, 1
    %p365 = scmp.eq.s32.totalorder %s28, 1
    %p366 = scmp.ne.s32.totalorder %s361, %s363
    %p367 = scmp.eq.s32.totalorder %s28, 0
    %p368 = por %p366, %p367
    %p369 = scmp.ne.s32.totalorder %s361, %s363
    %p370 = scmp.eq.s32.totalorder %s33, 1
    %p371 = por %p369, %p370
    %p372 = scmp.ne.s32.totalorder %s363, %s364
    %p373 = scmp.eq.s32.totalorder %s33, 0
    %p374 = por %p372, %p373
    %p375 = scmp.ne.s32.totalorder %s363, %s364
    %p376 = scmp.eq.s32.totalorder %s34, 1
    %p377 = por %p375, %p376
    %p379 = scmp.ne.s32.totalorder %s364, %s378
    %p380 = scmp.eq.s32.totalorder %s34, 0
    %p381 = por %p379, %p380
    %s383 = sadd.s32 %s382, 1
    %p386 = scmp.eq.s32.totalorder %s28, 1
    %p387 = scmp.ne.s32.totalorder %s382, %s384
    %p388 = scmp.eq.s32.totalorder %s28, 0
    %p389 = por %p387, %p388
    %p390 = scmp.ne.s32.totalorder %s382, %s384
    %p391 = scmp.eq.s32.totalorder %s33, 1
    %p392 = por %p390, %p391
    %p393 = scmp.ne.s32.totalorder %s384, %s385
    %p394 = scmp.eq.s32.totalorder %s33, 0
    %p395 = por %p393, %p394
    %p396 = scmp.ne.s32.totalorder %s384, %s385
    %p397 = scmp.eq.s32.totalorder %s34, 1
    %p398 = por %p396, %p397
    %p400 = scmp.ne.s32.totalorder %s385, %s399
    %p401 = scmp.eq.s32.totalorder %s34, 0
    %p402 = por %p400, %p401
    %s404 = sadd.s32 %s403, 1
    %p407 = scmp.eq.s32.totalorder %s28, 1
    %p408 = scmp.ne.s32.totalorder %s403, %s405
    %p409 = scmp.eq.s32.totalorder %s28, 0
    %p410 = por %p408, %p409
    %p411 = scmp.ne.s32.totalorder %s403, %s405
    %p412 = scmp.eq.s32.totalorder %s33, 1
    %p413 = por %p411, %p412
    %p414 = scmp.ne.s32.totalorder %s405, %s406
    %p415 = scmp.eq.s32.totalorder %s33, 0
    %p416 = por %p414, %p415
    %p417 = scmp.ne.s32.totalorder %s405, %s406
    %p418 = scmp.eq.s32.totalorder %s34, 1
    %p419 = por %p417, %p418
    %p421 = scmp.ne.s32.totalorder %s406, %s420
    %p422 = scmp.eq.s32.totalorder %s34, 0
    %p423 = por %p421, %p422
    %s425 = sadd.s32 %s424, 1
    %p428 = scmp.eq.s32.totalorder %s28, 1
    %p429 = scmp.ne.s32.totalorder %s424, %s426
    %p430 = scmp.eq.s32.totalorder %s28, 0
    %p431 = por %p429, %p430
    %p432 = scmp.ne.s32.totalorder %s424, %s426
    %p433 = scmp.eq.s32.totalorder %s33, 1
    %p434 = por %p432, %p433
    %p435 = scmp.ne.s32.totalorder %s426, %s427
    %p436 = scmp.eq.s32.totalorder %s33, 0
    %p437 = por %p435, %p436
    %p438 = scmp.ne.s32.totalorder %s426, %s427
    %p439 = scmp.eq.s32.totalorder %s34, 1
    %p440 = por %p438, %p439
    %p442 = scmp.ne.s32.totalorder %s427, %s441
    %p443 = scmp.eq.s32.totalorder %s34, 0
    %p444 = por %p442, %p443
    %s446 = sadd.s32 %s445, 1
    %p449 = scmp.eq.s32.totalorder %s28, 1
    %p450 = scmp.ne.s32.totalorder %s445, %s447
    %p451 = scmp.eq.s32.totalorder %s28, 0
    %p452 = por %p450, %p451
    %p453 = scmp.ne.s32.totalorder %s445, %s447
    %p454 = scmp.eq.s32.totalorder %s33, 1
    %p455 = por %p453, %p454
    %p456 = scmp.ne.s32.totalorder %s447, %s448
    %p457 = scmp.eq.s32.totalorder %s33, 0
    %p458 = por %p456, %p457
    %p459 = scmp.ne.s32.totalorder %s447, %s448
    %p460 = scmp.eq.s32.totalorder %s34, 1
    %p461 = por %p459, %p460
    %p463 = scmp.ne.s32.totalorder %s448, %s462
    %p464 = scmp.eq.s32.totalorder %s34, 0
    %p465 = por %p463, %p464
    %s467 = sadd.s32 %s466, 1
    %p470 = scmp.eq.s32.totalorder %s28, 1
    %p471 = scmp.ne.s32.totalorder %s466, %s468
    %p472 = scmp.eq.s32.totalorder %s28, 0
    %p473 = por %p471, %p472
    %p474 = scmp.ne.s32.totalorder %s466, %s468
    %p475 = scmp.eq.s32.totalorder %s33, 1
    %p476 = por %p474, %p475
    %p477 = scmp.ne.s32.totalorder %s468, %s469
    %p478 = scmp.eq.s32.totalorder %s33, 0
    %p479 = por %p477, %p478
    %p480 = scmp.ne.s32.totalorder %s468, %s469
    %p481 = scmp.eq.s32.totalorder %s34, 1
    %p482 = por %p480, %p481
    %p484 = scmp.ne.s32.totalorder %s469, %s483
    %p485 = scmp.eq.s32.totalorder %s34, 0
    %p486 = por %p484, %p485
    %s488 = sadd.s32 %s487, 1
    %p491 = scmp.eq.s32.totalorder %s28, 1
    %p492 = scmp.ne.s32.totalorder %s487, %s489
    %p493 = scmp.eq.s32.totalorder %s28, 0
    %p494 = por %p492, %p493
    %p495 = scmp.ne.s32.totalorder %s487, %s489
    %p496 = scmp.eq.s32.totalorder %s33, 1
    %p497 = por %p495, %p496
    %p498 = scmp.ne.s32.totalorder %s489, %s490
    %p499 = scmp.eq.s32.totalorder %s33, 0
    %p500 = por %p498, %p499
    %p501 = scmp.ne.s32.totalorder %s489, %s490
    %p502 = scmp.eq.s32.totalorder %s34, 1
    %p503 = por %p501, %p502
    %p505 = scmp.ne.s32.totalorder %s490, %s504
    %p506 = scmp.eq.s32.totalorder %s34, 0
    %p507 = por %p505, %p506
    %s508 = ssub.s32 %s28, %s35
    %p509 = scmp.eq.s32.totalorder %s508, 0
    %s511 = sadd.s32 %s510, 1
    %s512 = scalar_select %p509, %s510, %s511
    %p515 = pneg %p509
    %p516 = scmp.eq.s32.totalorder %s28, 1
    %p517 = por %p515, %p516
    %p518 = scmp.ne.s32.totalorder %s510, %s513
    %p519 = scmp.eq.s32.totalorder %s28, 0
    %p520 = por %p518, %p519
    %p521 = scmp.ne.s32.totalorder %s510, %s513
    %p522 = scmp.eq.s32.totalorder %s33, 1
    %p523 = por %p521, %p522
    %p524 = scmp.ne.s32.totalorder %s513, %s514
    %p525 = scmp.eq.s32.totalorder %s33, 0
    %p526 = por %p524, %p525
    %p527 = scmp.ne.s32.totalorder %s513, %s514
    %p528 = scmp.eq.s32.totalorder %s34, 1
    %p529 = por %p527, %p528
    %p531 = scmp.ne.s32.totalorder %s514, %s530
    %p532 = scmp.eq.s32.totalorder %s34, 0
    %p533 = por %p531, %p532
    %p534 = scmp.le.s32.totalorder 1, %s28
    %p535 = scmp.lt.s32.totalorder %s28, 3
    %p536 = pnand %p534, %p535
    %p537 = pneg %p536
    // Predicated region
    $region9: #{wave_transformer_forward.2} parent=5 // pred_check
      _
    $region10: #{wave_transformer_forward.2} parent=5 // pred_check_branch
      %539 = sbr.rel (%p536) target = $region12
    $region11: #{wave_transformer_forward.2} parent=5 // pred_region
      %s540 = ssub.s32 %s28, 1
      // Predicated region
      $region13: #{wave_transformer_forward.2} parent=11 // pred_check
        %p541 = pneg %p101
      $region14: #{wave_transformer_forward.2} parent=11 // pred_check_branch
        %543 = sbr.rel (%p541) target = $region16
      $region15: #{wave_transformer_forward.2} parent=11 // pred_region
        _
      $region16: #{wave_transformer_forward.2} parent=11 // pred_fallthru
        _
      // Predicated region
      $region17: #{wave_transformer_forward.2} parent=11 // pred_check
        %p544 = pneg %p122
      $region18: #{wave_transformer_forward.2} parent=11 // pred_check_branch
        %546 = sbr.rel (%p544) target = $region20
      $region19: #{wave_transformer_forward.2} parent=11 // pred_region
        _
      $region20: #{wave_transformer_forward.2} parent=11 // pred_fallthru
        _
      // Predicated region
      $region21: #{wave_transformer_forward.2} parent=11 // pred_check
        %p547 = pneg %p143
      $region22: #{wave_transformer_forward.2} parent=11 // pred_check_branch
        %549 = sbr.rel (%p547) target = $region24
      $region23: #{wave_transformer_forward.2} parent=11 // pred_region
        _
      $region24: #{wave_transformer_forward.2} parent=11 // pred_fallthru
        _
      // Predicated region
      $region25: #{wave_transformer_forward.2} parent=11 // pred_check
        %p550 = pneg %p164
      $region26: #{wave_transformer_forward.2} parent=11 // pred_check_branch
        %552 = sbr.rel (%p550) target = $region28
      $region27: #{wave_transformer_forward.2} parent=11 // pred_region
        _
      $region28: #{wave_transformer_forward.2} parent=11 // pred_fallthru
        _
      // Predicated region
      $region29: #{wave_transformer_forward.2} parent=11 // pred_check
        %p553 = pneg %p185
      $region30: #{wave_transformer_forward.2} parent=11 // pred_check_branch
        %555 = sbr.rel (%p553) target = $region32
      $region31: #{wave_transformer_forward.2} parent=11 // pred_region
        _
      $region32: #{wave_transformer_forward.2} parent=11 // pred_fallthru
        _
      // Predicated region
      $region33: #{wave_transformer_forward.2} parent=11 // pred_check
        %p556 = pneg %p206
      $region34: #{wave_transformer_forward.2} parent=11 // pred_check_branch
        %558 = sbr.rel (%p556) target = $region36
      $region35: #{wave_transformer_forward.2} parent=11 // pred_region
        _
      $region36: #{wave_transformer_forward.2} parent=11 // pred_fallthru
        _
      // Predicated region
      $region37: #{wave_transformer_forward.2} parent=11 // pred_check
        %p559 = pneg %p227
      $region38: #{wave_transformer_forward.2} parent=11 // pred_check_branch
        %561 = sbr.rel (%p559) target = $region40
      $region39: #{wave_transformer_forward.2} parent=11 // pred_region
        _
      $region40: #{wave_transformer_forward.2} parent=11 // pred_fallthru
        _
      // Predicated region
      $region41: #{wave_transformer_forward.2} parent=11 // pred_check
        %p562 = pneg %p248
      $region42: #{wave_transformer_forward.2} parent=11 // pred_check_branch
        %564 = sbr.rel (%p562) target = $region44
      $region43: #{wave_transformer_forward.2} parent=11 // pred_region
        _
      $region44: #{wave_transformer_forward.2} parent=11 // pred_fallthru
        _
      // Predicated region
      $region45: #{wave_transformer_forward.2} parent=11 // pred_check
        %p565 = pneg %p269
      $region46: #{wave_transformer_forward.2} parent=11 // pred_check_branch
        %567 = sbr.rel (%p565) target = $region48
      $region47: #{wave_transformer_forward.2} parent=11 // pred_region
        _
      $region48: #{wave_transformer_forward.2} parent=11 // pred_fallthru
        _
      // Predicated region
      $region49: #{wave_transformer_forward.2} parent=11 // pred_check
        %p568 = pneg %p290
      $region50: #{wave_transformer_forward.2} parent=11 // pred_check_branch
        %570 = sbr.rel (%p568) target = $region52
      $region51: #{wave_transformer_forward.2} parent=11 // pred_region
        _
      $region52: #{wave_transformer_forward.2} parent=11 // pred_fallthru
        _
      // Predicated region
      $region53: #{wave_transformer_forward.2} parent=11 // pred_check
        %p571 = pneg %p311
      $region54: #{wave_transformer_forward.2} parent=11 // pred_check_branch
        %573 = sbr.rel (%p571) target = $region56
      $region55: #{wave_transformer_forward.2} parent=11 // pred_region
        _
      $region56: #{wave_transformer_forward.2} parent=11 // pred_fallthru
        _
      // Predicated region
      $region57: #{wave_transformer_forward.2} parent=11 // pred_check
        %p574 = pneg %p332
      $region58: #{wave_transformer_forward.2} parent=11 // pred_check_branch
        %576 = sbr.rel (%p574) target = $region60
      $region59: #{wave_transformer_forward.2} parent=11 // pred_region
        _
      $region60: #{wave_transformer_forward.2} parent=11 // pred_fallthru
        _
      // Predicated region
      $region61: #{wave_transformer_forward.2} parent=11 // pred_check
        %p577 = pneg %p353
      $region62: #{wave_transformer_forward.2} parent=11 // pred_check_branch
        %579 = sbr.rel (%p577) target = $region64
      $region63: #{wave_transformer_forward.2} parent=11 // pred_region
        _
      $region64: #{wave_transformer_forward.2} parent=11 // pred_fallthru
        _
      // Predicated region
      $region65: #{wave_transformer_forward.2} parent=11 // pred_check
        %p580 = pneg %p374
      $region66: #{wave_transformer_forward.2} parent=11 // pred_check_branch
        %582 = sbr.rel (%p580) target = $region68
      $region67: #{wave_transformer_forward.2} parent=11 // pred_region
        _
      $region68: #{wave_transformer_forward.2} parent=11 // pred_fallthru
        _
      // Predicated region
      $region69: #{wave_transformer_forward.2} parent=11 // pred_check
        %p583 = pneg %p395
      $region70: #{wave_transformer_forward.2} parent=11 // pred_check_branch
        %585 = sbr.rel (%p583) target = $region72
      $region71: #{wave_transformer_forward.2} parent=11 // pred_region
        _
      $region72: #{wave_transformer_forward.2} parent=11 // pred_fallthru
        _
      // Predicated region
      $region73: #{wave_transformer_forward.2} parent=11 // pred_check
        %p586 = pneg %p416
      $region74: #{wave_transformer_forward.2} parent=11 // pred_check_branch
        %588 = sbr.rel (%p586) target = $region76
      $region75: #{wave_transformer_forward.2} parent=11 // pred_region
        _
      $region76: #{wave_transformer_forward.2} parent=11 // pred_fallthru
        _
      // Predicated region
      $region77: #{wave_transformer_forward.2} parent=11 // pred_check
        %p589 = pneg %p437
      $region78: #{wave_transformer_forward.2} parent=11 // pred_check_branch
        %591 = sbr.rel (%p589) target = $region80
      $region79: #{wave_transformer_forward.2} parent=11 // pred_region
        _
      $region80: #{wave_transformer_forward.2} parent=11 // pred_fallthru
        _
      // Predicated region
      $region81: #{wave_transformer_forward.2} parent=11 // pred_check
        %p592 = pneg %p458
      $region82: #{wave_transformer_forward.2} parent=11 // pred_check_branch
        %594 = sbr.rel (%p592) target = $region84
      $region83: #{wave_transformer_forward.2} parent=11 // pred_region
        _
      $region84: #{wave_transformer_forward.2} parent=11 // pred_fallthru
        _
      // Predicated region
      $region85: #{wave_transformer_forward.2} parent=11 // pred_check
        %p595 = pneg %p479
      $region86: #{wave_transformer_forward.2} parent=11 // pred_check_branch
        %597 = sbr.rel (%p595) target = $region88
      $region87: #{wave_transformer_forward.2} parent=11 // pred_region
        _
      $region88: #{wave_transformer_forward.2} parent=11 // pred_fallthru
        _
      // Predicated region
      $region89: #{wave_transformer_forward.2} parent=11 // pred_check
        %p598 = pneg %p500
      $region90: #{wave_transformer_forward.2} parent=11 // pred_check_branch
        %600 = sbr.rel (%p598) target = $region92
      $region91: #{wave_transformer_forward.2} parent=11 // pred_region
        _
      $region92: #{wave_transformer_forward.2} parent=11 // pred_fallthru
        _
    $region12: #{wave_transformer_forward.2} parent=5 // pred_fallthru
      _
    %p601 = scmp.lt.s32.totalorder %s28, 2
    // Predicated region
    $region93: #{wave_transformer_forward.2} parent=5 // pred_check
      %p602 = pneg %p601
    $region94: #{wave_transformer_forward.2} parent=5 // pred_check_branch
      %604 = sbr.rel (%p602) target = $region96
    $region95: #{wave_transformer_forward.2} parent=5 // pred_region
      // Predicated region
      $region97: #{wave_transformer_forward.2} parent=95 // pred_check
        %p605 = pneg %p48
      $region98: #{wave_transformer_forward.2} parent=95 // pred_check_branch
        %607 = sbr.rel (%p605) target = $region100
      $region99: #{wave_transformer_forward.2} parent=95 // pred_region
        %p608 = scmp.lt.s32.totalorder %s28, 1
        %s609 = scalar_select %p608, %s28, 1
        %s610 = smul.addr %s609, 4
        %s611 = smul.addr %s610, 8
        %s612 = scalar_lea.vmem %s0, %s611
      $region100: #{wave_transformer_forward.2} parent=95 // pred_fallthru
        _
      // Predicated region
      $region101: #{wave_transformer_forward.2} parent=95 // pred_check
        %p613 = pneg %p74
      $region102: #{wave_transformer_forward.2} parent=95 // pred_check_branch
        %615 = sbr.rel (%p613) target = $region104
      $region103: #{wave_transformer_forward.2} parent=95 // pred_region
        %p616 = scmp.lt.s32.totalorder %s28, 1
        %s617 = scalar_select %p616, %s28, 1
        %s618 = smul.addr %s617, 4
        %s619 = smul.addr %s618, 8
        %s620 = scalar_lea.vmem %s1, %s619
      $region104: #{wave_transformer_forward.2} parent=95 // pred_fallthru
        _
    $region96: #{wave_transformer_forward.2} parent=5 // pred_fallthru
      _
    %p621 = scmp.le.s32.totalorder 1, %s28
    %p622 = scmp.lt.s32.totalorder %s28, 3
    %p623 = pnand %p621, %p622
    %p624 = pneg %p623
    // Predicated region
    $region105: #{wave_transformer_forward.2} parent=5 // pred_check
      _
    $region106: #{wave_transformer_forward.2} parent=5 // pred_check_branch
      %626 = sbr.rel (%p623) target = $region108
    $region107: #{wave_transformer_forward.2} parent=5 // pred_region
      %s627 = ssub.s32 %s28, 1
      %p628 = scmp.lt.s32.totalorder %s33, 1
      %s629 = scalar_select %p628, %s33, 1
      %s630 = smul.addr %s629, 4
      %s631 = smul.addr %s630, 8
      %s632 = scalar_lea.vmem %s0, %s631
      %p633 = pneg %p54
      %p634 = pneg %p51
      %p635 = scmp.lt.s32.totalorder %s33, 1
      %s636 = scalar_select %p635, %s33, 1
      %s637 = smul.addr %s636, 4
      %s638 = smul.addr %s637, 8
      %s639 = scalar_lea.vmem %s1, %s638
      %p640 = pneg %p80
      %p641 = pneg %p77
      %p642 = pneg %p101
      %p643 = pneg %p98
      %p644 = pneg %p122
      %p645 = pneg %p119
      %p646 = pneg %p143
      %p647 = pneg %p140
      %p648 = pneg %p164
      %p649 = pneg %p161
      %p650 = pneg %p185
      %p651 = pneg %p182
      %p652 = pneg %p206
      %p653 = pneg %p203
      %p654 = pneg %p227
      %p655 = pneg %p224
      %p656 = pneg %p248
      %p657 = pneg %p245
      %p658 = pneg %p269
      %p659 = pneg %p266
      %p660 = pneg %p290
      %p661 = pneg %p287
      %p662 = pneg %p311
      %p663 = pneg %p308
      %p664 = pneg %p332
      %p665 = pneg %p329
      %p666 = pneg %p353
      %p667 = pneg %p350
      %p668 = pneg %p374
      %p669 = pneg %p371
      %p670 = pneg %p395
      %p671 = pneg %p392
      %p672 = pneg %p416
      %p673 = pneg %p413
      %p674 = pneg %p437
      %p675 = pneg %p434
      %p676 = pneg %p458
      %p677 = pneg %p455
      %p678 = pneg %p479
      %p679 = pneg %p476
      %p680 = pneg %p500
      %p681 = pneg %p497
      %p682 = pneg %p526
      %p683 = pneg %p523
      %p684 = scmp.lt.s32.totalorder %s33, 1
      %s685 = scalar_select %p684, %s33, 1
      %s686 = smul.addr %s685, 4
      %s687 = smul.addr %s686, 8
      %s688 = scalar_lea.vmem %s22, %s687
      %p689 = scmp.lt.s32.totalorder %s33, 1
      %s690 = scalar_select %p689, %s33, 1
      %s691 = smul.addr %s690, 4
      %s692 = smul.addr %s691, 8
      %s693 = scalar_lea.vmem %s0, %s692
      %p694 = scmp.lt.s32.totalorder %s33, 1
      %s695 = scalar_select %p694, %s33, 1
      %s696 = smul.addr %s695, 4
      %s697 = smul.addr %s696, 8
      %s698 = scalar_lea.vmem %s1, %s697
      %p699 = scmp.lt.s32.totalorder %s33, 1
      %s700 = scalar_select %p699, %s33, 1
      %s701 = smul.addr %s700, 4
      %s702 = smul.addr %s701, 8
      %s703 = scalar_lea.vmem %s22, %s702
      %v705 = vld [vmem:[%s693] sm:$0xff]
      %v706 = vld [vmem:[%s693 + $0x8] sm:$0xff]
      %v707 = vld [vmem:[%s693 + $0x10] sm:$0xff]
      %v708 = vld [vmem:[%s693 + $0x18] sm:$0xff]
      %v709 = vld [vmem:[%s2] sm:$0xf]
      %v710 = vpack.c.bf16 %v706, %v705
      %v711 = vpack.c.bf16 %v708, %v707
      %v712 = vld [vmem:[%s3] sm:$0x1]
      %v714 = vlaneseq
      %v715 = vshrl.u32 %v714, 7
      %v716 = vsub.s32 0, %v715
      %v717 = vrot.slane %v712, %v716
      %vm719 = vcmask 64512
      %v721 = vsel %vm719, %v710, 0
      %v724 = vsel %vm719, %v711, 0
      %vm726 = vcmask 1043456
      %v728 = vsel %vm726, %v709, 0
      %730 = vmatprep.subr.bf16.mxu0 0
      %731 = vmatpush1.bf16.msra.mxu0 %v728
      %732 = vmatprep.subr.bf16.mxu0 0
      %733 = vmatpush1.bf16.msra.mxu0 0
      %734 = vmatprep.subr.bf16.mxu0 0
      %735 = vmatpush1.bf16.msra.mxu0 0
      %736 = vmatprep.subr.bf16.mxu0 0
      %737 = vmatpush1.bf16.msra.mxu0 0
      %738 = vmatprep.subr.bf16.mxu0 0
      %739 = vmatpush1.bf16.msra.mxu0 0
      %740 = vmatprep.subr.bf16.mxu0 0
      %741 = vmatpush1.bf16.msra.mxu0 0
      %742 = vmatprep.subr.bf16.mxu0 0
      %743 = vmatpush1.bf16.msra.mxu0 0
      %744 = vmatprep.subr.bf16.mxu0 0
      %745 = vmatpush1.bf16.msra.mxu0 0
      %746 = vmatprep.subr.bf16.mxu0 0
      %747 = vmatpush1.bf16.msra.mxu0 0
      %748 = vmatprep.subr.bf16.mxu0 0
      %749 = vmatpush1.bf16.msra.mxu0 0
      %750 = vmatprep.subr.bf16.mxu0 0
      %751 = vmatpush1.bf16.msra.mxu0 0
      %752 = vmatprep.subr.bf16.mxu0 0
      %753 = vmatpush1.bf16.msra.mxu0 0
      %754 = vmatprep.subr.bf16.mxu0 0
      %755 = vmatpush1.bf16.msra.mxu0 0
      %756 = vmatprep.subr.bf16.mxu0 0
      %757 = vmatpush1.bf16.msra.mxu0 0
      %758 = vmatprep.subr.bf16.mxu0 0
      %759 = vmatpush1.bf16.msra.mxu0 0
      %760 = vmatprep.subr.bf16.mxu0 0
      %761 = vmatpush1.bf16.msra.mxu0 0
      %762 = vmatprep.mubr.bf16.mxu0 0
      %763 = vmatmul.mubr.bf16.gmra.mrb[0].mxu0 %v721
      %v764 = vpop.f32.mrb[0].mxu0
      %v765 = vadd.f32 %v717, %v764
      %v766 = vpop.f32.mrb[0].mxu0
      %v767 = vpop.f32.mrb[0].mxu0
      %v768 = vadd.f32 %v717, %v767
      %v769 = vpop.f32.mrb[0].mxu0
      %770 = vmatprep.mubr.bf16.mxu0 0
      %771 = vmatmul.mubr.bf16.gmra.mrb[0].mxu0 %v724
      %v772 = vpop.f32.mrb[0].mxu0
      %v773 = vadd.f32 %v717, %v772
      %v774 = vpop.f32.mrb[0].mxu0
      %v775 = vpop.f32.mrb[0].mxu0
      %v776 = vadd.f32 %v717, %v775
      %v777 = vpop.f32.mrb[0].mxu0
      %778 = vdwg.mxu0
      %v779 = vld [vmem:[%s4] sm:$0x1]
      %v780 = vld [vmem:[%s5] sm:$0x1]
      %vm781 = vcmask 261120
      %v782 = vsel %vm781, %v765, 0.0
      %783 = vadd.xlane.f32.xlu0 %v782
      %v784 = vpop.xlane.xlu0 %783
      %v785 = vsel %vm781, %v768, 0.0
      %786 = vadd.xlane.f32.xlu0 %v785
      %v787 = vpop.xlane.xlu0 %786
      %v788 = vsel %vm781, %v773, 0.0
      %789 = vadd.xlane.f32.xlu0 %v788
      %v790 = vpop.xlane.xlu0 %789
      %v791 = vsel %vm781, %v776, 0.0
      %792 = vadd.xlane.f32.xlu0 %v791
      %v793 = vpop.xlane.xlu0 %792
      %v794 = vrcp.pop 32.0
      %v795 = vmul.f32 %v784, %v794
      %v796 = vmul.f32 %v787, %v794
      %v797 = vmul.f32 %v790, %v794
      %v798 = vmul.f32 %v793, %v794
      %v799 = vsub.f32 %v765, %v795
      %v800 = vsub.f32 %v768, %v796
      %v801 = vsub.f32 %v773, %v797
      %v802 = vsub.f32 %v776, %v798
      %v803 = vmul.f32 %v799, %v799
      %v804 = vmul.f32 %v800, %v800
      %v805 = vmul.f32 %v801, %v801
      %v806 = vmul.f32 %v802, %v802
      %v807 = vsel %vm781, %v803, 0.0
      %808 = vadd.xlane.f32.xlu0 %v807
      %v809 = vpop.xlane.xlu0 %808
      %v810 = vsel %vm781, %v804, 0.0
      %811 = vadd.xlane.f32.xlu0 %v810
      %v812 = vpop.xlane.xlu0 %811
      %v813 = vsel %vm781, %v805, 0.0
      %814 = vadd.xlane.f32.xlu0 %v813
      %v815 = vpop.xlane.xlu0 %814
      %v816 = vsel %vm781, %v806, 0.0
      %817 = vadd.xlane.f32.xlu0 %v816
      %v818 = vpop.xlane.xlu0 %817
      %v819 = vmul.f32 %v809, %v794
      %v820 = vmul.f32 %v812, %v794
      %v821 = vmul.f32 %v815, %v794
      %v822 = vmul.f32 %v818, %v794
      %v823 = vadd.f32 %v819, 1e-05
      %v824 = vadd.f32 %v820, 1e-05
      %v825 = vadd.f32 %v821, 1e-05
      %v826 = vadd.f32 %v822, 1e-05
      %v827 = vrsqrt.pop %v823
      %v828 = vrsqrt.pop %v824
      %v829 = vrsqrt.pop %v825
      %v830 = vrsqrt.pop %v826
      %v831 = vmul.f32 %v799, %v827
      %v832 = vmul.f32 %v800, %v828
      %v833 = vmul.f32 %v801, %v829
      %v834 = vmul.f32 %v802, %v830
      %v836 = vlaneseq
      %v837 = vshrl.u32 %v836, 7
      %v838 = vsub.s32 0, %v837
      %v839 = vrot.slane %v779, %v838
      %v841 = vmul.f32 %v831, %v839
      %v842 = vmul.f32 %v832, %v839
      %v843 = vmul.f32 %v833, %v839
      %v844 = vmul.f32 %v834, %v839
      %v846 = vlaneseq
      %v847 = vshrl.u32 %v846, 7
      %v848 = vsub.s32 0, %v847
      %v849 = vrot.slane %v780, %v848
      %v851 = vadd.f32 %v841, %v849
      %v852 = vadd.f32 %v842, %v849
      %v853 = vadd.f32 %v843, %v849
      %v854 = vadd.f32 %v844, %v849
      %v855 = vld [vmem:[%s698] sm:$0xff]
      %v856 = vld [vmem:[%s698 + $0x8] sm:$0xff]
      %v857 = vld [vmem:[%s698 + $0x10] sm:$0xff]
      %v858 = vld [vmem:[%s698 + $0x18] sm:$0xff]
      %v859 = vadd.f32 %v851, %v855
      %v860 = vadd.f32 %v852, %v856
      %v861 = vadd.f32 %v853, %v857
      %v862 = vadd.f32 %v854, %v858
      %v863 = vld [vmem:[%s6] sm:$0xf]
      %v864 = vld [vmem:[%s6 + $0x4] sm:$0xf]
      %v865 = vld [vmem:[%s6 + $0x8] sm:$0xf]
      %v866 = vld [vmem:[%s6 + $0xc] sm:$0xf]
      %v867 = vld [vmem:[%s7] sm:$0x1]
      %v868 = vld [vmem:[%s8] sm:$0xf]
      %v869 = vld [vmem:[%s8 + $0x4] sm:$0xf]
      %v870 = vld [vmem:[%s8 + $0x8] sm:$0xf]
      %v871 = vld [vmem:[%s8 + $0xc] sm:$0xf]
      %v872 = vld [vmem:[%s9] sm:$0x1]
      %v873 = vld [vmem:[%s10] sm:$0x1]
      %v874 = vld [vmem:[%s11] sm:$0x1]
      %v875 = vld [vmem:[%s12] sm:$0xf]
      %v876 = vld [vmem:[%s12 + $0x4] sm:$0xf]
      %v877 = vld [vmem:[%s12 + $0x8] sm:$0xf]
      %v878 = vld [vmem:[%s12 + $0xc] sm:$0xf]
      %v879 = vld [vmem:[%s13] sm:$0x1]
      %v880 = vld [vmem:[%s14] sm:$0xf]
      %v881 = vld [vmem:[%s14 + $0x4] sm:$0xf]
      %v882 = vld [vmem:[%s14 + $0x8] sm:$0xf]
      %v883 = vld [vmem:[%s14 + $0xc] sm:$0xf]
      %v884 = vld [vmem:[%s14 + $0x10] sm:$0xf]
      %v885 = vld [vmem:[%s14 + $0x14] sm:$0xf]
      %v886 = vld [vmem:[%s14 + $0x18] sm:$0xf]
      %v887 = vld [vmem:[%s14 + $0x1c] sm:$0xf]
      %v888 = vld [vmem:[%s14 + $0x20] sm:$0xf]
      %v889 = vld [vmem:[%s14 + $0x24] sm:$0xf]
      %v890 = vld [vmem:[%s14 + $0x28] sm:$0xf]
      %v891 = vld [vmem:[%s14 + $0x2c] sm:$0xf]
      %v892 = vld [vmem:[%s14 + $0x30] sm:$0xf]
      %v893 = vld [vmem:[%s14 + $0x34] sm:$0xf]
      %v894 = vld [vmem:[%s14 + $0x38] sm:$0xf]
      %v895 = vld [vmem:[%s14 + $0x3c] sm:$0xf]
      %v896 = vld [vmem:[%s15] sm:$0x1]
      %v897 = vld [vmem:[%s16] sm:$0x1]
      %v898 = vld [vmem:[%s17] sm:$0x1]
      %v899 = vld [vmem:[%s18] sm:$0xf]
      %v900 = vld [vmem:[%s18 + $0x4] sm:$0xf]
      %v901 = vld [vmem:[%s18 + $0x8] sm:$0xf]
      %v902 = vld [vmem:[%s18 + $0xc] sm:$0xf]
      %v903 = vld [vmem:[%s19] sm:$0x1]
      %v904 = vpack.c.bf16 %v860, %v859
      %v905 = vpack.c.bf16 %v862, %v861
      %v907 = vlaneseq
      %v908 = vshrl.u32 %v907, 7
      %v909 = vsub.s32 0, %v908
      %v910 = vrot.slane %v867, %v909
      %v916 = vunpack.c.l.b16 %v863
      %v917 = vunpack.c.l.b16 %v864
      %v918 = vunpack.c.l.b16 %v865
      %v919 = vunpack.c.l.b16 %v866
      %v920 = vpack.c.b16 %v917, %v916
      %v921 = vpack.c.b16 %v919, %v918
      %v925 = vsel %vm781, %v904, 0
      %v928 = vsel %vm781, %v905, 0
      %930 = vmatprep.subr.bf16.mxu0 0
      %931 = vmatpush1.bf16.msra.mxu0 %v920
      %932 = vmatprep.subr.bf16.mxu0 0
      %933 = vmatpush1.bf16.msra.mxu0 %v921
      %934 = vmatprep.subr.bf16.mxu0 0
      %935 = vmatpush1.bf16.msra.mxu0 0
      %936 = vmatprep.subr.bf16.mxu0 0
      %937 = vmatpush1.bf16.msra.mxu0 0
      %938 = vmatprep.subr.bf16.mxu0 0
      %939 = vmatpush1.bf16.msra.mxu0 0
      %940 = vmatprep.subr.bf16.mxu0 0
      %941 = vmatpush1.bf16.msra.mxu0 0
      %942 = vmatprep.subr.bf16.mxu0 0
      %943 = vmatpush1.bf16.msra.mxu0 0
      %944 = vmatprep.subr.bf16.mxu0 0
      %945 = vmatpush1.bf16.msra.mxu0 0
      %946 = vmatprep.subr.bf16.mxu0 0
      %947 = vmatpush1.bf16.msra.mxu0 0
      %948 = vmatprep.subr.bf16.mxu0 0
      %949 = vmatpush1.bf16.msra.mxu0 0
      %950 = vmatprep.subr.bf16.mxu0 0
      %951 = vmatpush1.bf16.msra.mxu0 0
      %952 = vmatprep.subr.bf16.mxu0 0
      %953 = vmatpush1.bf16.msra.mxu0 0
      %954 = vmatprep.subr.bf16.mxu0 0
      %955 = vmatpush1.bf16.msra.mxu0 0
      %956 = vmatprep.subr.bf16.mxu0 0
      %957 = vmatpush1.bf16.msra.mxu0 0
      %958 = vmatprep.subr.bf16.mxu0 0
      %959 = vmatpush1.bf16.msra.mxu0 0
      %960 = vmatprep.subr.bf16.mxu0 0
      %961 = vmatpush1.bf16.msra.mxu0 0
      %962 = vmatprep.mubr.bf16.mxu0 0
      %963 = vmatmul.mubr.bf16.gmra.mrb[0].mxu0 %v925
      %v964 = vpop.f32.mrb[0].mxu0
      %v965 = vadd.f32 %v910, %v964
      %v966 = vpop.f32.mrb[0].mxu0
      %v967 = vpop.f32.mrb[0].mxu0
      %v968 = vadd.f32 %v910, %v967
      %v969 = vpop.f32.mrb[0].mxu0
      %970 = vmatprep.mubr.bf16.mxu0 0
      %971 = vmatmul.mubr.bf16.gmra.mrb[0].mxu0 %v928
      %v972 = vpop.f32.mrb[0].mxu0
      %v973 = vadd.f32 %v910, %v972
      %v974 = vpop.f32.mrb[0].mxu0
      %v975 = vpop.f32.mrb[0].mxu0
      %v976 = vadd.f32 %v910, %v975
      %v977 = vpop.f32.mrb[0].mxu0
      %978 = vdwg.mxu0
      %v979 = vpack.c.bf16 %v968, %v965
      %v980 = vpack.c.bf16 %v976, %v973
      %983 = vrot.lane.b32.xlu0 %v979, 96
      %v984 = vpop.permute.xlu0 %983
      %985 = vrot.lane.b32.xlu0 %v980, 96
      %v986 = vpop.permute.xlu0 %985
      %v988 = vsel %vm719, %v979, 0
      %v991 = vsel %vm719, %v980, 0
      %v994 = vsel %vm719, %v984, 0
      %v997 = vsel %vm719, %v986, 0
      %999 = vmatprep.subr.bf16.mxu0 0
      %1000 = vmatpush1.bf16.xpose.msra.mxu0 %v994
      %1001 = vmatprep.subr.bf16.mxu0 0
      %1002 = vmatpush1.bf16.xpose.msra.mxu0 %v997
      %1003 = vmatprep.subr.bf16.mxu0 0
      %1004 = vmatpush1.bf16.xpose.msra.mxu0 0
      %1005 = vmatprep.subr.bf16.mxu0 0
      %1006 = vmatpush1.bf16.xpose.msra.mxu0 0
      %1007 = vmatprep.subr.bf16.mxu0 0
      %1008 = vmatpush1.bf16.xpose.msra.mxu0 0
      %1009 = vmatprep.subr.bf16.mxu0 0
      %1010 = vmatpush1.bf16.xpose.msra.mxu0 0
      %1011 = vmatprep.subr.bf16.mxu0 0
      %1012 = vmatpush1.bf16.xpose.msra.mxu0 0
      %1013 = vmatprep.subr.bf16.mxu0 0
      %1014 = vmatpush1.bf16.xpose.msra.mxu0 0
      %1015 = vmatprep.subr.bf16.mxu0 0
      %1016 = vmatpush1.bf16.xpose.msra.mxu0 0
      %1017 = vmatprep.subr.bf16.mxu0 0
      %1018 = vmatpush1.bf16.xpose.msra.mxu0 0
      %1019 = vmatprep.subr.bf16.mxu0 0
      %1020 = vmatpush1.bf16.xpose.msra.mxu0 0
      %1021 = vmatprep.subr.bf16.mxu0 0
      %1022 = vmatpush1.bf16.xpose.msra.mxu0 0
      %1023 = vmatprep.subr.bf16.mxu0 0
      %1024 = vmatpush1.bf16.xpose.msra.mxu0 0
      %1025 = vmatprep.subr.bf16.mxu0 0
      %1026 = vmatpush1.bf16.xpose.msra.mxu0 0
      %1027 = vmatprep.subr.bf16.mxu0 0
      %1028 = vmatpush1.bf16.xpose.msra.mxu0 0
      %1029 = vmatprep.subr.bf16.mxu0 0
      %1030 = vmatpush1.bf16.xpose.msra.mxu0 0
      %1031 = vmatprep.mubr.bf16.mxu0 0
      %1032 = vmatmul.mubr.bf16.gmra.mrb[0].mxu0 %v988
      %v1033 = vpop.f32.mrb[0].mxu0
      %v1034 = vadd.f32 0.0, %v1033
      %v1035 = vpop.f32.mrb[0].mxu0
      %v1036 = vpop.f32.mrb[0].mxu0
      %v1037 = vadd.f32 0.0, %v1036
      %v1038 = vpop.f32.mrb[0].mxu0
      %1039 = vmatprep.mubr.bf16.mxu0 0
      %1040 = vmatmul.mubr.bf16.gmra.mrb[0].mxu0 %v991
      %v1041 = vpop.f32.mrb[0].mxu0
      %v1042 = vadd.f32 0.0, %v1041
      %v1043 = vpop.f32.mrb[0].mxu0
      %v1044 = vpop.f32.mrb[0].mxu0
      %v1045 = vadd.f32 0.0, %v1044
      %v1046 = vpop.f32.mrb[0].mxu0
      %1047 = vdwg.mxu0
      %v1048 = vsel %vm781, %v1034, -inf
      %1049 = vmax.xlane.f32.xlu0 %v1048
      %v1050 = vpop.xlane.xlu0 %1049
      %v1051 = vsel %vm781, %v1037, -inf
      %1052 = vmax.xlane.f32.xlu0 %v1051
      %v1053 = vpop.xlane.xlu0 %1052
      %v1054 = vsel %vm781, %v1042, -inf
      %1055 = vmax.xlane.f32.xlu0 %v1054
      %v1056 = vpop.xlane.xlu0 %1055
      %v1057 = vsel %vm781, %v1045, -inf
      %1058 = vmax.xlane.f32.xlu0 %v1057
      %v1059 = vpop.xlane.xlu0 %1058
      %v1060 = vsub.f32 %v1034, %v1050
      %v1061 = vsub.f32 %v1037, %v1053
      %v1062 = vsub.f32 %v1042, %v1056
      %v1063 = vsub.f32 %v1045, %v1059
      %v1064 = vmul.f32 %v1060, 1.442695
      %v1065 = vpow.pop %v1064
      %v1066 = vmul.f32 %v1061, 1.442695
      %v1067 = vpow.pop %v1066
      %v1068 = vmul.f32 %v1062, 1.442695
      %v1069 = vpow.pop %v1068
      %v1070 = vmul.f32 %v1063, 1.442695
      %v1071 = vpow.pop %v1070
      %v1072 = vsel %vm781, %v1065, 0.0
      %1073 = vadd.xlane.f32.xlu0 %v1072
      %v1074 = vpop.xlane.xlu0 %1073
      %v1075 = vsel %vm781, %v1067, 0.0
      %1076 = vadd.xlane.f32.xlu0 %v1075
      %v1077 = vpop.xlane.xlu0 %1076
      %v1078 = vsel %vm781, %v1069, 0.0
      %1079 = vadd.xlane.f32.xlu0 %v1078
      %v1080 = vpop.xlane.xlu0 %1079
      %v1081 = vsel %vm781, %v1071, 0.0
      %1082 = vadd.xlane.f32.xlu0 %v1081
      %v1083 = vpop.xlane.xlu0 %1082
      %v1084 = vrcp.pop %v1074
      %v1085 = vrcp.pop %v1077
      %v1086 = vrcp.pop %v1080
      %v1087 = vrcp.pop %v1083
      %v1088 = vmul.f32 %v1065, %v1084
      %v1089 = vmul.f32 %v1067, %v1085
      %v1090 = vmul.f32 %v1069, %v1086
      %v1091 = vmul.f32 %v1071, %v1087
      %v1092 = vpack.c.bf16 %v1089, %v1088
      %v1093 = vpack.c.bf16 %v1091, %v1090
      %1094 = vrot.lane.b32.xlu0 %v979, 64
      %v1095 = vpop.permute.xlu0 %1094
      %1096 = vrot.lane.b32.xlu0 %v980, 64
      %v1097 = vpop.permute.xlu0 %1096
      %v1101 = vsel %vm781, %v1092, 0
      %v1104 = vsel %vm781, %v1093, 0
      %1106 = vmatprep.subr.bf16.mxu0 0
      %1107 = vmatpush1.bf16.msra.mxu0 %v1095
      %1108 = vmatprep.subr.bf16.mxu0 0
      %1109 = vmatpush1.bf16.msra.mxu0 %v1097
      %1110 = vmatprep.subr.bf16.mxu0 0
      %1111 = vmatpush1.bf16.msra.mxu0 0
      %1112 = vmatprep.subr.bf16.mxu0 0
      %1113 = vmatpush1.bf16.msra.mxu0 0
      %1114 = vmatprep.subr.bf16.mxu0 0
      %1115 = vmatpush1.bf16.msra.mxu0 0
      %1116 = vmatprep.subr.bf16.mxu0 0
      %1117 = vmatpush1.bf16.msra.mxu0 0
      %1118 = vmatprep.subr.bf16.mxu0 0
      %1119 = vmatpush1.bf16.msra.mxu0 0
      %1120 = vmatprep.subr.bf16.mxu0 0
      %1121 = vmatpush1.bf16.msra.mxu0 0
      %1122 = vmatprep.subr.bf16.mxu0 0
      %1123 = vmatpush1.bf16.msra.mxu0 0
      %1124 = vmatprep.subr.bf16.mxu0 0
      %1125 = vmatpush1.bf16.msra.mxu0 0
      %1126 = vmatprep.subr.bf16.mxu0 0
      %1127 = vmatpush1.bf16.msra.mxu0 0
      %1128 = vmatprep.subr.bf16.mxu0 0
      %1129 = vmatpush1.bf16.msra.mxu0 0
      %1130 = vmatprep.subr.bf16.mxu0 0
      %1131 = vmatpush1.bf16.msra.mxu0 0
      %1132 = vmatprep.subr.bf16.mxu0 0
      %1133 = vmatpush1.bf16.msra.mxu0 0
      %1134 = vmatprep.subr.bf16.mxu0 0
      %1135 = vmatpush1.bf16.msra.mxu0 0
      %1136 = vmatprep.subr.bf16.mxu0 0
      %1137 = vmatpush1.bf16.msra.mxu0 0
      %1138 = vmatprep.mubr.bf16.mxu0 0
      %1139 = vmatmul.mubr.bf16.gmra.mrb[0].mxu0 %v1101
      %v1140 = vpop.f32.mrb[0].mxu0
      %v1141 = vadd.f32 0.0, %v1140
      %v1142 = vpop.f32.mrb[0].mxu0
      %v1143 = vpop.f32.mrb[0].mxu0
      %v1144 = vadd.f32 0.0, %v1143
      %v1145 = vpop.f32.mrb[0].mxu0
      %1146 = vmatprep.mubr.bf16.mxu0 0
      %1147 = vmatmul.mubr.bf16.gmra.mrb[0].mxu0 %v1104
      %v1148 = vpop.f32.mrb[0].mxu0
      %v1149 = vadd.f32 0.0, %v1148
      %v1150 = vpop.f32.mrb[0].mxu0
      %v1151 = vpop.f32.mrb[0].mxu0
      %v1152 = vadd.f32 0.0, %v1151
      %v1153 = vpop.f32.mrb[0].mxu0
      %1154 = vdwg.mxu0
      %1155 = vrot.lane.b32.xlu0 %v979, 120
      %v1156 = vpop.permute.xlu0 %1155
      %1157 = vrot.lane.b32.xlu0 %v980, 120
      %v1158 = vpop.permute.xlu0 %1157
      %1159 = vrot.lane.b32.xlu0 %v979, 88
      %v1160 = vpop.permute.xlu0 %1159
      %1161 = vrot.lane.b32.xlu0 %v980, 88
      %v1162 = vpop.permute.xlu0 %1161
      %v1164 = vsel %vm719, %v1156, 0
      %v1167 = vsel %vm719, %v1158, 0
      %v1170 = vsel %vm719, %v1160, 0
      %v1173 = vsel %vm719, %v1162, 0
      %1175 = vmatprep.subr.bf16.mxu0 0
      %1176 = vmatpush1.bf16.xpose.msra.mxu0 %v1170
      %1177 = vmatprep.subr.bf16.mxu0 0
      %1178 = vmatpush1.bf16.xpose.msra.mxu0 %v1173
      %1179 = vmatprep.subr.bf16.mxu0 0
      %1180 = vmatpush1.bf16.xpose.msra.mxu0 0
      %1181 = vmatprep.subr.bf16.mxu0 0
      %1182 = vmatpush1.bf16.xpose.msra.mxu0 0
      %1183 = vmatprep.subr.bf16.mxu0 0
      %1184 = vmatpush1.bf16.xpose.msra.mxu0 0
      %1185 = vmatprep.subr.bf16.mxu0 0
      %1186 = vmatpush1.bf16.xpose.msra.mxu0 0
      %1187 = vmatprep.subr.bf16.mxu0 0
      %1188 = vmatpush1.bf16.xpose.msra.mxu0 0
      %1189 = vmatprep.subr.bf16.mxu0 0
      %1190 = vmatpush1.bf16.xpose.msra.mxu0 0
      %1191 = vmatprep.subr.bf16.mxu0 0
      %1192 = vmatpush1.bf16.xpose.msra.mxu0 0
      %1193 = vmatprep.subr.bf16.mxu0 0
      %1194 = vmatpush1.bf16.xpose.msra.mxu0 0
      %1195 = vmatprep.subr.bf16.mxu0 0
      %1196 = vmatpush1.bf16.xpose.msra.mxu0 0
      %1197 = vmatprep.subr.bf16.mxu0 0
      %1198 = vmatpush1.bf16.xpose.msra.mxu0 0
      %1199 = vmatprep.subr.bf16.mxu0 0
      %1200 = vmatpush1.bf16.xpose.msra.mxu0 0
      %1201 = vmatprep.subr.bf16.mxu0 0
      %1202 = vmatpush1.bf16.xpose.msra.mxu0 0
      %1203 = vmatprep.subr.bf16.mxu0 0
      %1204 = vmatpush1.bf16.xpose.msra.mxu0 0
      %1205 = vmatprep.subr.bf16.mxu0 0
      %1206 = vmatpush1.bf16.xpose.msra.mxu0 0
      %1207 = vmatprep.mubr.bf16.mxu0 0
      %1208 = vmatmul.mubr.bf16.gmra.mrb[0].mxu0 %v1164
      %v1209 = vpop.f32.mrb[0].mxu0
      %v1210 = vadd.f32 0.0, %v1209
      %v1211 = vpop.f32.mrb[0].mxu0
      %v1212 = vpop.f32.mrb[0].mxu0
      %v1213 = vadd.f32 0.0, %v1212
      %v1214 = vpop.f32.mrb[0].mxu0
      %1215 = vmatprep.mubr.bf16.mxu0 0
      %1216 = vmatmul.mubr.bf16.gmra.mrb[0].mxu0 %v1167
      %v1217 = vpop.f32.mrb[0].mxu0
      %v1218 = vadd.f32 0.0, %v1217
      %v1219 = vpop.f32.mrb[0].mxu0
      %v1220 = vpop.f32.mrb[0].mxu0
      %v1221 = vadd.f32 0.0, %v1220
      %v1222 = vpop.f32.mrb[0].mxu0
      %1223 = vdwg.mxu0
      %v1224 = vsel %vm781, %v1210, -inf
      %1225 = vmax.xlane.f32.xlu0 %v1224
      %v1226 = vpop.xlane.xlu0 %1225
      %v1227 = vsel %vm781, %v1213, -inf
      %1228 = vmax.xlane.f32.xlu0 %v1227
      %v1229 = vpop.xlane.xlu0 %1228
      %v1230 = vsel %vm781, %v1218, -inf
      %1231 = vmax.xlane.f32.xlu0 %v1230
      %v1232 = vpop.xlane.xlu0 %1231
      %v1233 = vsel %vm781, %v1221, -inf
      %1234 = vmax.xlane.f32.xlu0 %v1233
      %v1235 = vpop.xlane.xlu0 %1234
      %v1236 = vsub.f32 %v1210, %v1226
      %v1237 = vsub.f32 %v1213, %v1229
      %v1238 = vsub.f32 %v1218, %v1232
      %v1239 = vsub.f32 %v1221, %v1235
      %v1240 = vmul.f32 %v1236, 1.442695
      %v1241 = vpow.pop %v1240
      %v1242 = vmul.f32 %v1237, 1.442695
      %v1243 = vpow.pop %v1242
      %v1244 = vmul.f32 %v1238, 1.442695
      %v1245 = vpow.pop %v1244
      %v1246 = vmul.f32 %v1239, 1.442695
      %v1247 = vpow.pop %v1246
      %v1248 = vsel %vm781, %v1241, 0.0
      %1249 = vadd.xlane.f32.xlu0 %v1248
      %v1250 = vpop.xlane.xlu0 %1249
      %v1251 = vsel %vm781, %v1243, 0.0
      %1252 = vadd.xlane.f32.xlu0 %v1251
      %v1253 = vpop.xlane.xlu0 %1252
      %v1254 = vsel %vm781, %v1245, 0.0
      %1255 = vadd.xlane.f32.xlu0 %v1254
      %v1256 = vpop.xlane.xlu0 %1255
      %v1257 = vsel %vm781, %v1247, 0.0
      %1258 = vadd.xlane.f32.xlu0 %v1257
      %v1259 = vpop.xlane.xlu0 %1258
      %v1260 = vrcp.pop %v1250
      %v1261 = vrcp.pop %v1253
      %v1262 = vrcp.pop %v1256
      %v1263 = vrcp.pop %v1259
      %v1264 = vmul.f32 %v1241, %v1260
      %v1265 = vmul.f32 %v1243, %v1261
      %v1266 = vmul.f32 %v1245, %v1262
      %v1267 = vmul.f32 %v1247, %v1263
      %v1268 = vpack.c.bf16 %v1265, %v1264
      %v1269 = vpack.c.bf16 %v1267, %v1266
      %1270 = vrot.lane.b32.xlu0 %v979, 56
      %v1271 = vpop.permute.xlu0 %1270
      %1272 = vrot.lane.b32.xlu0 %v980, 56
      %v1273 = vpop.permute.xlu0 %1272
      %v1277 = vsel %vm781, %v1268, 0
      %v1280 = vsel %vm781, %v1269, 0
      %1282 = vmatprep.subr.bf16.mxu0 0
      %1283 = vmatpush1.bf16.msra.mxu0 %v1271
      %1284 = vmatprep.subr.bf16.mxu0 0
      %1285 = vmatpush1.bf16.msra.mxu0 %v1273
      %1286 = vmatprep.subr.bf16.mxu0 0
      %1287 = vmatpush1.bf16.msra.mxu0 0
      %1288 = vmatprep.subr.bf16.mxu0 0
      %1289 = vmatpush1.bf16.msra.mxu0 0
      %1290 = vmatprep.subr.bf16.mxu0 0
      %1291 = vmatpush1.bf16.msra.mxu0 0
      %1292 = vmatprep.subr.bf16.mxu0 0
      %1293 = vmatpush1.bf16.msra.mxu0 0
      %1294 = vmatprep.subr.bf16.mxu0 0
      %1295 = vmatpush1.bf16.msra.mxu0 0
      %1296 = vmatprep.subr.bf16.mxu0 0
      %1297 = vmatpush1.bf16.msra.mxu0 0
      %1298 = vmatprep.subr.bf16.mxu0 0
      %1299 = vmatpush1.bf16.msra.mxu0 0
      %1300 = vmatprep.subr.bf16.mxu0 0
      %1301 = vmatpush1.bf16.msra.mxu0 0
      %1302 = vmatprep.subr.bf16.mxu0 0
      %1303 = vmatpush1.bf16.msra.mxu0 0
      %1304 = vmatprep.subr.bf16.mxu0 0
      %1305 = vmatpush1.bf16.msra.mxu0 0
      %1306 = vmatprep.subr.bf16.mxu0 0
      %1307 = vmatpush1.bf16.msra.mxu0 0
      %1308 = vmatprep.subr.bf16.mxu0 0
      %1309 = vmatpush1.bf16.msra.mxu0 0
      %1310 = vmatprep.subr.bf16.mxu0 0
      %1311 = vmatpush1.bf16.msra.mxu0 0
      %1312 = vmatprep.subr.bf16.mxu0 0
      %1313 = vmatpush1.bf16.msra.mxu0 0
      %1314 = vmatprep.mubr.bf16.mxu0 0
      %1315 = vmatmul.mubr.bf16.gmra.mrb[0].mxu0 %v1277
      %v1316 = vpop.f32.mrb[0].mxu0
      %v1317 = vadd.f32 0.0, %v1316
      %v1318 = vpop.f32.mrb[0].mxu0
      %v1319 = vpop.f32.mrb[0].mxu0
      %v1320 = vadd.f32 0.0, %v1319
      %v1321 = vpop.f32.mrb[0].mxu0
      %1322 = vmatprep.mubr.bf16.mxu0 0
      %1323 = vmatmul.mubr.bf16.gmra.mrb[0].mxu0 %v1280
      %v1324 = vpop.f32.mrb[0].mxu0
      %v1325 = vadd.f32 0.0, %v1324
      %v1326 = vpop.f32.mrb[0].mxu0
      %v1327 = vpop.f32.mrb[0].mxu0
      %v1328 = vadd.f32 0.0, %v1327
      %v1329 = vpop.f32.mrb[0].mxu0
      %1330 = vdwg.mxu0
      %1331 = vrot.lane.b32.xlu0 %v979, 112
      %v1332 = vpop.permute.xlu0 %1331
      %1333 = vrot.lane.b32.xlu0 %v980, 112
      %v1334 = vpop.permute.xlu0 %1333
      %1335 = vrot.lane.b32.xlu0 %v979, 80
      %v1336 = vpop.permute.xlu0 %1335
      %1337 = vrot.lane.b32.xlu0 %v980, 80
      %v1338 = vpop.permute.xlu0 %1337
      %v1340 = vsel %vm719, %v1332, 0
      %v1343 = vsel %vm719, %v1334, 0
      %v1346 = vsel %vm719, %v1336, 0
      %v1349 = vsel %vm719, %v1338, 0
      %1351 = vmatprep.subr.bf16.mxu0 0
      %1352 = vmatpush1.bf16.xpose.msra.mxu0 %v1346
      %1353 = vmatprep.subr.bf16.mxu0 0
      %1354 = vmatpush1.bf16.xpose.msra.mxu0 %v1349
      %1355 = vmatprep.subr.bf16.mxu0 0
      %1356 = vmatpush1.bf16.xpose.msra.mxu0 0
      %1357 = vmatprep.subr.bf16.mxu0 0
      %1358 = vmatpush1.bf16.xpose.msra.mxu0 0
      %1359 = vmatprep.subr.bf16.mxu0 0
      %1360 = vmatpush1.bf16.xpose.msra.mxu0 0
      %1361 = vmatprep.subr.bf16.mxu0 0
      %1362 = vmatpush1.bf16.xpose.msra.mxu0 0
      %1363 = vmatprep.subr.bf16.mxu0 0
      %1364 = vmatpush1.bf16.xpose.msra.mxu0 0
      %1365 = vmatprep.subr.bf16.mxu0 0
      %1366 = vmatpush1.bf16.xpose.msra.mxu0 0
      %1367 = vmatprep.subr.bf16.mxu0 0
      %1368 = vmatpush1.bf16.xpose.msra.mxu0 0
      %1369 = vmatprep.subr.bf16.mxu0 0
      %1370 = vmatpush1.bf16.xpose.msra.mxu0 0
      %1371 = vmatprep.subr.bf16.mxu0 0
      %1372 = vmatpush1.bf16.xpose.msra.mxu0 0
      %1373 = vmatprep.subr.bf16.mxu0 0
      %1374 = vmatpush1.bf16.xpose.msra.mxu0 0
      %1375 = vmatprep.subr.bf16.mxu0 0
      %1376 = vmatpush1.bf16.xpose.msra.mxu0 0
      %1377 = vmatprep.subr.bf16.mxu0 0
      %1378 = vmatpush1.bf16.xpose.msra.mxu0 0
      %1379 = vmatprep.subr.bf16.mxu0 0
      %1380 = vmatpush1.bf16.xpose.msra.mxu0 0
      %1381 = vmatprep.subr.bf16.mxu0 0
      %1382 = vmatpush1.bf16.xpose.msra.mxu0 0
      %1383 = vmatprep.mubr.bf16.mxu0 0
      %1384 = vmatmul.mubr.bf16.gmra.mrb[0].mxu0 %v1340
      %v1385 = vpop.f32.mrb[0].mxu0
      %v1386 = vadd.f32 0.0, %v1385
      %v1387 = vpop.f32.mrb[0].mxu0
      %v1388 = vpop.f32.mrb[0].mxu0
      %v1389 = vadd.f32 0.0, %v1388
      %v1390 = vpop.f32.mrb[0].mxu0
      %1391 = vmatprep.mubr.bf16.mxu0 0
      %1392 = vmatmul.mubr.bf16.gmra.mrb[0].mxu0 %v1343
      %v1393 = vpop.f32.mrb[0].mxu0
      %v1394 = vadd.f32 0.0, %v1393
      %v1395 = vpop.f32.mrb[0].mxu0
      %v1396 = vpop.f32.mrb[0].mxu0
      %v1397 = vadd.f32 0.0, %v1396
      %v1398 = vpop.f32.mrb[0].mxu0
      %1399 = vdwg.mxu0
      %v1400 = vsel %vm781, %v1386, -inf
      %1401 = vmax.xlane.f32.xlu0 %v1400
      %v1402 = vpop.xlane.xlu0 %1401
      %v1403 = vsel %vm781, %v1389, -inf
      %1404 = vmax.xlane.f32.xlu0 %v1403
      %v1405 = vpop.xlane.xlu0 %1404
      %v1406 = vsel %vm781, %v1394, -inf
      %1407 = vmax.xlane.f32.xlu0 %v1406
      %v1408 = vpop.xlane.xlu0 %1407
      %v1409 = vsel %vm781, %v1397, -inf
      %1410 = vmax.xlane.f32.xlu0 %v1409
      %v1411 = vpop.xlane.xlu0 %1410
      %v1412 = vsub.f32 %v1386, %v1402
      %v1413 = vsub.f32 %v1389, %v1405
      %v1414 = vsub.f32 %v1394, %v1408
      %v1415 = vsub.f32 %v1397, %v1411
      %v1416 = vmul.f32 %v1412, 1.442695
      %v1417 = vpow.pop %v1416
      %v1418 = vmul.f32 %v1413, 1.442695
      %v1419 = vpow.pop %v1418
      %v1420 = vmul.f32 %v1414, 1.442695
      %v1421 = vpow.pop %v1420
      %v1422 = vmul.f32 %v1415, 1.442695
      %v1423 = vpow.pop %v1422
      %v1424 = vsel %vm781, %v1417, 0.0
      %1425 = vadd.xlane.f32.xlu0 %v1424
      %v1426 = vpop.xlane.xlu0 %1425
      %v1427 = vsel %vm781, %v1419, 0.0
      %1428 = vadd.xlane.f32.xlu0 %v1427
      %v1429 = vpop.xlane.xlu0 %1428
      %v1430 = vsel %vm781, %v1421, 0.0
      %1431 = vadd.xlane.f32.xlu0 %v1430
      %v1432 = vpop.xlane.xlu0 %1431
      %v1433 = vsel %vm781, %v1423, 0.0
      %1434 = vadd.xlane.f32.xlu0 %v1433
      %v1435 = vpop.xlane.xlu0 %1434
      %v1436 = vrcp.pop %v1426
      %v1437 = vrcp.pop %v1429
      %v1438 = vrcp.pop %v1432
      %v1439 = vrcp.pop %v1435
      %v1440 = vmul.f32 %v1417, %v1436
      %v1441 = vmul.f32 %v1419, %v1437
      %v1442 = vmul.f32 %v1421, %v1438
      %v1443 = vmul.f32 %v1423, %v1439
      %v1444 = vpack.c.bf16 %v1441, %v1440
      %v1445 = vpack.c.bf16 %v1443, %v1442
      %1446 = vrot.lane.b32.xlu0 %v979, 48
      %v1447 = vpop.permute.xlu0 %1446
      %1448 = vrot.lane.b32.xlu0 %v980, 48
      %v1449 = vpop.permute.xlu0 %1448
      %v1453 = vsel %vm781, %v1444, 0
      %v1456 = vsel %vm781, %v1445, 0
      %1458 = vmatprep.subr.bf16.mxu0 0
      %1459 = vmatpush1.bf16.msra.mxu0 %v1447
      %1460 = vmatprep.subr.bf16.mxu0 0
      %1461 = vmatpush1.bf16.msra.mxu0 %v1449
      %1462 = vmatprep.subr.bf16.mxu0 0
      %1463 = vmatpush1.bf16.msra.mxu0 0
      %1464 = vmatprep.subr.bf16.mxu0 0
      %1465 = vmatpush1.bf16.msra.mxu0 0
      %1466 = vmatprep.subr.bf16.mxu0 0
      %1467 = vmatpush1.bf16.msra.mxu0 0
      %1468 = vmatprep.subr.bf16.mxu0 0
      %1469 = vmatpush1.bf16.msra.mxu0 0
      %1470 = vmatprep.subr.bf16.mxu0 0
      %1471 = vmatpush1.bf16.msra.mxu0 0
      %1472 = vmatprep.subr.bf16.mxu0 0
      %1473 = vmatpush1.bf16.msra.mxu0 0
      %1474 = vmatprep.subr.bf16.mxu0 0
      %1475 = vmatpush1.bf16.msra.mxu0 0
      %1476 = vmatprep.subr.bf16.mxu0 0
      %1477 = vmatpush1.bf16.msra.mxu0 0
      %1478 = vmatprep.subr.bf16.mxu0 0
      %1479 = vmatpush1.bf16.msra.mxu0 0
      %1480 = vmatprep.subr.bf16.mxu0 0
      %1481 = vmatpush1.bf16.msra.mxu0 0
      %1482 = vmatprep.subr.bf16.mxu0 0
      %1483 = vmatpush1.bf16.msra.mxu0 0
      %1484 = vmatprep.subr.bf16.mxu0 0
      %1485 = vmatpush1.bf16.msra.mxu0 0
      %1486 = vmatprep.subr.bf16.mxu0 0
      %1487 = vmatpush1.bf16.msra.mxu0 0
      %1488 = vmatprep.subr.bf16.mxu0 0
      %1489 = vmatpush1.bf16.msra.mxu0 0
      %1490 = vmatprep.mubr.bf16.mxu0 0
      %1491 = vmatmul.mubr.bf16.gmra.mrb[0].mxu0 %v1453
      %v1492 = vpop.f32.mrb[0].mxu0
      %v1493 = vadd.f32 0.0, %v1492
      %v1494 = vpop.f32.mrb[0].mxu0
      %v1495 = vpop.f32.mrb[0].mxu0
      %v1496 = vadd.f32 0.0, %v1495
      %v1497 = vpop.f32.mrb[0].mxu0
      %1498 = vmatprep.mubr.bf16.mxu0 0
      %1499 = vmatmul.mubr.bf16.gmra.mrb[0].mxu0 %v1456
      %v1500 = vpop.f32.mrb[0].mxu0
      %v1501 = vadd.f32 0.0, %v1500
      %v1502 = vpop.f32.mrb[0].mxu0
      %v1503 = vpop.f32.mrb[0].mxu0
      %v1504 = vadd.f32 0.0, %v1503
      %v1505 = vpop.f32.mrb[0].mxu0
      %1506 = vdwg.mxu0
      %1507 = vrot.lane.b32.xlu0 %v979, 104
      %v1508 = vpop.permute.xlu0 %1507
      %1509 = vrot.lane.b32.xlu0 %v980, 104
      %v1510 = vpop.permute.xlu0 %1509
      %1511 = vrot.lane.b32.xlu0 %v979, 72
      %v1512 = vpop.permute.xlu0 %1511
      %1513 = vrot.lane.b32.xlu0 %v980, 72
      %v1514 = vpop.permute.xlu0 %1513
      %v1516 = vsel %vm719, %v1508, 0
      %v1519 = vsel %vm719, %v1510, 0
      %v1522 = vsel %vm719, %v1512, 0
      %v1525 = vsel %vm719, %v1514, 0
      %1527 = vmatprep.subr.bf16.mxu0 0
      %1528 = vmatpush1.bf16.xpose.msra.mxu0 %v1522
      %1529 = vmatprep.subr.bf16.mxu0 0
      %1530 = vmatpush1.bf16.xpose.msra.mxu0 %v1525
      %1531 = vmatprep.subr.bf16.mxu0 0
      %1532 = vmatpush1.bf16.xpose.msra.mxu0 0
      %1533 = vmatprep.subr.bf16.mxu0 0
      %1534 = vmatpush1.bf16.xpose.msra.mxu0 0
      %1535 = vmatprep.subr.bf16.mxu0 0
      %1536 = vmatpush1.bf16.xpose.msra.mxu0 0
      %1537 = vmatprep.subr.bf16.mxu0 0
      %1538 = vmatpush1.bf16.xpose.msra.mxu0 0
      %1539 = vmatprep.subr.bf16.mxu0 0
      %1540 = vmatpush1.bf16.xpose.msra.mxu0 0
      %1541 = vmatprep.subr.bf16.mxu0 0
      %1542 = vmatpush1.bf16.xpose.msra.mxu0 0
      %1543 = vmatprep.subr.bf16.mxu0 0
      %1544 = vmatpush1.bf16.xpose.msra.mxu0 0
      %1545 = vmatprep.subr.bf16.mxu0 0
      %1546 = vmatpush1.bf16.xpose.msra.mxu0 0
      %1547 = vmatprep.subr.bf16.mxu0 0
      %1548 = vmatpush1.bf16.xpose.msra.mxu0 0
      %1549 = vmatprep.subr.bf16.mxu0 0
      %1550 = vmatpush1.bf16.xpose.msra.mxu0 0
      %1551 = vmatprep.subr.bf16.mxu0 0
      %1552 = vmatpush1.bf16.xpose.msra.mxu0 0
      %1553 = vmatprep.subr.bf16.mxu0 0
      %1554 = vmatpush1.bf16.xpose.msra.mxu0 0
      %1555 = vmatprep.subr.bf16.mxu0 0
      %1556 = vmatpush1.bf16.xpose.msra.mxu0 0
      %1557 = vmatprep.subr.bf16.mxu0 0
      %1558 = vmatpush1.bf16.xpose.msra.mxu0 0
      %1559 = vmatprep.mubr.bf16.mxu0 0
      %1560 = vmatmul.mubr.bf16.gmra.mrb[0].mxu0 %v1516
      %v1561 = vpop.f32.mrb[0].mxu0
      %v1562 = vadd.f32 0.0, %v1561
      %v1563 = vpop.f32.mrb[0].mxu0
      %v1564 = vpop.f32.mrb[0].mxu0
      %v1565 = vadd.f32 0.0, %v1564
      %v1566 = vpop.f32.mrb[0].mxu0
      %1567 = vmatprep.mubr.bf16.mxu0 0
      %1568 = vmatmul.mubr.bf16.gmra.mrb[0].mxu0 %v1519
      %v1569 = vpop.f32.mrb[0].mxu0
      %v1570 = vadd.f32 0.0, %v1569
      %v1571 = vpop.f32.mrb[0].mxu0
      %v1572 = vpop.f32.mrb[0].mxu0
      %v1573 = vadd.f32 0.0, %v1572
      %v1574 = vpop.f32.mrb[0].mxu0
      %1575 = vdwg.mxu0
      %v1576 = vsel %vm781, %v1562, -inf
      %1577 = vmax.xlane.f32.xlu0 %v1576
      %v1578 = vpop.xlane.xlu0 %1577
      %v1579 = vsel %vm781, %v1565, -inf
      %1580 = vmax.xlane.f32.xlu0 %v1579
      %v1581 = vpop.xlane.xlu0 %1580
      %v1582 = vsel %vm781, %v1570, -inf
      %1583 = vmax.xlane.f32.xlu0 %v1582
      %v1584 = vpop.xlane.xlu0 %1583
      %v1585 = vsel %vm781, %v1573, -inf
      %1586 = vmax.xlane.f32.xlu0 %v1585
      %v1587 = vpop.xlane.xlu0 %1586
      %v1588 = vsub.f32 %v1562, %v1578
      %v1589 = vsub.f32 %v1565, %v1581
      %v1590 = vsub.f32 %v1570, %v1584
      %v1591 = vsub.f32 %v1573, %v1587
      %v1592 = vmul.f32 %v1588, 1.442695
      %v1593 = vpow.pop %v1592
      %v1594 = vmul.f32 %v1589, 1.442695
      %v1595 = vpow.pop %v1594
      %v1596 = vmul.f32 %v1590, 1.442695
      %v1597 = vpow.pop %v1596
      %v1598 = vmul.f32 %v1591, 1.442695
      %v1599 = vpow.pop %v1598
      %v1600 = vsel %vm781, %v1593, 0.0
      %1601 = vadd.xlane.f32.xlu0 %v1600
      %v1602 = vpop.xlane.xlu0 %1601
      %v1603 = vsel %vm781, %v1595, 0.0
      %1604 = vadd.xlane.f32.xlu0 %v1603
      %v1605 = vpop.xlane.xlu0 %1604
      %v1606 = vsel %vm781, %v1597, 0.0
      %1607 = vadd.xlane.f32.xlu0 %v1606
      %v1608 = vpop.xlane.xlu0 %1607
      %v1609 = vsel %vm781, %v1599, 0.0
      %1610 = vadd.xlane.f32.xlu0 %v1609
      %v1611 = vpop.xlane.xlu0 %1610
      %v1612 = vrcp.pop %v1602
      %v1613 = vrcp.pop %v1605
      %v1614 = vrcp.pop %v1608
      %v1615 = vrcp.pop %v1611
      %v1616 = vmul.f32 %v1593, %v1612
      %v1617 = vmul.f32 %v1595, %v1613
      %v1618 = vmul.f32 %v1597, %v1614
      %v1619 = vmul.f32 %v1599, %v1615
      %v1620 = vpack.c.bf16 %v1617, %v1616
      %v1621 = vpack.c.bf16 %v1619, %v1618
      %1622 = vrot.lane.b32.xlu0 %v979, 40
      %v1623 = vpop.permute.xlu0 %1622
      %1624 = vrot.lane.b32.xlu0 %v980, 40
      %v1625 = vpop.permute.xlu0 %1624
      %v1629 = vsel %vm781, %v1620, 0
      %v1632 = vsel %vm781, %v1621, 0
      %1634 = vmatprep.subr.bf16.mxu0 0
      %1635 = vmatpush1.bf16.msra.mxu0 %v1623
      %1636 = vmatprep.subr.bf16.mxu0 0
      %1637 = vmatpush1.bf16.msra.mxu0 %v1625
      %1638 = vmatprep.subr.bf16.mxu0 0
      %1639 = vmatpush1.bf16.msra.mxu0 0
      %1640 = vmatprep.subr.bf16.mxu0 0
      %1641 = vmatpush1.bf16.msra.mxu0 0
      %1642 = vmatprep.subr.bf16.mxu0 0
      %1643 = vmatpush1.bf16.msra.mxu0 0
      %1644 = vmatprep.subr.bf16.mxu0 0
      %1645 = vmatpush1.bf16.msra.mxu0 0
      %1646 = vmatprep.subr.bf16.mxu0 0
      %1647 = vmatpush1.bf16.msra.mxu0 0
      %1648 = vmatprep.subr.bf16.mxu0 0
      %1649 = vmatpush1.bf16.msra.mxu0 0
      %1650 = vmatprep.subr.bf16.mxu0 0
      %1651 = vmatpush1.bf16.msra.mxu0 0
      %1652 = vmatprep.subr.bf16.mxu0 0
      %1653 = vmatpush1.bf16.msra.mxu0 0
      %1654 = vmatprep.subr.bf16.mxu0 0
      %1655 = vmatpush1.bf16.msra.mxu0 0
      %1656 = vmatprep.subr.bf16.mxu0 0
      %1657 = vmatpush1.bf16.msra.mxu0 0
      %1658 = vmatprep.subr.bf16.mxu0 0
      %1659 = vmatpush1.bf16.msra.mxu0 0
      %1660 = vmatprep.subr.bf16.mxu0 0
      %1661 = vmatpush1.bf16.msra.mxu0 0
      %1662 = vmatprep.subr.bf16.mxu0 0
      %1663 = vmatpush1.bf16.msra.mxu0 0
      %1664 = vmatprep.subr.bf16.mxu0 0
      %1665 = vmatpush1.bf16.msra.mxu0 0
      %1666 = vmatprep.mubr.bf16.mxu0 0
      %1667 = vmatmul.mubr.bf16.gmra.mrb[0].mxu0 %v1629
      %v1668 = vpop.f32.mrb[0].mxu0
      %v1669 = vadd.f32 0.0, %v1668
      %v1670 = vpop.f32.mrb[0].mxu0
      %v1671 = vpop.f32.mrb[0].mxu0
      %v1672 = vadd.f32 0.0, %v1671
      %v1673 = vpop.f32.mrb[0].mxu0
      %1674 = vmatprep.mubr.bf16.mxu0 0
      %1675 = vmatmul.mubr.bf16.gmra.mrb[0].mxu0 %v1632
      %v1676 = vpop.f32.mrb[0].mxu0
      %v1677 = vadd.f32 0.0, %v1676
      %v1678 = vpop.f32.mrb[0].mxu0
      %v1679 = vpop.f32.mrb[0].mxu0
      %v1680 = vadd.f32 0.0, %v1679
      %v1681 = vpop.f32.mrb[0].mxu0
      %1682 = vdwg.mxu0
      %1687 = vrot.lane.b32.xlu0 %v1317, 8
      %v1688 = vpop.permute.xlu0 %1687
      %1689 = vrot.lane.b32.xlu0 %v1320, 8
      %v1690 = vpop.permute.xlu0 %1689
      %1691 = vrot.lane.b32.xlu0 %v1325, 8
      %v1692 = vpop.permute.xlu0 %1691
      %1693 = vrot.lane.b32.xlu0 %v1328, 8
      %v1694 = vpop.permute.xlu0 %1693
      %1703 = vrot.lane.b32.xlu0 %v1493, 16
      %v1704 = vpop.permute.xlu0 %1703
      %1705 = vrot.lane.b32.xlu0 %v1496, 16
      %v1706 = vpop.permute.xlu0 %1705
      %1707 = vrot.lane.b32.xlu0 %v1501, 16
      %v1708 = vpop.permute.xlu0 %1707
      %1709 = vrot.lane.b32.xlu0 %v1504, 16
      %v1710 = vpop.permute.xlu0 %1709
      %1719 = vrot.lane.b32.xlu0 %v1669, 24
      %v1720 = vpop.permute.xlu0 %1719
      %1721 = vrot.lane.b32.xlu0 %v1672, 24
      %v1722 = vpop.permute.xlu0 %1721
      %1723 = vrot.lane.b32.xlu0 %v1677, 24
      %v1724 = vpop.permute.xlu0 %1723
      %1725 = vrot.lane.b32.xlu0 %v1680, 24
      %v1726 = vpop.permute.xlu0 %1725
      %v1731 = vsel %vm719, %v1141, %v1688
      %v1732 = vsel %vm719, %v1144, %v1690
      %v1733 = vsel %vm719, %v1149, %v1692
      %v1734 = vsel %vm719, %v1152, %v1694
      %vm1735 = vcmask 130048
      %v1736 = vsel %vm1735, %v1731, %v1704
      %v1737 = vsel %vm1735, %v1732, %v1706
      %v1738 = vsel %vm1735, %v1733, %v1708
      %v1739 = vsel %vm1735, %v1734, %v1710
      %vm1740 = vcmask 195584
      %v1741 = vsel %vm1740, %v1736, %v1720
      %v1742 = vsel %vm1740, %v1737, %v1722
      %v1743 = vsel %vm1740, %v1738, %v1724
      %v1744 = vsel %vm1740, %v1739, %v1726
      %v1745 = vpack.c.bf16 %v1742, %v1741
      %v1746 = vpack.c.bf16 %v1744, %v1743
      %v1748 = vlaneseq
      %v1749 = vshrl.u32 %v1748, 7
      %v1750 = vsub.s32 0, %v1749
      %v1751 = vrot.slane %v872, %v1750
      %v1757 = vunpack.c.l.b16 %v868
      %v1758 = vunpack.c.l.b16 %v869
      %v1759 = vunpack.c.l.b16 %v870
      %v1760 = vunpack.c.l.b16 %v871
      %v1761 = vpack.c.b16 %v1758, %v1757
      %v1762 = vpack.c.b16 %v1760, %v1759
      %v1766 = vsel %vm781, %v1745, 0
      %v1769 = vsel %vm781, %v1746, 0
      %1771 = vmatprep.subr.bf16.mxu0 0
      %1772 = vmatpush1.bf16.msra.mxu0 %v1761
      %1773 = vmatprep.subr.bf16.mxu0 0
      %1774 = vmatpush1.bf16.msra.mxu0 %v1762
      %1775 = vmatprep.subr.bf16.mxu0 0
      %1776 = vmatpush1.bf16.msra.mxu0 0
      %1777 = vmatprep.subr.bf16.mxu0 0
      %1778 = vmatpush1.bf16.msra.mxu0 0
      %1779 = vmatprep.subr.bf16.mxu0 0
      %1780 = vmatpush1.bf16.msra.mxu0 0
      %1781 = vmatprep.subr.bf16.mxu0 0
      %1782 = vmatpush1.bf16.msra.mxu0 0
      %1783 = vmatprep.subr.bf16.mxu0 0
      %1784 = vmatpush1.bf16.msra.mxu0 0
      %1785 = vmatprep.subr.bf16.mxu0 0
      %1786 = vmatpush1.bf16.msra.mxu0 0
      %1787 = vmatprep.subr.bf16.mxu0 0
      %1788 = vmatpush1.bf16.msra.mxu0 0
      %1789 = vmatprep.subr.bf16.mxu0 0
      %1790 = vmatpush1.bf16.msra.mxu0 0
      %1791 = vmatprep.subr.bf16.mxu0 0
      %1792 = vmatpush1.bf16.msra.mxu0 0
      %1793 = vmatprep.subr.bf16.mxu0 0
      %1794 = vmatpush1.bf16.msra.mxu0 0
      %1795 = vmatprep.subr.bf16.mxu0 0
      %1796 = vmatpush1.bf16.msra.mxu0 0
      %1797 = vmatprep.subr.bf16.mxu0 0
      %1798 = vmatpush1.bf16.msra.mxu0 0
      %1799 = vmatprep.subr.bf16.mxu0 0
      %1800 = vmatpush1.bf16.msra.mxu0 0
      %1801 = vmatprep.subr.bf16.mxu0 0
      %1802 = vmatpush1.bf16.msra.mxu0 0
      %1803 = vmatprep.mubr.bf16.mxu0 0
      %1804 = vmatmul.mubr.bf16.gmra.mrb[0].mxu0 %v1766
      %v1805 = vpop.f32.mrb[0].mxu0
      %v1806 = vadd.f32 %v1751, %v1805
      %v1807 = vpop.f32.mrb[0].mxu0
      %v1808 = vpop.f32.mrb[0].mxu0
      %v1809 = vadd.f32 %v1751, %v1808
      %v1810 = vpop.f32.mrb[0].mxu0
      %1811 = vmatprep.mubr.bf16.mxu0 0
      %1812 = vmatmul.mubr.bf16.gmra.mrb[0].mxu0 %v1769
      %v1813 = vpop.f32.mrb[0].mxu0
      %v1814 = vadd.f32 %v1751, %v1813
      %v1815 = vpop.f32.mrb[0].mxu0
      %v1816 = vpop.f32.mrb[0].mxu0
      %v1817 = vadd.f32 %v1751, %v1816
      %v1818 = vpop.f32.mrb[0].mxu0
      %1819 = vdwg.mxu0
      %v1820 = vadd.f32 %v859, %v1806
      %v1821 = vadd.f32 %v860, %v1809
      %v1822 = vadd.f32 %v861, %v1814
      %v1823 = vadd.f32 %v862, %v1817
      %v1824 = vsel %vm781, %v1820, 0.0
      %1825 = vadd.xlane.f32.xlu0 %v1824
      %v1826 = vpop.xlane.xlu0 %1825
      %v1827 = vsel %vm781, %v1821, 0.0
      %1828 = vadd.xlane.f32.xlu0 %v1827
      %v1829 = vpop.xlane.xlu0 %1828
      %v1830 = vsel %vm781, %v1822, 0.0
      %1831 = vadd.xlane.f32.xlu0 %v1830
      %v1832 = vpop.xlane.xlu0 %1831
      %v1833 = vsel %vm781, %v1823, 0.0
      %1834 = vadd.xlane.f32.xlu0 %v1833
      %v1835 = vpop.xlane.xlu0 %1834
      %v1836 = vmul.f32 %v1826, %v794
      %v1837 = vmul.f32 %v1829, %v794
      %v1838 = vmul.f32 %v1832, %v794
      %v1839 = vmul.f32 %v1835, %v794
      %v1840 = vsub.f32 %v1820, %v1836
      %v1841 = vsub.f32 %v1821, %v1837
      %v1842 = vsub.f32 %v1822, %v1838
      %v1843 = vsub.f32 %v1823, %v1839
      %v1844 = vmul.f32 %v1840, %v1840
      %v1845 = vmul.f32 %v1841, %v1841
      %v1846 = vmul.f32 %v1842, %v1842
      %v1847 = vmul.f32 %v1843, %v1843
      %v1848 = vsel %vm781, %v1844, 0.0
      %1849 = vadd.xlane.f32.xlu0 %v1848
      %v1850 = vpop.xlane.xlu0 %1849
      %v1851 = vsel %vm781, %v1845, 0.0
      %1852 = vadd.xlane.f32.xlu0 %v1851
      %v1853 = vpop.xlane.xlu0 %1852
      %v1854 = vsel %vm781, %v1846, 0.0
      %1855 = vadd.xlane.f32.xlu0 %v1854
      %v1856 = vpop.xlane.xlu0 %1855
      %v1857 = vsel %vm781, %v1847, 0.0
      %1858 = vadd.xlane.f32.xlu0 %v1857
      %v1859 = vpop.xlane.xlu0 %1858
      %v1860 = vmul.f32 %v1850, %v794
      %v1861 = vmul.f32 %v1853, %v794
      %v1862 = vmul.f32 %v1856, %v794
      %v1863 = vmul.f32 %v1859, %v794
      %v1864 = vadd.f32 %v1860, 1e-05
      %v1865 = vadd.f32 %v1861, 1e-05
      %v1866 = vadd.f32 %v1862, 1e-05
      %v1867 = vadd.f32 %v1863, 1e-05
      %v1868 = vrsqrt.pop %v1864
      %v1869 = vrsqrt.pop %v1865
      %v1870 = vrsqrt.pop %v1866
      %v1871 = vrsqrt.pop %v1867
      %v1872 = vmul.f32 %v1840, %v1868
      %v1873 = vmul.f32 %v1841, %v1869
      %v1874 = vmul.f32 %v1842, %v1870
      %v1875 = vmul.f32 %v1843, %v1871
      %v1877 = vlaneseq
      %v1878 = vshrl.u32 %v1877, 7
      %v1879 = vsub.s32 0, %v1878
      %v1880 = vrot.slane %v873, %v1879
      %v1882 = vmul.f32 %v1872, %v1880
      %v1883 = vmul.f32 %v1873, %v1880
      %v1884 = vmul.f32 %v1874, %v1880
      %v1885 = vmul.f32 %v1875, %v1880
      %v1887 = vlaneseq
      %v1888 = vshrl.u32 %v1887, 7
      %v1889 = vsub.s32 0, %v1888
      %v1890 = vrot.slane %v874, %v1889
      %v1892 = vadd.f32 %v1882, %v1890
      %v1893 = vadd.f32 %v1883, %v1890
      %v1894 = vadd.f32 %v1884, %v1890
      %v1895 = vadd.f32 %v1885, %v1890
      %v1896 = vpack.c.bf16 %v1893, %v1892
      %v1897 = vpack.c.bf16 %v1895, %v1894
      %v1899 = vlaneseq
      %v1900 = vshrl.u32 %v1899, 7
      %v1901 = vsub.s32 0, %v1900
      %v1902 = vrot.slane %v879, %v1901
      %v1908 = vunpack.c.l.b16 %v875
      %v1909 = vunpack.c.l.b16 %v876
      %v1910 = vunpack.c.l.b16 %v877
      %v1911 = vunpack.c.l.b16 %v878
      %v1912 = vpack.c.b16 %v1909, %v1908
      %v1913 = vpack.c.b16 %v1911, %v1910
      %v1917 = vsel %vm781, %v1896, 0
      %v1920 = vsel %vm781, %v1897, 0
      %1922 = vmatprep.subr.bf16.mxu0 0
      %1923 = vmatpush1.bf16.msra.mxu0 %v1912
      %1924 = vmatprep.subr.bf16.mxu0 0
      %1925 = vmatpush1.bf16.msra.mxu0 %v1913
      %1926 = vmatprep.subr.bf16.mxu0 0
      %1927 = vmatpush1.bf16.msra.mxu0 0
      %1928 = vmatprep.subr.bf16.mxu0 0
      %1929 = vmatpush1.bf16.msra.mxu0 0
      %1930 = vmatprep.subr.bf16.mxu0 0
      %1931 = vmatpush1.bf16.msra.mxu0 0
      %1932 = vmatprep.subr.bf16.mxu0 0
      %1933 = vmatpush1.bf16.msra.mxu0 0
      %1934 = vmatprep.subr.bf16.mxu0 0
      %1935 = vmatpush1.bf16.msra.mxu0 0
      %1936 = vmatprep.subr.bf16.mxu0 0
      %1937 = vmatpush1.bf16.msra.mxu0 0
      %1938 = vmatprep.subr.bf16.mxu0 0
      %1939 = vmatpush1.bf16.msra.mxu0 0
      %1940 = vmatprep.subr.bf16.mxu0 0
      %1941 = vmatpush1.bf16.msra.mxu0 0
      %1942 = vmatprep.subr.bf16.mxu0 0
      %1943 = vmatpush1.bf16.msra.mxu0 0
      %1944 = vmatprep.subr.bf16.mxu0 0
      %1945 = vmatpush1.bf16.msra.mxu0 0
      %1946 = vmatprep.subr.bf16.mxu0 0
      %1947 = vmatpush1.bf16.msra.mxu0 0
      %1948 = vmatprep.subr.bf16.mxu0 0
      %1949 = vmatpush1.bf16.msra.mxu0 0
      %1950 = vmatprep.subr.bf16.mxu0 0
      %1951 = vmatpush1.bf16.msra.mxu0 0
      %1952 = vmatprep.subr.bf16.mxu0 0
      %1953 = vmatpush1.bf16.msra.mxu0 0
      %1954 = vmatprep.mubr.bf16.mxu0 0
      %1955 = vmatmul.mubr.bf16.gmra.mrb[0].mxu0 %v1917
      %v1956 = vpop.f32.mrb[0].mxu0
      %v1957 = vadd.f32 %v1902, %v1956
      %v1958 = vpop.f32.mrb[0].mxu0
      %v1959 = vpop.f32.mrb[0].mxu0
      %v1960 = vadd.f32 %v1902, %v1959
      %v1961 = vpop.f32.mrb[0].mxu0
      %1962 = vmatprep.mubr.bf16.mxu0 0
      %1963 = vmatmul.mubr.bf16.gmra.mrb[0].mxu0 %v1920
      %v1964 = vpop.f32.mrb[0].mxu0
      %v1965 = vadd.f32 %v1902, %v1964
      %v1966 = vpop.f32.mrb[0].mxu0
      %v1967 = vpop.f32.mrb[0].mxu0
      %v1968 = vadd.f32 %v1902, %v1967
      %v1969 = vpop.f32.mrb[0].mxu0
      %1970 = vdwg.mxu0
      %v1971 = vmax.f32 %v1957, 0.0
      %v1972 = vmax.f32 %v1960, 0.0
      %v1973 = vmax.f32 %v1965, 0.0
      %v1974 = vmax.f32 %v1968, 0.0
      %v1975 = vpack.c.bf16 %v1972, %v1971
      %v1976 = vpack.c.bf16 %v1974, %v1973
      %v1978 = vlaneseq
      %v1979 = vshrl.u32 %v1978, 7
      %v1980 = vsub.s32 0, %v1979
      %v1981 = vrot.slane %v896, %v1980
      %v1999 = vunpack.c.l.b16 %v880
      %v2000 = vunpack.c.l.b16 %v881
      %v2001 = vunpack.c.l.b16 %v882
      %v2002 = vunpack.c.l.b16 %v883
      %v2003 = vunpack.c.l.b16 %v884
      %v2004 = vunpack.c.l.b16 %v885
      %v2005 = vunpack.c.l.b16 %v886
      %v2006 = vunpack.c.l.b16 %v887
      %v2007 = vunpack.c.l.b16 %v888
      %v2008 = vunpack.c.l.b16 %v889
      %v2009 = vunpack.c.l.b16 %v890
      %v2010 = vunpack.c.l.b16 %v891
      %v2011 = vunpack.c.l.b16 %v892
      %v2012 = vunpack.c.l.b16 %v893
      %v2013 = vunpack.c.l.b16 %v894
      %v2014 = vunpack.c.l.b16 %v895
      %v2015 = vpack.c.b16 %v2000, %v1999
      %v2016 = vpack.c.b16 %v2002, %v2001
      %v2017 = vpack.c.b16 %v2004, %v2003
      %v2018 = vpack.c.b16 %v2006, %v2005
      %v2019 = vpack.c.b16 %v2008, %v2007
      %v2020 = vpack.c.b16 %v2010, %v2009
      %v2021 = vpack.c.b16 %v2012, %v2011
      %v2022 = vpack.c.b16 %v2014, %v2013
      %2031 = vmatprep.subr.bf16.mxu0 0
      %2032 = vmatpush1.bf16.msra.mxu0 %v2015
      %2033 = vmatprep.subr.bf16.mxu0 0
      %2034 = vmatpush1.bf16.msra.mxu0 %v2016
      %2035 = vmatprep.subr.bf16.mxu0 0
      %2036 = vmatpush1.bf16.msra.mxu0 %v2017
      %2037 = vmatprep.subr.bf16.mxu0 0
      %2038 = vmatpush1.bf16.msra.mxu0 %v2018
      %2039 = vmatprep.subr.bf16.mxu0 0
      %2040 = vmatpush1.bf16.msra.mxu0 %v2019
      %2041 = vmatprep.subr.bf16.mxu0 0
      %2042 = vmatpush1.bf16.msra.mxu0 %v2020
      %2043 = vmatprep.subr.bf16.mxu0 0
      %2044 = vmatpush1.bf16.msra.mxu0 %v2021
      %2045 = vmatprep.subr.bf16.mxu0 0
      %2046 = vmatpush1.bf16.msra.mxu0 %v2022
      %2047 = vmatprep.subr.bf16.mxu0 0
      %2048 = vmatpush1.bf16.msra.mxu0 0
      %2049 = vmatprep.subr.bf16.mxu0 0
      %2050 = vmatpush1.bf16.msra.mxu0 0
      %2051 = vmatprep.subr.bf16.mxu0 0
      %2052 = vmatpush1.bf16.msra.mxu0 0
      %2053 = vmatprep.subr.bf16.mxu0 0
      %2054 = vmatpush1.bf16.msra.mxu0 0
      %2055 = vmatprep.subr.bf16.mxu0 0
      %2056 = vmatpush1.bf16.msra.mxu0 0
      %2057 = vmatprep.subr.bf16.mxu0 0
      %2058 = vmatpush1.bf16.msra.mxu0 0
      %2059 = vmatprep.subr.bf16.mxu0 0
      %2060 = vmatpush1.bf16.msra.mxu0 0
      %2061 = vmatprep.subr.bf16.mxu0 0
      %2062 = vmatpush1.bf16.msra.mxu0 0
      %2063 = vmatprep.mubr.bf16.mxu0 0
      %2064 = vmatmul.mubr.bf16.gmra.mrb[0].mxu0 %v1975
      %v2065 = vpop.f32.mrb[0].mxu0
      %v2066 = vadd.f32 %v1981, %v2065
      %v2067 = vpop.f32.mrb[0].mxu0
      %v2068 = vpop.f32.mrb[0].mxu0
      %v2069 = vadd.f32 %v1981, %v2068
      %v2070 = vpop.f32.mrb[0].mxu0
      %2071 = vmatprep.mubr.bf16.mxu0 0
      %2072 = vmatmul.mubr.bf16.gmra.mrb[0].mxu0 %v1976
      %v2073 = vpop.f32.mrb[0].mxu0
      %v2074 = vadd.f32 %v1981, %v2073
      %v2075 = vpop.f32.mrb[0].mxu0
      %v2076 = vpop.f32.mrb[0].mxu0
      %v2077 = vadd.f32 %v1981, %v2076
      %v2078 = vpop.f32.mrb[0].mxu0
      %2079 = vdwg.mxu0
      %v2080 = vadd.f32 %v1892, %v2066
      %v2081 = vadd.f32 %v1893, %v2069
      %v2082 = vadd.f32 %v1894, %v2074
      %v2083 = vadd.f32 %v1895, %v2077
      %v2084 = vsel %vm781, %v2080, 0.0
      %2085 = vadd.xlane.f32.xlu0 %v2084
      %v2086 = vpop.xlane.xlu0 %2085
      %v2087 = vsel %vm781, %v2081, 0.0
      %2088 = vadd.xlane.f32.xlu0 %v2087
      %v2089 = vpop.xlane.xlu0 %2088
      %v2090 = vsel %vm781, %v2082, 0.0
      %2091 = vadd.xlane.f32.xlu0 %v2090
      %v2092 = vpop.xlane.xlu0 %2091
      %v2093 = vsel %vm781, %v2083, 0.0
      %2094 = vadd.xlane.f32.xlu0 %v2093
      %v2095 = vpop.xlane.xlu0 %2094
      %v2096 = vmul.f32 %v2086, %v794
      %v2097 = vmul.f32 %v2089, %v794
      %v2098 = vmul.f32 %v2092, %v794
      %v2099 = vmul.f32 %v2095, %v794
      %v2100 = vsub.f32 %v2080, %v2096
      %v2101 = vsub.f32 %v2081, %v2097
      %v2102 = vsub.f32 %v2082, %v2098
      %v2103 = vsub.f32 %v2083, %v2099
      %v2104 = vmul.f32 %v2100, %v2100
      %v2105 = vmul.f32 %v2101, %v2101
      %v2106 = vmul.f32 %v2102, %v2102
      %v2107 = vmul.f32 %v2103, %v2103
      %v2108 = vsel %vm781, %v2104, 0.0
      %2109 = vadd.xlane.f32.xlu0 %v2108
      %v2110 = vpop.xlane.xlu0 %2109
      %v2111 = vsel %vm781, %v2105, 0.0
      %2112 = vadd.xlane.f32.xlu0 %v2111
      %v2113 = vpop.xlane.xlu0 %2112
      %v2114 = vsel %vm781, %v2106, 0.0
      %2115 = vadd.xlane.f32.xlu0 %v2114
      %v2116 = vpop.xlane.xlu0 %2115
      %v2117 = vsel %vm781, %v2107, 0.0
      %2118 = vadd.xlane.f32.xlu0 %v2117
      %v2119 = vpop.xlane.xlu0 %2118
      %v2120 = vmul.f32 %v2110, %v794
      %v2121 = vmul.f32 %v2113, %v794
      %v2122 = vmul.f32 %v2116, %v794
      %v2123 = vmul.f32 %v2119, %v794
      %v2124 = vadd.f32 %v2120, 1e-05
      %v2125 = vadd.f32 %v2121, 1e-05
      %v2126 = vadd.f32 %v2122, 1e-05
      %v2127 = vadd.f32 %v2123, 1e-05
      %v2128 = vrsqrt.pop %v2124
      %v2129 = vrsqrt.pop %v2125
      %v2130 = vrsqrt.pop %v2126
      %v2131 = vrsqrt.pop %v2127
      %v2132 = vmul.f32 %v2100, %v2128
      %v2133 = vmul.f32 %v2101, %v2129
      %v2134 = vmul.f32 %v2102, %v2130
      %v2135 = vmul.f32 %v2103, %v2131
      %v2137 = vlaneseq
      %v2138 = vshrl.u32 %v2137, 7
      %v2139 = vsub.s32 0, %v2138
      %v2140 = vrot.slane %v897, %v2139
      %v2142 = vmul.f32 %v2132, %v2140
      %v2143 = vmul.f32 %v2133, %v2140
      %v2144 = vmul.f32 %v2134, %v2140
      %v2145 = vmul.f32 %v2135, %v2140
      %v2147 = vlaneseq
      %v2148 = vshrl.u32 %v2147, 7
      %v2149 = vsub.s32 0, %v2148
      %v2150 = vrot.slane %v898, %v2149
      %v2152 = vadd.f32 %v2142, %v2150
      %v2153 = vadd.f32 %v2143, %v2150
      %v2154 = vadd.f32 %v2144, %v2150
      %v2155 = vadd.f32 %v2145, %v2150
      %v2157 = vlaneseq
      %v2158 = vshrl.u32 %v2157, 7
      %v2159 = vsub.s32 0, %v2158
      %v2160 = vrot.slane %v903, %v2159
      %v2166 = vunpack.c.l.b16 %v899
      %v2167 = vunpack.c.l.b16 %v900
      %v2168 = vunpack.c.l.b16 %v901
      %v2169 = vunpack.c.l.b16 %v902
      %v2170 = vpack.c.b16 %v2167, %v2166
      %v2171 = vpack.c.b16 %v2169, %v2168
      %2174 = vmatprep.subr.bf16.mxu0 0
      %2175 = vmatpush1.bf16.msra.mxu0 %v2170
      %2176 = vmatprep.subr.bf16.mxu0 0
      %2177 = vmatpush1.bf16.msra.mxu0 %v2171
      %2178 = vmatprep.subr.bf16.mxu0 0
      %2179 = vmatpush1.bf16.msra.mxu0 0
      %2180 = vmatprep.subr.bf16.mxu0 0
      %2181 = vmatpush1.bf16.msra.mxu0 0
      %2182 = vmatprep.subr.bf16.mxu0 0
      %2183 = vmatpush1.bf16.msra.mxu0 0
      %2184 = vmatprep.subr.bf16.mxu0 0
      %2185 = vmatpush1.bf16.msra.mxu0 0
      %2186 = vmatprep.subr.bf16.mxu0 0
      %2187 = vmatpush1.bf16.msra.mxu0 0
      %2188 = vmatprep.subr.bf16.mxu0 0
      %2189 = vmatpush1.bf16.msra.mxu0 0
      %2190 = vmatprep.subr.bf16.mxu0 0
      %2191 = vmatpush1.bf16.msra.mxu0 0
      %2192 = vmatprep.subr.bf16.mxu0 0
      %2193 = vmatpush1.bf16.msra.mxu0 0
      %2194 = vmatprep.subr.bf16.mxu0 0
      %2195 = vmatpush1.bf16.msra.mxu0 0
      %2196 = vmatprep.subr.bf16.mxu0 0
      %2197 = vmatpush1.bf16.msra.mxu0 0
      %2198 = vmatprep.subr.bf16.mxu0 0
      %2199 = vmatpush1.bf16.msra.mxu0 0
      %2200 = vmatprep.subr.bf16.mxu0 0
      %2201 = vmatpush1.bf16.msra.mxu0 0
      %2202 = vmatprep.subr.bf16.mxu0 0
      %2203 = vmatpush1.bf16.msra.mxu0 0
      %2204 = vmatprep.subr.bf16.mxu0 0
      %2205 = vmatpush1.bf16.msra.mxu0 0
      %2206 = vmatprep.mubr.bf16.mxu0 0
      %2207 = vmatmul.mubr.bf16.gmra.mrb[0].mxu0 %v925
      %v2208 = vpop.f32.mrb[0].mxu0
      %v2209 = vadd.f32 %v2160, %v2208
      %v2210 = vpop.f32.mrb[0].mxu0
      %v2211 = vpop.f32.mrb[0].mxu0
      %v2212 = vadd.f32 %v2160, %v2211
      %v2213 = vpop.f32.mrb[0].mxu0
      %2214 = vmatprep.mubr.bf16.mxu0 0
      %2215 = vmatmul.mubr.bf16.gmra.mrb[0].mxu0 %v928
      %v2216 = vpop.f32.mrb[0].mxu0
      %v2217 = vadd.f32 %v2160, %v2216
      %v2218 = vpop.f32.mrb[0].mxu0
      %v2219 = vpop.f32.mrb[0].mxu0
      %v2220 = vadd.f32 %v2160, %v2219
      %v2221 = vpop.f32.mrb[0].mxu0
      %2222 = vdwg.mxu0
      %v2223 = vsub.f32 0.0, %v2209
      %v2224 = vsub.f32 0.0, %v2212
      %v2225 = vsub.f32 0.0, %v2217
      %v2226 = vsub.f32 0.0, %v2220
      %v2227 = vmul.f32 %v2223, 1.442695
      %v2228 = vpow.pop %v2227
      %v2229 = vmul.f32 %v2224, 1.442695
      %v2230 = vpow.pop %v2229
      %v2231 = vmul.f32 %v2225, 1.442695
      %v2232 = vpow.pop %v2231
      %v2233 = vmul.f32 %v2226, 1.442695
      %v2234 = vpow.pop %v2233
      %v2235 = vadd.f32 %v2228, 1.0
      %v2236 = vadd.f32 %v2230, 1.0
      %v2237 = vadd.f32 %v2232, 1.0
      %v2238 = vadd.f32 %v2234, 1.0
      %v2239 = vrcp.pop %v2235
      %v2240 = vmul.f32 1.0, %v2239
      %v2241 = vrcp.pop %v2236
      %v2242 = vmul.f32 1.0, %v2241
      %v2243 = vrcp.pop %v2237
      %v2244 = vmul.f32 1.0, %v2243
      %v2245 = vrcp.pop %v2238
      %v2246 = vmul.f32 1.0, %v2245
      %v2247 = vmul.f32 %v2152, %v2240
      %v2248 = vmul.f32 %v2153, %v2242
      %v2249 = vmul.f32 %v2154, %v2244
      %v2250 = vmul.f32 %v2155, %v2246
      %s2251 = scalar_lea.vmem %s6, 16
      %v2252 = vld [vmem:[%s2251] sm:$0xf]
      %v2253 = vld [vmem:[%s2251 + $0x4] sm:$0xf]
      %v2254 = vld [vmem:[%s2251 + $0x8] sm:$0xf]
      %v2255 = vld [vmem:[%s2251 + $0xc] sm:$0xf]
      %s2256 = scalar_lea.vmem %s7, 1
      %v2257 = vld [vmem:[%s2256] sm:$0x1]
      %s2258 = scalar_lea.vmem %s8, 16
      %v2259 = vld [vmem:[%s2258] sm:$0xf]
      %v2260 = vld [vmem:[%s2258 + $0x4] sm:$0xf]
      %v2261 = vld [vmem:[%s2258 + $0x8] sm:$0xf]
      %v2262 = vld [vmem:[%s2258 + $0xc] sm:$0xf]
      %s2263 = scalar_lea.vmem %s9, 1
      %v2264 = vld [vmem:[%s2263] sm:$0x1]
      %s2265 = scalar_lea.vmem %s10, 1
      %v2266 = vld [vmem:[%s2265] sm:$0x1]
      %s2267 = scalar_lea.vmem %s11, 1
      %v2268 = vld [vmem:[%s2267] sm:$0x1]
      %s2269 = scalar_lea.vmem %s12, 16
      %v2270 = vld [vmem:[%s2269] sm:$0xf]
      %v2271 = vld [vmem:[%s2269 + $0x4] sm:$0xf]
      %v2272 = vld [vmem:[%s2269 + $0x8] sm:$0xf]
      %v2273 = vld [vmem:[%s2269 + $0xc] sm:$0xf]
      %s2274 = scalar_lea.vmem %s13, 1
      %v2275 = vld [vmem:[%s2274] sm:$0x1]
      %s2276 = scalar_lea.vmem %s14, 64
      %v2277 = vld [vmem:[%s2276] sm:$0xf]
      %v2278 = vld [vmem:[%s2276 + $0x4] sm:$0xf]
      %v2279 = vld [vmem:[%s2276 + $0x8] sm:$0xf]
      %v2280 = vld [vmem:[%s2276 + $0xc] sm:$0xf]
      %v2281 = vld [vmem:[%s2276 + $0x10] sm:$0xf]
      %v2282 = vld [vmem:[%s2276 + $0x14] sm:$0xf]
      %v2283 = vld [vmem:[%s2276 + $0x18] sm:$0xf]
      %v2284 = vld [vmem:[%s2276 + $0x1c] sm:$0xf]
      %v2285 = vld [vmem:[%s2276 + $0x20] sm:$0xf]
      %v2286 = vld [vmem:[%s2276 + $0x24] sm:$0xf]
      %v2287 = vld [vmem:[%s2276 + $0x28] sm:$0xf]
      %v2288 = vld [vmem:[%s2276 + $0x2c] sm:$0xf]
      %v2289 = vld [vmem:[%s2276 + $0x30] sm:$0xf]
      %v2290 = vld [vmem:[%s2276 + $0x34] sm:$0xf]
      %v2291 = vld [vmem:[%s2276 + $0x38] sm:$0xf]
      %v2292 = vld [vmem:[%s2276 + $0x3c] sm:$0xf]
      %s2293 = scalar_lea.vmem %s15, 1
      %v2294 = vld [vmem:[%s2293] sm:$0x1]
      %s2295 = scalar_lea.vmem %s16, 1
      %v2296 = vld [vmem:[%s2295] sm:$0x1]
      %s2297 = scalar_lea.vmem %s17, 1
      %v2298 = vld [vmem:[%s2297] sm:$0x1]
      %s2299 = scalar_lea.vmem %s18, 16
      %v2300 = vld [vmem:[%s2299] sm:$0xf]
      %v2301 = vld [vmem:[%s2299 + $0x4] sm:$0xf]
      %v2302 = vld [vmem:[%s2299 + $0x8] sm:$0xf]
      %v2303 = vld [vmem:[%s2299 + $0xc] sm:$0xf]
      %s2304 = scalar_lea.vmem %s19, 1
      %v2305 = vld [vmem:[%s2304] sm:$0x1]
      %v2306 = vpack.c.bf16 %v2248, %v2247
      %v2307 = vpack.c.bf16 %v2250, %v2249
      %v2309 = vlaneseq
      %v2310 = vshrl.u32 %v2309, 7
      %v2311 = vsub.s32 0, %v2310
      %v2312 = vrot.slane %v2257, %v2311
      %v2318 = vunpack.c.l.b16 %v2252
      %v2319 = vunpack.c.l.b16 %v2253
      %v2320 = vunpack.c.l.b16 %v2254
      %v2321 = vunpack.c.l.b16 %v2255
      %v2322 = vpack.c.b16 %v2319, %v2318
      %v2323 = vpack.c.b16 %v2321, %v2320
      %v2327 = vsel %vm781, %v2306, 0
      %v2330 = vsel %vm781, %v2307, 0
      %2332 = vmatprep.subr.bf16.mxu0 0
      %2333 = vmatpush1.bf16.msra.mxu0 %v2322
      %2334 = vmatprep.subr.bf16.mxu0 0
      %2335 = vmatpush1.bf16.msra.mxu0 %v2323
      %2336 = vmatprep.subr.bf16.mxu0 0
      %2337 = vmatpush1.bf16.msra.mxu0 0
      %2338 = vmatprep.subr.bf16.mxu0 0
      %2339 = vmatpush1.bf16.msra.mxu0 0
      %2340 = vmatprep.subr.bf16.mxu0 0
      %2341 = vmatpush1.bf16.msra.mxu0 0
      %2342 = vmatprep.subr.bf16.mxu0 0
      %2343 = vmatpush1.bf16.msra.mxu0 0
      %2344 = vmatprep.subr.bf16.mxu0 0
      %2345 = vmatpush1.bf16.msra.mxu0 0
      %2346 = vmatprep.subr.bf16.mxu0 0
      %2347 = vmatpush1.bf16.msra.mxu0 0
      %2348 = vmatprep.subr.bf16.mxu0 0
      %2349 = vmatpush1.bf16.msra.mxu0 0
      %2350 = vmatprep.subr.bf16.mxu0 0
      %2351 = vmatpush1.bf16.msra.mxu0 0
      %2352 = vmatprep.subr.bf16.mxu0 0
      %2353 = vmatpush1.bf16.msra.mxu0 0
      %2354 = vmatprep.subr.bf16.mxu0 0
      %2355 = vmatpush1.bf16.msra.mxu0 0
      %2356 = vmatprep.subr.bf16.mxu0 0
      %2357 = vmatpush1.bf16.msra.mxu0 0
      %2358 = vmatprep.subr.bf16.mxu0 0
      %2359 = vmatpush1.bf16.msra.mxu0 0
      %2360 = vmatprep.subr.bf16.mxu0 0
      %2361 = vmatpush1.bf16.msra.mxu0 0
      %2362 = vmatprep.subr.bf16.mxu0 0
      %2363 = vmatpush1.bf16.msra.mxu0 0
      %2364 = vmatprep.mubr.bf16.mxu0 0
      %2365 = vmatmul.mubr.bf16.gmra.mrb[0].mxu0 %v2327
      %v2366 = vpop.f32.mrb[0].mxu0
      %v2367 = vadd.f32 %v2312, %v2366
      %v2368 = vpop.f32.mrb[0].mxu0
      %v2369 = vpop.f32.mrb[0].mxu0
      %v2370 = vadd.f32 %v2312, %v2369
      %v2371 = vpop.f32.mrb[0].mxu0
      %2372 = vmatprep.mubr.bf16.mxu0 0
      %2373 = vmatmul.mubr.bf16.gmra.mrb[0].mxu0 %v2330
      %v2374 = vpop.f32.mrb[0].mxu0
      %v2375 = vadd.f32 %v2312, %v2374
      %v2376 = vpop.f32.mrb[0].mxu0
      %v2377 = vpop.f32.mrb[0].mxu0
      %v2378 = vadd.f32 %v2312, %v2377
      %v2379 = vpop.f32.mrb[0].mxu0
      %2380 = vdwg.mxu0
      %v2381 = vpack.c.bf16 %v2370, %v2367
      %v2382 = vpack.c.bf16 %v2378, %v2375
      %2385 = vrot.lane.b32.xlu0 %v2381, 96
      %v2386 = vpop.permute.xlu0 %2385
      %2387 = vrot.lane.b32.xlu0 %v2382, 96
      %v2388 = vpop.permute.xlu0 %2387
      %v2390 = vsel %vm719, %v2381, 0
      %v2393 = vsel %vm719, %v2382, 0
      %v2396 = vsel %vm719, %v2386, 0
      %v2399 = vsel %vm719, %v2388, 0
      %2401 = vmatprep.subr.bf16.mxu0 0
      %2402 = vmatpush1.bf16.xpose.msra.mxu0 %v2396
      %2403 = vmatprep.subr.bf16.mxu0 0
      %2404 = vmatpush1.bf16.xpose.msra.mxu0 %v2399
      %2405 = vmatprep.subr.bf16.mxu0 0
      %2406 = vmatpush1.bf16.xpose.msra.mxu0 0
      %2407 = vmatprep.subr.bf16.mxu0 0
      %2408 = vmatpush1.bf16.xpose.msra.mxu0 0
      %2409 = vmatprep.subr.bf16.mxu0 0
      %2410 = vmatpush1.bf16.xpose.msra.mxu0 0
      %2411 = vmatprep.subr.bf16.mxu0 0
      %2412 = vmatpush1.bf16.xpose.msra.mxu0 0
      %2413 = vmatprep.subr.bf16.mxu0 0
      %2414 = vmatpush1.bf16.xpose.msra.mxu0 0
      %2415 = vmatprep.subr.bf16.mxu0 0
      %2416 = vmatpush1.bf16.xpose.msra.mxu0 0
      %2417 = vmatprep.subr.bf16.mxu0 0
      %2418 = vmatpush1.bf16.xpose.msra.mxu0 0
      %2419 = vmatprep.subr.bf16.mxu0 0
      %2420 = vmatpush1.bf16.xpose.msra.mxu0 0
      %2421 = vmatprep.subr.bf16.mxu0 0
      %2422 = vmatpush1.bf16.xpose.msra.mxu0 0
      %2423 = vmatprep.subr.bf16.mxu0 0
      %2424 = vmatpush1.bf16.xpose.msra.mxu0 0
      %2425 = vmatprep.subr.bf16.mxu0 0
      %2426 = vmatpush1.bf16.xpose.msra.mxu0 0
      %2427 = vmatprep.subr.bf16.mxu0 0
      %2428 = vmatpush1.bf16.xpose.msra.mxu0 0
      %2429 = vmatprep.subr.bf16.mxu0 0
      %2430 = vmatpush1.bf16.xpose.msra.mxu0 0
      %2431 = vmatprep.subr.bf16.mxu0 0
      %2432 = vmatpush1.bf16.xpose.msra.mxu0 0
      %2433 = vmatprep.mubr.bf16.mxu0 0
      %2434 = vmatmul.mubr.bf16.gmra.mrb[0].mxu0 %v2390
      %v2435 = vpop.f32.mrb[0].mxu0
      %v2436 = vadd.f32 0.0, %v2435
      %v2437 = vpop.f32.mrb[0].mxu0
      %v2438 = vpop.f32.mrb[0].mxu0
      %v2439 = vadd.f32 0.0, %v2438
      %v2440 = vpop.f32.mrb[0].mxu0
      %2441 = vmatprep.mubr.bf16.mxu0 0
      %2442 = vmatmul.mubr.bf16.gmra.mrb[0].mxu0 %v2393
      %v2443 = vpop.f32.mrb[0].mxu0
      %v2444 = vadd.f32 0.0, %v2443
      %v2445 = vpop.f32.mrb[0].mxu0
      %v2446 = vpop.f32.mrb[0].mxu0
      %v2447 = vadd.f32 0.0, %v2446
      %v2448 = vpop.f32.mrb[0].mxu0
      %2449 = vdwg.mxu0
      %v2450 = vsel %vm781, %v2436, -inf
      %2451 = vmax.xlane.f32.xlu0 %v2450
      %v2452 = vpop.xlane.xlu0 %2451
      %v2453 = vsel %vm781, %v2439, -inf
      %2454 = vmax.xlane.f32.xlu0 %v2453
      %v2455 = vpop.xlane.xlu0 %2454
      %v2456 = vsel %vm781, %v2444, -inf
      %2457 = vmax.xlane.f32.xlu0 %v2456
      %v2458 = vpop.xlane.xlu0 %2457
      %v2459 = vsel %vm781, %v2447, -inf
      %2460 = vmax.xlane.f32.xlu0 %v2459
      %v2461 = vpop.xlane.xlu0 %2460
      %v2462 = vsub.f32 %v2436, %v2452
      %v2463 = vsub.f32 %v2439, %v2455
      %v2464 = vsub.f32 %v2444, %v2458
      %v2465 = vsub.f32 %v2447, %v2461
      %v2466 = vmul.f32 %v2462, 1.442695
      %v2467 = vpow.pop %v2466
      %v2468 = vmul.f32 %v2463, 1.442695
      %v2469 = vpow.pop %v2468
      %v2470 = vmul.f32 %v2464, 1.442695
      %v2471 = vpow.pop %v2470
      %v2472 = vmul.f32 %v2465, 1.442695
      %v2473 = vpow.pop %v2472
      %v2474 = vsel %vm781, %v2467, 0.0
      %2475 = vadd.xlane.f32.xlu0 %v2474
      %v2476 = vpop.xlane.xlu0 %2475
      %v2477 = vsel %vm781, %v2469, 0.0
      %2478 = vadd.xlane.f32.xlu0 %v2477
      %v2479 = vpop.xlane.xlu0 %2478
      %v2480 = vsel %vm781, %v2471, 0.0
      %2481 = vadd.xlane.f32.xlu0 %v2480
      %v2482 = vpop.xlane.xlu0 %2481
      %v2483 = vsel %vm781, %v2473, 0.0
      %2484 = vadd.xlane.f32.xlu0 %v2483
      %v2485 = vpop.xlane.xlu0 %2484
      %v2486 = vrcp.pop %v2476
      %v2487 = vrcp.pop %v2479
      %v2488 = vrcp.pop %v2482
      %v2489 = vrcp.pop %v2485
      %v2490 = vmul.f32 %v2467, %v2486
      %v2491 = vmul.f32 %v2469, %v2487
      %v2492 = vmul.f32 %v2471, %v2488
      %v2493 = vmul.f32 %v2473, %v2489
      %v2494 = vpack.c.bf16 %v2491, %v2490
      %v2495 = vpack.c.bf16 %v2493, %v2492
      %2496 = vrot.lane.b32.xlu0 %v2381, 64
      %v2497 = vpop.permute.xlu0 %2496
      %2498 = vrot.lane.b32.xlu0 %v2382, 64
      %v2499 = vpop.permute.xlu0 %2498
      %v2503 = vsel %vm781, %v2494, 0
      %v2506 = vsel %vm781, %v2495, 0
      %2508 = vmatprep.subr.bf16.mxu0 0
      %2509 = vmatpush1.bf16.msra.mxu0 %v2497
      %2510 = vmatprep.subr.bf16.mxu0 0
      %2511 = vmatpush1.bf16.msra.mxu0 %v2499
      %2512 = vmatprep.subr.bf16.mxu0 0
      %2513 = vmatpush1.bf16.msra.mxu0 0
      %2514 = vmatprep.subr.bf16.mxu0 0
      %2515 = vmatpush1.bf16.msra.mxu0 0
      %2516 = vmatprep.subr.bf16.mxu0 0
      %2517 = vmatpush1.bf16.msra.mxu0 0
      %2518 = vmatprep.subr.bf16.mxu0 0
      %2519 = vmatpush1.bf16.msra.mxu0 0
      %2520 = vmatprep.subr.bf16.mxu0 0
      %2521 = vmatpush1.bf16.msra.mxu0 0
      %2522 = vmatprep.subr.bf16.mxu0 0
      %2523 = vmatpush1.bf16.msra.mxu0 0
      %2524 = vmatprep.subr.bf16.mxu0 0
      %2525 = vmatpush1.bf16.msra.mxu0 0
      %2526 = vmatprep.subr.bf16.mxu0 0
      %2527 = vmatpush1.bf16.msra.mxu0 0
      %2528 = vmatprep.subr.bf16.mxu0 0
      %2529 = vmatpush1.bf16.msra.mxu0 0
      %2530 = vmatprep.subr.bf16.mxu0 0
      %2531 = vmatpush1.bf16.msra.mxu0 0
      %2532 = vmatprep.subr.bf16.mxu0 0
      %2533 = vmatpush1.bf16.msra.mxu0 0
      %2534 = vmatprep.subr.bf16.mxu0 0
      %2535 = vmatpush1.bf16.msra.mxu0 0
      %2536 = vmatprep.subr.bf16.mxu0 0
      %2537 = vmatpush1.bf16.msra.mxu0 0
      %2538 = vmatprep.subr.bf16.mxu0 0
      %2539 = vmatpush1.bf16.msra.mxu0 0
      %2540 = vmatprep.mubr.bf16.mxu0 0
      %2541 = vmatmul.mubr.bf16.gmra.mrb[0].mxu0 %v2503
      %v2542 = vpop.f32.mrb[0].mxu0
      %v2543 = vadd.f32 0.0, %v2542
      %v2544 = vpop.f32.mrb[0].mxu0
      %v2545 = vpop.f32.mrb[0].mxu0
      %v2546 = vadd.f32 0.0, %v2545
      %v2547 = vpop.f32.mrb[0].mxu0
      %2548 = vmatprep.mubr.bf16.mxu0 0
      %2549 = vmatmul.mubr.bf16.gmra.mrb[0].mxu0 %v2506
      %v2550 = vpop.f32.mrb[0].mxu0
      %v2551 = vadd.f32 0.0, %v2550
      %v2552 = vpop.f32.mrb[0].mxu0
      %v2553 = vpop.f32.mrb[0].mxu0
      %v2554 = vadd.f32 0.0, %v2553
      %v2555 = vpop.f32.mrb[0].mxu0
      %2556 = vdwg.mxu0
      %2557 = vrot.lane.b32.xlu0 %v2381, 120
      %v2558 = vpop.permute.xlu0 %2557
      %2559 = vrot.lane.b32.xlu0 %v2382, 120
      %v2560 = vpop.permute.xlu0 %2559
      %2561 = vrot.lane.b32.xlu0 %v2381, 88
      %v2562 = vpop.permute.xlu0 %2561
      %2563 = vrot.lane.b32.xlu0 %v2382, 88
      %v2564 = vpop.permute.xlu0 %2563
      %v2566 = vsel %vm719, %v2558, 0
      %v2569 = vsel %vm719, %v2560, 0
      %v2572 = vsel %vm719, %v2562, 0
      %v2575 = vsel %vm719, %v2564, 0
      %2577 = vmatprep.subr.bf16.mxu0 0
      %2578 = vmatpush1.bf16.xpose.msra.mxu0 %v2572
      %2579 = vmatprep.subr.bf16.mxu0 0
      %2580 = vmatpush1.bf16.xpose.msra.mxu0 %v2575
      %2581 = vmatprep.subr.bf16.mxu0 0
      %2582 = vmatpush1.bf16.xpose.msra.mxu0 0
      %2583 = vmatprep.subr.bf16.mxu0 0
      %2584 = vmatpush1.bf16.xpose.msra.mxu0 0
      %2585 = vmatprep.subr.bf16.mxu0 0
      %2586 = vmatpush1.bf16.xpose.msra.mxu0 0
      %2587 = vmatprep.subr.bf16.mxu0 0
      %2588 = vmatpush1.bf16.xpose.msra.mxu0 0
      %2589 = vmatprep.subr.bf16.mxu0 0
      %2590 = vmatpush1.bf16.xpose.msra.mxu0 0
      %2591 = vmatprep.subr.bf16.mxu0 0
      %2592 = vmatpush1.bf16.xpose.msra.mxu0 0
      %2593 = vmatprep.subr.bf16.mxu0 0
      %2594 = vmatpush1.bf16.xpose.msra.mxu0 0
      %2595 = vmatprep.subr.bf16.mxu0 0
      %2596 = vmatpush1.bf16.xpose.msra.mxu0 0
      %2597 = vmatprep.subr.bf16.mxu0 0
      %2598 = vmatpush1.bf16.xpose.msra.mxu0 0
      %2599 = vmatprep.subr.bf16.mxu0 0
      %2600 = vmatpush1.bf16.xpose.msra.mxu0 0
      %2601 = vmatprep.subr.bf16.mxu0 0
      %2602 = vmatpush1.bf16.xpose.msra.mxu0 0
      %2603 = vmatprep.subr.bf16.mxu0 0
      %2604 = vmatpush1.bf16.xpose.msra.mxu0 0
      %2605 = vmatprep.subr.bf16.mxu0 0
      %2606 = vmatpush1.bf16.xpose.msra.mxu0 0
      %2607 = vmatprep.subr.bf16.mxu0 0
      %2608 = vmatpush1.bf16.xpose.msra.mxu0 0
      %2609 = vmatprep.mubr.bf16.mxu0 0
      %2610 = vmatmul.mubr.bf16.gmra.mrb[0].mxu0 %v2566
      %v2611 = vpop.f32.mrb[0].mxu0
      %v2612 = vadd.f32 0.0, %v2611
      %v2613 = vpop.f32.mrb[0].mxu0
      %v2614 = vpop.f32.mrb[0].mxu0
      %v2615 = vadd.f32 0.0, %v2614
      %v2616 = vpop.f32.mrb[0].mxu0
      %2617 = vmatprep.mubr.bf16.mxu0 0
      %2618 = vmatmul.mubr.bf16.gmra.mrb[0].mxu0 %v2569
      %v2619 = vpop.f32.mrb[0].mxu0
      %v2620 = vadd.f32 0.0, %v2619
      %v2621 = vpop.f32.mrb[0].mxu0
      %v2622 = vpop.f32.mrb[0].mxu0
      %v2623 = vadd.f32 0.0, %v2622
      %v2624 = vpop.f32.mrb[0].mxu0
      %2625 = vdwg.mxu0
      %v2626 = vsel %vm781, %v2612, -inf
      %2627 = vmax.xlane.f32.xlu0 %v2626
      %v2628 = vpop.xlane.xlu0 %2627
      %v2629 = vsel %vm781, %v2615, -inf
      %2630 = vmax.xlane.f32.xlu0 %v2629
      %v2631 = vpop.xlane.xlu0 %2630
      %v2632 = vsel %vm781, %v2620, -inf
      %2633 = vmax.xlane.f32.xlu0 %v2632
      %v2634 = vpop.xlane.xlu0 %2633
      %v2635 = vsel %vm781, %v2623, -inf
      %2636 = vmax.xlane.f32.xlu0 %v2635
      %v2637 = vpop.xlane.xlu0 %2636
      %v2638 = vsub.f32 %v2612, %v2628
      %v2639 = vsub.f32 %v2615, %v2631
      %v2640 = vsub.f32 %v2620, %v2634
      %v2641 = vsub.f32 %v2623, %v2637
      %v2642 = vmul.f32 %v2638, 1.442695
      %v2643 = vpow.pop %v2642
      %v2644 = vmul.f32 %v2639, 1.442695
      %v2645 = vpow.pop %v2644
      %v2646 = vmul.f32 %v2640, 1.442695
      %v2647 = vpow.pop %v2646
      %v2648 = vmul.f32 %v2641, 1.442695
      %v2649 = vpow.pop %v2648
      %v2650 = vsel %vm781, %v2643, 0.0
      %2651 = vadd.xlane.f32.xlu0 %v2650
      %v2652 = vpop.xlane.xlu0 %2651
      %v2653 = vsel %vm781, %v2645, 0.0
      %2654 = vadd.xlane.f32.xlu0 %v2653
      %v2655 = vpop.xlane.xlu0 %2654
      %v2656 = vsel %vm781, %v2647, 0.0
      %2657 = vadd.xlane.f32.xlu0 %v2656
      %v2658 = vpop.xlane.xlu0 %2657
      %v2659 = vsel %vm781, %v2649, 0.0
      %2660 = vadd.xlane.f32.xlu0 %v2659
      %v2661 = vpop.xlane.xlu0 %2660
      %v2662 = vrcp.pop %v2652
      %v2663 = vrcp.pop %v2655
      %v2664 = vrcp.pop %v2658
      %v2665 = vrcp.pop %v2661
      %v2666 = vmul.f32 %v2643, %v2662
      %v2667 = vmul.f32 %v2645, %v2663
      %v2668 = vmul.f32 %v2647, %v2664
      %v2669 = vmul.f32 %v2649, %v2665
      %v2670 = vpack.c.bf16 %v2667, %v2666
      %v2671 = vpack.c.bf16 %v2669, %v2668
      %2672 = vrot.lane.b32.xlu0 %v2381, 56
      %v2673 = vpop.permute.xlu0 %2672
      %2674 = vrot.lane.b32.xlu0 %v2382, 56
      %v2675 = vpop.permute.xlu0 %2674
      %v2679 = vsel %vm781, %v2670, 0
      %v2682 = vsel %vm781, %v2671, 0
      %2684 = vmatprep.subr.bf16.mxu0 0
      %2685 = vmatpush1.bf16.msra.mxu0 %v2673
      %2686 = vmatprep.subr.bf16.mxu0 0
      %2687 = vmatpush1.bf16.msra.mxu0 %v2675
      %2688 = vmatprep.subr.bf16.mxu0 0
      %2689 = vmatpush1.bf16.msra.mxu0 0
      %2690 = vmatprep.subr.bf16.mxu0 0
      %2691 = vmatpush1.bf16.msra.mxu0 0
      %2692 = vmatprep.subr.bf16.mxu0 0
      %2693 = vmatpush1.bf16.msra.mxu0 0
      %2694 = vmatprep.subr.bf16.mxu0 0
      %2695 = vmatpush1.bf16.msra.mxu0 0
      %2696 = vmatprep.subr.bf16.mxu0 0
      %2697 = vmatpush1.bf16.msra.mxu0 0
      %2698 = vmatprep.subr.bf16.mxu0 0
      %2699 = vmatpush1.bf16.msra.mxu0 0
      %2700 = vmatprep.subr.bf16.mxu0 0
      %2701 = vmatpush1.bf16.msra.mxu0 0
      %2702 = vmatprep.subr.bf16.mxu0 0
      %2703 = vmatpush1.bf16.msra.mxu0 0
      %2704 = vmatprep.subr.bf16.mxu0 0
      %2705 = vmatpush1.bf16.msra.mxu0 0
      %2706 = vmatprep.subr.bf16.mxu0 0
      %2707 = vmatpush1.bf16.msra.mxu0 0
      %2708 = vmatprep.subr.bf16.mxu0 0
      %2709 = vmatpush1.bf16.msra.mxu0 0
      %2710 = vmatprep.subr.bf16.mxu0 0
      %2711 = vmatpush1.bf16.msra.mxu0 0
      %2712 = vmatprep.subr.bf16.mxu0 0
      %2713 = vmatpush1.bf16.msra.mxu0 0
      %2714 = vmatprep.subr.bf16.mxu0 0
      %2715 = vmatpush1.bf16.msra.mxu0 0
      %2716 = vmatprep.mubr.bf16.mxu0 0
      %2717 = vmatmul.mubr.bf16.gmra.mrb[0].mxu0 %v2679
      %v2718 = vpop.f32.mrb[0].mxu0
      %v2719 = vadd.f32 0.0, %v2718
      %v2720 = vpop.f32.mrb[0].mxu0
      %v2721 = vpop.f32.mrb[0].mxu0
      %v2722 = vadd.f32 0.0, %v2721
      %v2723 = vpop.f32.mrb[0].mxu0
      %2724 = vmatprep.mubr.bf16.mxu0 0
      %2725 = vmatmul.mubr.bf16.gmra.mrb[0].mxu0 %v2682
      %v2726 = vpop.f32.mrb[0].mxu0
      %v2727 = vadd.f32 0.0, %v2726
      %v2728 = vpop.f32.mrb[0].mxu0
      %v2729 = vpop.f32.mrb[0].mxu0
      %v2730 = vadd.f32 0.0, %v2729
      %v2731 = vpop.f32.mrb[0].mxu0
      %2732 = vdwg.mxu0
      %2733 = vrot.lane.b32.xlu0 %v2381, 112
      %v2734 = vpop.permute.xlu0 %2733
      %2735 = vrot.lane.b32.xlu0 %v2382, 112
      %v2736 = vpop.permute.xlu0 %2735
      %2737 = vrot.lane.b32.xlu0 %v2381, 80
      %v2738 = vpop.permute.xlu0 %2737
      %2739 = vrot.lane.b32.xlu0 %v2382, 80
      %v2740 = vpop.permute.xlu0 %2739
      %v2742 = vsel %vm719, %v2734, 0
      %v2745 = vsel %vm719, %v2736, 0
      %v2748 = vsel %vm719, %v2738, 0
      %v2751 = vsel %vm719, %v2740, 0
      %2753 = vmatprep.subr.bf16.mxu0 0
      %2754 = vmatpush1.bf16.xpose.msra.mxu0 %v2748
      %2755 = vmatprep.subr.bf16.mxu0 0
      %2756 = vmatpush1.bf16.xpose.msra.mxu0 %v2751
      %2757 = vmatprep.subr.bf16.mxu0 0
      %2758 = vmatpush1.bf16.xpose.msra.mxu0 0
      %2759 = vmatprep.subr.bf16.mxu0 0
      %2760 = vmatpush1.bf16.xpose.msra.mxu0 0
      %2761 = vmatprep.subr.bf16.mxu0 0
      %2762 = vmatpush1.bf16.xpose.msra.mxu0 0
      %2763 = vmatprep.subr.bf16.mxu0 0
      %2764 = vmatpush1.bf16.xpose.msra.mxu0 0
      %2765 = vmatprep.subr.bf16.mxu0 0
      %2766 = vmatpush1.bf16.xpose.msra.mxu0 0
      %2767 = vmatprep.subr.bf16.mxu0 0
      %2768 = vmatpush1.bf16.xpose.msra.mxu0 0
      %2769 = vmatprep.subr.bf16.mxu0 0
      %2770 = vmatpush1.bf16.xpose.msra.mxu0 0
      %2771 = vmatprep.subr.bf16.mxu0 0
      %2772 = vmatpush1.bf16.xpose.msra.mxu0 0
      %2773 = vmatprep.subr.bf16.mxu0 0
      %2774 = vmatpush1.bf16.xpose.msra.mxu0 0
      %2775 = vmatprep.subr.bf16.mxu0 0
      %2776 = vmatpush1.bf16.xpose.msra.mxu0 0
      %2777 = vmatprep.subr.bf16.mxu0 0
      %2778 = vmatpush1.bf16.xpose.msra.mxu0 0
      %2779 = vmatprep.subr.bf16.mxu0 0
      %2780 = vmatpush1.bf16.xpose.msra.mxu0 0
      %2781 = vmatprep.subr.bf16.mxu0 0
      %2782 = vmatpush1.bf16.xpose.msra.mxu0 0
      %2783 = vmatprep.subr.bf16.mxu0 0
      %2784 = vmatpush1.bf16.xpose.msra.mxu0 0
      %2785 = vmatprep.mubr.bf16.mxu0 0
      %2786 = vmatmul.mubr.bf16.gmra.mrb[0].mxu0 %v2742
      %v2787 = vpop.f32.mrb[0].mxu0
      %v2788 = vadd.f32 0.0, %v2787
      %v2789 = vpop.f32.mrb[0].mxu0
      %v2790 = vpop.f32.mrb[0].mxu0
      %v2791 = vadd.f32 0.0, %v2790
      %v2792 = vpop.f32.mrb[0].mxu0
      %2793 = vmatprep.mubr.bf16.mxu0 0
      %2794 = vmatmul.mubr.bf16.gmra.mrb[0].mxu0 %v2745
      %v2795 = vpop.f32.mrb[0].mxu0
      %v2796 = vadd.f32 0.0, %v2795
      %v2797 = vpop.f32.mrb[0].mxu0
      %v2798 = vpop.f32.mrb[0].mxu0
      %v2799 = vadd.f32 0.0, %v2798
      %v2800 = vpop.f32.mrb[0].mxu0
      %2801 = vdwg.mxu0
      %v2802 = vsel %vm781, %v2788, -inf
      %2803 = vmax.xlane.f32.xlu0 %v2802
      %v2804 = vpop.xlane.xlu0 %2803
      %v2805 = vsel %vm781, %v2791, -inf
      %2806 = vmax.xlane.f32.xlu0 %v2805
      %v2807 = vpop.xlane.xlu0 %2806
      %v2808 = vsel %vm781, %v2796, -inf
      %2809 = vmax.xlane.f32.xlu0 %v2808
      %v2810 = vpop.xlane.xlu0 %2809
      %v2811 = vsel %vm781, %v2799, -inf
      %2812 = vmax.xlane.f32.xlu0 %v2811
      %v2813 = vpop.xlane.xlu0 %2812
      %v2814 = vsub.f32 %v2788, %v2804
      %v2815 = vsub.f32 %v2791, %v2807
      %v2816 = vsub.f32 %v2796, %v2810
      %v2817 = vsub.f32 %v2799, %v2813
      %v2818 = vmul.f32 %v2814, 1.442695
      %v2819 = vpow.pop %v2818
      %v2820 = vmul.f32 %v2815, 1.442695
      %v2821 = vpow.pop %v2820
      %v2822 = vmul.f32 %v2816, 1.442695
      %v2823 = vpow.pop %v2822
      %v2824 = vmul.f32 %v2817, 1.442695
      %v2825 = vpow.pop %v2824
      %v2826 = vsel %vm781, %v2819, 0.0
      %2827 = vadd.xlane.f32.xlu0 %v2826
      %v2828 = vpop.xlane.xlu0 %2827
      %v2829 = vsel %vm781, %v2821, 0.0
      %2830 = vadd.xlane.f32.xlu0 %v2829
      %v2831 = vpop.xlane.xlu0 %2830
      %v2832 = vsel %vm781, %v2823, 0.0
      %2833 = vadd.xlane.f32.xlu0 %v2832
      %v2834 = vpop.xlane.xlu0 %2833
      %v2835 = vsel %vm781, %v2825, 0.0
      %2836 = vadd.xlane.f32.xlu0 %v2835
      %v2837 = vpop.xlane.xlu0 %2836
      %v2838 = vrcp.pop %v2828
      %v2839 = vrcp.pop %v2831
      %v2840 = vrcp.pop %v2834
      %v2841 = vrcp.pop %v2837
      %v2842 = vmul.f32 %v2819, %v2838
      %v2843 = vmul.f32 %v2821, %v2839
      %v2844 = vmul.f32 %v2823, %v2840
      %v2845 = vmul.f32 %v2825, %v2841
      %v2846 = vpack.c.bf16 %v2843, %v2842
      %v2847 = vpack.c.bf16 %v2845, %v2844
      %2848 = vrot.lane.b32.xlu0 %v2381, 48
      %v2849 = vpop.permute.xlu0 %2848
      %2850 = vrot.lane.b32.xlu0 %v2382, 48
      %v2851 = vpop.permute.xlu0 %2850
      %v2855 = vsel %vm781, %v2846, 0
      %v2858 = vsel %vm781, %v2847, 0
      %2860 = vmatprep.subr.bf16.mxu0 0
      %2861 = vmatpush1.bf16.msra.mxu0 %v2849
      %2862 = vmatprep.subr.bf16.mxu0 0
      %2863 = vmatpush1.bf16.msra.mxu0 %v2851
      %2864 = vmatprep.subr.bf16.mxu0 0
      %2865 = vmatpush1.bf16.msra.mxu0 0
      %2866 = vmatprep.subr.bf16.mxu0 0
      %2867 = vmatpush1.bf16.msra.mxu0 0
      %2868 = vmatprep.subr.bf16.mxu0 0
      %2869 = vmatpush1.bf16.msra.mxu0 0
      %2870 = vmatprep.subr.bf16.mxu0 0
      %2871 = vmatpush1.bf16.msra.mxu0 0
      %2872 = vmatprep.subr.bf16.mxu0 0
      %2873 = vmatpush1.bf16.msra.mxu0 0
      %2874 = vmatprep.subr.bf16.mxu0 0
      %2875 = vmatpush1.bf16.msra.mxu0 0
      %2876 = vmatprep.subr.bf16.mxu0 0
      %2877 = vmatpush1.bf16.msra.mxu0 0
      %2878 = vmatprep.subr.bf16.mxu0 0
      %2879 = vmatpush1.bf16.msra.mxu0 0
      %2880 = vmatprep.subr.bf16.mxu0 0
      %2881 = vmatpush1.bf16.msra.mxu0 0
      %2882 = vmatprep.subr.bf16.mxu0 0
      %2883 = vmatpush1.bf16.msra.mxu0 0
      %2884 = vmatprep.subr.bf16.mxu0 0
      %2885 = vmatpush1.bf16.msra.mxu0 0
      %2886 = vmatprep.subr.bf16.mxu0 0
      %2887 = vmatpush1.bf16.msra.mxu0 0
      %2888 = vmatprep.subr.bf16.mxu0 0
      %2889 = vmatpush1.bf16.msra.mxu0 0
      %2890 = vmatprep.subr.bf16.mxu0 0
      %2891 = vmatpush1.bf16.msra.mxu0 0
      %2892 = vmatprep.mubr.bf16.mxu0 0
      %2893 = vmatmul.mubr.bf16.gmra.mrb[0].mxu0 %v2855
      %v2894 = vpop.f32.mrb[0].mxu0
      %v2895 = vadd.f32 0.0, %v2894
      %v2896 = vpop.f32.mrb[0].mxu0
      %v2897 = vpop.f32.mrb[0].mxu0
      %v2898 = vadd.f32 0.0, %v2897
      %v2899 = vpop.f32.mrb[0].mxu0
      %2900 = vmatprep.mubr.bf16.mxu0 0
      %2901 = vmatmul.mubr.bf16.gmra.mrb[0].mxu0 %v2858
      %v2902 = vpop.f32.mrb[0].mxu0
      %v2903 = vadd.f32 0.0, %v2902
      %v2904 = vpop.f32.mrb[0].mxu0
      %v2905 = vpop.f32.mrb[0].mxu0
      %v2906 = vadd.f32 0.0, %v2905
      %v2907 = vpop.f32.mrb[0].mxu0
      %2908 = vdwg.mxu0
      %2909 = vrot.lane.b32.xlu0 %v2381, 104
      %v2910 = vpop.permute.xlu0 %2909
      %2911 = vrot.lane.b32.xlu0 %v2382, 104
      %v2912 = vpop.permute.xlu0 %2911
      %2913 = vrot.lane.b32.xlu0 %v2381, 72
      %v2914 = vpop.permute.xlu0 %2913
      %2915 = vrot.lane.b32.xlu0 %v2382, 72
      %v2916 = vpop.permute.xlu0 %2915
      %v2918 = vsel %vm719, %v2910, 0
      %v2921 = vsel %vm719, %v2912, 0
      %v2924 = vsel %vm719, %v2914, 0
      %v2927 = vsel %vm719, %v2916, 0
      %2929 = vmatprep.subr.bf16.mxu0 0
      %2930 = vmatpush1.bf16.xpose.msra.mxu0 %v2924
      %2931 = vmatprep.subr.bf16.mxu0 0
      %2932 = vmatpush1.bf16.xpose.msra.mxu0 %v2927
      %2933 = vmatprep.subr.bf16.mxu0 0
      %2934 = vmatpush1.bf16.xpose.msra.mxu0 0
      %2935 = vmatprep.subr.bf16.mxu0 0
      %2936 = vmatpush1.bf16.xpose.msra.mxu0 0
      %2937 = vmatprep.subr.bf16.mxu0 0
      %2938 = vmatpush1.bf16.xpose.msra.mxu0 0
      %2939 = vmatprep.subr.bf16.mxu0 0
      %2940 = vmatpush1.bf16.xpose.msra.mxu0 0
      %2941 = vmatprep.subr.bf16.mxu0 0
      %2942 = vmatpush1.bf16.xpose.msra.mxu0 0
      %2943 = vmatprep.subr.bf16.mxu0 0
      %2944 = vmatpush1.bf16.xpose.msra.mxu0 0
      %2945 = vmatprep.subr.bf16.mxu0 0
      %2946 = vmatpush1.bf16.xpose.msra.mxu0 0
      %2947 = vmatprep.subr.bf16.mxu0 0
      %2948 = vmatpush1.bf16.xpose.msra.mxu0 0
      %2949 = vmatprep.subr.bf16.mxu0 0
      %2950 = vmatpush1.bf16.xpose.msra.mxu0 0
      %2951 = vmatprep.subr.bf16.mxu0 0
      %2952 = vmatpush1.bf16.xpose.msra.mxu0 0
      %2953 = vmatprep.subr.bf16.mxu0 0
      %2954 = vmatpush1.bf16.xpose.msra.mxu0 0
      %2955 = vmatprep.subr.bf16.mxu0 0
      %2956 = vmatpush1.bf16.xpose.msra.mxu0 0
      %2957 = vmatprep.subr.bf16.mxu0 0
      %2958 = vmatpush1.bf16.xpose.msra.mxu0 0
      %2959 = vmatprep.subr.bf16.mxu0 0
      %2960 = vmatpush1.bf16.xpose.msra.mxu0 0
      %2961 = vmatprep.mubr.bf16.mxu0 0
      %2962 = vmatmul.mubr.bf16.gmra.mrb[0].mxu0 %v2918
      %v2963 = vpop.f32.mrb[0].mxu0
      %v2964 = vadd.f32 0.0, %v2963
      %v2965 = vpop.f32.mrb[0].mxu0
      %v2966 = vpop.f32.mrb[0].mxu0
      %v2967 = vadd.f32 0.0, %v2966
      %v2968 = vpop.f32.mrb[0].mxu0
      %2969 = vmatprep.mubr.bf16.mxu0 0
      %2970 = vmatmul.mubr.bf16.gmra.mrb[0].mxu0 %v2921
      %v2971 = vpop.f32.mrb[0].mxu0
      %v2972 = vadd.f32 0.0, %v2971
      %v2973 = vpop.f32.mrb[0].mxu0
      %v2974 = vpop.f32.mrb[0].mxu0
      %v2975 = vadd.f32 0.0, %v2974
      %v2976 = vpop.f32.mrb[0].mxu0
      %2977 = vdwg.mxu0
      %v2978 = vsel %vm781, %v2964, -inf
      %2979 = vmax.xlane.f32.xlu0 %v2978
      %v2980 = vpop.xlane.xlu0 %2979
      %v2981 = vsel %vm781, %v2967, -inf
      %2982 = vmax.xlane.f32.xlu0 %v2981
      %v2983 = vpop.xlane.xlu0 %2982
      %v2984 = vsel %vm781, %v2972, -inf
      %2985 = vmax.xlane.f32.xlu0 %v2984
      %v2986 = vpop.xlane.xlu0 %2985
      %v2987 = vsel %vm781, %v2975, -inf
      %2988 = vmax.xlane.f32.xlu0 %v2987
      %v2989 = vpop.xlane.xlu0 %2988
      %v2990 = vsub.f32 %v2964, %v2980
      %v2991 = vsub.f32 %v2967, %v2983
      %v2992 = vsub.f32 %v2972, %v2986
      %v2993 = vsub.f32 %v2975, %v2989
      %v2994 = vmul.f32 %v2990, 1.442695
      %v2995 = vpow.pop %v2994
      %v2996 = vmul.f32 %v2991, 1.442695
      %v2997 = vpow.pop %v2996
      %v2998 = vmul.f32 %v2992, 1.442695
      %v2999 = vpow.pop %v2998
      %v3000 = vmul.f32 %v2993, 1.442695
      %v3001 = vpow.pop %v3000
      %v3002 = vsel %vm781, %v2995, 0.0
      %3003 = vadd.xlane.f32.xlu0 %v3002
      %v3004 = vpop.xlane.xlu0 %3003
      %v3005 = vsel %vm781, %v2997, 0.0
      %3006 = vadd.xlane.f32.xlu0 %v3005
      %v3007 = vpop.xlane.xlu0 %3006
      %v3008 = vsel %vm781, %v2999, 0.0
      %3009 = vadd.xlane.f32.xlu0 %v3008
      %v3010 = vpop.xlane.xlu0 %3009
      %v3011 = vsel %vm781, %v3001, 0.0
      %3012 = vadd.xlane.f32.xlu0 %v3011
      %v3013 = vpop.xlane.xlu0 %3012
      %v3014 = vrcp.pop %v3004
      %v3015 = vrcp.pop %v3007
      %v3016 = vrcp.pop %v3010
      %v3017 = vrcp.pop %v3013
      %v3018 = vmul.f32 %v2995, %v3014
      %v3019 = vmul.f32 %v2997, %v3015
      %v3020 = vmul.f32 %v2999, %v3016
      %v3021 = vmul.f32 %v3001, %v3017
      %v3022 = vpack.c.bf16 %v3019, %v3018
      %v3023 = vpack.c.bf16 %v3021, %v3020
      %3024 = vrot.lane.b32.xlu0 %v2381, 40
      %v3025 = vpop.permute.xlu0 %3024
      %3026 = vrot.lane.b32.xlu0 %v2382, 40
      %v3027 = vpop.permute.xlu0 %3026
      %v3031 = vsel %vm781, %v3022, 0
      %v3034 = vsel %vm781, %v3023, 0
      %3036 = vmatprep.subr.bf16.mxu0 0
      %3037 = vmatpush1.bf16.msra.mxu0 %v3025
      %3038 = vmatprep.subr.bf16.mxu0 0
      %3039 = vmatpush1.bf16.msra.mxu0 %v3027
      %3040 = vmatprep.subr.bf16.mxu0 0
      %3041 = vmatpush1.bf16.msra.mxu0 0
      %3042 = vmatprep.subr.bf16.mxu0 0
      %3043 = vmatpush1.bf16.msra.mxu0 0
      %3044 = vmatprep.subr.bf16.mxu0 0
      %3045 = vmatpush1.bf16.msra.mxu0 0
      %3046 = vmatprep.subr.bf16.mxu0 0
      %3047 = vmatpush1.bf16.msra.mxu0 0
      %3048 = vmatprep.subr.bf16.mxu0 0
      %3049 = vmatpush1.bf16.msra.mxu0 0
      %3050 = vmatprep.subr.bf16.mxu0 0
      %3051 = vmatpush1.bf16.msra.mxu0 0
      %3052 = vmatprep.subr.bf16.mxu0 0
      %3053 = vmatpush1.bf16.msra.mxu0 0
      %3054 = vmatprep.subr.bf16.mxu0 0
      %3055 = vmatpush1.bf16.msra.mxu0 0
      %3056 = vmatprep.subr.bf16.mxu0 0
      %3057 = vmatpush1.bf16.msra.mxu0 0
      %3058 = vmatprep.subr.bf16.mxu0 0
      %3059 = vmatpush1.bf16.msra.mxu0 0
      %3060 = vmatprep.subr.bf16.mxu0 0
      %3061 = vmatpush1.bf16.msra.mxu0 0
      %3062 = vmatprep.subr.bf16.mxu0 0
      %3063 = vmatpush1.bf16.msra.mxu0 0
      %3064 = vmatprep.subr.bf16.mxu0 0
      %3065 = vmatpush1.bf16.msra.mxu0 0
      %3066 = vmatprep.subr.bf16.mxu0 0
      %3067 = vmatpush1.bf16.msra.mxu0 0
      %3068 = vmatprep.mubr.bf16.mxu0 0
      %3069 = vmatmul.mubr.bf16.gmra.mrb[0].mxu0 %v3031
      %v3070 = vpop.f32.mrb[0].mxu0
      %v3071 = vadd.f32 0.0, %v3070
      %v3072 = vpop.f32.mrb[0].mxu0
      %v3073 = vpop.f32.mrb[0].mxu0
      %v3074 = vadd.f32 0.0, %v3073
      %v3075 = vpop.f32.mrb[0].mxu0
      %3076 = vmatprep.mubr.bf16.mxu0 0
      %3077 = vmatmul.mubr.bf16.gmra.mrb[0].mxu0 %v3034
      %v3078 = vpop.f32.mrb[0].mxu0
      %v3079 = vadd.f32 0.0, %v3078
      %v3080 = vpop.f32.mrb[0].mxu0
      %v3081 = vpop.f32.mrb[0].mxu0
      %v3082 = vadd.f32 0.0, %v3081
      %v3083 = vpop.f32.mrb[0].mxu0
      %3084 = vdwg.mxu0
      %3089 = vrot.lane.b32.xlu0 %v2719, 8
      %v3090 = vpop.permute.xlu0 %3089
      %3091 = vrot.lane.b32.xlu0 %v2722, 8
      %v3092 = vpop.permute.xlu0 %3091
      %3093 = vrot.lane.b32.xlu0 %v2727, 8
      %v3094 = vpop.permute.xlu0 %3093
      %3095 = vrot.lane.b32.xlu0 %v2730, 8
      %v3096 = vpop.permute.xlu0 %3095
      %3105 = vrot.lane.b32.xlu0 %v2895, 16
      %v3106 = vpop.permute.xlu0 %3105
      %3107 = vrot.lane.b32.xlu0 %v2898, 16
      %v3108 = vpop.permute.xlu0 %3107
      %3109 = vrot.lane.b32.xlu0 %v2903, 16
      %v3110 = vpop.permute.xlu0 %3109
      %3111 = vrot.lane.b32.xlu0 %v2906, 16
      %v3112 = vpop.permute.xlu0 %3111
      %3121 = vrot.lane.b32.xlu0 %v3071, 24
      %v3122 = vpop.permute.xlu0 %3121
      %3123 = vrot.lane.b32.xlu0 %v3074, 24
      %v3124 = vpop.permute.xlu0 %3123
      %3125 = vrot.lane.b32.xlu0 %v3079, 24
      %v3126 = vpop.permute.xlu0 %3125
      %3127 = vrot.lane.b32.xlu0 %v3082, 24
      %v3128 = vpop.permute.xlu0 %3127
      %v3133 = vsel %vm719, %v2543, %v3090
      %v3134 = vsel %vm719, %v2546, %v3092
      %v3135 = vsel %vm719, %v2551, %v3094
      %v3136 = vsel %vm719, %v2554, %v3096
      %v3137 = vsel %vm1735, %v3133, %v3106
      %v3138 = vsel %vm1735, %v3134, %v3108
      %v3139 = vsel %vm1735, %v3135, %v3110
      %v3140 = vsel %vm1735, %v3136, %v3112
      %v3141 = vsel %vm1740, %v3137, %v3122
      %v3142 = vsel %vm1740, %v3138, %v3124
      %v3143 = vsel %vm1740, %v3139, %v3126
      %v3144 = vsel %vm1740, %v3140, %v3128
      %v3145 = vpack.c.bf16 %v3142, %v3141
      %v3146 = vpack.c.bf16 %v3144, %v3143
      %v3148 = vlaneseq
      %v3149 = vshrl.u32 %v3148, 7
      %v3150 = vsub.s32 0, %v3149
      %v3151 = vrot.slane %v2264, %v3150
      %v3157 = vunpack.c.l.b16 %v2259
      %v3158 = vunpack.c.l.b16 %v2260
      %v3159 = vunpack.c.l.b16 %v2261
      %v3160 = vunpack.c.l.b16 %v2262
      %v3161 = vpack.c.b16 %v3158, %v3157
      %v3162 = vpack.c.b16 %v3160, %v3159
      %v3166 = vsel %vm781, %v3145, 0
      %v3169 = vsel %vm781, %v3146, 0
      %3171 = vmatprep.subr.bf16.mxu0 0
      %3172 = vmatpush1.bf16.msra.mxu0 %v3161
      %3173 = vmatprep.subr.bf16.mxu0 0
      %3174 = vmatpush1.bf16.msra.mxu0 %v3162
      %3175 = vmatprep.subr.bf16.mxu0 0
      %3176 = vmatpush1.bf16.msra.mxu0 0
      %3177 = vmatprep.subr.bf16.mxu0 0
      %3178 = vmatpush1.bf16.msra.mxu0 0
      %3179 = vmatprep.subr.bf16.mxu0 0
      %3180 = vmatpush1.bf16.msra.mxu0 0
      %3181 = vmatprep.subr.bf16.mxu0 0
      %3182 = vmatpush1.bf16.msra.mxu0 0
      %3183 = vmatprep.subr.bf16.mxu0 0
      %3184 = vmatpush1.bf16.msra.mxu0 0
      %3185 = vmatprep.subr.bf16.mxu0 0
      %3186 = vmatpush1.bf16.msra.mxu0 0
      %3187 = vmatprep.subr.bf16.mxu0 0
      %3188 = vmatpush1.bf16.msra.mxu0 0
      %3189 = vmatprep.subr.bf16.mxu0 0
      %3190 = vmatpush1.bf16.msra.mxu0 0
      %3191 = vmatprep.subr.bf16.mxu0 0
      %3192 = vmatpush1.bf16.msra.mxu0 0
      %3193 = vmatprep.subr.bf16.mxu0 0
      %3194 = vmatpush1.bf16.msra.mxu0 0
      %3195 = vmatprep.subr.bf16.mxu0 0
      %3196 = vmatpush1.bf16.msra.mxu0 0
      %3197 = vmatprep.subr.bf16.mxu0 0
      %3198 = vmatpush1.bf16.msra.mxu0 0
      %3199 = vmatprep.subr.bf16.mxu0 0
      %3200 = vmatpush1.bf16.msra.mxu0 0
      %3201 = vmatprep.subr.bf16.mxu0 0
      %3202 = vmatpush1.bf16.msra.mxu0 0
      %3203 = vmatprep.mubr.bf16.mxu0 0
      %3204 = vmatmul.mubr.bf16.gmra.mrb[0].mxu0 %v3166
      %v3205 = vpop.f32.mrb[0].mxu0
      %v3206 = vadd.f32 %v3151, %v3205
      %v3207 = vpop.f32.mrb[0].mxu0
      %v3208 = vpop.f32.mrb[0].mxu0
      %v3209 = vadd.f32 %v3151, %v3208
      %v3210 = vpop.f32.mrb[0].mxu0
      %3211 = vmatprep.mubr.bf16.mxu0 0
      %3212 = vmatmul.mubr.bf16.gmra.mrb[0].mxu0 %v3169
      %v3213 = vpop.f32.mrb[0].mxu0
      %v3214 = vadd.f32 %v3151, %v3213
      %v3215 = vpop.f32.mrb[0].mxu0
      %v3216 = vpop.f32.mrb[0].mxu0
      %v3217 = vadd.f32 %v3151, %v3216
      %v3218 = vpop.f32.mrb[0].mxu0
      %3219 = vdwg.mxu0
      %v3220 = vadd.f32 %v2247, %v3206
      %v3221 = vadd.f32 %v2248, %v3209
      %v3222 = vadd.f32 %v2249, %v3214
      %v3223 = vadd.f32 %v2250, %v3217
      %v3224 = vsel %vm781, %v3220, 0.0
      %3225 = vadd.xlane.f32.xlu0 %v3224
      %v3226 = vpop.xlane.xlu0 %3225
      %v3227 = vsel %vm781, %v3221, 0.0
      %3228 = vadd.xlane.f32.xlu0 %v3227
      %v3229 = vpop.xlane.xlu0 %3228
      %v3230 = vsel %vm781, %v3222, 0.0
      %3231 = vadd.xlane.f32.xlu0 %v3230
      %v3232 = vpop.xlane.xlu0 %3231
      %v3233 = vsel %vm781, %v3223, 0.0
      %3234 = vadd.xlane.f32.xlu0 %v3233
      %v3235 = vpop.xlane.xlu0 %3234
      %v3236 = vmul.f32 %v3226, %v794
      %v3237 = vmul.f32 %v3229, %v794
      %v3238 = vmul.f32 %v3232, %v794
      %v3239 = vmul.f32 %v3235, %v794
      %v3240 = vsub.f32 %v3220, %v3236
      %v3241 = vsub.f32 %v3221, %v3237
      %v3242 = vsub.f32 %v3222, %v3238
      %v3243 = vsub.f32 %v3223, %v3239
      %v3244 = vmul.f32 %v3240, %v3240
      %v3245 = vmul.f32 %v3241, %v3241
      %v3246 = vmul.f32 %v3242, %v3242
      %v3247 = vmul.f32 %v3243, %v3243
      %v3248 = vsel %vm781, %v3244, 0.0
      %3249 = vadd.xlane.f32.xlu0 %v3248
      %v3250 = vpop.xlane.xlu0 %3249
      %v3251 = vsel %vm781, %v3245, 0.0
      %3252 = vadd.xlane.f32.xlu0 %v3251
      %v3253 = vpop.xlane.xlu0 %3252
      %v3254 = vsel %vm781, %v3246, 0.0
      %3255 = vadd.xlane.f32.xlu0 %v3254
      %v3256 = vpop.xlane.xlu0 %3255
      %v3257 = vsel %vm781, %v3247, 0.0
      %3258 = vadd.xlane.f32.xlu0 %v3257
      %v3259 = vpop.xlane.xlu0 %3258
      %v3260 = vmul.f32 %v3250, %v794
      %v3261 = vmul.f32 %v3253, %v794
      %v3262 = vmul.f32 %v3256, %v794
      %v3263 = vmul.f32 %v3259, %v794
      %v3264 = vadd.f32 %v3260, 1e-05
      %v3265 = vadd.f32 %v3261, 1e-05
      %v3266 = vadd.f32 %v3262, 1e-05
      %v3267 = vadd.f32 %v3263, 1e-05
      %v3268 = vrsqrt.pop %v3264
      %v3269 = vrsqrt.pop %v3265
      %v3270 = vrsqrt.pop %v3266
      %v3271 = vrsqrt.pop %v3267
      %v3272 = vmul.f32 %v3240, %v3268
      %v3273 = vmul.f32 %v3241, %v3269
      %v3274 = vmul.f32 %v3242, %v3270
      %v3275 = vmul.f32 %v3243, %v3271
      %v3277 = vlaneseq
      %v3278 = vshrl.u32 %v3277, 7
      %v3279 = vsub.s32 0, %v3278
      %v3280 = vrot.slane %v2266, %v3279
      %v3282 = vmul.f32 %v3272, %v3280
      %v3283 = vmul.f32 %v3273, %v3280
      %v3284 = vmul.f32 %v3274, %v3280
      %v3285 = vmul.f32 %v3275, %v3280
      %v3287 = vlaneseq
      %v3288 = vshrl.u32 %v3287, 7
      %v3289 = vsub.s32 0, %v3288
      %v3290 = vrot.slane %v2268, %v3289
      %v3292 = vadd.f32 %v3282, %v3290
      %v3293 = vadd.f32 %v3283, %v3290
      %v3294 = vadd.f32 %v3284, %v3290
      %v3295 = vadd.f32 %v3285, %v3290
      %v3296 = vpack.c.bf16 %v3293, %v3292
      %v3297 = vpack.c.bf16 %v3295, %v3294
      %v3299 = vlaneseq
      %v3300 = vshrl.u32 %v3299, 7
      %v3301 = vsub.s32 0, %v3300
      %v3302 = vrot.slane %v2275, %v3301
      %v3308 = vunpack.c.l.b16 %v2270
      %v3309 = vunpack.c.l.b16 %v2271
      %v3310 = vunpack.c.l.b16 %v2272
      %v3311 = vunpack.c.l.b16 %v2273
      %v3312 = vpack.c.b16 %v3309, %v3308
      %v3313 = vpack.c.b16 %v3311, %v3310
      %v3317 = vsel %vm781, %v3296, 0
      %v3320 = vsel %vm781, %v3297, 0
      %3322 = vmatprep.subr.bf16.mxu0 0
      %3323 = vmatpush1.bf16.msra.mxu0 %v3312
      %3324 = vmatprep.subr.bf16.mxu0 0
      %3325 = vmatpush1.bf16.msra.mxu0 %v3313
      %3326 = vmatprep.subr.bf16.mxu0 0
      %3327 = vmatpush1.bf16.msra.mxu0 0
      %3328 = vmatprep.subr.bf16.mxu0 0
      %3329 = vmatpush1.bf16.msra.mxu0 0
      %3330 = vmatprep.subr.bf16.mxu0 0
      %3331 = vmatpush1.bf16.msra.mxu0 0
      %3332 = vmatprep.subr.bf16.mxu0 0
      %3333 = vmatpush1.bf16.msra.mxu0 0
      %3334 = vmatprep.subr.bf16.mxu0 0
      %3335 = vmatpush1.bf16.msra.mxu0 0
      %3336 = vmatprep.subr.bf16.mxu0 0
      %3337 = vmatpush1.bf16.msra.mxu0 0
      %3338 = vmatprep.subr.bf16.mxu0 0
      %3339 = vmatpush1.bf16.msra.mxu0 0
      %3340 = vmatprep.subr.bf16.mxu0 0
      %3341 = vmatpush1.bf16.msra.mxu0 0
      %3342 = vmatprep.subr.bf16.mxu0 0
      %3343 = vmatpush1.bf16.msra.mxu0 0
      %3344 = vmatprep.subr.bf16.mxu0 0
      %3345 = vmatpush1.bf16.msra.mxu0 0
      %3346 = vmatprep.subr.bf16.mxu0 0
      %3347 = vmatpush1.bf16.msra.mxu0 0
      %3348 = vmatprep.subr.bf16.mxu0 0
      %3349 = vmatpush1.bf16.msra.mxu0 0
      %3350 = vmatprep.subr.bf16.mxu0 0
      %3351 = vmatpush1.bf16.msra.mxu0 0
      %3352 = vmatprep.subr.bf16.mxu0 0
      %3353 = vmatpush1.bf16.msra.mxu0 0
      %3354 = vmatprep.mubr.bf16.mxu0 0
      %3355 = vmatmul.mubr.bf16.gmra.mrb[0].mxu0 %v3317
      %v3356 = vpop.f32.mrb[0].mxu0
      %v3357 = vadd.f32 %v3302, %v3356
      %v3358 = vpop.f32.mrb[0].mxu0
      %v3359 = vpop.f32.mrb[0].mxu0
      %v3360 = vadd.f32 %v3302, %v3359
      %v3361 = vpop.f32.mrb[0].mxu0
      %3362 = vmatprep.mubr.bf16.mxu0 0
      %3363 = vmatmul.mubr.bf16.gmra.mrb[0].mxu0 %v3320
      %v3364 = vpop.f32.mrb[0].mxu0
      %v3365 = vadd.f32 %v3302, %v3364
      %v3366 = vpop.f32.mrb[0].mxu0
      %v3367 = vpop.f32.mrb[0].mxu0
      %v3368 = vadd.f32 %v3302, %v3367
      %v3369 = vpop.f32.mrb[0].mxu0
      %3370 = vdwg.mxu0
      %v3371 = vmax.f32 %v3357, 0.0
      %v3372 = vmax.f32 %v3360, 0.0
      %v3373 = vmax.f32 %v3365, 0.0
      %v3374 = vmax.f32 %v3368, 0.0
      %v3375 = vpack.c.bf16 %v3372, %v3371
      %v3376 = vpack.c.bf16 %v3374, %v3373
      %v3378 = vlaneseq
      %v3379 = vshrl.u32 %v3378, 7
      %v3380 = vsub.s32 0, %v3379
      %v3381 = vrot.slane %v2294, %v3380
      %v3399 = vunpack.c.l.b16 %v2277
      %v3400 = vunpack.c.l.b16 %v2278
      %v3401 = vunpack.c.l.b16 %v2279
      %v3402 = vunpack.c.l.b16 %v2280
      %v3403 = vunpack.c.l.b16 %v2281
      %v3404 = vunpack.c.l.b16 %v2282
      %v3405 = vunpack.c.l.b16 %v2283
      %v3406 = vunpack.c.l.b16 %v2284
      %v3407 = vunpack.c.l.b16 %v2285
      %v3408 = vunpack.c.l.b16 %v2286
      %v3409 = vunpack.c.l.b16 %v2287
      %v3410 = vunpack.c.l.b16 %v2288
      %v3411 = vunpack.c.l.b16 %v2289
      %v3412 = vunpack.c.l.b16 %v2290
      %v3413 = vunpack.c.l.b16 %v2291
      %v3414 = vunpack.c.l.b16 %v2292
      %v3415 = vpack.c.b16 %v3400, %v3399
      %v3416 = vpack.c.b16 %v3402, %v3401
      %v3417 = vpack.c.b16 %v3404, %v3403
      %v3418 = vpack.c.b16 %v3406, %v3405
      %v3419 = vpack.c.b16 %v3408, %v3407
      %v3420 = vpack.c.b16 %v3410, %v3409
      %v3421 = vpack.c.b16 %v3412, %v3411
      %v3422 = vpack.c.b16 %v3414, %v3413
      %3431 = vmatprep.subr.bf16.mxu0 0
      %3432 = vmatpush1.bf16.msra.mxu0 %v3415
      %3433 = vmatprep.subr.bf16.mxu0 0
      %3434 = vmatpush1.bf16.msra.mxu0 %v3416
      %3435 = vmatprep.subr.bf16.mxu0 0
      %3436 = vmatpush1.bf16.msra.mxu0 %v3417
      %3437 = vmatprep.subr.bf16.mxu0 0
      %3438 = vmatpush1.bf16.msra.mxu0 %v3418
      %3439 = vmatprep.subr.bf16.mxu0 0
      %3440 = vmatpush1.bf16.msra.mxu0 %v3419
      %3441 = vmatprep.subr.bf16.mxu0 0
      %3442 = vmatpush1.bf16.msra.mxu0 %v3420
      %3443 = vmatprep.subr.bf16.mxu0 0
      %3444 = vmatpush1.bf16.msra.mxu0 %v3421
      %3445 = vmatprep.subr.bf16.mxu0 0
      %3446 = vmatpush1.bf16.msra.mxu0 %v3422
      %3447 = vmatprep.subr.bf16.mxu0 0
      %3448 = vmatpush1.bf16.msra.mxu0 0
      %3449 = vmatprep.subr.bf16.mxu0 0
      %3450 = vmatpush1.bf16.msra.mxu0 0
      %3451 = vmatprep.subr.bf16.mxu0 0
      %3452 = vmatpush1.bf16.msra.mxu0 0
      %3453 = vmatprep.subr.bf16.mxu0 0
      %3454 = vmatpush1.bf16.msra.mxu0 0
      %3455 = vmatprep.subr.bf16.mxu0 0
      %3456 = vmatpush1.bf16.msra.mxu0 0
      %3457 = vmatprep.subr.bf16.mxu0 0
      %3458 = vmatpush1.bf16.msra.mxu0 0
      %3459 = vmatprep.subr.bf16.mxu0 0
      %3460 = vmatpush1.bf16.msra.mxu0 0
      %3461 = vmatprep.subr.bf16.mxu0 0
      %3462 = vmatpush1.bf16.msra.mxu0 0
      %3463 = vmatprep.mubr.bf16.mxu0 0
      %3464 = vmatmul.mubr.bf16.gmra.mrb[0].mxu0 %v3375
      %v3465 = vpop.f32.mrb[0].mxu0
      %v3466 = vadd.f32 %v3381, %v3465
      %v3467 = vpop.f32.mrb[0].mxu0
      %v3468 = vpop.f32.mrb[0].mxu0
      %v3469 = vadd.f32 %v3381, %v3468
      %v3470 = vpop.f32.mrb[0].mxu0
      %3471 = vmatprep.mubr.bf16.mxu0 0
      %3472 = vmatmul.mubr.bf16.gmra.mrb[0].mxu0 %v3376
      %v3473 = vpop.f32.mrb[0].mxu0
      %v3474 = vadd.f32 %v3381, %v3473
      %v3475 = vpop.f32.mrb[0].mxu0
      %v3476 = vpop.f32.mrb[0].mxu0
      %v3477 = vadd.f32 %v3381, %v3476
      %v3478 = vpop.f32.mrb[0].mxu0
      %3479 = vdwg.mxu0
      %v3480 = vadd.f32 %v3292, %v3466
      %v3481 = vadd.f32 %v3293, %v3469
      %v3482 = vadd.f32 %v3294, %v3474
      %v3483 = vadd.f32 %v3295, %v3477
      %v3484 = vsel %vm781, %v3480, 0.0
      %3485 = vadd.xlane.f32.xlu0 %v3484
      %v3486 = vpop.xlane.xlu0 %3485
      %v3487 = vsel %vm781, %v3481, 0.0
      %3488 = vadd.xlane.f32.xlu0 %v3487
      %v3489 = vpop.xlane.xlu0 %3488
      %v3490 = vsel %vm781, %v3482, 0.0
      %3491 = vadd.xlane.f32.xlu0 %v3490
      %v3492 = vpop.xlane.xlu0 %3491
      %v3493 = vsel %vm781, %v3483, 0.0
      %3494 = vadd.xlane.f32.xlu0 %v3493
      %v3495 = vpop.xlane.xlu0 %3494
      %v3496 = vmul.f32 %v3486, %v794
      %v3497 = vmul.f32 %v3489, %v794
      %v3498 = vmul.f32 %v3492, %v794
      %v3499 = vmul.f32 %v3495, %v794
      %v3500 = vsub.f32 %v3480, %v3496
      %v3501 = vsub.f32 %v3481, %v3497
      %v3502 = vsub.f32 %v3482, %v3498
      %v3503 = vsub.f32 %v3483, %v3499
      %v3504 = vmul.f32 %v3500, %v3500
      %v3505 = vmul.f32 %v3501, %v3501
      %v3506 = vmul.f32 %v3502, %v3502
      %v3507 = vmul.f32 %v3503, %v3503
      %v3508 = vsel %vm781, %v3504, 0.0
      %3509 = vadd.xlane.f32.xlu0 %v3508
      %v3510 = vpop.xlane.xlu0 %3509
      %v3511 = vsel %vm781, %v3505, 0.0
      %3512 = vadd.xlane.f32.xlu0 %v3511
      %v3513 = vpop.xlane.xlu0 %3512
      %v3514 = vsel %vm781, %v3506, 0.0
      %3515 = vadd.xlane.f32.xlu0 %v3514
      %v3516 = vpop.xlane.xlu0 %3515
      %v3517 = vsel %vm781, %v3507, 0.0
      %3518 = vadd.xlane.f32.xlu0 %v3517
      %v3519 = vpop.xlane.xlu0 %3518
      %v3520 = vmul.f32 %v3510, %v794
      %v3521 = vmul.f32 %v3513, %v794
      %v3522 = vmul.f32 %v3516, %v794
      %v3523 = vmul.f32 %v3519, %v794
      %v3524 = vadd.f32 %v3520, 1e-05
      %v3525 = vadd.f32 %v3521, 1e-05
      %v3526 = vadd.f32 %v3522, 1e-05
      %v3527 = vadd.f32 %v3523, 1e-05
      %v3528 = vrsqrt.pop %v3524
      %v3529 = vrsqrt.pop %v3525
      %v3530 = vrsqrt.pop %v3526
      %v3531 = vrsqrt.pop %v3527
      %v3532 = vmul.f32 %v3500, %v3528
      %v3533 = vmul.f32 %v3501, %v3529
      %v3534 = vmul.f32 %v3502, %v3530
      %v3535 = vmul.f32 %v3503, %v3531
      %v3537 = vlaneseq
      %v3538 = vshrl.u32 %v3537, 7
      %v3539 = vsub.s32 0, %v3538
      %v3540 = vrot.slane %v2296, %v3539
      %v3542 = vmul.f32 %v3532, %v3540
      %v3543 = vmul.f32 %v3533, %v3540
      %v3544 = vmul.f32 %v3534, %v3540
      %v3545 = vmul.f32 %v3535, %v3540
      %v3547 = vlaneseq
      %v3548 = vshrl.u32 %v3547, 7
      %v3549 = vsub.s32 0, %v3548
      %v3550 = vrot.slane %v2298, %v3549
      %v3552 = vadd.f32 %v3542, %v3550
      %v3553 = vadd.f32 %v3543, %v3550
      %v3554 = vadd.f32 %v3544, %v3550
      %v3555 = vadd.f32 %v3545, %v3550
      %v3557 = vlaneseq
      %v3558 = vshrl.u32 %v3557, 7
      %v3559 = vsub.s32 0, %v3558
      %v3560 = vrot.slane %v2305, %v3559
      %v3566 = vunpack.c.l.b16 %v2300
      %v3567 = vunpack.c.l.b16 %v2301
      %v3568 = vunpack.c.l.b16 %v2302
      %v3569 = vunpack.c.l.b16 %v2303
      %v3570 = vpack.c.b16 %v3567, %v3566
      %v3571 = vpack.c.b16 %v3569, %v3568
      %3574 = vmatprep.subr.bf16.mxu0 0
      %3575 = vmatpush1.bf16.msra.mxu0 %v3570
      %3576 = vmatprep.subr.bf16.mxu0 0
      %3577 = vmatpush1.bf16.msra.mxu0 %v3571
      %3578 = vmatprep.subr.bf16.mxu0 0
      %3579 = vmatpush1.bf16.msra.mxu0 0
      %3580 = vmatprep.subr.bf16.mxu0 0
      %3581 = vmatpush1.bf16.msra.mxu0 0
      %3582 = vmatprep.subr.bf16.mxu0 0
      %3583 = vmatpush1.bf16.msra.mxu0 0
      %3584 = vmatprep.subr.bf16.mxu0 0
      %3585 = vmatpush1.bf16.msra.mxu0 0
      %3586 = vmatprep.subr.bf16.mxu0 0
      %3587 = vmatpush1.bf16.msra.mxu0 0
      %3588 = vmatprep.subr.bf16.mxu0 0
      %3589 = vmatpush1.bf16.msra.mxu0 0
      %3590 = vmatprep.subr.bf16.mxu0 0
      %3591 = vmatpush1.bf16.msra.mxu0 0
      %3592 = vmatprep.subr.bf16.mxu0 0
      %3593 = vmatpush1.bf16.msra.mxu0 0
      %3594 = vmatprep.subr.bf16.mxu0 0
      %3595 = vmatpush1.bf16.msra.mxu0 0
      %3596 = vmatprep.subr.bf16.mxu0 0
      %3597 = vmatpush1.bf16.msra.mxu0 0
      %3598 = vmatprep.subr.bf16.mxu0 0
      %3599 = vmatpush1.bf16.msra.mxu0 0
      %3600 = vmatprep.subr.bf16.mxu0 0
      %3601 = vmatpush1.bf16.msra.mxu0 0
      %3602 = vmatprep.subr.bf16.mxu0 0
      %3603 = vmatpush1.bf16.msra.mxu0 0
      %3604 = vmatprep.subr.bf16.mxu0 0
      %3605 = vmatpush1.bf16.msra.mxu0 0
      %3606 = vmatprep.mubr.bf16.mxu0 0
      %3607 = vmatmul.mubr.bf16.gmra.mrb[0].mxu0 %v2327
      %v3608 = vpop.f32.mrb[0].mxu0
      %v3609 = vadd.f32 %v3560, %v3608
      %v3610 = vpop.f32.mrb[0].mxu0
      %v3611 = vpop.f32.mrb[0].mxu0
      %v3612 = vadd.f32 %v3560, %v3611
      %v3613 = vpop.f32.mrb[0].mxu0
      %3614 = vmatprep.mubr.bf16.mxu0 0
      %3615 = vmatmul.mubr.bf16.gmra.mrb[0].mxu0 %v2330
      %v3616 = vpop.f32.mrb[0].mxu0
      %v3617 = vadd.f32 %v3560, %v3616
      %v3618 = vpop.f32.mrb[0].mxu0
      %v3619 = vpop.f32.mrb[0].mxu0
      %v3620 = vadd.f32 %v3560, %v3619
      %v3621 = vpop.f32.mrb[0].mxu0
      %3622 = vdwg.mxu0
      %v3623 = vsub.f32 0.0, %v3609
      %v3624 = vsub.f32 0.0, %v3612
      %v3625 = vsub.f32 0.0, %v3617
      %v3626 = vsub.f32 0.0, %v3620
      %v3627 = vmul.f32 %v3623, 1.442695
      %v3628 = vpow.pop %v3627
      %v3629 = vmul.f32 %v3624, 1.442695
      %v3630 = vpow.pop %v3629
      %v3631 = vmul.f32 %v3625, 1.442695
      %v3632 = vpow.pop %v3631
      %v3633 = vmul.f32 %v3626, 1.442695
      %v3634 = vpow.pop %v3633
      %v3635 = vadd.f32 %v3628, 1.0
      %v3636 = vadd.f32 %v3630, 1.0
      %v3637 = vadd.f32 %v3632, 1.0
      %v3638 = vadd.f32 %v3634, 1.0
      %v3639 = vrcp.pop %v3635
      %v3640 = vmul.f32 1.0, %v3639
      %v3641 = vrcp.pop %v3636
      %v3642 = vmul.f32 1.0, %v3641
      %v3643 = vrcp.pop %v3637
      %v3644 = vmul.f32 1.0, %v3643
      %v3645 = vrcp.pop %v3638
      %v3646 = vmul.f32 1.0, %v3645
      %v3647 = vmul.f32 %v3552, %v3640
      %v3648 = vmul.f32 %v3553, %v3642
      %v3649 = vmul.f32 %v3554, %v3644
      %v3650 = vmul.f32 %v3555, %v3646
      %v3651 = vld [vmem:[%s20] sm:$0x1]
      %v3652 = vld [vmem:[%s21] sm:$0x1]
      %v3653 = vsel %vm781, %v3647, 0.0
      %3654 = vadd.xlane.f32.xlu0 %v3653
      %v3655 = vpop.xlane.xlu0 %3654
      %v3656 = vsel %vm781, %v3648, 0.0
      %3657 = vadd.xlane.f32.xlu0 %v3656
      %v3658 = vpop.xlane.xlu0 %3657
      %v3659 = vsel %vm781, %v3649, 0.0
      %3660 = vadd.xlane.f32.xlu0 %v3659
      %v3661 = vpop.xlane.xlu0 %3660
      %v3662 = vsel %vm781, %v3650, 0.0
      %3663 = vadd.xlane.f32.xlu0 %v3662
      %v3664 = vpop.xlane.xlu0 %3663
      %v3665 = vmul.f32 %v3655, %v794
      %v3666 = vmul.f32 %v3658, %v794
      %v3667 = vmul.f32 %v3661, %v794
      %v3668 = vmul.f32 %v3664, %v794
      %v3669 = vsub.f32 %v3647, %v3665
      %v3670 = vsub.f32 %v3648, %v3666
      %v3671 = vsub.f32 %v3649, %v3667
      %v3672 = vsub.f32 %v3650, %v3668
      %v3673 = vmul.f32 %v3669, %v3669
      %v3674 = vmul.f32 %v3670, %v3670
      %v3675 = vmul.f32 %v3671, %v3671
      %v3676 = vmul.f32 %v3672, %v3672
      %v3677 = vsel %vm781, %v3673, 0.0
      %3678 = vadd.xlane.f32.xlu0 %v3677
      %v3679 = vpop.xlane.xlu0 %3678
      %v3680 = vsel %vm781, %v3674, 0.0
      %3681 = vadd.xlane.f32.xlu0 %v3680
      %v3682 = vpop.xlane.xlu0 %3681
      %v3683 = vsel %vm781, %v3675, 0.0
      %3684 = vadd.xlane.f32.xlu0 %v3683
      %v3685 = vpop.xlane.xlu0 %3684
      %v3686 = vsel %vm781, %v3676, 0.0
      %3687 = vadd.xlane.f32.xlu0 %v3686
      %v3688 = vpop.xlane.xlu0 %3687
      %v3689 = vmul.f32 %v3679, %v794
      %v3690 = vmul.f32 %v3682, %v794
      %v3691 = vmul.f32 %v3685, %v794
      %v3692 = vmul.f32 %v3688, %v794
      %v3693 = vadd.f32 %v3689, 1e-05
      %v3694 = vadd.f32 %v3690, 1e-05
      %v3695 = vadd.f32 %v3691, 1e-05
      %v3696 = vadd.f32 %v3692, 1e-05
      %v3697 = vrsqrt.pop %v3693
      %v3698 = vrsqrt.pop %v3694
      %v3699 = vrsqrt.pop %v3695
      %v3700 = vrsqrt.pop %v3696
      %v3701 = vmul.f32 %v3669, %v3697
      %v3702 = vmul.f32 %v3670, %v3698
      %v3703 = vmul.f32 %v3671, %v3699
      %v3704 = vmul.f32 %v3672, %v3700
      %v3706 = vlaneseq
      %v3707 = vshrl.u32 %v3706, 7
      %v3708 = vsub.s32 0, %v3707
      %v3709 = vrot.slane %v3651, %v3708
      %v3711 = vmul.f32 %v3701, %v3709
      %v3712 = vmul.f32 %v3702, %v3709
      %v3713 = vmul.f32 %v3703, %v3709
      %v3714 = vmul.f32 %v3704, %v3709
      %v3716 = vlaneseq
      %v3717 = vshrl.u32 %v3716, 7
      %v3718 = vsub.s32 0, %v3717
      %v3719 = vrot.slane %v3652, %v3718
      %v3721 = vadd.f32 %v3711, %v3719
      %v3722 = vadd.f32 %v3712, %v3719
      %v3723 = vadd.f32 %v3713, %v3719
      %v3724 = vadd.f32 %v3714, %v3719
      %3725 = vst.msk [vmem:[%s703] sm:$0xff] %vm781, %v3721
      %3726 = vst.msk [vmem:[%s703 + $0x8] sm:$0xff] %vm781, %v3722
      %3727 = vst.msk [vmem:[%s703 + $0x10] sm:$0xff] %vm781, %v3723
      %3728 = vst.msk [vmem:[%s703 + $0x18] sm:$0xff] %vm781, %v3724
      %p3729 = scmp.lt.s32.totalorder %s33, 1
      %s3730 = scalar_select %p3729, %s33, 1
      %s3731 = smul.addr %s3730, 4
      %s3732 = smul.addr %s3731, 8
      %s3733 = scalar_lea.vmem %s22, %s3732
      // Predicated region
      $region109: #{wave_transformer_forward.2} parent=107 // pred_check
        %p3734 = pneg %p523
      $region110: #{wave_transformer_forward.2} parent=107 // pred_check_branch
        %3736 = sbr.rel (%p3734) target = $region112
      $region111: #{wave_transformer_forward.2} parent=107 // pred_region
        _
      $region112: #{wave_transformer_forward.2} parent=107 // pred_fallthru
        _
    $region108: #{wave_transformer_forward.2} parent=5 // pred_fallthru
      _
    %p3737 = scmp.le.s32.totalorder 2, %s28
    // Predicated region
    $region113: #{wave_transformer_forward.2} parent=5 // pred_check
      %p3738 = pneg %p3737
    $region114: #{wave_transformer_forward.2} parent=5 // pred_check_branch
      %3740 = sbr.rel (%p3738) target = $region116
    $region115: #{wave_transformer_forward.2} parent=5 // pred_region
      %s3741 = ssub.s32 %s28, 2
      // Predicated region
      $region117: #{wave_transformer_forward.2} parent=115 // pred_check
        %p3742 = pneg %p529
      $region118: #{wave_transformer_forward.2} parent=115 // pred_check_branch
        %3744 = sbr.rel (%p3742) target = $region120
      $region119: #{wave_transformer_forward.2} parent=115 // pred_region
        %p3745 = scmp.lt.s32.totalorder %s34, 1
        %s3746 = scalar_select %p3745, %s34, 1
        %s3747 = smul.addr %s3746, 4
        %s3748 = smul.addr %s3747, 8
        %s3749 = scalar_lea.vmem %s22, %s3748
      $region120: #{wave_transformer_forward.2} parent=115 // pred_fallthru
        _
    $region116: #{wave_transformer_forward.2} parent=5 // pred_fallthru
      _
  $region6: #{wave_transformer_forward.2} parent=0 // loop_footer
    %s32 = sadd.s32 1, %s28
  $region7: #{wave_transformer_forward.2} parent=0 // loop_footer_branch
    %27 = sbr.rel target = $region3
  $region8: #{wave_transformer_forward.2} parent=0 // loop_exit
    _

</llo_original>
